<compile_context>
chip_gen: v7x
topology: tpu7x:2x2x1
jax: 0.10.0
libtpu: 0.0.40
codegen_flags: <defaults>
</compile_context>

<pallas_src>
import functools
import math

import jax
import jax.numpy as jnp
from jax.experimental import pallas as pl
from jax.experimental.pallas import tpu as pltpu


# name,          input segments, c_out, K,  has_bn, activation
_LAYERS = [
    ("conv1",       (1,),        20,   25, True,  "leaky"),
    ("conv2",       (20,),       10,   15, True,  "leaky"),
    ("conv3",       (20, 10),    10,   15, True,  "leaky"),
    ("conv4",       (10,),       10,   15, True,  "leaky"),
    ("conv5",       (10, 10),    10,   15, True,  "leaky"),
    ("conv6",       (10,),       10,   15, True,  "leaky"),
    ("conv7",       (10, 10),     7,    5, True,  "leaky"),
    ("conv8",       (7,),         3,    5, True,  "leaky"),
    ("conv9",       (7, 3),       1,    5, True,  "leaky"),
    ("finalFilter", (1,),         1,   91, False, "softplus"),
]

_WING = 128  # zero wing on each side of the activation slab ('same' padding)


def _round_up(x, m):
    return (x + m - 1) // m * m


# ----------------------------------------------------------------------------
# Fused kernel: the whole network for one batch element per grid step.
# ----------------------------------------------------------------------------
def _fused_kernel(x_ref, *refs, L, metas):
    n_layers = len(metas)
    wb = refs[:2 * n_layers]                 # (w1, b1, ..., w10, b10)
    out_ref = refs[2 * n_layers]             # (1, 1, L)
    xpad_ref = refs[2 * n_layers + 1]        # (max_c8, L + 2*_WING) f32
    col_ref = refs[2 * n_layers + 2]         # (max_K*c8, L)        f32

    # Zero the padded activation slab once per grid step: the 128-wide zero
    # wings implement 'same' padding for every conv (max pad is 45 < 128).
    xpad_ref[...] = jnp.zeros(xpad_ref.shape, xpad_ref.dtype)

    def conv(idx, new_vals):
        """One Conv1d (+ folded BN) (+ activation).

        `new_vals` are the activations not already resident in the slab; they
        correspond to the LAST len(new_vals) input segments of this layer
        (earlier segments were written by the previous layer at the same
        rows, so torch.cat([...], dim=1) costs nothing).
        """
        segs, c8, K, act = metas[idx]
        pad = (K - 1) // 2
        w_ref, b_ref = wb[2 * idx], wb[2 * idx + 1]

        # 8-row-aligned segment offsets inside the slab.
        offs, r = [], 0
        for s in segs:
            offs.append(r)
            r += _round_up(s, 8)
        for row0, val in zip(offs[len(segs) - len(new_vals):], new_vals):
            xpad_ref[row0:row0 + val.shape[0], _WING:_WING + L] = val

        # im2col: tap-block k holds the input shifted by (k - pad); channel
        # rows are padded to c8 (pad/gap rows carry zero weights).
        xp = xpad_ref[0:c8, :]                       # (c8, L + 2*_WING)
        for k in range(K):
            off = _WING - pad + k
            col_ref[k * c8:(k + 1) * c8, :] = xp[:, off:off + L]

        # Whole conv as a single MXU matmul, f32 accumulation.
        y = jnp.dot(w_ref[...], col_ref[0:K * c8, :],
                    preferred_element_type=jnp.float32)
        y = y + b_ref[...]                           # conv bias + BN shift
        if act == "leaky":
            y = jnp.where(y >= 0.0, y, 0.01 * y)     # LeakyReLU(0.01)
        else:                                        # Softplus(beta=1, thr=20)
            y = jnp.where(y > 20.0, y,
                          jnp.log1p(jnp.exp(jnp.minimum(y, 20.0))))
        return y

    x = x_ref[0]                                     # (1, L)
    a1 = conv(0, [x])                                # conv1
    a2 = conv(1, [a1])                               # conv2
    a3 = conv(2, [a2])                               # conv3(cat[x01, x2])
    a4 = conv(3, [a3])                               # conv4
    a5 = conv(4, [a4])                               # conv5(cat[x3, x4])
    a6 = conv(5, [a5])                               # conv6
    a7 = conv(6, [a6])                               # conv7(cat[x5, x6])
    a8 = conv(7, [a7])                               # conv8
    a9 = conv(8, [a8])                               # conv9(cat[x7, x8])
    y = conv(9, [a9])                                # finalFilter + softplus
    out_ref[0] = y                                   # -> x.view(N, L)


# ----------------------------------------------------------------------------
# Wrapper: BN folding + im2col weight layout, then one pallas_call.
# ----------------------------------------------------------------------------
def _prep_layer(w, b, bn, segs):
    """Fold eval-mode BN into (w, b) and lay w out as (C_out, K*C8)."""
    c_out, c_in, K = w.shape
    assert sum(segs) == c_in
    if bn is not None:
        gamma, beta, mean, var = bn
        scale = gamma / jnp.sqrt(var + 1e-5)
        w = w * scale[:, None, None]
        b = beta + scale * (b - mean)
    # Pad each concat segment of the channel axis to a multiple of 8 so every
    # store in the kernel is sublane-tile aligned; pad rows get zero weights.
    pieces, start = [], 0
    for s in segs:
        piece = w[:, start:start + s, :]                           # (c_out,s,K)
        piece = jnp.pad(piece, ((0, 0), (0, _round_up(s, 8) - s), (0, 0)))
        pieces.append(piece)
        start += s
    w = jnp.concatenate(pieces, axis=1)                            # (c_out,c8,K)
    c8 = w.shape[1]
    w_mat = jnp.transpose(w, (0, 2, 1)).reshape(c_out, K * c8)     # (c_out,K*c8)
    return (w_mat.astype(jnp.float32),
            jnp.reshape(b, (c_out, 1)).astype(jnp.float32))


def prepare_params(params):
    flat = []
    for name, segs, _c_out, _k, _has_bn, _act in _LAYERS:
        w, b, bn = params[name]
        flat.extend(_prep_layer(w, b, bn, segs))
    return tuple(flat)


def forward(x, prepped):
    N, c_in0, L = x.shape
    assert c_in0 == 1 and L % 128 == 0

    metas = []
    for _name, segs, _c_out, K, _bn, act in _LAYERS:
        c8 = sum(_round_up(s, 8) for s in segs)
        metas.append((segs, c8, K, act))
    metas = tuple(metas)
    max_c8 = max(m[1] for m in metas)                 # 40
    max_kc8 = max(m[1] * m[2] for m in metas)         # 728 (finalFilter)

    kernel = functools.partial(_fused_kernel, L=L, metas=metas)

    in_specs = [pl.BlockSpec((1, 1, L), lambda n: (n, 0, 0))]
    in_specs += [pl.BlockSpec(p.shape, lambda n: (0, 0)) for p in prepped]

    out = pl.pallas_call(
        kernel,
        out_shape=jax.ShapeDtypeStruct((N, 1, L), jnp.float32),
        grid=(N,),
        in_specs=in_specs,
        out_specs=pl.BlockSpec((1, 1, L), lambda n: (n, 0, 0)),
        scratch_shapes=[
            pltpu.VMEM((max_c8, L + 2 * _WING), jnp.float32),  # padded act slab
            pltpu.VMEM((max_kc8, L), jnp.float32),             # im2col taps
        ],
        compiler_params=pltpu.CompilerParams(
            dimension_semantics=("parallel",)),
    )(x, *prepped)
    return out[:, 0, :]                               # (N, L)


# ----------------------------------------------------------------------------
# Deterministic parameter init (shapes from the module's __init__)
# ----------------------------------------------------------------------------
def init_params(key):
    params = {}
    for name, segs, c_out, k, has_bn, _act in _LAYERS:
        c_in = sum(segs)
        key, kw, kb, k1, k2, k3, k4 = jax.random.split(key, 7)
        bound = 1.0 / math.sqrt(c_in * k)
        w = jax.random.uniform(kw, (c_out, c_in, k), jnp.float32, -bound, bound)
        b = jax.random.uniform(kb, (c_out,), jnp.float32, -bound, bound)
        if has_bn:
            gamma = jax.random.uniform(k1, (c_out,), jnp.float32, 0.8, 1.2)
            beta = 0.1 * jax.random.normal(k2, (c_out,), jnp.float32)
            mean = 0.1 * jax.random.normal(k3, (c_out,), jnp.float32)
            var = jax.random.uniform(k4, (c_out,), jnp.float32, 0.5, 1.5)
            bn = (gamma, beta, mean, var)
        else:
            bn = None
        params[name] = (w, b, bn)
    return params


if __name__ == "__main__":
    key = jax.random.PRNGKey(0)
    key, kx = jax.random.split(key)

    N, L = 2, 256                                     # small synthetic shapes
    x = jax.random.normal(kx, (N, 1, L), jnp.float32)

    params = init_params(key)
    prepped = prepare_params(params)                  # BN folding + weight layout

    y = jax.jit(forward)(x, prepped)
    y = jax.block_until_ready(y)
    assert y.shape == (N, L), y.shape
    assert bool(jnp.all(jnp.isfinite(y))) and bool(jnp.all(y >= 0.0))
    print("KERNEL_OK")
</pallas_src>

<mosaic_0001>
module attributes {stable_mosaic.version = 11 : i64} {
  func.func @_fused_kernel(%arg0: i32, %arg1: memref<1x1x256xf32, #tpu.memory_space<vmem>>, %arg2: memref<20x200xf32, #tpu.memory_space<vmem>>, %arg3: memref<20x1xf32, #tpu.memory_space<vmem>>, %arg4: memref<10x360xf32, #tpu.memory_space<vmem>>, %arg5: memref<10x1xf32, #tpu.memory_space<vmem>>, %arg6: memref<10x600xf32, #tpu.memory_space<vmem>>, %arg7: memref<10x1xf32, #tpu.memory_space<vmem>>, %arg8: memref<10x240xf32, #tpu.memory_space<vmem>>, %arg9: memref<10x1xf32, #tpu.memory_space<vmem>>, %arg10: memref<10x480xf32, #tpu.memory_space<vmem>>, %arg11: memref<10x1xf32, #tpu.memory_space<vmem>>, %arg12: memref<10x240xf32, #tpu.memory_space<vmem>>, %arg13: memref<10x1xf32, #tpu.memory_space<vmem>>, %arg14: memref<7x160xf32, #tpu.memory_space<vmem>>, %arg15: memref<7x1xf32, #tpu.memory_space<vmem>>, %arg16: memref<3x40xf32, #tpu.memory_space<vmem>>, %arg17: memref<3x1xf32, #tpu.memory_space<vmem>>, %arg18: memref<1x80xf32, #tpu.memory_space<vmem>>, %arg19: memref<1x1xf32, #tpu.memory_space<vmem>>, %arg20: memref<1x728xf32, #tpu.memory_space<vmem>>, %arg21: memref<1x1xf32, #tpu.memory_space<vmem>>, %arg22: memref<1x1x256xf32, #tpu.memory_space<vmem>>, %arg23: memref<40x512xf32, #tpu.memory_space<vmem>>, %arg24: memref<728x256xf32, #tpu.memory_space<vmem>>) attributes {dimension_semantics = [#tpu.dimension_semantics<parallel>], iteration_bounds = array<i64: 2>, scalar_prefetch = 0 : i64, scratch_operands = 2 : i64, tpu.core_type = #tpu.core_type<tc>, window_params = [{transform_indices = @transform_0, window_bounds = array<i64: 1, 1, 256>}, {pipeline_mode = #tpu.pipeline_mode<synchronous>, transform_indices = @transform_1, window_bounds = array<i64: 20, 200>}, {pipeline_mode = #tpu.pipeline_mode<synchronous>, transform_indices = @transform_2, window_bounds = array<i64: 20, 1>}, {pipeline_mode = #tpu.pipeline_mode<synchronous>, transform_indices = @transform_3, window_bounds = array<i64: 10, 360>}, {pipeline_mode = #tpu.pipeline_mode<synchronous>, transform_indices = @transform_4, window_bounds = array<i64: 10, 1>}, {pipeline_mode = #tpu.pipeline_mode<synchronous>, transform_indices = @transform_5, window_bounds = array<i64: 10, 600>}, {pipeline_mode = #tpu.pipeline_mode<synchronous>, transform_indices = @transform_6, window_bounds = array<i64: 10, 1>}, {pipeline_mode = #tpu.pipeline_mode<synchronous>, transform_indices = @transform_7, window_bounds = array<i64: 10, 240>}, {pipeline_mode = #tpu.pipeline_mode<synchronous>, transform_indices = @transform_8, window_bounds = array<i64: 10, 1>}, {pipeline_mode = #tpu.pipeline_mode<synchronous>, transform_indices = @transform_9, window_bounds = array<i64: 10, 480>}, {pipeline_mode = #tpu.pipeline_mode<synchronous>, transform_indices = @transform_10, window_bounds = array<i64: 10, 1>}, {pipeline_mode = #tpu.pipeline_mode<synchronous>, transform_indices = @transform_11, window_bounds = array<i64: 10, 240>}, {pipeline_mode = #tpu.pipeline_mode<synchronous>, transform_indices = @transform_12, window_bounds = array<i64: 10, 1>}, {pipeline_mode = #tpu.pipeline_mode<synchronous>, transform_indices = @transform_13, window_bounds = array<i64: 7, 160>}, {pipeline_mode = #tpu.pipeline_mode<synchronous>, transform_indices = @transform_14, window_bounds = array<i64: 7, 1>}, {pipeline_mode = #tpu.pipeline_mode<synchronous>, transform_indices = @transform_15, window_bounds = array<i64: 3, 40>}, {pipeline_mode = #tpu.pipeline_mode<synchronous>, transform_indices = @transform_16, window_bounds = array<i64: 3, 1>}, {pipeline_mode = #tpu.pipeline_mode<synchronous>, transform_indices = @transform_17, window_bounds = array<i64: 1, 80>}, {pipeline_mode = #tpu.pipeline_mode<synchronous>, transform_indices = @transform_18, window_bounds = array<i64: 1, 1>}, {pipeline_mode = #tpu.pipeline_mode<synchronous>, transform_indices = @transform_19, window_bounds = array<i64: 1, 728>}, {pipeline_mode = #tpu.pipeline_mode<synchronous>, transform_indices = @transform_20, window_bounds = array<i64: 1, 1>}, {transform_indices = @transform_21, window_bounds = array<i64: 1, 1, 256>}]} {
    %cst = arith.constant 0.000000e+00 : f32
    %0 = vector.broadcast %cst : f32 to vector<40x512xf32>
    %c0 = arith.constant 0 : index
    %c0_0 = arith.constant 0 : index
    %1 = vector.load %arg23[%c0, %c0_0] : memref<40x512xf32, #tpu.memory_space<vmem>>, vector<40x512xf32>
    tpu.vector_store %arg23[%c0, %c0_0], %0 {strides = array<i32>} : memref<40x512xf32, #tpu.memory_space<vmem>>, vector<40x512xf32>,
    %c0_1 = arith.constant 0 : index
    %c0_2 = arith.constant 0 : index
    %c0_3 = arith.constant 0 : index
    %2 = vector.load %arg1[%c0_1, %c0_2, %c0_3] : memref<1x1x256xf32, #tpu.memory_space<vmem>>, vector<1x1x256xf32>
    %3 = vector.shape_cast %2 : vector<1x1x256xf32> to vector<1x256xf32>
    %c0_4 = arith.constant 0 : index
    %c128 = arith.constant 128 : index
    %4 = vector.load %arg23[%c0_4, %c128] : memref<40x512xf32, #tpu.memory_space<vmem>>, vector<1x256xf32>
    tpu.vector_store %arg23[%c0_4, %c128], %3 {strides = array<i32>} : memref<40x512xf32, #tpu.memory_space<vmem>>, vector<1x256xf32>,
    %c0_5 = arith.constant 0 : index
    %c0_6 = arith.constant 0 : index
    %5 = vector.load %arg23[%c0_5, %c0_6] : memref<40x512xf32, #tpu.memory_space<vmem>>, vector<8x512xf32>
    %6 = vector.extract_strided_slice %5 {offsets = [0, 116], sizes = [8, 256], strides = [1, 1]} : vector<8x512xf32> to vector<8x256xf32>
    %c0_7 = arith.constant 0 : index
    %c0_8 = arith.constant 0 : index
    %7 = vector.load %arg24[%c0_7, %c0_8] : memref<728x256xf32, #tpu.memory_space<vmem>>, vector<8x256xf32>
    tpu.vector_store %arg24[%c0_7, %c0_8], %6 {strides = array<i32>} : memref<728x256xf32, #tpu.memory_space<vmem>>, vector<8x256xf32>,
    %8 = vector.extract_strided_slice %5 {offsets = [0, 117], sizes = [8, 256], strides = [1, 1]} : vector<8x512xf32> to vector<8x256xf32>
    %c8 = arith.constant 8 : index
    %c0_9 = arith.constant 0 : index
    %9 = vector.load %arg24[%c8, %c0_9] : memref<728x256xf32, #tpu.memory_space<vmem>>, vector<8x256xf32>
    tpu.vector_store %arg24[%c8, %c0_9], %8 {strides = array<i32>} : memref<728x256xf32, #tpu.memory_space<vmem>>, vector<8x256xf32>,
    %10 = vector.extract_strided_slice %5 {offsets = [0, 118], sizes = [8, 256], strides = [1, 1]} : vector<8x512xf32> to vector<8x256xf32>
    %c16 = arith.constant 16 : index
    %c0_10 = arith.constant 0 : index
    %11 = vector.load %arg24[%c16, %c0_10] : memref<728x256xf32, #tpu.memory_space<vmem>>, vector<8x256xf32>
    tpu.vector_store %arg24[%c16, %c0_10], %10 {strides = array<i32>} : memref<728x256xf32, #tpu.memory_space<vmem>>, vector<8x256xf32>,
    %12 = vector.extract_strided_slice %5 {offsets = [0, 119], sizes = [8, 256], strides = [1, 1]} : vector<8x512xf32> to vector<8x256xf32>
    %c24 = arith.constant 24 : index
    %c0_11 = arith.constant 0 : index
    %13 = vector.load %arg24[%c24, %c0_11] : memref<728x256xf32, #tpu.memory_space<vmem>>, vector<8x256xf32>
    tpu.vector_store %arg24[%c24, %c0_11], %12 {strides = array<i32>} : memref<728x256xf32, #tpu.memory_space<vmem>>, vector<8x256xf32>,
    %14 = vector.extract_strided_slice %5 {offsets = [0, 120], sizes = [8, 256], strides = [1, 1]} : vector<8x512xf32> to vector<8x256xf32>
    %c32 = arith.constant 32 : index
    %c0_12 = arith.constant 0 : index
    %15 = vector.load %arg24[%c32, %c0_12] : memref<728x256xf32, #tpu.memory_space<vmem>>, vector<8x256xf32>
    tpu.vector_store %arg24[%c32, %c0_12], %14 {strides = array<i32>} : memref<728x256xf32, #tpu.memory_space<vmem>>, vector<8x256xf32>,
    %16 = vector.extract_strided_slice %5 {offsets = [0, 121], sizes = [8, 256], strides = [1, 1]} : vector<8x512xf32> to vector<8x256xf32>
    %c40 = arith.constant 40 : index
    %c0_13 = arith.constant 0 : index
    %17 = vector.load %arg24[%c40, %c0_13] : memref<728x256xf32, #tpu.memory_space<vmem>>, vector<8x256xf32>
    tpu.vector_store %arg24[%c40, %c0_13], %16 {strides = array<i32>} : memref<728x256xf32, #tpu.memory_space<vmem>>, vector<8x256xf32>,
    %18 = vector.extract_strided_slice %5 {offsets = [0, 122], sizes = [8, 256], strides = [1, 1]} : vector<8x512xf32> to vector<8x256xf32>
    %c48 = arith.constant 48 : index
    %c0_14 = arith.constant 0 : index
    %19 = vector.load %arg24[%c48, %c0_14] : memref<728x256xf32, #tpu.memory_space<vmem>>, vector<8x256xf32>
    tpu.vector_store %arg24[%c48, %c0_14], %18 {strides = array<i32>} : memref<728x256xf32, #tpu.memory_space<vmem>>, vector<8x256xf32>,
    %20 = vector.extract_strided_slice %5 {offsets = [0, 123], sizes = [8, 256], strides = [1, 1]} : vector<8x512xf32> to vector<8x256xf32>
    %c56 = arith.constant 56 : index
    %c0_15 = arith.constant 0 : index
    %21 = vector.load %arg24[%c56, %c0_15] : memref<728x256xf32, #tpu.memory_space<vmem>>, vector<8x256xf32>
    tpu.vector_store %arg24[%c56, %c0_15], %20 {strides = array<i32>} : memref<728x256xf32, #tpu.memory_space<vmem>>, vector<8x256xf32>,
    %22 = vector.extract_strided_slice %5 {offsets = [0, 124], sizes = [8, 256], strides = [1, 1]} : vector<8x512xf32> to vector<8x256xf32>
    %c64 = arith.constant 64 : index
    %c0_16 = arith.constant 0 : index
    %23 = vector.load %arg24[%c64, %c0_16] : memref<728x256xf32, #tpu.memory_space<vmem>>, vector<8x256xf32>
    tpu.vector_store %arg24[%c64, %c0_16], %22 {strides = array<i32>} : memref<728x256xf32, #tpu.memory_space<vmem>>, vector<8x256xf32>,
    %24 = vector.extract_strided_slice %5 {offsets = [0, 125], sizes = [8, 256], strides = [1, 1]} : vector<8x512xf32> to vector<8x256xf32>
    %c72 = arith.constant 72 : index
    %c0_17 = arith.constant 0 : index
    %25 = vector.load %arg24[%c72, %c0_17] : memref<728x256xf32, #tpu.memory_space<vmem>>, vector<8x256xf32>
    tpu.vector_store %arg24[%c72, %c0_17], %24 {strides = array<i32>} : memref<728x256xf32, #tpu.memory_space<vmem>>, vector<8x256xf32>,
    %26 = vector.extract_strided_slice %5 {offsets = [0, 126], sizes = [8, 256], strides = [1, 1]} : vector<8x512xf32> to vector<8x256xf32>
    %c80 = arith.constant 80 : index
    %c0_18 = arith.constant 0 : index
    %27 = vector.load %arg24[%c80, %c0_18] : memref<728x256xf32, #tpu.memory_space<vmem>>, vector<8x256xf32>
    tpu.vector_store %arg24[%c80, %c0_18], %26 {strides = array<i32>} : memref<728x256xf32, #tpu.memory_space<vmem>>, vector<8x256xf32>,
    %28 = vector.extract_strided_slice %5 {offsets = [0, 127], sizes = [8, 256], strides = [1, 1]} : vector<8x512xf32> to vector<8x256xf32>
    %c88 = arith.constant 88 : index
    %c0_19 = arith.constant 0 : index
    %29 = vector.load %arg24[%c88, %c0_19] : memref<728x256xf32, #tpu.memory_space<vmem>>, vector<8x256xf32>
    tpu.vector_store %arg24[%c88, %c0_19], %28 {strides = array<i32>} : memref<728x256xf32, #tpu.memory_space<vmem>>, vector<8x256xf32>,
    %30 = vector.extract_strided_slice %5 {offsets = [0, 128], sizes = [8, 256], strides = [1, 1]} : vector<8x512xf32> to vector<8x256xf32>
    %c96 = arith.constant 96 : index
    %c0_20 = arith.constant 0 : index
    %31 = vector.load %arg24[%c96, %c0_20] : memref<728x256xf32, #tpu.memory_space<vmem>>, vector<8x256xf32>
    tpu.vector_store %arg24[%c96, %c0_20], %30 {strides = array<i32>} : memref<728x256xf32, #tpu.memory_space<vmem>>, vector<8x256xf32>,
    %32 = vector.extract_strided_slice %5 {offsets = [0, 129], sizes = [8, 256], strides = [1, 1]} : vector<8x512xf32> to vector<8x256xf32>
    %c104 = arith.constant 104 : index
    %c0_21 = arith.constant 0 : index
    %33 = vector.load %arg24[%c104, %c0_21] : memref<728x256xf32, #tpu.memory_space<vmem>>, vector<8x256xf32>
    tpu.vector_store %arg24[%c104, %c0_21], %32 {strides = array<i32>} : memref<728x256xf32, #tpu.memory_space<vmem>>, vector<8x256xf32>,
    %34 = vector.extract_strided_slice %5 {offsets = [0, 130], sizes = [8, 256], strides = [1, 1]} : vector<8x512xf32> to vector<8x256xf32>
    %c112 = arith.constant 112 : index
    %c0_22 = arith.constant 0 : index
    %35 = vector.load %arg24[%c112, %c0_22] : memref<728x256xf32, #tpu.memory_space<vmem>>, vector<8x256xf32>
    tpu.vector_store %arg24[%c112, %c0_22], %34 {strides = array<i32>} : memref<728x256xf32, #tpu.memory_space<vmem>>, vector<8x256xf32>,
    %36 = vector.extract_strided_slice %5 {offsets = [0, 131], sizes = [8, 256], strides = [1, 1]} : vector<8x512xf32> to vector<8x256xf32>
    %c120 = arith.constant 120 : index
    %c0_23 = arith.constant 0 : index
    %37 = vector.load %arg24[%c120, %c0_23] : memref<728x256xf32, #tpu.memory_space<vmem>>, vector<8x256xf32>
    tpu.vector_store %arg24[%c120, %c0_23], %36 {strides = array<i32>} : memref<728x256xf32, #tpu.memory_space<vmem>>, vector<8x256xf32>,
    %38 = vector.extract_strided_slice %5 {offsets = [0, 132], sizes = [8, 256], strides = [1, 1]} : vector<8x512xf32> to vector<8x256xf32>
    %c128_24 = arith.constant 128 : index
    %c0_25 = arith.constant 0 : index
    %39 = vector.load %arg24[%c128_24, %c0_25] : memref<728x256xf32, #tpu.memory_space<vmem>>, vector<8x256xf32>
    tpu.vector_store %arg24[%c128_24, %c0_25], %38 {strides = array<i32>} : memref<728x256xf32, #tpu.memory_space<vmem>>, vector<8x256xf32>,
    %40 = vector.extract_strided_slice %5 {offsets = [0, 133], sizes = [8, 256], strides = [1, 1]} : vector<8x512xf32> to vector<8x256xf32>
    %c136 = arith.constant 136 : index
    %c0_26 = arith.constant 0 : index
    %41 = vector.load %arg24[%c136, %c0_26] : memref<728x256xf32, #tpu.memory_space<vmem>>, vector<8x256xf32>
    tpu.vector_store %arg24[%c136, %c0_26], %40 {strides = array<i32>} : memref<728x256xf32, #tpu.memory_space<vmem>>, vector<8x256xf32>,
    %42 = vector.extract_strided_slice %5 {offsets = [0, 134], sizes = [8, 256], strides = [1, 1]} : vector<8x512xf32> to vector<8x256xf32>
    %c144 = arith.constant 144 : index
    %c0_27 = arith.constant 0 : index
    %43 = vector.load %arg24[%c144, %c0_27] : memref<728x256xf32, #tpu.memory_space<vmem>>, vector<8x256xf32>
    tpu.vector_store %arg24[%c144, %c0_27], %42 {strides = array<i32>} : memref<728x256xf32, #tpu.memory_space<vmem>>, vector<8x256xf32>,
    %44 = vector.extract_strided_slice %5 {offsets = [0, 135], sizes = [8, 256], strides = [1, 1]} : vector<8x512xf32> to vector<8x256xf32>
    %c152 = arith.constant 152 : index
    %c0_28 = arith.constant 0 : index
    %45 = vector.load %arg24[%c152, %c0_28] : memref<728x256xf32, #tpu.memory_space<vmem>>, vector<8x256xf32>
    tpu.vector_store %arg24[%c152, %c0_28], %44 {strides = array<i32>} : memref<728x256xf32, #tpu.memory_space<vmem>>, vector<8x256xf32>,
    %46 = vector.extract_strided_slice %5 {offsets = [0, 136], sizes = [8, 256], strides = [1, 1]} : vector<8x512xf32> to vector<8x256xf32>
    %c160 = arith.constant 160 : index
    %c0_29 = arith.constant 0 : index
    %47 = vector.load %arg24[%c160, %c0_29] : memref<728x256xf32, #tpu.memory_space<vmem>>, vector<8x256xf32>
    tpu.vector_store %arg24[%c160, %c0_29], %46 {strides = array<i32>} : memref<728x256xf32, #tpu.memory_space<vmem>>, vector<8x256xf32>,
    %48 = vector.extract_strided_slice %5 {offsets = [0, 137], sizes = [8, 256], strides = [1, 1]} : vector<8x512xf32> to vector<8x256xf32>
    %c168 = arith.constant 168 : index
    %c0_30 = arith.constant 0 : index
    %49 = vector.load %arg24[%c168, %c0_30] : memref<728x256xf32, #tpu.memory_space<vmem>>, vector<8x256xf32>
    tpu.vector_store %arg24[%c168, %c0_30], %48 {strides = array<i32>} : memref<728x256xf32, #tpu.memory_space<vmem>>, vector<8x256xf32>,
    %50 = vector.extract_strided_slice %5 {offsets = [0, 138], sizes = [8, 256], strides = [1, 1]} : vector<8x512xf32> to vector<8x256xf32>
    %c176 = arith.constant 176 : index
    %c0_31 = arith.constant 0 : index
    %51 = vector.load %arg24[%c176, %c0_31] : memref<728x256xf32, #tpu.memory_space<vmem>>, vector<8x256xf32>
    tpu.vector_store %arg24[%c176, %c0_31], %50 {strides = array<i32>} : memref<728x256xf32, #tpu.memory_space<vmem>>, vector<8x256xf32>,
    %52 = vector.extract_strided_slice %5 {offsets = [0, 139], sizes = [8, 256], strides = [1, 1]} : vector<8x512xf32> to vector<8x256xf32>
    %c184 = arith.constant 184 : index
    %c0_32 = arith.constant 0 : index
    %53 = vector.load %arg24[%c184, %c0_32] : memref<728x256xf32, #tpu.memory_space<vmem>>, vector<8x256xf32>
    tpu.vector_store %arg24[%c184, %c0_32], %52 {strides = array<i32>} : memref<728x256xf32, #tpu.memory_space<vmem>>, vector<8x256xf32>,
    %54 = vector.extract_strided_slice %5 {offsets = [0, 140], sizes = [8, 256], strides = [1, 1]} : vector<8x512xf32> to vector<8x256xf32>
    %c192 = arith.constant 192 : index
    %c0_33 = arith.constant 0 : index
    %55 = vector.load %arg24[%c192, %c0_33] : memref<728x256xf32, #tpu.memory_space<vmem>>, vector<8x256xf32>
    tpu.vector_store %arg24[%c192, %c0_33], %54 {strides = array<i32>} : memref<728x256xf32, #tpu.memory_space<vmem>>, vector<8x256xf32>,
    %c0_34 = arith.constant 0 : index
    %c0_35 = arith.constant 0 : index
    %56 = vector.load %arg2[%c0_34, %c0_35] : memref<20x200xf32, #tpu.memory_space<vmem>>, vector<20x200xf32>
    %c0_36 = arith.constant 0 : index
    %c0_37 = arith.constant 0 : index
    %57 = vector.load %arg24[%c0_36, %c0_37] : memref<728x256xf32, #tpu.memory_space<vmem>>, vector<200x256xf32>
    %cst_38 = arith.constant dense<0.000000e+00> : vector<20x256xf32>
    %58 = tpu.matmul %56, %57, %cst_38 {dimension_numbers = #tpu.dot_dimension_numbers<[1], [0], [0], [1], [0, 0, 1, 1], [], []>} : vector<20x200xf32>, vector<200x256xf32>, vector<20x256xf32> -> vector<20x256xf32>
    %c0_39 = arith.constant 0 : index
    %c0_40 = arith.constant 0 : index
    %59 = vector.load %arg3[%c0_39, %c0_40] : memref<20x1xf32, #tpu.memory_space<vmem>>, vector<20x1xf32>
    %60 = vector.broadcast %59 : vector<20x1xf32> to vector<20x256xf32>
    %61 = arith.addf %58, %60 : vector<20x256xf32>
    %cst_41 = arith.constant 0.000000e+00 : f32
    %62 = vector.broadcast %cst_41 : f32 to vector<20x256xf32>
    %63 = arith.cmpf oge, %61, %62 : vector<20x256xf32>
    %cst_42 = arith.constant 0.00999999977 : f32
    %64 = vector.broadcast %cst_42 : f32 to vector<20x256xf32>
    %65 = arith.mulf %64, %61 : vector<20x256xf32>
    %66 = arith.select %63, %61, %65 : vector<20x256xi1>, vector<20x256xf32>
    %c0_43 = arith.constant 0 : index
    %c128_44 = arith.constant 128 : index
    %67 = vector.load %arg23[%c0_43, %c128_44] : memref<40x512xf32, #tpu.memory_space<vmem>>, vector<20x256xf32>
    tpu.vector_store %arg23[%c0_43, %c128_44], %66 {strides = array<i32>} : memref<40x512xf32, #tpu.memory_space<vmem>>, vector<20x256xf32>,
    %c0_45 = arith.constant 0 : index
    %c0_46 = arith.constant 0 : index
    %68 = vector.load %arg23[%c0_45, %c0_46] : memref<40x512xf32, #tpu.memory_space<vmem>>, vector<24x512xf32>
    %69 = vector.extract_strided_slice %68 {offsets = [0, 121], sizes = [24, 256], strides = [1, 1]} : vector<24x512xf32> to vector<24x256xf32>
    %c0_47 = arith.constant 0 : index
    %c0_48 = arith.constant 0 : index
    %70 = vector.load %arg24[%c0_47, %c0_48] : memref<728x256xf32, #tpu.memory_space<vmem>>, vector<24x256xf32>
    tpu.vector_store %arg24[%c0_47, %c0_48], %69 {strides = array<i32>} : memref<728x256xf32, #tpu.memory_space<vmem>>, vector<24x256xf32>,
    %71 = vector.extract_strided_slice %68 {offsets = [0, 122], sizes = [24, 256], strides = [1, 1]} : vector<24x512xf32> to vector<24x256xf32>
    %c24_49 = arith.constant 24 : index
    %c0_50 = arith.constant 0 : index
    %72 = vector.load %arg24[%c24_49, %c0_50] : memref<728x256xf32, #tpu.memory_space<vmem>>, vector<24x256xf32>
    tpu.vector_store %arg24[%c24_49, %c0_50], %71 {strides = array<i32>} : memref<728x256xf32, #tpu.memory_space<vmem>>, vector<24x256xf32>,
    %73 = vector.extract_strided_slice %68 {offsets = [0, 123], sizes = [24, 256], strides = [1, 1]} : vector<24x512xf32> to vector<24x256xf32>
    %c48_51 = arith.constant 48 : index
    %c0_52 = arith.constant 0 : index
    %74 = vector.load %arg24[%c48_51, %c0_52] : memref<728x256xf32, #tpu.memory_space<vmem>>, vector<24x256xf32>
    tpu.vector_store %arg24[%c48_51, %c0_52], %73 {strides = array<i32>} : memref<728x256xf32, #tpu.memory_space<vmem>>, vector<24x256xf32>,
    %75 = vector.extract_strided_slice %68 {offsets = [0, 124], sizes = [24, 256], strides = [1, 1]} : vector<24x512xf32> to vector<24x256xf32>
    %c72_53 = arith.constant 72 : index
    %c0_54 = arith.constant 0 : index
    %76 = vector.load %arg24[%c72_53, %c0_54] : memref<728x256xf32, #tpu.memory_space<vmem>>, vector<24x256xf32>
    tpu.vector_store %arg24[%c72_53, %c0_54], %75 {strides = array<i32>} : memref<728x256xf32, #tpu.memory_space<vmem>>, vector<24x256xf32>,
    %77 = vector.extract_strided_slice %68 {offsets = [0, 125], sizes = [24, 256], strides = [1, 1]} : vector<24x512xf32> to vector<24x256xf32>
    %c96_55 = arith.constant 96 : index
    %c0_56 = arith.constant 0 : index
    %78 = vector.load %arg24[%c96_55, %c0_56] : memref<728x256xf32, #tpu.memory_space<vmem>>, vector<24x256xf32>
    tpu.vector_store %arg24[%c96_55, %c0_56], %77 {strides = array<i32>} : memref<728x256xf32, #tpu.memory_space<vmem>>, vector<24x256xf32>,
    %79 = vector.extract_strided_slice %68 {offsets = [0, 126], sizes = [24, 256], strides = [1, 1]} : vector<24x512xf32> to vector<24x256xf32>
    %c120_57 = arith.constant 120 : index
    %c0_58 = arith.constant 0 : index
    %80 = vector.load %arg24[%c120_57, %c0_58] : memref<728x256xf32, #tpu.memory_space<vmem>>, vector<24x256xf32>
    tpu.vector_store %arg24[%c120_57, %c0_58], %79 {strides = array<i32>} : memref<728x256xf32, #tpu.memory_space<vmem>>, vector<24x256xf32>,
    %81 = vector.extract_strided_slice %68 {offsets = [0, 127], sizes = [24, 256], strides = [1, 1]} : vector<24x512xf32> to vector<24x256xf32>
    %c144_59 = arith.constant 144 : index
    %c0_60 = arith.constant 0 : index
    %82 = vector.load %arg24[%c144_59, %c0_60] : memref<728x256xf32, #tpu.memory_space<vmem>>, vector<24x256xf32>
    tpu.vector_store %arg24[%c144_59, %c0_60], %81 {strides = array<i32>} : memref<728x256xf32, #tpu.memory_space<vmem>>, vector<24x256xf32>,
    %83 = vector.extract_strided_slice %68 {offsets = [0, 128], sizes = [24, 256], strides = [1, 1]} : vector<24x512xf32> to vector<24x256xf32>
    %c168_61 = arith.constant 168 : index
    %c0_62 = arith.constant 0 : index
    %84 = vector.load %arg24[%c168_61, %c0_62] : memref<728x256xf32, #tpu.memory_space<vmem>>, vector<24x256xf32>
    tpu.vector_store %arg24[%c168_61, %c0_62], %83 {strides = array<i32>} : memref<728x256xf32, #tpu.memory_space<vmem>>, vector<24x256xf32>,
    %85 = vector.extract_strided_slice %68 {offsets = [0, 129], sizes = [24, 256], strides = [1, 1]} : vector<24x512xf32> to vector<24x256xf32>
    %c192_63 = arith.constant 192 : index
    %c0_64 = arith.constant 0 : index
    %86 = vector.load %arg24[%c192_63, %c0_64] : memref<728x256xf32, #tpu.memory_space<vmem>>, vector<24x256xf32>
    tpu.vector_store %arg24[%c192_63, %c0_64], %85 {strides = array<i32>} : memref<728x256xf32, #tpu.memory_space<vmem>>, vector<24x256xf32>,
    %87 = vector.extract_strided_slice %68 {offsets = [0, 130], sizes = [24, 256], strides = [1, 1]} : vector<24x512xf32> to vector<24x256xf32>
    %c216 = arith.constant 216 : index
    %c0_65 = arith.constant 0 : index
    %88 = vector.load %arg24[%c216, %c0_65] : memref<728x256xf32, #tpu.memory_space<vmem>>, vector<24x256xf32>
    tpu.vector_store %arg24[%c216, %c0_65], %87 {strides = array<i32>} : memref<728x256xf32, #tpu.memory_space<vmem>>, vector<24x256xf32>,
    %89 = vector.extract_strided_slice %68 {offsets = [0, 131], sizes = [24, 256], strides = [1, 1]} : vector<24x512xf32> to vector<24x256xf32>
    %c240 = arith.constant 240 : index
    %c0_66 = arith.constant 0 : index
    %90 = vector.load %arg24[%c240, %c0_66] : memref<728x256xf32, #tpu.memory_space<vmem>>, vector<24x256xf32>
    tpu.vector_store %arg24[%c240, %c0_66], %89 {strides = array<i32>} : memref<728x256xf32, #tpu.memory_space<vmem>>, vector<24x256xf32>,
    %91 = vector.extract_strided_slice %68 {offsets = [0, 132], sizes = [24, 256], strides = [1, 1]} : vector<24x512xf32> to vector<24x256xf32>
    %c264 = arith.constant 264 : index
    %c0_67 = arith.constant 0 : index
    %92 = vector.load %arg24[%c264, %c0_67] : memref<728x256xf32, #tpu.memory_space<vmem>>, vector<24x256xf32>
    tpu.vector_store %arg24[%c264, %c0_67], %91 {strides = array<i32>} : memref<728x256xf32, #tpu.memory_space<vmem>>, vector<24x256xf32>,
    %93 = vector.extract_strided_slice %68 {offsets = [0, 133], sizes = [24, 256], strides = [1, 1]} : vector<24x512xf32> to vector<24x256xf32>
    %c288 = arith.constant 288 : index
    %c0_68 = arith.constant 0 : index
    %94 = vector.load %arg24[%c288, %c0_68] : memref<728x256xf32, #tpu.memory_space<vmem>>, vector<24x256xf32>
    tpu.vector_store %arg24[%c288, %c0_68], %93 {strides = array<i32>} : memref<728x256xf32, #tpu.memory_space<vmem>>, vector<24x256xf32>,
    %95 = vector.extract_strided_slice %68 {offsets = [0, 134], sizes = [24, 256], strides = [1, 1]} : vector<24x512xf32> to vector<24x256xf32>
    %c312 = arith.constant 312 : index
    %c0_69 = arith.constant 0 : index
    %96 = vector.load %arg24[%c312, %c0_69] : memref<728x256xf32, #tpu.memory_space<vmem>>, vector<24x256xf32>
    tpu.vector_store %arg24[%c312, %c0_69], %95 {strides = array<i32>} : memref<728x256xf32, #tpu.memory_space<vmem>>, vector<24x256xf32>,
    %97 = vector.extract_strided_slice %68 {offsets = [0, 135], sizes = [24, 256], strides = [1, 1]} : vector<24x512xf32> to vector<24x256xf32>
    %c336 = arith.constant 336 : index
    %c0_70 = arith.constant 0 : index
    %98 = vector.load %arg24[%c336, %c0_70] : memref<728x256xf32, #tpu.memory_space<vmem>>, vector<24x256xf32>
    tpu.vector_store %arg24[%c336, %c0_70], %97 {strides = array<i32>} : memref<728x256xf32, #tpu.memory_space<vmem>>, vector<24x256xf32>,
    %c0_71 = arith.constant 0 : index
    %c0_72 = arith.constant 0 : index
    %99 = vector.load %arg4[%c0_71, %c0_72] : memref<10x360xf32, #tpu.memory_space<vmem>>, vector<10x360xf32>
    %c0_73 = arith.constant 0 : index
    %c0_74 = arith.constant 0 : index
    %100 = vector.load %arg24[%c0_73, %c0_74] : memref<728x256xf32, #tpu.memory_space<vmem>>, vector<360x256xf32>
    %cst_75 = arith.constant dense<0.000000e+00> : vector<10x256xf32>
    %101 = tpu.matmul %99, %100, %cst_75 {dimension_numbers = #tpu.dot_dimension_numbers<[1], [0], [0], [1], [0, 0, 1, 1], [], []>} : vector<10x360xf32>, vector<360x256xf32>, vector<10x256xf32> -> vector<10x256xf32>
    %c0_76 = arith.constant 0 : index
    %c0_77 = arith.constant 0 : index
    %102 = vector.load %arg5[%c0_76, %c0_77] : memref<10x1xf32, #tpu.memory_space<vmem>>, vector<10x1xf32>
    %103 = vector.broadcast %102 : vector<10x1xf32> to vector<10x256xf32>
    %104 = arith.addf %101, %103 : vector<10x256xf32>
    %cst_78 = arith.constant 0.000000e+00 : f32
    %105 = vector.broadcast %cst_78 : f32 to vector<10x256xf32>
    %106 = arith.cmpf oge, %104, %105 : vector<10x256xf32>
    %cst_79 = arith.constant 0.00999999977 : f32
    %107 = vector.broadcast %cst_79 : f32 to vector<10x256xf32>
    %108 = arith.mulf %107, %104 : vector<10x256xf32>
    %109 = arith.select %106, %104, %108 : vector<10x256xi1>, vector<10x256xf32>
    %c24_80 = arith.constant 24 : index
    %c128_81 = arith.constant 128 : index
    %110 = vector.load %arg23[%c24_80, %c128_81] : memref<40x512xf32, #tpu.memory_space<vmem>>, vector<10x256xf32>
    tpu.vector_store %arg23[%c24_80, %c128_81], %109 {strides = array<i32>} : memref<40x512xf32, #tpu.memory_space<vmem>>, vector<10x256xf32>,
    %c0_82 = arith.constant 0 : index
    %c0_83 = arith.constant 0 : index
    %111 = vector.load %arg23[%c0_82, %c0_83] : memref<40x512xf32, #tpu.memory_space<vmem>>, vector<40x512xf32>
    %112 = vector.extract_strided_slice %111 {offsets = [0, 121], sizes = [40, 256], strides = [1, 1]} : vector<40x512xf32> to vector<40x256xf32>
    %c0_84 = arith.constant 0 : index
    %c0_85 = arith.constant 0 : index
    %113 = vector.load %arg24[%c0_84, %c0_85] : memref<728x256xf32, #tpu.memory_space<vmem>>, vector<40x256xf32>
    tpu.vector_store %arg24[%c0_84, %c0_85], %112 {strides = array<i32>} : memref<728x256xf32, #tpu.memory_space<vmem>>, vector<40x256xf32>,
    %114 = vector.extract_strided_slice %111 {offsets = [0, 122], sizes = [40, 256], strides = [1, 1]} : vector<40x512xf32> to vector<40x256xf32>
    %c40_86 = arith.constant 40 : index
    %c0_87 = arith.constant 0 : index
    %115 = vector.load %arg24[%c40_86, %c0_87] : memref<728x256xf32, #tpu.memory_space<vmem>>, vector<40x256xf32>
    tpu.vector_store %arg24[%c40_86, %c0_87], %114 {strides = array<i32>} : memref<728x256xf32, #tpu.memory_space<vmem>>, vector<40x256xf32>,
    %116 = vector.extract_strided_slice %111 {offsets = [0, 123], sizes = [40, 256], strides = [1, 1]} : vector<40x512xf32> to vector<40x256xf32>
    %c80_88 = arith.constant 80 : index
    %c0_89 = arith.constant 0 : index
    %117 = vector.load %arg24[%c80_88, %c0_89] : memref<728x256xf32, #tpu.memory_space<vmem>>, vector<40x256xf32>
    tpu.vector_store %arg24[%c80_88, %c0_89], %116 {strides = array<i32>} : memref<728x256xf32, #tpu.memory_space<vmem>>, vector<40x256xf32>,
    %118 = vector.extract_strided_slice %111 {offsets = [0, 124], sizes = [40, 256], strides = [1, 1]} : vector<40x512xf32> to vector<40x256xf32>
    %c120_90 = arith.constant 120 : index
    %c0_91 = arith.constant 0 : index
    %119 = vector.load %arg24[%c120_90, %c0_91] : memref<728x256xf32, #tpu.memory_space<vmem>>, vector<40x256xf32>
    tpu.vector_store %arg24[%c120_90, %c0_91], %118 {strides = array<i32>} : memref<728x256xf32, #tpu.memory_space<vmem>>, vector<40x256xf32>,
    %120 = vector.extract_strided_slice %111 {offsets = [0, 125], sizes = [40, 256], strides = [1, 1]} : vector<40x512xf32> to vector<40x256xf32>
    %c160_92 = arith.constant 160 : index
    %c0_93 = arith.constant 0 : index
    %121 = vector.load %arg24[%c160_92, %c0_93] : memref<728x256xf32, #tpu.memory_space<vmem>>, vector<40x256xf32>
    tpu.vector_store %arg24[%c160_92, %c0_93], %120 {strides = array<i32>} : memref<728x256xf32, #tpu.memory_space<vmem>>, vector<40x256xf32>,
    %122 = vector.extract_strided_slice %111 {offsets = [0, 126], sizes = [40, 256], strides = [1, 1]} : vector<40x512xf32> to vector<40x256xf32>
    %c200 = arith.constant 200 : index
    %c0_94 = arith.constant 0 : index
    %123 = vector.load %arg24[%c200, %c0_94] : memref<728x256xf32, #tpu.memory_space<vmem>>, vector<40x256xf32>
    tpu.vector_store %arg24[%c200, %c0_94], %122 {strides = array<i32>} : memref<728x256xf32, #tpu.memory_space<vmem>>, vector<40x256xf32>,
    %124 = vector.extract_strided_slice %111 {offsets = [0, 127], sizes = [40, 256], strides = [1, 1]} : vector<40x512xf32> to vector<40x256xf32>
    %c240_95 = arith.constant 240 : index
    %c0_96 = arith.constant 0 : index
    %125 = vector.load %arg24[%c240_95, %c0_96] : memref<728x256xf32, #tpu.memory_space<vmem>>, vector<40x256xf32>
    tpu.vector_store %arg24[%c240_95, %c0_96], %124 {strides = array<i32>} : memref<728x256xf32, #tpu.memory_space<vmem>>, vector<40x256xf32>,
    %126 = vector.extract_strided_slice %111 {offsets = [0, 128], sizes = [40, 256], strides = [1, 1]} : vector<40x512xf32> to vector<40x256xf32>
    %c280 = arith.constant 280 : index
    %c0_97 = arith.constant 0 : index
    %127 = vector.load %arg24[%c280, %c0_97] : memref<728x256xf32, #tpu.memory_space<vmem>>, vector<40x256xf32>
    tpu.vector_store %arg24[%c280, %c0_97], %126 {strides = array<i32>} : memref<728x256xf32, #tpu.memory_space<vmem>>, vector<40x256xf32>,
    %128 = vector.extract_strided_slice %111 {offsets = [0, 129], sizes = [40, 256], strides = [1, 1]} : vector<40x512xf32> to vector<40x256xf32>
    %c320 = arith.constant 320 : index
    %c0_98 = arith.constant 0 : index
    %129 = vector.load %arg24[%c320, %c0_98] : memref<728x256xf32, #tpu.memory_space<vmem>>, vector<40x256xf32>
    tpu.vector_store %arg24[%c320, %c0_98], %128 {strides = array<i32>} : memref<728x256xf32, #tpu.memory_space<vmem>>, vector<40x256xf32>,
    %130 = vector.extract_strided_slice %111 {offsets = [0, 130], sizes = [40, 256], strides = [1, 1]} : vector<40x512xf32> to vector<40x256xf32>
    %c360 = arith.constant 360 : index
    %c0_99 = arith.constant 0 : index
    %131 = vector.load %arg24[%c360, %c0_99] : memref<728x256xf32, #tpu.memory_space<vmem>>, vector<40x256xf32>
    tpu.vector_store %arg24[%c360, %c0_99], %130 {strides = array<i32>} : memref<728x256xf32, #tpu.memory_space<vmem>>, vector<40x256xf32>,
    %132 = vector.extract_strided_slice %111 {offsets = [0, 131], sizes = [40, 256], strides = [1, 1]} : vector<40x512xf32> to vector<40x256xf32>
    %c400 = arith.constant 400 : index
    %c0_100 = arith.constant 0 : index
    %133 = vector.load %arg24[%c400, %c0_100] : memref<728x256xf32, #tpu.memory_space<vmem>>, vector<40x256xf32>
    tpu.vector_store %arg24[%c400, %c0_100], %132 {strides = array<i32>} : memref<728x256xf32, #tpu.memory_space<vmem>>, vector<40x256xf32>,
    %134 = vector.extract_strided_slice %111 {offsets = [0, 132], sizes = [40, 256], strides = [1, 1]} : vector<40x512xf32> to vector<40x256xf32>
    %c440 = arith.constant 440 : index
    %c0_101 = arith.constant 0 : index
    %135 = vector.load %arg24[%c440, %c0_101] : memref<728x256xf32, #tpu.memory_space<vmem>>, vector<40x256xf32>
    tpu.vector_store %arg24[%c440, %c0_101], %134 {strides = array<i32>} : memref<728x256xf32, #tpu.memory_space<vmem>>, vector<40x256xf32>,
    %136 = vector.extract_strided_slice %111 {offsets = [0, 133], sizes = [40, 256], strides = [1, 1]} : vector<40x512xf32> to vector<40x256xf32>
    %c480 = arith.constant 480 : index
    %c0_102 = arith.constant 0 : index
    %137 = vector.load %arg24[%c480, %c0_102] : memref<728x256xf32, #tpu.memory_space<vmem>>, vector<40x256xf32>
    tpu.vector_store %arg24[%c480, %c0_102], %136 {strides = array<i32>} : memref<728x256xf32, #tpu.memory_space<vmem>>, vector<40x256xf32>,
    %138 = vector.extract_strided_slice %111 {offsets = [0, 134], sizes = [40, 256], strides = [1, 1]} : vector<40x512xf32> to vector<40x256xf32>
    %c520 = arith.constant 520 : index
    %c0_103 = arith.constant 0 : index
    %139 = vector.load %arg24[%c520, %c0_103] : memref<728x256xf32, #tpu.memory_space<vmem>>, vector<40x256xf32>
    tpu.vector_store %arg24[%c520, %c0_103], %138 {strides = array<i32>} : memref<728x256xf32, #tpu.memory_space<vmem>>, vector<40x256xf32>,
    %140 = vector.extract_strided_slice %111 {offsets = [0, 135], sizes = [40, 256], strides = [1, 1]} : vector<40x512xf32> to vector<40x256xf32>
    %c560 = arith.constant 560 : index
    %c0_104 = arith.constant 0 : index
    %141 = vector.load %arg24[%c560, %c0_104] : memref<728x256xf32, #tpu.memory_space<vmem>>, vector<40x256xf32>
    tpu.vector_store %arg24[%c560, %c0_104], %140 {strides = array<i32>} : memref<728x256xf32, #tpu.memory_space<vmem>>, vector<40x256xf32>,
    %c0_105 = arith.constant 0 : index
    %c0_106 = arith.constant 0 : index
    %142 = vector.load %arg6[%c0_105, %c0_106] : memref<10x600xf32, #tpu.memory_space<vmem>>, vector<10x600xf32>
    %c0_107 = arith.constant 0 : index
    %c0_108 = arith.constant 0 : index
    %143 = vector.load %arg24[%c0_107, %c0_108] : memref<728x256xf32, #tpu.memory_space<vmem>>, vector<600x256xf32>
    %cst_109 = arith.constant dense<0.000000e+00> : vector<10x256xf32>
    %144 = tpu.matmul %142, %143, %cst_109 {dimension_numbers = #tpu.dot_dimension_numbers<[1], [0], [0], [1], [0, 0, 1, 1], [], []>} : vector<10x600xf32>, vector<600x256xf32>, vector<10x256xf32> -> vector<10x256xf32>
    %c0_110 = arith.constant 0 : index
    %c0_111 = arith.constant 0 : index
    %145 = vector.load %arg7[%c0_110, %c0_111] : memref<10x1xf32, #tpu.memory_space<vmem>>, vector<10x1xf32>
    %146 = vector.broadcast %145 : vector<10x1xf32> to vector<10x256xf32>
    %147 = arith.addf %144, %146 : vector<10x256xf32>
    %cst_112 = arith.constant 0.000000e+00 : f32
    %148 = vector.broadcast %cst_112 : f32 to vector<10x256xf32>
    %149 = arith.cmpf oge, %147, %148 : vector<10x256xf32>
    %cst_113 = arith.constant 0.00999999977 : f32
    %150 = vector.broadcast %cst_113 : f32 to vector<10x256xf32>
    %151 = arith.mulf %150, %147 : vector<10x256xf32>
    %152 = arith.select %149, %147, %151 : vector<10x256xi1>, vector<10x256xf32>
    %c0_114 = arith.constant 0 : index
    %c128_115 = arith.constant 128 : index
    %153 = vector.load %arg23[%c0_114, %c128_115] : memref<40x512xf32, #tpu.memory_space<vmem>>, vector<10x256xf32>
    tpu.vector_store %arg23[%c0_114, %c128_115], %152 {strides = array<i32>} : memref<40x512xf32, #tpu.memory_space<vmem>>, vector<10x256xf32>,
    %c0_116 = arith.constant 0 : index
    %c0_117 = arith.constant 0 : index
    %154 = vector.load %arg23[%c0_116, %c0_117] : memref<40x512xf32, #tpu.memory_space<vmem>>, vector<16x512xf32>
    %155 = vector.extract_strided_slice %154 {offsets = [0, 121], sizes = [16, 256], strides = [1, 1]} : vector<16x512xf32> to vector<16x256xf32>
    %c0_118 = arith.constant 0 : index
    %c0_119 = arith.constant 0 : index
    %156 = vector.load %arg24[%c0_118, %c0_119] : memref<728x256xf32, #tpu.memory_space<vmem>>, vector<16x256xf32>
    tpu.vector_store %arg24[%c0_118, %c0_119], %155 {strides = array<i32>} : memref<728x256xf32, #tpu.memory_space<vmem>>, vector<16x256xf32>,
    %157 = vector.extract_strided_slice %154 {offsets = [0, 122], sizes = [16, 256], strides = [1, 1]} : vector<16x512xf32> to vector<16x256xf32>
    %c16_120 = arith.constant 16 : index
    %c0_121 = arith.constant 0 : index
    %158 = vector.load %arg24[%c16_120, %c0_121] : memref<728x256xf32, #tpu.memory_space<vmem>>, vector<16x256xf32>
    tpu.vector_store %arg24[%c16_120, %c0_121], %157 {strides = array<i32>} : memref<728x256xf32, #tpu.memory_space<vmem>>, vector<16x256xf32>,
    %159 = vector.extract_strided_slice %154 {offsets = [0, 123], sizes = [16, 256], strides = [1, 1]} : vector<16x512xf32> to vector<16x256xf32>
    %c32_122 = arith.constant 32 : index
    %c0_123 = arith.constant 0 : index
    %160 = vector.load %arg24[%c32_122, %c0_123] : memref<728x256xf32, #tpu.memory_space<vmem>>, vector<16x256xf32>
    tpu.vector_store %arg24[%c32_122, %c0_123], %159 {strides = array<i32>} : memref<728x256xf32, #tpu.memory_space<vmem>>, vector<16x256xf32>,
    %161 = vector.extract_strided_slice %154 {offsets = [0, 124], sizes = [16, 256], strides = [1, 1]} : vector<16x512xf32> to vector<16x256xf32>
    %c48_124 = arith.constant 48 : index
    %c0_125 = arith.constant 0 : index
    %162 = vector.load %arg24[%c48_124, %c0_125] : memref<728x256xf32, #tpu.memory_space<vmem>>, vector<16x256xf32>
    tpu.vector_store %arg24[%c48_124, %c0_125], %161 {strides = array<i32>} : memref<728x256xf32, #tpu.memory_space<vmem>>, vector<16x256xf32>,
    %163 = vector.extract_strided_slice %154 {offsets = [0, 125], sizes = [16, 256], strides = [1, 1]} : vector<16x512xf32> to vector<16x256xf32>
    %c64_126 = arith.constant 64 : index
    %c0_127 = arith.constant 0 : index
    %164 = vector.load %arg24[%c64_126, %c0_127] : memref<728x256xf32, #tpu.memory_space<vmem>>, vector<16x256xf32>
    tpu.vector_store %arg24[%c64_126, %c0_127], %163 {strides = array<i32>} : memref<728x256xf32, #tpu.memory_space<vmem>>, vector<16x256xf32>,
    %165 = vector.extract_strided_slice %154 {offsets = [0, 126], sizes = [16, 256], strides = [1, 1]} : vector<16x512xf32> to vector<16x256xf32>
    %c80_128 = arith.constant 80 : index
    %c0_129 = arith.constant 0 : index
    %166 = vector.load %arg24[%c80_128, %c0_129] : memref<728x256xf32, #tpu.memory_space<vmem>>, vector<16x256xf32>
    tpu.vector_store %arg24[%c80_128, %c0_129], %165 {strides = array<i32>} : memref<728x256xf32, #tpu.memory_space<vmem>>, vector<16x256xf32>,
    %167 = vector.extract_strided_slice %154 {offsets = [0, 127], sizes = [16, 256], strides = [1, 1]} : vector<16x512xf32> to vector<16x256xf32>
    %c96_130 = arith.constant 96 : index
    %c0_131 = arith.constant 0 : index
    %168 = vector.load %arg24[%c96_130, %c0_131] : memref<728x256xf32, #tpu.memory_space<vmem>>, vector<16x256xf32>
    tpu.vector_store %arg24[%c96_130, %c0_131], %167 {strides = array<i32>} : memref<728x256xf32, #tpu.memory_space<vmem>>, vector<16x256xf32>,
    %169 = vector.extract_strided_slice %154 {offsets = [0, 128], sizes = [16, 256], strides = [1, 1]} : vector<16x512xf32> to vector<16x256xf32>
    %c112_132 = arith.constant 112 : index
    %c0_133 = arith.constant 0 : index
    %170 = vector.load %arg24[%c112_132, %c0_133] : memref<728x256xf32, #tpu.memory_space<vmem>>, vector<16x256xf32>
    tpu.vector_store %arg24[%c112_132, %c0_133], %169 {strides = array<i32>} : memref<728x256xf32, #tpu.memory_space<vmem>>, vector<16x256xf32>,
    %171 = vector.extract_strided_slice %154 {offsets = [0, 129], sizes = [16, 256], strides = [1, 1]} : vector<16x512xf32> to vector<16x256xf32>
    %c128_134 = arith.constant 128 : index
    %c0_135 = arith.constant 0 : index
    %172 = vector.load %arg24[%c128_134, %c0_135] : memref<728x256xf32, #tpu.memory_space<vmem>>, vector<16x256xf32>
    tpu.vector_store %arg24[%c128_134, %c0_135], %171 {strides = array<i32>} : memref<728x256xf32, #tpu.memory_space<vmem>>, vector<16x256xf32>,
    %173 = vector.extract_strided_slice %154 {offsets = [0, 130], sizes = [16, 256], strides = [1, 1]} : vector<16x512xf32> to vector<16x256xf32>
    %c144_136 = arith.constant 144 : index
    %c0_137 = arith.constant 0 : index
    %174 = vector.load %arg24[%c144_136, %c0_137] : memref<728x256xf32, #tpu.memory_space<vmem>>, vector<16x256xf32>
    tpu.vector_store %arg24[%c144_136, %c0_137], %173 {strides = array<i32>} : memref<728x256xf32, #tpu.memory_space<vmem>>, vector<16x256xf32>,
    %175 = vector.extract_strided_slice %154 {offsets = [0, 131], sizes = [16, 256], strides = [1, 1]} : vector<16x512xf32> to vector<16x256xf32>
    %c160_138 = arith.constant 160 : index
    %c0_139 = arith.constant 0 : index
    %176 = vector.load %arg24[%c160_138, %c0_139] : memref<728x256xf32, #tpu.memory_space<vmem>>, vector<16x256xf32>
    tpu.vector_store %arg24[%c160_138, %c0_139], %175 {strides = array<i32>} : memref<728x256xf32, #tpu.memory_space<vmem>>, vector<16x256xf32>,
    %177 = vector.extract_strided_slice %154 {offsets = [0, 132], sizes = [16, 256], strides = [1, 1]} : vector<16x512xf32> to vector<16x256xf32>
    %c176_140 = arith.constant 176 : index
    %c0_141 = arith.constant 0 : index
    %178 = vector.load %arg24[%c176_140, %c0_141] : memref<728x256xf32, #tpu.memory_space<vmem>>, vector<16x256xf32>
    tpu.vector_store %arg24[%c176_140, %c0_141], %177 {strides = array<i32>} : memref<728x256xf32, #tpu.memory_space<vmem>>, vector<16x256xf32>,
    %179 = vector.extract_strided_slice %154 {offsets = [0, 133], sizes = [16, 256], strides = [1, 1]} : vector<16x512xf32> to vector<16x256xf32>
    %c192_142 = arith.constant 192 : index
    %c0_143 = arith.constant 0 : index
    %180 = vector.load %arg24[%c192_142, %c0_143] : memref<728x256xf32, #tpu.memory_space<vmem>>, vector<16x256xf32>
    tpu.vector_store %arg24[%c192_142, %c0_143], %179 {strides = array<i32>} : memref<728x256xf32, #tpu.memory_space<vmem>>, vector<16x256xf32>,
    %181 = vector.extract_strided_slice %154 {offsets = [0, 134], sizes = [16, 256], strides = [1, 1]} : vector<16x512xf32> to vector<16x256xf32>
    %c208 = arith.constant 208 : index
    %c0_144 = arith.constant 0 : index
    %182 = vector.load %arg24[%c208, %c0_144] : memref<728x256xf32, #tpu.memory_space<vmem>>, vector<16x256xf32>
    tpu.vector_store %arg24[%c208, %c0_144], %181 {strides = array<i32>} : memref<728x256xf32, #tpu.memory_space<vmem>>, vector<16x256xf32>,
    %183 = vector.extract_strided_slice %154 {offsets = [0, 135], sizes = [16, 256], strides = [1, 1]} : vector<16x512xf32> to vector<16x256xf32>
    %c224 = arith.constant 224 : index
    %c0_145 = arith.constant 0 : index
    %184 = vector.load %arg24[%c224, %c0_145] : memref<728x256xf32, #tpu.memory_space<vmem>>, vector<16x256xf32>
    tpu.vector_store %arg24[%c224, %c0_145], %183 {strides = array<i32>} : memref<728x256xf32, #tpu.memory_space<vmem>>, vector<16x256xf32>,
    %c0_146 = arith.constant 0 : index
    %c0_147 = arith.constant 0 : index
    %185 = vector.load %arg8[%c0_146, %c0_147] : memref<10x240xf32, #tpu.memory_space<vmem>>, vector<10x240xf32>
    %c0_148 = arith.constant 0 : index
    %c0_149 = arith.constant 0 : index
    %186 = vector.load %arg24[%c0_148, %c0_149] : memref<728x256xf32, #tpu.memory_space<vmem>>, vector<240x256xf32>
    %cst_150 = arith.constant dense<0.000000e+00> : vector<10x256xf32>
    %187 = tpu.matmul %185, %186, %cst_150 {dimension_numbers = #tpu.dot_dimension_numbers<[1], [0], [0], [1], [0, 0, 1, 1], [], []>} : vector<10x240xf32>, vector<240x256xf32>, vector<10x256xf32> -> vector<10x256xf32>
    %c0_151 = arith.constant 0 : index
    %c0_152 = arith.constant 0 : index
    %188 = vector.load %arg9[%c0_151, %c0_152] : memref<10x1xf32, #tpu.memory_space<vmem>>, vector<10x1xf32>
    %189 = vector.broadcast %188 : vector<10x1xf32> to vector<10x256xf32>
    %190 = arith.addf %187, %189 : vector<10x256xf32>
    %cst_153 = arith.constant 0.000000e+00 : f32
    %191 = vector.broadcast %cst_153 : f32 to vector<10x256xf32>
    %192 = arith.cmpf oge, %190, %191 : vector<10x256xf32>
    %cst_154 = arith.constant 0.00999999977 : f32
    %193 = vector.broadcast %cst_154 : f32 to vector<10x256xf32>
    %194 = arith.mulf %193, %190 : vector<10x256xf32>
    %195 = arith.select %192, %190, %194 : vector<10x256xi1>, vector<10x256xf32>
    %c16_155 = arith.constant 16 : index
    %c128_156 = arith.constant 128 : index
    %196 = vector.load %arg23[%c16_155, %c128_156] : memref<40x512xf32, #tpu.memory_space<vmem>>, vector<10x256xf32>
    tpu.vector_store %arg23[%c16_155, %c128_156], %195 {strides = array<i32>} : memref<40x512xf32, #tpu.memory_space<vmem>>, vector<10x256xf32>,
    %c0_157 = arith.constant 0 : index
    %c0_158 = arith.constant 0 : index
    %197 = vector.load %arg23[%c0_157, %c0_158] : memref<40x512xf32, #tpu.memory_space<vmem>>, vector<32x512xf32>
    %198 = vector.extract_strided_slice %197 {offsets = [0, 121], sizes = [32, 256], strides = [1, 1]} : vector<32x512xf32> to vector<32x256xf32>
    %c0_159 = arith.constant 0 : index
    %c0_160 = arith.constant 0 : index
    %199 = vector.load %arg24[%c0_159, %c0_160] : memref<728x256xf32, #tpu.memory_space<vmem>>, vector<32x256xf32>
    tpu.vector_store %arg24[%c0_159, %c0_160], %198 {strides = array<i32>} : memref<728x256xf32, #tpu.memory_space<vmem>>, vector<32x256xf32>,
    %200 = vector.extract_strided_slice %197 {offsets = [0, 122], sizes = [32, 256], strides = [1, 1]} : vector<32x512xf32> to vector<32x256xf32>
    %c32_161 = arith.constant 32 : index
    %c0_162 = arith.constant 0 : index
    %201 = vector.load %arg24[%c32_161, %c0_162] : memref<728x256xf32, #tpu.memory_space<vmem>>, vector<32x256xf32>
    tpu.vector_store %arg24[%c32_161, %c0_162], %200 {strides = array<i32>} : memref<728x256xf32, #tpu.memory_space<vmem>>, vector<32x256xf32>,
    %202 = vector.extract_strided_slice %197 {offsets = [0, 123], sizes = [32, 256], strides = [1, 1]} : vector<32x512xf32> to vector<32x256xf32>
    %c64_163 = arith.constant 64 : index
    %c0_164 = arith.constant 0 : index
    %203 = vector.load %arg24[%c64_163, %c0_164] : memref<728x256xf32, #tpu.memory_space<vmem>>, vector<32x256xf32>
    tpu.vector_store %arg24[%c64_163, %c0_164], %202 {strides = array<i32>} : memref<728x256xf32, #tpu.memory_space<vmem>>, vector<32x256xf32>,
    %204 = vector.extract_strided_slice %197 {offsets = [0, 124], sizes = [32, 256], strides = [1, 1]} : vector<32x512xf32> to vector<32x256xf32>
    %c96_165 = arith.constant 96 : index
    %c0_166 = arith.constant 0 : index
    %205 = vector.load %arg24[%c96_165, %c0_166] : memref<728x256xf32, #tpu.memory_space<vmem>>, vector<32x256xf32>
    tpu.vector_store %arg24[%c96_165, %c0_166], %204 {strides = array<i32>} : memref<728x256xf32, #tpu.memory_space<vmem>>, vector<32x256xf32>,
    %206 = vector.extract_strided_slice %197 {offsets = [0, 125], sizes = [32, 256], strides = [1, 1]} : vector<32x512xf32> to vector<32x256xf32>
    %c128_167 = arith.constant 128 : index
    %c0_168 = arith.constant 0 : index
    %207 = vector.load %arg24[%c128_167, %c0_168] : memref<728x256xf32, #tpu.memory_space<vmem>>, vector<32x256xf32>
    tpu.vector_store %arg24[%c128_167, %c0_168], %206 {strides = array<i32>} : memref<728x256xf32, #tpu.memory_space<vmem>>, vector<32x256xf32>,
    %208 = vector.extract_strided_slice %197 {offsets = [0, 126], sizes = [32, 256], strides = [1, 1]} : vector<32x512xf32> to vector<32x256xf32>
    %c160_169 = arith.constant 160 : index
    %c0_170 = arith.constant 0 : index
    %209 = vector.load %arg24[%c160_169, %c0_170] : memref<728x256xf32, #tpu.memory_space<vmem>>, vector<32x256xf32>
    tpu.vector_store %arg24[%c160_169, %c0_170], %208 {strides = array<i32>} : memref<728x256xf32, #tpu.memory_space<vmem>>, vector<32x256xf32>,
    %210 = vector.extract_strided_slice %197 {offsets = [0, 127], sizes = [32, 256], strides = [1, 1]} : vector<32x512xf32> to vector<32x256xf32>
    %c192_171 = arith.constant 192 : index
    %c0_172 = arith.constant 0 : index
    %211 = vector.load %arg24[%c192_171, %c0_172] : memref<728x256xf32, #tpu.memory_space<vmem>>, vector<32x256xf32>
    tpu.vector_store %arg24[%c192_171, %c0_172], %210 {strides = array<i32>} : memref<728x256xf32, #tpu.memory_space<vmem>>, vector<32x256xf32>,
    %212 = vector.extract_strided_slice %197 {offsets = [0, 128], sizes = [32, 256], strides = [1, 1]} : vector<32x512xf32> to vector<32x256xf32>
    %c224_173 = arith.constant 224 : index
    %c0_174 = arith.constant 0 : index
    %213 = vector.load %arg24[%c224_173, %c0_174] : memref<728x256xf32, #tpu.memory_space<vmem>>, vector<32x256xf32>
    tpu.vector_store %arg24[%c224_173, %c0_174], %212 {strides = array<i32>} : memref<728x256xf32, #tpu.memory_space<vmem>>, vector<32x256xf32>,
    %214 = vector.extract_strided_slice %197 {offsets = [0, 129], sizes = [32, 256], strides = [1, 1]} : vector<32x512xf32> to vector<32x256xf32>
    %c256 = arith.constant 256 : index
    %c0_175 = arith.constant 0 : index
    %215 = vector.load %arg24[%c256, %c0_175] : memref<728x256xf32, #tpu.memory_space<vmem>>, vector<32x256xf32>
    tpu.vector_store %arg24[%c256, %c0_175], %214 {strides = array<i32>} : memref<728x256xf32, #tpu.memory_space<vmem>>, vector<32x256xf32>,
    %216 = vector.extract_strided_slice %197 {offsets = [0, 130], sizes = [32, 256], strides = [1, 1]} : vector<32x512xf32> to vector<32x256xf32>
    %c288_176 = arith.constant 288 : index
    %c0_177 = arith.constant 0 : index
    %217 = vector.load %arg24[%c288_176, %c0_177] : memref<728x256xf32, #tpu.memory_space<vmem>>, vector<32x256xf32>
    tpu.vector_store %arg24[%c288_176, %c0_177], %216 {strides = array<i32>} : memref<728x256xf32, #tpu.memory_space<vmem>>, vector<32x256xf32>,
    %218 = vector.extract_strided_slice %197 {offsets = [0, 131], sizes = [32, 256], strides = [1, 1]} : vector<32x512xf32> to vector<32x256xf32>
    %c320_178 = arith.constant 320 : index
    %c0_179 = arith.constant 0 : index
    %219 = vector.load %arg24[%c320_178, %c0_179] : memref<728x256xf32, #tpu.memory_space<vmem>>, vector<32x256xf32>
    tpu.vector_store %arg24[%c320_178, %c0_179], %218 {strides = array<i32>} : memref<728x256xf32, #tpu.memory_space<vmem>>, vector<32x256xf32>,
    %220 = vector.extract_strided_slice %197 {offsets = [0, 132], sizes = [32, 256], strides = [1, 1]} : vector<32x512xf32> to vector<32x256xf32>
    %c352 = arith.constant 352 : index
    %c0_180 = arith.constant 0 : index
    %221 = vector.load %arg24[%c352, %c0_180] : memref<728x256xf32, #tpu.memory_space<vmem>>, vector<32x256xf32>
    tpu.vector_store %arg24[%c352, %c0_180], %220 {strides = array<i32>} : memref<728x256xf32, #tpu.memory_space<vmem>>, vector<32x256xf32>,
    %222 = vector.extract_strided_slice %197 {offsets = [0, 133], sizes = [32, 256], strides = [1, 1]} : vector<32x512xf32> to vector<32x256xf32>
    %c384 = arith.constant 384 : index
    %c0_181 = arith.constant 0 : index
    %223 = vector.load %arg24[%c384, %c0_181] : memref<728x256xf32, #tpu.memory_space<vmem>>, vector<32x256xf32>
    tpu.vector_store %arg24[%c384, %c0_181], %222 {strides = array<i32>} : memref<728x256xf32, #tpu.memory_space<vmem>>, vector<32x256xf32>,
    %224 = vector.extract_strided_slice %197 {offsets = [0, 134], sizes = [32, 256], strides = [1, 1]} : vector<32x512xf32> to vector<32x256xf32>
    %c416 = arith.constant 416 : index
    %c0_182 = arith.constant 0 : index
    %225 = vector.load %arg24[%c416, %c0_182] : memref<728x256xf32, #tpu.memory_space<vmem>>, vector<32x256xf32>
    tpu.vector_store %arg24[%c416, %c0_182], %224 {strides = array<i32>} : memref<728x256xf32, #tpu.memory_space<vmem>>, vector<32x256xf32>,
    %226 = vector.extract_strided_slice %197 {offsets = [0, 135], sizes = [32, 256], strides = [1, 1]} : vector<32x512xf32> to vector<32x256xf32>
    %c448 = arith.constant 448 : index
    %c0_183 = arith.constant 0 : index
    %227 = vector.load %arg24[%c448, %c0_183] : memref<728x256xf32, #tpu.memory_space<vmem>>, vector<32x256xf32>
    tpu.vector_store %arg24[%c448, %c0_183], %226 {strides = array<i32>} : memref<728x256xf32, #tpu.memory_space<vmem>>, vector<32x256xf32>,
    %c0_184 = arith.constant 0 : index
    %c0_185 = arith.constant 0 : index
    %228 = vector.load %arg10[%c0_184, %c0_185] : memref<10x480xf32, #tpu.memory_space<vmem>>, vector<10x480xf32>
    %c0_186 = arith.constant 0 : index
    %c0_187 = arith.constant 0 : index
    %229 = vector.load %arg24[%c0_186, %c0_187] : memref<728x256xf32, #tpu.memory_space<vmem>>, vector<480x256xf32>
    %cst_188 = arith.constant dense<0.000000e+00> : vector<10x256xf32>
    %230 = tpu.matmul %228, %229, %cst_188 {dimension_numbers = #tpu.dot_dimension_numbers<[1], [0], [0], [1], [0, 0, 1, 1], [], []>} : vector<10x480xf32>, vector<480x256xf32>, vector<10x256xf32> -> vector<10x256xf32>
    %c0_189 = arith.constant 0 : index
    %c0_190 = arith.constant 0 : index
    %231 = vector.load %arg11[%c0_189, %c0_190] : memref<10x1xf32, #tpu.memory_space<vmem>>, vector<10x1xf32>
    %232 = vector.broadcast %231 : vector<10x1xf32> to vector<10x256xf32>
    %233 = arith.addf %230, %232 : vector<10x256xf32>
    %cst_191 = arith.constant 0.000000e+00 : f32
    %234 = vector.broadcast %cst_191 : f32 to vector<10x256xf32>
    %235 = arith.cmpf oge, %233, %234 : vector<10x256xf32>
    %cst_192 = arith.constant 0.00999999977 : f32
    %236 = vector.broadcast %cst_192 : f32 to vector<10x256xf32>
    %237 = arith.mulf %236, %233 : vector<10x256xf32>
    %238 = arith.select %235, %233, %237 : vector<10x256xi1>, vector<10x256xf32>
    %c0_193 = arith.constant 0 : index
    %c128_194 = arith.constant 128 : index
    %239 = vector.load %arg23[%c0_193, %c128_194] : memref<40x512xf32, #tpu.memory_space<vmem>>, vector<10x256xf32>
    tpu.vector_store %arg23[%c0_193, %c128_194], %238 {strides = array<i32>} : memref<40x512xf32, #tpu.memory_space<vmem>>, vector<10x256xf32>,
    %c0_195 = arith.constant 0 : index
    %c0_196 = arith.constant 0 : index
    %240 = vector.load %arg23[%c0_195, %c0_196] : memref<40x512xf32, #tpu.memory_space<vmem>>, vector<16x512xf32>
    %241 = vector.extract_strided_slice %240 {offsets = [0, 121], sizes = [16, 256], strides = [1, 1]} : vector<16x512xf32> to vector<16x256xf32>
    %c0_197 = arith.constant 0 : index
    %c0_198 = arith.constant 0 : index
    %242 = vector.load %arg24[%c0_197, %c0_198] : memref<728x256xf32, #tpu.memory_space<vmem>>, vector<16x256xf32>
    tpu.vector_store %arg24[%c0_197, %c0_198], %241 {strides = array<i32>} : memref<728x256xf32, #tpu.memory_space<vmem>>, vector<16x256xf32>,
    %243 = vector.extract_strided_slice %240 {offsets = [0, 122], sizes = [16, 256], strides = [1, 1]} : vector<16x512xf32> to vector<16x256xf32>
    %c16_199 = arith.constant 16 : index
    %c0_200 = arith.constant 0 : index
    %244 = vector.load %arg24[%c16_199, %c0_200] : memref<728x256xf32, #tpu.memory_space<vmem>>, vector<16x256xf32>
    tpu.vector_store %arg24[%c16_199, %c0_200], %243 {strides = array<i32>} : memref<728x256xf32, #tpu.memory_space<vmem>>, vector<16x256xf32>,
    %245 = vector.extract_strided_slice %240 {offsets = [0, 123], sizes = [16, 256], strides = [1, 1]} : vector<16x512xf32> to vector<16x256xf32>
    %c32_201 = arith.constant 32 : index
    %c0_202 = arith.constant 0 : index
    %246 = vector.load %arg24[%c32_201, %c0_202] : memref<728x256xf32, #tpu.memory_space<vmem>>, vector<16x256xf32>
    tpu.vector_store %arg24[%c32_201, %c0_202], %245 {strides = array<i32>} : memref<728x256xf32, #tpu.memory_space<vmem>>, vector<16x256xf32>,
    %247 = vector.extract_strided_slice %240 {offsets = [0, 124], sizes = [16, 256], strides = [1, 1]} : vector<16x512xf32> to vector<16x256xf32>
    %c48_203 = arith.constant 48 : index
    %c0_204 = arith.constant 0 : index
    %248 = vector.load %arg24[%c48_203, %c0_204] : memref<728x256xf32, #tpu.memory_space<vmem>>, vector<16x256xf32>
    tpu.vector_store %arg24[%c48_203, %c0_204], %247 {strides = array<i32>} : memref<728x256xf32, #tpu.memory_space<vmem>>, vector<16x256xf32>,
    %249 = vector.extract_strided_slice %240 {offsets = [0, 125], sizes = [16, 256], strides = [1, 1]} : vector<16x512xf32> to vector<16x256xf32>
    %c64_205 = arith.constant 64 : index
    %c0_206 = arith.constant 0 : index
    %250 = vector.load %arg24[%c64_205, %c0_206] : memref<728x256xf32, #tpu.memory_space<vmem>>, vector<16x256xf32>
    tpu.vector_store %arg24[%c64_205, %c0_206], %249 {strides = array<i32>} : memref<728x256xf32, #tpu.memory_space<vmem>>, vector<16x256xf32>,
    %251 = vector.extract_strided_slice %240 {offsets = [0, 126], sizes = [16, 256], strides = [1, 1]} : vector<16x512xf32> to vector<16x256xf32>
    %c80_207 = arith.constant 80 : index
    %c0_208 = arith.constant 0 : index
    %252 = vector.load %arg24[%c80_207, %c0_208] : memref<728x256xf32, #tpu.memory_space<vmem>>, vector<16x256xf32>
    tpu.vector_store %arg24[%c80_207, %c0_208], %251 {strides = array<i32>} : memref<728x256xf32, #tpu.memory_space<vmem>>, vector<16x256xf32>,
    %253 = vector.extract_strided_slice %240 {offsets = [0, 127], sizes = [16, 256], strides = [1, 1]} : vector<16x512xf32> to vector<16x256xf32>
    %c96_209 = arith.constant 96 : index
    %c0_210 = arith.constant 0 : index
    %254 = vector.load %arg24[%c96_209, %c0_210] : memref<728x256xf32, #tpu.memory_space<vmem>>, vector<16x256xf32>
    tpu.vector_store %arg24[%c96_209, %c0_210], %253 {strides = array<i32>} : memref<728x256xf32, #tpu.memory_space<vmem>>, vector<16x256xf32>,
    %255 = vector.extract_strided_slice %240 {offsets = [0, 128], sizes = [16, 256], strides = [1, 1]} : vector<16x512xf32> to vector<16x256xf32>
    %c112_211 = arith.constant 112 : index
    %c0_212 = arith.constant 0 : index
    %256 = vector.load %arg24[%c112_211, %c0_212] : memref<728x256xf32, #tpu.memory_space<vmem>>, vector<16x256xf32>
    tpu.vector_store %arg24[%c112_211, %c0_212], %255 {strides = array<i32>} : memref<728x256xf32, #tpu.memory_space<vmem>>, vector<16x256xf32>,
    %257 = vector.extract_strided_slice %240 {offsets = [0, 129], sizes = [16, 256], strides = [1, 1]} : vector<16x512xf32> to vector<16x256xf32>
    %c128_213 = arith.constant 128 : index
    %c0_214 = arith.constant 0 : index
    %258 = vector.load %arg24[%c128_213, %c0_214] : memref<728x256xf32, #tpu.memory_space<vmem>>, vector<16x256xf32>
    tpu.vector_store %arg24[%c128_213, %c0_214], %257 {strides = array<i32>} : memref<728x256xf32, #tpu.memory_space<vmem>>, vector<16x256xf32>,
    %259 = vector.extract_strided_slice %240 {offsets = [0, 130], sizes = [16, 256], strides = [1, 1]} : vector<16x512xf32> to vector<16x256xf32>
    %c144_215 = arith.constant 144 : index
    %c0_216 = arith.constant 0 : index
    %260 = vector.load %arg24[%c144_215, %c0_216] : memref<728x256xf32, #tpu.memory_space<vmem>>, vector<16x256xf32>
    tpu.vector_store %arg24[%c144_215, %c0_216], %259 {strides = array<i32>} : memref<728x256xf32, #tpu.memory_space<vmem>>, vector<16x256xf32>,
    %261 = vector.extract_strided_slice %240 {offsets = [0, 131], sizes = [16, 256], strides = [1, 1]} : vector<16x512xf32> to vector<16x256xf32>
    %c160_217 = arith.constant 160 : index
    %c0_218 = arith.constant 0 : index
    %262 = vector.load %arg24[%c160_217, %c0_218] : memref<728x256xf32, #tpu.memory_space<vmem>>, vector<16x256xf32>
    tpu.vector_store %arg24[%c160_217, %c0_218], %261 {strides = array<i32>} : memref<728x256xf32, #tpu.memory_space<vmem>>, vector<16x256xf32>,
    %263 = vector.extract_strided_slice %240 {offsets = [0, 132], sizes = [16, 256], strides = [1, 1]} : vector<16x512xf32> to vector<16x256xf32>
    %c176_219 = arith.constant 176 : index
    %c0_220 = arith.constant 0 : index
    %264 = vector.load %arg24[%c176_219, %c0_220] : memref<728x256xf32, #tpu.memory_space<vmem>>, vector<16x256xf32>
    tpu.vector_store %arg24[%c176_219, %c0_220], %263 {strides = array<i32>} : memref<728x256xf32, #tpu.memory_space<vmem>>, vector<16x256xf32>,
    %265 = vector.extract_strided_slice %240 {offsets = [0, 133], sizes = [16, 256], strides = [1, 1]} : vector<16x512xf32> to vector<16x256xf32>
    %c192_221 = arith.constant 192 : index
    %c0_222 = arith.constant 0 : index
    %266 = vector.load %arg24[%c192_221, %c0_222] : memref<728x256xf32, #tpu.memory_space<vmem>>, vector<16x256xf32>
    tpu.vector_store %arg24[%c192_221, %c0_222], %265 {strides = array<i32>} : memref<728x256xf32, #tpu.memory_space<vmem>>, vector<16x256xf32>,
    %267 = vector.extract_strided_slice %240 {offsets = [0, 134], sizes = [16, 256], strides = [1, 1]} : vector<16x512xf32> to vector<16x256xf32>
    %c208_223 = arith.constant 208 : index
    %c0_224 = arith.constant 0 : index
    %268 = vector.load %arg24[%c208_223, %c0_224] : memref<728x256xf32, #tpu.memory_space<vmem>>, vector<16x256xf32>
    tpu.vector_store %arg24[%c208_223, %c0_224], %267 {strides = array<i32>} : memref<728x256xf32, #tpu.memory_space<vmem>>, vector<16x256xf32>,
    %269 = vector.extract_strided_slice %240 {offsets = [0, 135], sizes = [16, 256], strides = [1, 1]} : vector<16x512xf32> to vector<16x256xf32>
    %c224_225 = arith.constant 224 : index
    %c0_226 = arith.constant 0 : index
    %270 = vector.load %arg24[%c224_225, %c0_226] : memref<728x256xf32, #tpu.memory_space<vmem>>, vector<16x256xf32>
    tpu.vector_store %arg24[%c224_225, %c0_226], %269 {strides = array<i32>} : memref<728x256xf32, #tpu.memory_space<vmem>>, vector<16x256xf32>,
    %c0_227 = arith.constant 0 : index
    %c0_228 = arith.constant 0 : index
    %271 = vector.load %arg12[%c0_227, %c0_228] : memref<10x240xf32, #tpu.memory_space<vmem>>, vector<10x240xf32>
    %c0_229 = arith.constant 0 : index
    %c0_230 = arith.constant 0 : index
    %272 = vector.load %arg24[%c0_229, %c0_230] : memref<728x256xf32, #tpu.memory_space<vmem>>, vector<240x256xf32>
    %cst_231 = arith.constant dense<0.000000e+00> : vector<10x256xf32>
    %273 = tpu.matmul %271, %272, %cst_231 {dimension_numbers = #tpu.dot_dimension_numbers<[1], [0], [0], [1], [0, 0, 1, 1], [], []>} : vector<10x240xf32>, vector<240x256xf32>, vector<10x256xf32> -> vector<10x256xf32>
    %c0_232 = arith.constant 0 : index
    %c0_233 = arith.constant 0 : index
    %274 = vector.load %arg13[%c0_232, %c0_233] : memref<10x1xf32, #tpu.memory_space<vmem>>, vector<10x1xf32>
    %275 = vector.broadcast %274 : vector<10x1xf32> to vector<10x256xf32>
    %276 = arith.addf %273, %275 : vector<10x256xf32>
    %cst_234 = arith.constant 0.000000e+00 : f32
    %277 = vector.broadcast %cst_234 : f32 to vector<10x256xf32>
    %278 = arith.cmpf oge, %276, %277 : vector<10x256xf32>
    %cst_235 = arith.constant 0.00999999977 : f32
    %279 = vector.broadcast %cst_235 : f32 to vector<10x256xf32>
    %280 = arith.mulf %279, %276 : vector<10x256xf32>
    %281 = arith.select %278, %276, %280 : vector<10x256xi1>, vector<10x256xf32>
    %c16_236 = arith.constant 16 : index
    %c128_237 = arith.constant 128 : index
    %282 = vector.load %arg23[%c16_236, %c128_237] : memref<40x512xf32, #tpu.memory_space<vmem>>, vector<10x256xf32>
    tpu.vector_store %arg23[%c16_236, %c128_237], %281 {strides = array<i32>} : memref<40x512xf32, #tpu.memory_space<vmem>>, vector<10x256xf32>,
    %c0_238 = arith.constant 0 : index
    %c0_239 = arith.constant 0 : index
    %283 = vector.load %arg23[%c0_238, %c0_239] : memref<40x512xf32, #tpu.memory_space<vmem>>, vector<32x512xf32>
    %284 = vector.extract_strided_slice %283 {offsets = [0, 126], sizes = [32, 256], strides = [1, 1]} : vector<32x512xf32> to vector<32x256xf32>
    %c0_240 = arith.constant 0 : index
    %c0_241 = arith.constant 0 : index
    %285 = vector.load %arg24[%c0_240, %c0_241] : memref<728x256xf32, #tpu.memory_space<vmem>>, vector<32x256xf32>
    tpu.vector_store %arg24[%c0_240, %c0_241], %284 {strides = array<i32>} : memref<728x256xf32, #tpu.memory_space<vmem>>, vector<32x256xf32>,
    %286 = vector.extract_strided_slice %283 {offsets = [0, 127], sizes = [32, 256], strides = [1, 1]} : vector<32x512xf32> to vector<32x256xf32>
    %c32_242 = arith.constant 32 : index
    %c0_243 = arith.constant 0 : index
    %287 = vector.load %arg24[%c32_242, %c0_243] : memref<728x256xf32, #tpu.memory_space<vmem>>, vector<32x256xf32>
    tpu.vector_store %arg24[%c32_242, %c0_243], %286 {strides = array<i32>} : memref<728x256xf32, #tpu.memory_space<vmem>>, vector<32x256xf32>,
    %288 = vector.extract_strided_slice %283 {offsets = [0, 128], sizes = [32, 256], strides = [1, 1]} : vector<32x512xf32> to vector<32x256xf32>
    %c64_244 = arith.constant 64 : index
    %c0_245 = arith.constant 0 : index
    %289 = vector.load %arg24[%c64_244, %c0_245] : memref<728x256xf32, #tpu.memory_space<vmem>>, vector<32x256xf32>
    tpu.vector_store %arg24[%c64_244, %c0_245], %288 {strides = array<i32>} : memref<728x256xf32, #tpu.memory_space<vmem>>, vector<32x256xf32>,
    %290 = vector.extract_strided_slice %283 {offsets = [0, 129], sizes = [32, 256], strides = [1, 1]} : vector<32x512xf32> to vector<32x256xf32>
    %c96_246 = arith.constant 96 : index
    %c0_247 = arith.constant 0 : index
    %291 = vector.load %arg24[%c96_246, %c0_247] : memref<728x256xf32, #tpu.memory_space<vmem>>, vector<32x256xf32>
    tpu.vector_store %arg24[%c96_246, %c0_247], %290 {strides = array<i32>} : memref<728x256xf32, #tpu.memory_space<vmem>>, vector<32x256xf32>,
    %292 = vector.extract_strided_slice %283 {offsets = [0, 130], sizes = [32, 256], strides = [1, 1]} : vector<32x512xf32> to vector<32x256xf32>
    %c128_248 = arith.constant 128 : index
    %c0_249 = arith.constant 0 : index
    %293 = vector.load %arg24[%c128_248, %c0_249] : memref<728x256xf32, #tpu.memory_space<vmem>>, vector<32x256xf32>
    tpu.vector_store %arg24[%c128_248, %c0_249], %292 {strides = array<i32>} : memref<728x256xf32, #tpu.memory_space<vmem>>, vector<32x256xf32>,
    %c0_250 = arith.constant 0 : index
    %c0_251 = arith.constant 0 : index
    %294 = vector.load %arg14[%c0_250, %c0_251] : memref<7x160xf32, #tpu.memory_space<vmem>>, vector<7x160xf32>
    %c0_252 = arith.constant 0 : index
    %c0_253 = arith.constant 0 : index
    %295 = vector.load %arg24[%c0_252, %c0_253] : memref<728x256xf32, #tpu.memory_space<vmem>>, vector<160x256xf32>
    %cst_254 = arith.constant dense<0.000000e+00> : vector<7x256xf32>
    %296 = tpu.matmul %294, %295, %cst_254 {dimension_numbers = #tpu.dot_dimension_numbers<[1], [0], [0], [1], [0, 0, 1, 1], [], []>} : vector<7x160xf32>, vector<160x256xf32>, vector<7x256xf32> -> vector<7x256xf32>
    %c0_255 = arith.constant 0 : index
    %c0_256 = arith.constant 0 : index
    %297 = vector.load %arg15[%c0_255, %c0_256] : memref<7x1xf32, #tpu.memory_space<vmem>>, vector<7x1xf32>
    %298 = vector.broadcast %297 : vector<7x1xf32> to vector<7x256xf32>
    %299 = arith.addf %296, %298 : vector<7x256xf32>
    %cst_257 = arith.constant 0.000000e+00 : f32
    %300 = vector.broadcast %cst_257 : f32 to vector<7x256xf32>
    %301 = arith.cmpf oge, %299, %300 : vector<7x256xf32>
    %cst_258 = arith.constant 0.00999999977 : f32
    %302 = vector.broadcast %cst_258 : f32 to vector<7x256xf32>
    %303 = arith.mulf %302, %299 : vector<7x256xf32>
    %304 = arith.select %301, %299, %303 : vector<7x256xi1>, vector<7x256xf32>
    %c0_259 = arith.constant 0 : index
    %c128_260 = arith.constant 128 : index
    %305 = vector.load %arg23[%c0_259, %c128_260] : memref<40x512xf32, #tpu.memory_space<vmem>>, vector<7x256xf32>
    tpu.vector_store %arg23[%c0_259, %c128_260], %304 {strides = array<i32>} : memref<40x512xf32, #tpu.memory_space<vmem>>, vector<7x256xf32>,
    %c0_261 = arith.constant 0 : index
    %c0_262 = arith.constant 0 : index
    %306 = vector.load %arg23[%c0_261, %c0_262] : memref<40x512xf32, #tpu.memory_space<vmem>>, vector<8x512xf32>
    %307 = vector.extract_strided_slice %306 {offsets = [0, 126], sizes = [8, 256], strides = [1, 1]} : vector<8x512xf32> to vector<8x256xf32>
    %c0_263 = arith.constant 0 : index
    %c0_264 = arith.constant 0 : index
    %308 = vector.load %arg24[%c0_263, %c0_264] : memref<728x256xf32, #tpu.memory_space<vmem>>, vector<8x256xf32>
    tpu.vector_store %arg24[%c0_263, %c0_264], %307 {strides = array<i32>} : memref<728x256xf32, #tpu.memory_space<vmem>>, vector<8x256xf32>,
    %309 = vector.extract_strided_slice %306 {offsets = [0, 127], sizes = [8, 256], strides = [1, 1]} : vector<8x512xf32> to vector<8x256xf32>
    %c8_265 = arith.constant 8 : index
    %c0_266 = arith.constant 0 : index
    %310 = vector.load %arg24[%c8_265, %c0_266] : memref<728x256xf32, #tpu.memory_space<vmem>>, vector<8x256xf32>
    tpu.vector_store %arg24[%c8_265, %c0_266], %309 {strides = array<i32>} : memref<728x256xf32, #tpu.memory_space<vmem>>, vector<8x256xf32>,
    %311 = vector.extract_strided_slice %306 {offsets = [0, 128], sizes = [8, 256], strides = [1, 1]} : vector<8x512xf32> to vector<8x256xf32>
    %c16_267 = arith.constant 16 : index
    %c0_268 = arith.constant 0 : index
    %312 = vector.load %arg24[%c16_267, %c0_268] : memref<728x256xf32, #tpu.memory_space<vmem>>, vector<8x256xf32>
    tpu.vector_store %arg24[%c16_267, %c0_268], %311 {strides = array<i32>} : memref<728x256xf32, #tpu.memory_space<vmem>>, vector<8x256xf32>,
    %313 = vector.extract_strided_slice %306 {offsets = [0, 129], sizes = [8, 256], strides = [1, 1]} : vector<8x512xf32> to vector<8x256xf32>
    %c24_269 = arith.constant 24 : index
    %c0_270 = arith.constant 0 : index
    %314 = vector.load %arg24[%c24_269, %c0_270] : memref<728x256xf32, #tpu.memory_space<vmem>>, vector<8x256xf32>
    tpu.vector_store %arg24[%c24_269, %c0_270], %313 {strides = array<i32>} : memref<728x256xf32, #tpu.memory_space<vmem>>, vector<8x256xf32>,
    %315 = vector.extract_strided_slice %306 {offsets = [0, 130], sizes = [8, 256], strides = [1, 1]} : vector<8x512xf32> to vector<8x256xf32>
    %c32_271 = arith.constant 32 : index
    %c0_272 = arith.constant 0 : index
    %316 = vector.load %arg24[%c32_271, %c0_272] : memref<728x256xf32, #tpu.memory_space<vmem>>, vector<8x256xf32>
    tpu.vector_store %arg24[%c32_271, %c0_272], %315 {strides = array<i32>} : memref<728x256xf32, #tpu.memory_space<vmem>>, vector<8x256xf32>,
    %c0_273 = arith.constant 0 : index
    %c0_274 = arith.constant 0 : index
    %317 = vector.load %arg16[%c0_273, %c0_274] : memref<3x40xf32, #tpu.memory_space<vmem>>, vector<3x40xf32>
    %c0_275 = arith.constant 0 : index
    %c0_276 = arith.constant 0 : index
    %318 = vector.load %arg24[%c0_275, %c0_276] : memref<728x256xf32, #tpu.memory_space<vmem>>, vector<40x256xf32>
    %cst_277 = arith.constant dense<0.000000e+00> : vector<3x256xf32>
    %319 = tpu.matmul %317, %318, %cst_277 {dimension_numbers = #tpu.dot_dimension_numbers<[1], [0], [0], [1], [0, 0, 1, 1], [], []>} : vector<3x40xf32>, vector<40x256xf32>, vector<3x256xf32> -> vector<3x256xf32>
    %c0_278 = arith.constant 0 : index
    %c0_279 = arith.constant 0 : index
    %320 = vector.load %arg17[%c0_278, %c0_279] : memref<3x1xf32, #tpu.memory_space<vmem>>, vector<3x1xf32>
    %321 = vector.broadcast %320 : vector<3x1xf32> to vector<3x256xf32>
    %322 = arith.addf %319, %321 : vector<3x256xf32>
    %cst_280 = arith.constant 0.000000e+00 : f32
    %323 = vector.broadcast %cst_280 : f32 to vector<3x256xf32>
    %324 = arith.cmpf oge, %322, %323 : vector<3x256xf32>
    %cst_281 = arith.constant 0.00999999977 : f32
    %325 = vector.broadcast %cst_281 : f32 to vector<3x256xf32>
    %326 = arith.mulf %325, %322 : vector<3x256xf32>
    %327 = arith.select %324, %322, %326 : vector<3x256xi1>, vector<3x256xf32>
    %c8_282 = arith.constant 8 : index
    %c128_283 = arith.constant 128 : index
    %328 = vector.load %arg23[%c8_282, %c128_283] : memref<40x512xf32, #tpu.memory_space<vmem>>, vector<3x256xf32>
    tpu.vector_store %arg23[%c8_282, %c128_283], %327 {strides = array<i32>} : memref<40x512xf32, #tpu.memory_space<vmem>>, vector<3x256xf32>,
    %c0_284 = arith.constant 0 : index
    %c0_285 = arith.constant 0 : index
    %329 = vector.load %arg23[%c0_284, %c0_285] : memref<40x512xf32, #tpu.memory_space<vmem>>, vector<16x512xf32>
    %330 = vector.extract_strided_slice %329 {offsets = [0, 126], sizes = [16, 256], strides = [1, 1]} : vector<16x512xf32> to vector<16x256xf32>
    %c0_286 = arith.constant 0 : index
    %c0_287 = arith.constant 0 : index
    %331 = vector.load %arg24[%c0_286, %c0_287] : memref<728x256xf32, #tpu.memory_space<vmem>>, vector<16x256xf32>
    tpu.vector_store %arg24[%c0_286, %c0_287], %330 {strides = array<i32>} : memref<728x256xf32, #tpu.memory_space<vmem>>, vector<16x256xf32>,
    %332 = vector.extract_strided_slice %329 {offsets = [0, 127], sizes = [16, 256], strides = [1, 1]} : vector<16x512xf32> to vector<16x256xf32>
    %c16_288 = arith.constant 16 : index
    %c0_289 = arith.constant 0 : index
    %333 = vector.load %arg24[%c16_288, %c0_289] : memref<728x256xf32, #tpu.memory_space<vmem>>, vector<16x256xf32>
    tpu.vector_store %arg24[%c16_288, %c0_289], %332 {strides = array<i32>} : memref<728x256xf32, #tpu.memory_space<vmem>>, vector<16x256xf32>,
    %334 = vector.extract_strided_slice %329 {offsets = [0, 128], sizes = [16, 256], strides = [1, 1]} : vector<16x512xf32> to vector<16x256xf32>
    %c32_290 = arith.constant 32 : index
    %c0_291 = arith.constant 0 : index
    %335 = vector.load %arg24[%c32_290, %c0_291] : memref<728x256xf32, #tpu.memory_space<vmem>>, vector<16x256xf32>
    tpu.vector_store %arg24[%c32_290, %c0_291], %334 {strides = array<i32>} : memref<728x256xf32, #tpu.memory_space<vmem>>, vector<16x256xf32>,
    %336 = vector.extract_strided_slice %329 {offsets = [0, 129], sizes = [16, 256], strides = [1, 1]} : vector<16x512xf32> to vector<16x256xf32>
    %c48_292 = arith.constant 48 : index
    %c0_293 = arith.constant 0 : index
    %337 = vector.load %arg24[%c48_292, %c0_293] : memref<728x256xf32, #tpu.memory_space<vmem>>, vector<16x256xf32>
    tpu.vector_store %arg24[%c48_292, %c0_293], %336 {strides = array<i32>} : memref<728x256xf32, #tpu.memory_space<vmem>>, vector<16x256xf32>,
    %338 = vector.extract_strided_slice %329 {offsets = [0, 130], sizes = [16, 256], strides = [1, 1]} : vector<16x512xf32> to vector<16x256xf32>
    %c64_294 = arith.constant 64 : index
    %c0_295 = arith.constant 0 : index
    %339 = vector.load %arg24[%c64_294, %c0_295] : memref<728x256xf32, #tpu.memory_space<vmem>>, vector<16x256xf32>
    tpu.vector_store %arg24[%c64_294, %c0_295], %338 {strides = array<i32>} : memref<728x256xf32, #tpu.memory_space<vmem>>, vector<16x256xf32>,
    %c0_296 = arith.constant 0 : index
    %c0_297 = arith.constant 0 : index
    %340 = vector.load %arg18[%c0_296, %c0_297] : memref<1x80xf32, #tpu.memory_space<vmem>>, vector<1x80xf32>
    %c0_298 = arith.constant 0 : index
    %c0_299 = arith.constant 0 : index
    %341 = vector.load %arg24[%c0_298, %c0_299] : memref<728x256xf32, #tpu.memory_space<vmem>>, vector<80x256xf32>
    %cst_300 = arith.constant dense<0.000000e+00> : vector<1x256xf32>
    %342 = tpu.matmul %340, %341, %cst_300 {dimension_numbers = #tpu.dot_dimension_numbers<[1], [0], [0], [1], [0, 0, 1, 1], [], []>} : vector<1x80xf32>, vector<80x256xf32>, vector<1x256xf32> -> vector<1x256xf32>
    %c0_301 = arith.constant 0 : index
    %c0_302 = arith.constant 0 : index
    %343 = vector.load %arg19[%c0_301, %c0_302] : memref<1x1xf32, #tpu.memory_space<vmem>>, vector<1x1xf32>
    %344 = vector.broadcast %343 : vector<1x1xf32> to vector<1x256xf32>
    %345 = arith.addf %342, %344 : vector<1x256xf32>
    %cst_303 = arith.constant 0.000000e+00 : f32
    %346 = vector.broadcast %cst_303 : f32 to vector<1x256xf32>
    %347 = arith.cmpf oge, %345, %346 : vector<1x256xf32>
    %cst_304 = arith.constant 0.00999999977 : f32
    %348 = vector.broadcast %cst_304 : f32 to vector<1x256xf32>
    %349 = arith.mulf %348, %345 : vector<1x256xf32>
    %350 = arith.select %347, %345, %349 : vector<1x256xi1>, vector<1x256xf32>
    %c0_305 = arith.constant 0 : index
    %c128_306 = arith.constant 128 : index
    %351 = vector.load %arg23[%c0_305, %c128_306] : memref<40x512xf32, #tpu.memory_space<vmem>>, vector<1x256xf32>
    tpu.vector_store %arg23[%c0_305, %c128_306], %350 {strides = array<i32>} : memref<40x512xf32, #tpu.memory_space<vmem>>, vector<1x256xf32>,
    %c0_307 = arith.constant 0 : index
    %c0_308 = arith.constant 0 : index
    %352 = vector.load %arg23[%c0_307, %c0_308] : memref<40x512xf32, #tpu.memory_space<vmem>>, vector<8x512xf32>
    %353 = vector.extract_strided_slice %352 {offsets = [0, 83], sizes = [8, 256], strides = [1, 1]} : vector<8x512xf32> to vector<8x256xf32>
    %c0_309 = arith.constant 0 : index
    %c0_310 = arith.constant 0 : index
    %354 = vector.load %arg24[%c0_309, %c0_310] : memref<728x256xf32, #tpu.memory_space<vmem>>, vector<8x256xf32>
    tpu.vector_store %arg24[%c0_309, %c0_310], %353 {strides = array<i32>} : memref<728x256xf32, #tpu.memory_space<vmem>>, vector<8x256xf32>,
    %355 = vector.extract_strided_slice %352 {offsets = [0, 84], sizes = [8, 256], strides = [1, 1]} : vector<8x512xf32> to vector<8x256xf32>
    %c8_311 = arith.constant 8 : index
    %c0_312 = arith.constant 0 : index
    %356 = vector.load %arg24[%c8_311, %c0_312] : memref<728x256xf32, #tpu.memory_space<vmem>>, vector<8x256xf32>
    tpu.vector_store %arg24[%c8_311, %c0_312], %355 {strides = array<i32>} : memref<728x256xf32, #tpu.memory_space<vmem>>, vector<8x256xf32>,
    %357 = vector.extract_strided_slice %352 {offsets = [0, 85], sizes = [8, 256], strides = [1, 1]} : vector<8x512xf32> to vector<8x256xf32>
    %c16_313 = arith.constant 16 : index
    %c0_314 = arith.constant 0 : index
    %358 = vector.load %arg24[%c16_313, %c0_314] : memref<728x256xf32, #tpu.memory_space<vmem>>, vector<8x256xf32>
    tpu.vector_store %arg24[%c16_313, %c0_314], %357 {strides = array<i32>} : memref<728x256xf32, #tpu.memory_space<vmem>>, vector<8x256xf32>,
    %359 = vector.extract_strided_slice %352 {offsets = [0, 86], sizes = [8, 256], strides = [1, 1]} : vector<8x512xf32> to vector<8x256xf32>
    %c24_315 = arith.constant 24 : index
    %c0_316 = arith.constant 0 : index
    %360 = vector.load %arg24[%c24_315, %c0_316] : memref<728x256xf32, #tpu.memory_space<vmem>>, vector<8x256xf32>
    tpu.vector_store %arg24[%c24_315, %c0_316], %359 {strides = array<i32>} : memref<728x256xf32, #tpu.memory_space<vmem>>, vector<8x256xf32>,
    %361 = vector.extract_strided_slice %352 {offsets = [0, 87], sizes = [8, 256], strides = [1, 1]} : vector<8x512xf32> to vector<8x256xf32>
    %c32_317 = arith.constant 32 : index
    %c0_318 = arith.constant 0 : index
    %362 = vector.load %arg24[%c32_317, %c0_318] : memref<728x256xf32, #tpu.memory_space<vmem>>, vector<8x256xf32>
    tpu.vector_store %arg24[%c32_317, %c0_318], %361 {strides = array<i32>} : memref<728x256xf32, #tpu.memory_space<vmem>>, vector<8x256xf32>,
    %363 = vector.extract_strided_slice %352 {offsets = [0, 88], sizes = [8, 256], strides = [1, 1]} : vector<8x512xf32> to vector<8x256xf32>
    %c40_319 = arith.constant 40 : index
    %c0_320 = arith.constant 0 : index
    %364 = vector.load %arg24[%c40_319, %c0_320] : memref<728x256xf32, #tpu.memory_space<vmem>>, vector<8x256xf32>
    tpu.vector_store %arg24[%c40_319, %c0_320], %363 {strides = array<i32>} : memref<728x256xf32, #tpu.memory_space<vmem>>, vector<8x256xf32>,
    %365 = vector.extract_strided_slice %352 {offsets = [0, 89], sizes = [8, 256], strides = [1, 1]} : vector<8x512xf32> to vector<8x256xf32>
    %c48_321 = arith.constant 48 : index
    %c0_322 = arith.constant 0 : index
    %366 = vector.load %arg24[%c48_321, %c0_322] : memref<728x256xf32, #tpu.memory_space<vmem>>, vector<8x256xf32>
    tpu.vector_store %arg24[%c48_321, %c0_322], %365 {strides = array<i32>} : memref<728x256xf32, #tpu.memory_space<vmem>>, vector<8x256xf32>,
    %367 = vector.extract_strided_slice %352 {offsets = [0, 90], sizes = [8, 256], strides = [1, 1]} : vector<8x512xf32> to vector<8x256xf32>
    %c56_323 = arith.constant 56 : index
    %c0_324 = arith.constant 0 : index
    %368 = vector.load %arg24[%c56_323, %c0_324] : memref<728x256xf32, #tpu.memory_space<vmem>>, vector<8x256xf32>
    tpu.vector_store %arg24[%c56_323, %c0_324], %367 {strides = array<i32>} : memref<728x256xf32, #tpu.memory_space<vmem>>, vector<8x256xf32>,
    %369 = vector.extract_strided_slice %352 {offsets = [0, 91], sizes = [8, 256], strides = [1, 1]} : vector<8x512xf32> to vector<8x256xf32>
    %c64_325 = arith.constant 64 : index
    %c0_326 = arith.constant 0 : index
    %370 = vector.load %arg24[%c64_325, %c0_326] : memref<728x256xf32, #tpu.memory_space<vmem>>, vector<8x256xf32>
    tpu.vector_store %arg24[%c64_325, %c0_326], %369 {strides = array<i32>} : memref<728x256xf32, #tpu.memory_space<vmem>>, vector<8x256xf32>,
    %371 = vector.extract_strided_slice %352 {offsets = [0, 92], sizes = [8, 256], strides = [1, 1]} : vector<8x512xf32> to vector<8x256xf32>
    %c72_327 = arith.constant 72 : index
    %c0_328 = arith.constant 0 : index
    %372 = vector.load %arg24[%c72_327, %c0_328] : memref<728x256xf32, #tpu.memory_space<vmem>>, vector<8x256xf32>
    tpu.vector_store %arg24[%c72_327, %c0_328], %371 {strides = array<i32>} : memref<728x256xf32, #tpu.memory_space<vmem>>, vector<8x256xf32>,
    %373 = vector.extract_strided_slice %352 {offsets = [0, 93], sizes = [8, 256], strides = [1, 1]} : vector<8x512xf32> to vector<8x256xf32>
    %c80_329 = arith.constant 80 : index
    %c0_330 = arith.constant 0 : index
    %374 = vector.load %arg24[%c80_329, %c0_330] : memref<728x256xf32, #tpu.memory_space<vmem>>, vector<8x256xf32>
    tpu.vector_store %arg24[%c80_329, %c0_330], %373 {strides = array<i32>} : memref<728x256xf32, #tpu.memory_space<vmem>>, vector<8x256xf32>,
    %375 = vector.extract_strided_slice %352 {offsets = [0, 94], sizes = [8, 256], strides = [1, 1]} : vector<8x512xf32> to vector<8x256xf32>
    %c88_331 = arith.constant 88 : index
    %c0_332 = arith.constant 0 : index
    %376 = vector.load %arg24[%c88_331, %c0_332] : memref<728x256xf32, #tpu.memory_space<vmem>>, vector<8x256xf32>
    tpu.vector_store %arg24[%c88_331, %c0_332], %375 {strides = array<i32>} : memref<728x256xf32, #tpu.memory_space<vmem>>, vector<8x256xf32>,
    %377 = vector.extract_strided_slice %352 {offsets = [0, 95], sizes = [8, 256], strides = [1, 1]} : vector<8x512xf32> to vector<8x256xf32>
    %c96_333 = arith.constant 96 : index
    %c0_334 = arith.constant 0 : index
    %378 = vector.load %arg24[%c96_333, %c0_334] : memref<728x256xf32, #tpu.memory_space<vmem>>, vector<8x256xf32>
    tpu.vector_store %arg24[%c96_333, %c0_334], %377 {strides = array<i32>} : memref<728x256xf32, #tpu.memory_space<vmem>>, vector<8x256xf32>,
    %379 = vector.extract_strided_slice %352 {offsets = [0, 96], sizes = [8, 256], strides = [1, 1]} : vector<8x512xf32> to vector<8x256xf32>
    %c104_335 = arith.constant 104 : index
    %c0_336 = arith.constant 0 : index
    %380 = vector.load %arg24[%c104_335, %c0_336] : memref<728x256xf32, #tpu.memory_space<vmem>>, vector<8x256xf32>
    tpu.vector_store %arg24[%c104_335, %c0_336], %379 {strides = array<i32>} : memref<728x256xf32, #tpu.memory_space<vmem>>, vector<8x256xf32>,
    %381 = vector.extract_strided_slice %352 {offsets = [0, 97], sizes = [8, 256], strides = [1, 1]} : vector<8x512xf32> to vector<8x256xf32>
    %c112_337 = arith.constant 112 : index
    %c0_338 = arith.constant 0 : index
    %382 = vector.load %arg24[%c112_337, %c0_338] : memref<728x256xf32, #tpu.memory_space<vmem>>, vector<8x256xf32>
    tpu.vector_store %arg24[%c112_337, %c0_338], %381 {strides = array<i32>} : memref<728x256xf32, #tpu.memory_space<vmem>>, vector<8x256xf32>,
    %383 = vector.extract_strided_slice %352 {offsets = [0, 98], sizes = [8, 256], strides = [1, 1]} : vector<8x512xf32> to vector<8x256xf32>
    %c120_339 = arith.constant 120 : index
    %c0_340 = arith.constant 0 : index
    %384 = vector.load %arg24[%c120_339, %c0_340] : memref<728x256xf32, #tpu.memory_space<vmem>>, vector<8x256xf32>
    tpu.vector_store %arg24[%c120_339, %c0_340], %383 {strides = array<i32>} : memref<728x256xf32, #tpu.memory_space<vmem>>, vector<8x256xf32>,
    %385 = vector.extract_strided_slice %352 {offsets = [0, 99], sizes = [8, 256], strides = [1, 1]} : vector<8x512xf32> to vector<8x256xf32>
    %c128_341 = arith.constant 128 : index
    %c0_342 = arith.constant 0 : index
    %386 = vector.load %arg24[%c128_341, %c0_342] : memref<728x256xf32, #tpu.memory_space<vmem>>, vector<8x256xf32>
    tpu.vector_store %arg24[%c128_341, %c0_342], %385 {strides = array<i32>} : memref<728x256xf32, #tpu.memory_space<vmem>>, vector<8x256xf32>,
    %387 = vector.extract_strided_slice %352 {offsets = [0, 100], sizes = [8, 256], strides = [1, 1]} : vector<8x512xf32> to vector<8x256xf32>
    %c136_343 = arith.constant 136 : index
    %c0_344 = arith.constant 0 : index
    %388 = vector.load %arg24[%c136_343, %c0_344] : memref<728x256xf32, #tpu.memory_space<vmem>>, vector<8x256xf32>
    tpu.vector_store %arg24[%c136_343, %c0_344], %387 {strides = array<i32>} : memref<728x256xf32, #tpu.memory_space<vmem>>, vector<8x256xf32>,
    %389 = vector.extract_strided_slice %352 {offsets = [0, 101], sizes = [8, 256], strides = [1, 1]} : vector<8x512xf32> to vector<8x256xf32>
    %c144_345 = arith.constant 144 : index
    %c0_346 = arith.constant 0 : index
    %390 = vector.load %arg24[%c144_345, %c0_346] : memref<728x256xf32, #tpu.memory_space<vmem>>, vector<8x256xf32>
    tpu.vector_store %arg24[%c144_345, %c0_346], %389 {strides = array<i32>} : memref<728x256xf32, #tpu.memory_space<vmem>>, vector<8x256xf32>,
    %391 = vector.extract_strided_slice %352 {offsets = [0, 102], sizes = [8, 256], strides = [1, 1]} : vector<8x512xf32> to vector<8x256xf32>
    %c152_347 = arith.constant 152 : index
    %c0_348 = arith.constant 0 : index
    %392 = vector.load %arg24[%c152_347, %c0_348] : memref<728x256xf32, #tpu.memory_space<vmem>>, vector<8x256xf32>
    tpu.vector_store %arg24[%c152_347, %c0_348], %391 {strides = array<i32>} : memref<728x256xf32, #tpu.memory_space<vmem>>, vector<8x256xf32>,
    %393 = vector.extract_strided_slice %352 {offsets = [0, 103], sizes = [8, 256], strides = [1, 1]} : vector<8x512xf32> to vector<8x256xf32>
    %c160_349 = arith.constant 160 : index
    %c0_350 = arith.constant 0 : index
    %394 = vector.load %arg24[%c160_349, %c0_350] : memref<728x256xf32, #tpu.memory_space<vmem>>, vector<8x256xf32>
    tpu.vector_store %arg24[%c160_349, %c0_350], %393 {strides = array<i32>} : memref<728x256xf32, #tpu.memory_space<vmem>>, vector<8x256xf32>,
    %395 = vector.extract_strided_slice %352 {offsets = [0, 104], sizes = [8, 256], strides = [1, 1]} : vector<8x512xf32> to vector<8x256xf32>
    %c168_351 = arith.constant 168 : index
    %c0_352 = arith.constant 0 : index
    %396 = vector.load %arg24[%c168_351, %c0_352] : memref<728x256xf32, #tpu.memory_space<vmem>>, vector<8x256xf32>
    tpu.vector_store %arg24[%c168_351, %c0_352], %395 {strides = array<i32>} : memref<728x256xf32, #tpu.memory_space<vmem>>, vector<8x256xf32>,
    %397 = vector.extract_strided_slice %352 {offsets = [0, 105], sizes = [8, 256], strides = [1, 1]} : vector<8x512xf32> to vector<8x256xf32>
    %c176_353 = arith.constant 176 : index
    %c0_354 = arith.constant 0 : index
    %398 = vector.load %arg24[%c176_353, %c0_354] : memref<728x256xf32, #tpu.memory_space<vmem>>, vector<8x256xf32>
    tpu.vector_store %arg24[%c176_353, %c0_354], %397 {strides = array<i32>} : memref<728x256xf32, #tpu.memory_space<vmem>>, vector<8x256xf32>,
    %399 = vector.extract_strided_slice %352 {offsets = [0, 106], sizes = [8, 256], strides = [1, 1]} : vector<8x512xf32> to vector<8x256xf32>
    %c184_355 = arith.constant 184 : index
    %c0_356 = arith.constant 0 : index
    %400 = vector.load %arg24[%c184_355, %c0_356] : memref<728x256xf32, #tpu.memory_space<vmem>>, vector<8x256xf32>
    tpu.vector_store %arg24[%c184_355, %c0_356], %399 {strides = array<i32>} : memref<728x256xf32, #tpu.memory_space<vmem>>, vector<8x256xf32>,
    %401 = vector.extract_strided_slice %352 {offsets = [0, 107], sizes = [8, 256], strides = [1, 1]} : vector<8x512xf32> to vector<8x256xf32>
    %c192_357 = arith.constant 192 : index
    %c0_358 = arith.constant 0 : index
    %402 = vector.load %arg24[%c192_357, %c0_358] : memref<728x256xf32, #tpu.memory_space<vmem>>, vector<8x256xf32>
    tpu.vector_store %arg24[%c192_357, %c0_358], %401 {strides = array<i32>} : memref<728x256xf32, #tpu.memory_space<vmem>>, vector<8x256xf32>,
    %403 = vector.extract_strided_slice %352 {offsets = [0, 108], sizes = [8, 256], strides = [1, 1]} : vector<8x512xf32> to vector<8x256xf32>
    %c200_359 = arith.constant 200 : index
    %c0_360 = arith.constant 0 : index
    %404 = vector.load %arg24[%c200_359, %c0_360] : memref<728x256xf32, #tpu.memory_space<vmem>>, vector<8x256xf32>
    tpu.vector_store %arg24[%c200_359, %c0_360], %403 {strides = array<i32>} : memref<728x256xf32, #tpu.memory_space<vmem>>, vector<8x256xf32>,
    %405 = vector.extract_strided_slice %352 {offsets = [0, 109], sizes = [8, 256], strides = [1, 1]} : vector<8x512xf32> to vector<8x256xf32>
    %c208_361 = arith.constant 208 : index
    %c0_362 = arith.constant 0 : index
    %406 = vector.load %arg24[%c208_361, %c0_362] : memref<728x256xf32, #tpu.memory_space<vmem>>, vector<8x256xf32>
    tpu.vector_store %arg24[%c208_361, %c0_362], %405 {strides = array<i32>} : memref<728x256xf32, #tpu.memory_space<vmem>>, vector<8x256xf32>,
    %407 = vector.extract_strided_slice %352 {offsets = [0, 110], sizes = [8, 256], strides = [1, 1]} : vector<8x512xf32> to vector<8x256xf32>
    %c216_363 = arith.constant 216 : index
    %c0_364 = arith.constant 0 : index
    %408 = vector.load %arg24[%c216_363, %c0_364] : memref<728x256xf32, #tpu.memory_space<vmem>>, vector<8x256xf32>
    tpu.vector_store %arg24[%c216_363, %c0_364], %407 {strides = array<i32>} : memref<728x256xf32, #tpu.memory_space<vmem>>, vector<8x256xf32>,
    %409 = vector.extract_strided_slice %352 {offsets = [0, 111], sizes = [8, 256], strides = [1, 1]} : vector<8x512xf32> to vector<8x256xf32>
    %c224_365 = arith.constant 224 : index
    %c0_366 = arith.constant 0 : index
    %410 = vector.load %arg24[%c224_365, %c0_366] : memref<728x256xf32, #tpu.memory_space<vmem>>, vector<8x256xf32>
    tpu.vector_store %arg24[%c224_365, %c0_366], %409 {strides = array<i32>} : memref<728x256xf32, #tpu.memory_space<vmem>>, vector<8x256xf32>,
    %411 = vector.extract_strided_slice %352 {offsets = [0, 112], sizes = [8, 256], strides = [1, 1]} : vector<8x512xf32> to vector<8x256xf32>
    %c232 = arith.constant 232 : index
    %c0_367 = arith.constant 0 : index
    %412 = vector.load %arg24[%c232, %c0_367] : memref<728x256xf32, #tpu.memory_space<vmem>>, vector<8x256xf32>
    tpu.vector_store %arg24[%c232, %c0_367], %411 {strides = array<i32>} : memref<728x256xf32, #tpu.memory_space<vmem>>, vector<8x256xf32>,
    %413 = vector.extract_strided_slice %352 {offsets = [0, 113], sizes = [8, 256], strides = [1, 1]} : vector<8x512xf32> to vector<8x256xf32>
    %c240_368 = arith.constant 240 : index
    %c0_369 = arith.constant 0 : index
    %414 = vector.load %arg24[%c240_368, %c0_369] : memref<728x256xf32, #tpu.memory_space<vmem>>, vector<8x256xf32>
    tpu.vector_store %arg24[%c240_368, %c0_369], %413 {strides = array<i32>} : memref<728x256xf32, #tpu.memory_space<vmem>>, vector<8x256xf32>,
    %415 = vector.extract_strided_slice %352 {offsets = [0, 114], sizes = [8, 256], strides = [1, 1]} : vector<8x512xf32> to vector<8x256xf32>
    %c248 = arith.constant 248 : index
    %c0_370 = arith.constant 0 : index
    %416 = vector.load %arg24[%c248, %c0_370] : memref<728x256xf32, #tpu.memory_space<vmem>>, vector<8x256xf32>
    tpu.vector_store %arg24[%c248, %c0_370], %415 {strides = array<i32>} : memref<728x256xf32, #tpu.memory_space<vmem>>, vector<8x256xf32>,
    %417 = vector.extract_strided_slice %352 {offsets = [0, 115], sizes = [8, 256], strides = [1, 1]} : vector<8x512xf32> to vector<8x256xf32>
    %c256_371 = arith.constant 256 : index
    %c0_372 = arith.constant 0 : index
    %418 = vector.load %arg24[%c256_371, %c0_372] : memref<728x256xf32, #tpu.memory_space<vmem>>, vector<8x256xf32>
    tpu.vector_store %arg24[%c256_371, %c0_372], %417 {strides = array<i32>} : memref<728x256xf32, #tpu.memory_space<vmem>>, vector<8x256xf32>,
    %419 = vector.extract_strided_slice %352 {offsets = [0, 116], sizes = [8, 256], strides = [1, 1]} : vector<8x512xf32> to vector<8x256xf32>
    %c264_373 = arith.constant 264 : index
    %c0_374 = arith.constant 0 : index
    %420 = vector.load %arg24[%c264_373, %c0_374] : memref<728x256xf32, #tpu.memory_space<vmem>>, vector<8x256xf32>
    tpu.vector_store %arg24[%c264_373, %c0_374], %419 {strides = array<i32>} : memref<728x256xf32, #tpu.memory_space<vmem>>, vector<8x256xf32>,
    %421 = vector.extract_strided_slice %352 {offsets = [0, 117], sizes = [8, 256], strides = [1, 1]} : vector<8x512xf32> to vector<8x256xf32>
    %c272 = arith.constant 272 : index
    %c0_375 = arith.constant 0 : index
    %422 = vector.load %arg24[%c272, %c0_375] : memref<728x256xf32, #tpu.memory_space<vmem>>, vector<8x256xf32>
    tpu.vector_store %arg24[%c272, %c0_375], %421 {strides = array<i32>} : memref<728x256xf32, #tpu.memory_space<vmem>>, vector<8x256xf32>,
    %423 = vector.extract_strided_slice %352 {offsets = [0, 118], sizes = [8, 256], strides = [1, 1]} : vector<8x512xf32> to vector<8x256xf32>
    %c280_376 = arith.constant 280 : index
    %c0_377 = arith.constant 0 : index
    %424 = vector.load %arg24[%c280_376, %c0_377] : memref<728x256xf32, #tpu.memory_space<vmem>>, vector<8x256xf32>
    tpu.vector_store %arg24[%c280_376, %c0_377], %423 {strides = array<i32>} : memref<728x256xf32, #tpu.memory_space<vmem>>, vector<8x256xf32>,
    %425 = vector.extract_strided_slice %352 {offsets = [0, 119], sizes = [8, 256], strides = [1, 1]} : vector<8x512xf32> to vector<8x256xf32>
    %c288_378 = arith.constant 288 : index
    %c0_379 = arith.constant 0 : index
    %426 = vector.load %arg24[%c288_378, %c0_379] : memref<728x256xf32, #tpu.memory_space<vmem>>, vector<8x256xf32>
    tpu.vector_store %arg24[%c288_378, %c0_379], %425 {strides = array<i32>} : memref<728x256xf32, #tpu.memory_space<vmem>>, vector<8x256xf32>,
    %427 = vector.extract_strided_slice %352 {offsets = [0, 120], sizes = [8, 256], strides = [1, 1]} : vector<8x512xf32> to vector<8x256xf32>
    %c296 = arith.constant 296 : index
    %c0_380 = arith.constant 0 : index
    %428 = vector.load %arg24[%c296, %c0_380] : memref<728x256xf32, #tpu.memory_space<vmem>>, vector<8x256xf32>
    tpu.vector_store %arg24[%c296, %c0_380], %427 {strides = array<i32>} : memref<728x256xf32, #tpu.memory_space<vmem>>, vector<8x256xf32>,
    %429 = vector.extract_strided_slice %352 {offsets = [0, 121], sizes = [8, 256], strides = [1, 1]} : vector<8x512xf32> to vector<8x256xf32>
    %c304 = arith.constant 304 : index
    %c0_381 = arith.constant 0 : index
    %430 = vector.load %arg24[%c304, %c0_381] : memref<728x256xf32, #tpu.memory_space<vmem>>, vector<8x256xf32>
    tpu.vector_store %arg24[%c304, %c0_381], %429 {strides = array<i32>} : memref<728x256xf32, #tpu.memory_space<vmem>>, vector<8x256xf32>,
    %431 = vector.extract_strided_slice %352 {offsets = [0, 122], sizes = [8, 256], strides = [1, 1]} : vector<8x512xf32> to vector<8x256xf32>
    %c312_382 = arith.constant 312 : index
    %c0_383 = arith.constant 0 : index
    %432 = vector.load %arg24[%c312_382, %c0_383] : memref<728x256xf32, #tpu.memory_space<vmem>>, vector<8x256xf32>
    tpu.vector_store %arg24[%c312_382, %c0_383], %431 {strides = array<i32>} : memref<728x256xf32, #tpu.memory_space<vmem>>, vector<8x256xf32>,
    %433 = vector.extract_strided_slice %352 {offsets = [0, 123], sizes = [8, 256], strides = [1, 1]} : vector<8x512xf32> to vector<8x256xf32>
    %c320_384 = arith.constant 320 : index
    %c0_385 = arith.constant 0 : index
    %434 = vector.load %arg24[%c320_384, %c0_385] : memref<728x256xf32, #tpu.memory_space<vmem>>, vector<8x256xf32>
    tpu.vector_store %arg24[%c320_384, %c0_385], %433 {strides = array<i32>} : memref<728x256xf32, #tpu.memory_space<vmem>>, vector<8x256xf32>,
    %435 = vector.extract_strided_slice %352 {offsets = [0, 124], sizes = [8, 256], strides = [1, 1]} : vector<8x512xf32> to vector<8x256xf32>
    %c328 = arith.constant 328 : index
    %c0_386 = arith.constant 0 : index
    %436 = vector.load %arg24[%c328, %c0_386] : memref<728x256xf32, #tpu.memory_space<vmem>>, vector<8x256xf32>
    tpu.vector_store %arg24[%c328, %c0_386], %435 {strides = array<i32>} : memref<728x256xf32, #tpu.memory_space<vmem>>, vector<8x256xf32>,
    %437 = vector.extract_strided_slice %352 {offsets = [0, 125], sizes = [8, 256], strides = [1, 1]} : vector<8x512xf32> to vector<8x256xf32>
    %c336_387 = arith.constant 336 : index
    %c0_388 = arith.constant 0 : index
    %438 = vector.load %arg24[%c336_387, %c0_388] : memref<728x256xf32, #tpu.memory_space<vmem>>, vector<8x256xf32>
    tpu.vector_store %arg24[%c336_387, %c0_388], %437 {strides = array<i32>} : memref<728x256xf32, #tpu.memory_space<vmem>>, vector<8x256xf32>,
    %439 = vector.extract_strided_slice %352 {offsets = [0, 126], sizes = [8, 256], strides = [1, 1]} : vector<8x512xf32> to vector<8x256xf32>
    %c344 = arith.constant 344 : index
    %c0_389 = arith.constant 0 : index
    %440 = vector.load %arg24[%c344, %c0_389] : memref<728x256xf32, #tpu.memory_space<vmem>>, vector<8x256xf32>
    tpu.vector_store %arg24[%c344, %c0_389], %439 {strides = array<i32>} : memref<728x256xf32, #tpu.memory_space<vmem>>, vector<8x256xf32>,
    %441 = vector.extract_strided_slice %352 {offsets = [0, 127], sizes = [8, 256], strides = [1, 1]} : vector<8x512xf32> to vector<8x256xf32>
    %c352_390 = arith.constant 352 : index
    %c0_391 = arith.constant 0 : index
    %442 = vector.load %arg24[%c352_390, %c0_391] : memref<728x256xf32, #tpu.memory_space<vmem>>, vector<8x256xf32>
    tpu.vector_store %arg24[%c352_390, %c0_391], %441 {strides = array<i32>} : memref<728x256xf32, #tpu.memory_space<vmem>>, vector<8x256xf32>,
    %443 = vector.extract_strided_slice %352 {offsets = [0, 128], sizes = [8, 256], strides = [1, 1]} : vector<8x512xf32> to vector<8x256xf32>
    %c360_392 = arith.constant 360 : index
    %c0_393 = arith.constant 0 : index
    %444 = vector.load %arg24[%c360_392, %c0_393] : memref<728x256xf32, #tpu.memory_space<vmem>>, vector<8x256xf32>
    tpu.vector_store %arg24[%c360_392, %c0_393], %443 {strides = array<i32>} : memref<728x256xf32, #tpu.memory_space<vmem>>, vector<8x256xf32>,
    %445 = vector.extract_strided_slice %352 {offsets = [0, 129], sizes = [8, 256], strides = [1, 1]} : vector<8x512xf32> to vector<8x256xf32>
    %c368 = arith.constant 368 : index
    %c0_394 = arith.constant 0 : index
    %446 = vector.load %arg24[%c368, %c0_394] : memref<728x256xf32, #tpu.memory_space<vmem>>, vector<8x256xf32>
    tpu.vector_store %arg24[%c368, %c0_394], %445 {strides = array<i32>} : memref<728x256xf32, #tpu.memory_space<vmem>>, vector<8x256xf32>,
    %447 = vector.extract_strided_slice %352 {offsets = [0, 130], sizes = [8, 256], strides = [1, 1]} : vector<8x512xf32> to vector<8x256xf32>
    %c376 = arith.constant 376 : index
    %c0_395 = arith.constant 0 : index
    %448 = vector.load %arg24[%c376, %c0_395] : memref<728x256xf32, #tpu.memory_space<vmem>>, vector<8x256xf32>
    tpu.vector_store %arg24[%c376, %c0_395], %447 {strides = array<i32>} : memref<728x256xf32, #tpu.memory_space<vmem>>, vector<8x256xf32>,
    %449 = vector.extract_strided_slice %352 {offsets = [0, 131], sizes = [8, 256], strides = [1, 1]} : vector<8x512xf32> to vector<8x256xf32>
    %c384_396 = arith.constant 384 : index
    %c0_397 = arith.constant 0 : index
    %450 = vector.load %arg24[%c384_396, %c0_397] : memref<728x256xf32, #tpu.memory_space<vmem>>, vector<8x256xf32>
    tpu.vector_store %arg24[%c384_396, %c0_397], %449 {strides = array<i32>} : memref<728x256xf32, #tpu.memory_space<vmem>>, vector<8x256xf32>,
    %451 = vector.extract_strided_slice %352 {offsets = [0, 132], sizes = [8, 256], strides = [1, 1]} : vector<8x512xf32> to vector<8x256xf32>
    %c392 = arith.constant 392 : index
    %c0_398 = arith.constant 0 : index
    %452 = vector.load %arg24[%c392, %c0_398] : memref<728x256xf32, #tpu.memory_space<vmem>>, vector<8x256xf32>
    tpu.vector_store %arg24[%c392, %c0_398], %451 {strides = array<i32>} : memref<728x256xf32, #tpu.memory_space<vmem>>, vector<8x256xf32>,
    %453 = vector.extract_strided_slice %352 {offsets = [0, 133], sizes = [8, 256], strides = [1, 1]} : vector<8x512xf32> to vector<8x256xf32>
    %c400_399 = arith.constant 400 : index
    %c0_400 = arith.constant 0 : index
    %454 = vector.load %arg24[%c400_399, %c0_400] : memref<728x256xf32, #tpu.memory_space<vmem>>, vector<8x256xf32>
    tpu.vector_store %arg24[%c400_399, %c0_400], %453 {strides = array<i32>} : memref<728x256xf32, #tpu.memory_space<vmem>>, vector<8x256xf32>,
    %455 = vector.extract_strided_slice %352 {offsets = [0, 134], sizes = [8, 256], strides = [1, 1]} : vector<8x512xf32> to vector<8x256xf32>
    %c408 = arith.constant 408 : index
    %c0_401 = arith.constant 0 : index
    %456 = vector.load %arg24[%c408, %c0_401] : memref<728x256xf32, #tpu.memory_space<vmem>>, vector<8x256xf32>
    tpu.vector_store %arg24[%c408, %c0_401], %455 {strides = array<i32>} : memref<728x256xf32, #tpu.memory_space<vmem>>, vector<8x256xf32>,
    %457 = vector.extract_strided_slice %352 {offsets = [0, 135], sizes = [8, 256], strides = [1, 1]} : vector<8x512xf32> to vector<8x256xf32>
    %c416_402 = arith.constant 416 : index
    %c0_403 = arith.constant 0 : index
    %458 = vector.load %arg24[%c416_402, %c0_403] : memref<728x256xf32, #tpu.memory_space<vmem>>, vector<8x256xf32>
    tpu.vector_store %arg24[%c416_402, %c0_403], %457 {strides = array<i32>} : memref<728x256xf32, #tpu.memory_space<vmem>>, vector<8x256xf32>,
    %459 = vector.extract_strided_slice %352 {offsets = [0, 136], sizes = [8, 256], strides = [1, 1]} : vector<8x512xf32> to vector<8x256xf32>
    %c424 = arith.constant 424 : index
    %c0_404 = arith.constant 0 : index
    %460 = vector.load %arg24[%c424, %c0_404] : memref<728x256xf32, #tpu.memory_space<vmem>>, vector<8x256xf32>
    tpu.vector_store %arg24[%c424, %c0_404], %459 {strides = array<i32>} : memref<728x256xf32, #tpu.memory_space<vmem>>, vector<8x256xf32>,
    %461 = vector.extract_strided_slice %352 {offsets = [0, 137], sizes = [8, 256], strides = [1, 1]} : vector<8x512xf32> to vector<8x256xf32>
    %c432 = arith.constant 432 : index
    %c0_405 = arith.constant 0 : index
    %462 = vector.load %arg24[%c432, %c0_405] : memref<728x256xf32, #tpu.memory_space<vmem>>, vector<8x256xf32>
    tpu.vector_store %arg24[%c432, %c0_405], %461 {strides = array<i32>} : memref<728x256xf32, #tpu.memory_space<vmem>>, vector<8x256xf32>,
    %463 = vector.extract_strided_slice %352 {offsets = [0, 138], sizes = [8, 256], strides = [1, 1]} : vector<8x512xf32> to vector<8x256xf32>
    %c440_406 = arith.constant 440 : index
    %c0_407 = arith.constant 0 : index
    %464 = vector.load %arg24[%c440_406, %c0_407] : memref<728x256xf32, #tpu.memory_space<vmem>>, vector<8x256xf32>
    tpu.vector_store %arg24[%c440_406, %c0_407], %463 {strides = array<i32>} : memref<728x256xf32, #tpu.memory_space<vmem>>, vector<8x256xf32>,
    %465 = vector.extract_strided_slice %352 {offsets = [0, 139], sizes = [8, 256], strides = [1, 1]} : vector<8x512xf32> to vector<8x256xf32>
    %c448_408 = arith.constant 448 : index
    %c0_409 = arith.constant 0 : index
    %466 = vector.load %arg24[%c448_408, %c0_409] : memref<728x256xf32, #tpu.memory_space<vmem>>, vector<8x256xf32>
    tpu.vector_store %arg24[%c448_408, %c0_409], %465 {strides = array<i32>} : memref<728x256xf32, #tpu.memory_space<vmem>>, vector<8x256xf32>,
    %467 = vector.extract_strided_slice %352 {offsets = [0, 140], sizes = [8, 256], strides = [1, 1]} : vector<8x512xf32> to vector<8x256xf32>
    %c456 = arith.constant 456 : index
    %c0_410 = arith.constant 0 : index
    %468 = vector.load %arg24[%c456, %c0_410] : memref<728x256xf32, #tpu.memory_space<vmem>>, vector<8x256xf32>
    tpu.vector_store %arg24[%c456, %c0_410], %467 {strides = array<i32>} : memref<728x256xf32, #tpu.memory_space<vmem>>, vector<8x256xf32>,
    %469 = vector.extract_strided_slice %352 {offsets = [0, 141], sizes = [8, 256], strides = [1, 1]} : vector<8x512xf32> to vector<8x256xf32>
    %c464 = arith.constant 464 : index
    %c0_411 = arith.constant 0 : index
    %470 = vector.load %arg24[%c464, %c0_411] : memref<728x256xf32, #tpu.memory_space<vmem>>, vector<8x256xf32>
    tpu.vector_store %arg24[%c464, %c0_411], %469 {strides = array<i32>} : memref<728x256xf32, #tpu.memory_space<vmem>>, vector<8x256xf32>,
    %471 = vector.extract_strided_slice %352 {offsets = [0, 142], sizes = [8, 256], strides = [1, 1]} : vector<8x512xf32> to vector<8x256xf32>
    %c472 = arith.constant 472 : index
    %c0_412 = arith.constant 0 : index
    %472 = vector.load %arg24[%c472, %c0_412] : memref<728x256xf32, #tpu.memory_space<vmem>>, vector<8x256xf32>
    tpu.vector_store %arg24[%c472, %c0_412], %471 {strides = array<i32>} : memref<728x256xf32, #tpu.memory_space<vmem>>, vector<8x256xf32>,
    %473 = vector.extract_strided_slice %352 {offsets = [0, 143], sizes = [8, 256], strides = [1, 1]} : vector<8x512xf32> to vector<8x256xf32>
    %c480_413 = arith.constant 480 : index
    %c0_414 = arith.constant 0 : index
    %474 = vector.load %arg24[%c480_413, %c0_414] : memref<728x256xf32, #tpu.memory_space<vmem>>, vector<8x256xf32>
    tpu.vector_store %arg24[%c480_413, %c0_414], %473 {strides = array<i32>} : memref<728x256xf32, #tpu.memory_space<vmem>>, vector<8x256xf32>,
    %475 = vector.extract_strided_slice %352 {offsets = [0, 144], sizes = [8, 256], strides = [1, 1]} : vector<8x512xf32> to vector<8x256xf32>
    %c488 = arith.constant 488 : index
    %c0_415 = arith.constant 0 : index
    %476 = vector.load %arg24[%c488, %c0_415] : memref<728x256xf32, #tpu.memory_space<vmem>>, vector<8x256xf32>
    tpu.vector_store %arg24[%c488, %c0_415], %475 {strides = array<i32>} : memref<728x256xf32, #tpu.memory_space<vmem>>, vector<8x256xf32>,
    %477 = vector.extract_strided_slice %352 {offsets = [0, 145], sizes = [8, 256], strides = [1, 1]} : vector<8x512xf32> to vector<8x256xf32>
    %c496 = arith.constant 496 : index
    %c0_416 = arith.constant 0 : index
    %478 = vector.load %arg24[%c496, %c0_416] : memref<728x256xf32, #tpu.memory_space<vmem>>, vector<8x256xf32>
    tpu.vector_store %arg24[%c496, %c0_416], %477 {strides = array<i32>} : memref<728x256xf32, #tpu.memory_space<vmem>>, vector<8x256xf32>,
    %479 = vector.extract_strided_slice %352 {offsets = [0, 146], sizes = [8, 256], strides = [1, 1]} : vector<8x512xf32> to vector<8x256xf32>
    %c504 = arith.constant 504 : index
    %c0_417 = arith.constant 0 : index
    %480 = vector.load %arg24[%c504, %c0_417] : memref<728x256xf32, #tpu.memory_space<vmem>>, vector<8x256xf32>
    tpu.vector_store %arg24[%c504, %c0_417], %479 {strides = array<i32>} : memref<728x256xf32, #tpu.memory_space<vmem>>, vector<8x256xf32>,
    %481 = vector.extract_strided_slice %352 {offsets = [0, 147], sizes = [8, 256], strides = [1, 1]} : vector<8x512xf32> to vector<8x256xf32>
    %c512 = arith.constant 512 : index
    %c0_418 = arith.constant 0 : index
    %482 = vector.load %arg24[%c512, %c0_418] : memref<728x256xf32, #tpu.memory_space<vmem>>, vector<8x256xf32>
    tpu.vector_store %arg24[%c512, %c0_418], %481 {strides = array<i32>} : memref<728x256xf32, #tpu.memory_space<vmem>>, vector<8x256xf32>,
    %483 = vector.extract_strided_slice %352 {offsets = [0, 148], sizes = [8, 256], strides = [1, 1]} : vector<8x512xf32> to vector<8x256xf32>
    %c520_419 = arith.constant 520 : index
    %c0_420 = arith.constant 0 : index
    %484 = vector.load %arg24[%c520_419, %c0_420] : memref<728x256xf32, #tpu.memory_space<vmem>>, vector<8x256xf32>
    tpu.vector_store %arg24[%c520_419, %c0_420], %483 {strides = array<i32>} : memref<728x256xf32, #tpu.memory_space<vmem>>, vector<8x256xf32>,
    %485 = vector.extract_strided_slice %352 {offsets = [0, 149], sizes = [8, 256], strides = [1, 1]} : vector<8x512xf32> to vector<8x256xf32>
    %c528 = arith.constant 528 : index
    %c0_421 = arith.constant 0 : index
    %486 = vector.load %arg24[%c528, %c0_421] : memref<728x256xf32, #tpu.memory_space<vmem>>, vector<8x256xf32>
    tpu.vector_store %arg24[%c528, %c0_421], %485 {strides = array<i32>} : memref<728x256xf32, #tpu.memory_space<vmem>>, vector<8x256xf32>,
    %487 = vector.extract_strided_slice %352 {offsets = [0, 150], sizes = [8, 256], strides = [1, 1]} : vector<8x512xf32> to vector<8x256xf32>
    %c536 = arith.constant 536 : index
    %c0_422 = arith.constant 0 : index
    %488 = vector.load %arg24[%c536, %c0_422] : memref<728x256xf32, #tpu.memory_space<vmem>>, vector<8x256xf32>
    tpu.vector_store %arg24[%c536, %c0_422], %487 {strides = array<i32>} : memref<728x256xf32, #tpu.memory_space<vmem>>, vector<8x256xf32>,
    %489 = vector.extract_strided_slice %352 {offsets = [0, 151], sizes = [8, 256], strides = [1, 1]} : vector<8x512xf32> to vector<8x256xf32>
    %c544 = arith.constant 544 : index
    %c0_423 = arith.constant 0 : index
    %490 = vector.load %arg24[%c544, %c0_423] : memref<728x256xf32, #tpu.memory_space<vmem>>, vector<8x256xf32>
    tpu.vector_store %arg24[%c544, %c0_423], %489 {strides = array<i32>} : memref<728x256xf32, #tpu.memory_space<vmem>>, vector<8x256xf32>,
    %491 = vector.extract_strided_slice %352 {offsets = [0, 152], sizes = [8, 256], strides = [1, 1]} : vector<8x512xf32> to vector<8x256xf32>
    %c552 = arith.constant 552 : index
    %c0_424 = arith.constant 0 : index
    %492 = vector.load %arg24[%c552, %c0_424] : memref<728x256xf32, #tpu.memory_space<vmem>>, vector<8x256xf32>
    tpu.vector_store %arg24[%c552, %c0_424], %491 {strides = array<i32>} : memref<728x256xf32, #tpu.memory_space<vmem>>, vector<8x256xf32>,
    %493 = vector.extract_strided_slice %352 {offsets = [0, 153], sizes = [8, 256], strides = [1, 1]} : vector<8x512xf32> to vector<8x256xf32>
    %c560_425 = arith.constant 560 : index
    %c0_426 = arith.constant 0 : index
    %494 = vector.load %arg24[%c560_425, %c0_426] : memref<728x256xf32, #tpu.memory_space<vmem>>, vector<8x256xf32>
    tpu.vector_store %arg24[%c560_425, %c0_426], %493 {strides = array<i32>} : memref<728x256xf32, #tpu.memory_space<vmem>>, vector<8x256xf32>,
    %495 = vector.extract_strided_slice %352 {offsets = [0, 154], sizes = [8, 256], strides = [1, 1]} : vector<8x512xf32> to vector<8x256xf32>
    %c568 = arith.constant 568 : index
    %c0_427 = arith.constant 0 : index
    %496 = vector.load %arg24[%c568, %c0_427] : memref<728x256xf32, #tpu.memory_space<vmem>>, vector<8x256xf32>
    tpu.vector_store %arg24[%c568, %c0_427], %495 {strides = array<i32>} : memref<728x256xf32, #tpu.memory_space<vmem>>, vector<8x256xf32>,
    %497 = vector.extract_strided_slice %352 {offsets = [0, 155], sizes = [8, 256], strides = [1, 1]} : vector<8x512xf32> to vector<8x256xf32>
    %c576 = arith.constant 576 : index
    %c0_428 = arith.constant 0 : index
    %498 = vector.load %arg24[%c576, %c0_428] : memref<728x256xf32, #tpu.memory_space<vmem>>, vector<8x256xf32>
    tpu.vector_store %arg24[%c576, %c0_428], %497 {strides = array<i32>} : memref<728x256xf32, #tpu.memory_space<vmem>>, vector<8x256xf32>,
    %499 = vector.extract_strided_slice %352 {offsets = [0, 156], sizes = [8, 256], strides = [1, 1]} : vector<8x512xf32> to vector<8x256xf32>
    %c584 = arith.constant 584 : index
    %c0_429 = arith.constant 0 : index
    %500 = vector.load %arg24[%c584, %c0_429] : memref<728x256xf32, #tpu.memory_space<vmem>>, vector<8x256xf32>
    tpu.vector_store %arg24[%c584, %c0_429], %499 {strides = array<i32>} : memref<728x256xf32, #tpu.memory_space<vmem>>, vector<8x256xf32>,
    %501 = vector.extract_strided_slice %352 {offsets = [0, 157], sizes = [8, 256], strides = [1, 1]} : vector<8x512xf32> to vector<8x256xf32>
    %c592 = arith.constant 592 : index
    %c0_430 = arith.constant 0 : index
    %502 = vector.load %arg24[%c592, %c0_430] : memref<728x256xf32, #tpu.memory_space<vmem>>, vector<8x256xf32>
    tpu.vector_store %arg24[%c592, %c0_430], %501 {strides = array<i32>} : memref<728x256xf32, #tpu.memory_space<vmem>>, vector<8x256xf32>,
    %503 = vector.extract_strided_slice %352 {offsets = [0, 158], sizes = [8, 256], strides = [1, 1]} : vector<8x512xf32> to vector<8x256xf32>
    %c600 = arith.constant 600 : index
    %c0_431 = arith.constant 0 : index
    %504 = vector.load %arg24[%c600, %c0_431] : memref<728x256xf32, #tpu.memory_space<vmem>>, vector<8x256xf32>
    tpu.vector_store %arg24[%c600, %c0_431], %503 {strides = array<i32>} : memref<728x256xf32, #tpu.memory_space<vmem>>, vector<8x256xf32>,
    %505 = vector.extract_strided_slice %352 {offsets = [0, 159], sizes = [8, 256], strides = [1, 1]} : vector<8x512xf32> to vector<8x256xf32>
    %c608 = arith.constant 608 : index
    %c0_432 = arith.constant 0 : index
    %506 = vector.load %arg24[%c608, %c0_432] : memref<728x256xf32, #tpu.memory_space<vmem>>, vector<8x256xf32>
    tpu.vector_store %arg24[%c608, %c0_432], %505 {strides = array<i32>} : memref<728x256xf32, #tpu.memory_space<vmem>>, vector<8x256xf32>,
    %507 = vector.extract_strided_slice %352 {offsets = [0, 160], sizes = [8, 256], strides = [1, 1]} : vector<8x512xf32> to vector<8x256xf32>
    %c616 = arith.constant 616 : index
    %c0_433 = arith.constant 0 : index
    %508 = vector.load %arg24[%c616, %c0_433] : memref<728x256xf32, #tpu.memory_space<vmem>>, vector<8x256xf32>
    tpu.vector_store %arg24[%c616, %c0_433], %507 {strides = array<i32>} : memref<728x256xf32, #tpu.memory_space<vmem>>, vector<8x256xf32>,
    %509 = vector.extract_strided_slice %352 {offsets = [0, 161], sizes = [8, 256], strides = [1, 1]} : vector<8x512xf32> to vector<8x256xf32>
    %c624 = arith.constant 624 : index
    %c0_434 = arith.constant 0 : index
    %510 = vector.load %arg24[%c624, %c0_434] : memref<728x256xf32, #tpu.memory_space<vmem>>, vector<8x256xf32>
    tpu.vector_store %arg24[%c624, %c0_434], %509 {strides = array<i32>} : memref<728x256xf32, #tpu.memory_space<vmem>>, vector<8x256xf32>,
    %511 = vector.extract_strided_slice %352 {offsets = [0, 162], sizes = [8, 256], strides = [1, 1]} : vector<8x512xf32> to vector<8x256xf32>
    %c632 = arith.constant 632 : index
    %c0_435 = arith.constant 0 : index
    %512 = vector.load %arg24[%c632, %c0_435] : memref<728x256xf32, #tpu.memory_space<vmem>>, vector<8x256xf32>
    tpu.vector_store %arg24[%c632, %c0_435], %511 {strides = array<i32>} : memref<728x256xf32, #tpu.memory_space<vmem>>, vector<8x256xf32>,
    %513 = vector.extract_strided_slice %352 {offsets = [0, 163], sizes = [8, 256], strides = [1, 1]} : vector<8x512xf32> to vector<8x256xf32>
    %c640 = arith.constant 640 : index
    %c0_436 = arith.constant 0 : index
    %514 = vector.load %arg24[%c640, %c0_436] : memref<728x256xf32, #tpu.memory_space<vmem>>, vector<8x256xf32>
    tpu.vector_store %arg24[%c640, %c0_436], %513 {strides = array<i32>} : memref<728x256xf32, #tpu.memory_space<vmem>>, vector<8x256xf32>,
    %515 = vector.extract_strided_slice %352 {offsets = [0, 164], sizes = [8, 256], strides = [1, 1]} : vector<8x512xf32> to vector<8x256xf32>
    %c648 = arith.constant 648 : index
    %c0_437 = arith.constant 0 : index
    %516 = vector.load %arg24[%c648, %c0_437] : memref<728x256xf32, #tpu.memory_space<vmem>>, vector<8x256xf32>
    tpu.vector_store %arg24[%c648, %c0_437], %515 {strides = array<i32>} : memref<728x256xf32, #tpu.memory_space<vmem>>, vector<8x256xf32>,
    %517 = vector.extract_strided_slice %352 {offsets = [0, 165], sizes = [8, 256], strides = [1, 1]} : vector<8x512xf32> to vector<8x256xf32>
    %c656 = arith.constant 656 : index
    %c0_438 = arith.constant 0 : index
    %518 = vector.load %arg24[%c656, %c0_438] : memref<728x256xf32, #tpu.memory_space<vmem>>, vector<8x256xf32>
    tpu.vector_store %arg24[%c656, %c0_438], %517 {strides = array<i32>} : memref<728x256xf32, #tpu.memory_space<vmem>>, vector<8x256xf32>,
    %519 = vector.extract_strided_slice %352 {offsets = [0, 166], sizes = [8, 256], strides = [1, 1]} : vector<8x512xf32> to vector<8x256xf32>
    %c664 = arith.constant 664 : index
    %c0_439 = arith.constant 0 : index
    %520 = vector.load %arg24[%c664, %c0_439] : memref<728x256xf32, #tpu.memory_space<vmem>>, vector<8x256xf32>
    tpu.vector_store %arg24[%c664, %c0_439], %519 {strides = array<i32>} : memref<728x256xf32, #tpu.memory_space<vmem>>, vector<8x256xf32>,
    %521 = vector.extract_strided_slice %352 {offsets = [0, 167], sizes = [8, 256], strides = [1, 1]} : vector<8x512xf32> to vector<8x256xf32>
    %c672 = arith.constant 672 : index
    %c0_440 = arith.constant 0 : index
    %522 = vector.load %arg24[%c672, %c0_440] : memref<728x256xf32, #tpu.memory_space<vmem>>, vector<8x256xf32>
    tpu.vector_store %arg24[%c672, %c0_440], %521 {strides = array<i32>} : memref<728x256xf32, #tpu.memory_space<vmem>>, vector<8x256xf32>,
    %523 = vector.extract_strided_slice %352 {offsets = [0, 168], sizes = [8, 256], strides = [1, 1]} : vector<8x512xf32> to vector<8x256xf32>
    %c680 = arith.constant 680 : index
    %c0_441 = arith.constant 0 : index
    %524 = vector.load %arg24[%c680, %c0_441] : memref<728x256xf32, #tpu.memory_space<vmem>>, vector<8x256xf32>
    tpu.vector_store %arg24[%c680, %c0_441], %523 {strides = array<i32>} : memref<728x256xf32, #tpu.memory_space<vmem>>, vector<8x256xf32>,
    %525 = vector.extract_strided_slice %352 {offsets = [0, 169], sizes = [8, 256], strides = [1, 1]} : vector<8x512xf32> to vector<8x256xf32>
    %c688 = arith.constant 688 : index
    %c0_442 = arith.constant 0 : index
    %526 = vector.load %arg24[%c688, %c0_442] : memref<728x256xf32, #tpu.memory_space<vmem>>, vector<8x256xf32>
    tpu.vector_store %arg24[%c688, %c0_442], %525 {strides = array<i32>} : memref<728x256xf32, #tpu.memory_space<vmem>>, vector<8x256xf32>,
    %527 = vector.extract_strided_slice %352 {offsets = [0, 170], sizes = [8, 256], strides = [1, 1]} : vector<8x512xf32> to vector<8x256xf32>
    %c696 = arith.constant 696 : index
    %c0_443 = arith.constant 0 : index
    %528 = vector.load %arg24[%c696, %c0_443] : memref<728x256xf32, #tpu.memory_space<vmem>>, vector<8x256xf32>
    tpu.vector_store %arg24[%c696, %c0_443], %527 {strides = array<i32>} : memref<728x256xf32, #tpu.memory_space<vmem>>, vector<8x256xf32>,
    %529 = vector.extract_strided_slice %352 {offsets = [0, 171], sizes = [8, 256], strides = [1, 1]} : vector<8x512xf32> to vector<8x256xf32>
    %c704 = arith.constant 704 : index
    %c0_444 = arith.constant 0 : index
    %530 = vector.load %arg24[%c704, %c0_444] : memref<728x256xf32, #tpu.memory_space<vmem>>, vector<8x256xf32>
    tpu.vector_store %arg24[%c704, %c0_444], %529 {strides = array<i32>} : memref<728x256xf32, #tpu.memory_space<vmem>>, vector<8x256xf32>,
    %531 = vector.extract_strided_slice %352 {offsets = [0, 172], sizes = [8, 256], strides = [1, 1]} : vector<8x512xf32> to vector<8x256xf32>
    %c712 = arith.constant 712 : index
    %c0_445 = arith.constant 0 : index
    %532 = vector.load %arg24[%c712, %c0_445] : memref<728x256xf32, #tpu.memory_space<vmem>>, vector<8x256xf32>
    tpu.vector_store %arg24[%c712, %c0_445], %531 {strides = array<i32>} : memref<728x256xf32, #tpu.memory_space<vmem>>, vector<8x256xf32>,
    %533 = vector.extract_strided_slice %352 {offsets = [0, 173], sizes = [8, 256], strides = [1, 1]} : vector<8x512xf32> to vector<8x256xf32>
    %c720 = arith.constant 720 : index
    %c0_446 = arith.constant 0 : index
    %534 = vector.load %arg24[%c720, %c0_446] : memref<728x256xf32, #tpu.memory_space<vmem>>, vector<8x256xf32>
    tpu.vector_store %arg24[%c720, %c0_446], %533 {strides = array<i32>} : memref<728x256xf32, #tpu.memory_space<vmem>>, vector<8x256xf32>,
    %c0_447 = arith.constant 0 : index
    %c0_448 = arith.constant 0 : index
    %535 = vector.load %arg20[%c0_447, %c0_448] : memref<1x728xf32, #tpu.memory_space<vmem>>, vector<1x728xf32>
    %c0_449 = arith.constant 0 : index
    %c0_450 = arith.constant 0 : index
    %536 = vector.load %arg24[%c0_449, %c0_450] : memref<728x256xf32, #tpu.memory_space<vmem>>, vector<728x256xf32>
    %cst_451 = arith.constant dense<0.000000e+00> : vector<1x256xf32>
    %537 = tpu.matmul %535, %536, %cst_451 {dimension_numbers = #tpu.dot_dimension_numbers<[1], [0], [0], [1], [0, 0, 1, 1], [], []>} : vector<1x728xf32>, vector<728x256xf32>, vector<1x256xf32> -> vector<1x256xf32>
    %c0_452 = arith.constant 0 : index
    %c0_453 = arith.constant 0 : index
    %538 = vector.load %arg21[%c0_452, %c0_453] : memref<1x1xf32, #tpu.memory_space<vmem>>, vector<1x1xf32>
    %539 = vector.broadcast %538 : vector<1x1xf32> to vector<1x256xf32>
    %540 = arith.addf %537, %539 : vector<1x256xf32>
    %cst_454 = arith.constant 2.000000e+01 : f32
    %541 = vector.broadcast %cst_454 : f32 to vector<1x256xf32>
    %542 = arith.cmpf ogt, %540, %541 : vector<1x256xf32>
    %cst_455 = arith.constant 2.000000e+01 : f32
    %543 = vector.broadcast %cst_455 : f32 to vector<1x256xf32>
    %544 = arith.minimumf %540, %543 : vector<1x256xf32>
    %545 = math.exp %544 : vector<1x256xf32>
    %546 = math.log1p %545 : vector<1x256xf32>
    %547 = arith.select %542, %540, %546 : vector<1x256xi1>, vector<1x256xf32>
    %c0_456 = arith.constant 0 : index
    %c0_457 = arith.constant 0 : index
    %c0_458 = arith.constant 0 : index
    %548 = vector.load %arg22[%c0_456, %c0_457, %c0_458] : memref<1x1x256xf32, #tpu.memory_space<vmem>>, vector<1x1x256xf32>
    %549 = vector.shape_cast %548 : vector<1x1x256xf32> to vector<1x256xf32>
    %550 = vector.shape_cast %547 : vector<1x256xf32> to vector<1x1x256xf32>
    tpu.vector_store %arg22[%c0_456, %c0_457, %c0_458], %550 {strides = array<i32>} : memref<1x1x256xf32, #tpu.memory_space<vmem>>, vector<1x1x256xf32>,
    return
  }
  func.func @transform_0(%arg0: i32) -> (i32, i32, i32) {
    %c0_i32 = arith.constant 0 : i32
    %c0_i32_0 = arith.constant 0 : i32
    %c0_i32_1 = arith.constant 0 : i32
    return %arg0, %c0_i32, %c0_i32_0 : i32, i32, i32
  }
  func.func @transform_1(%arg0: i32) -> (i32, i32) {
    %c0_i32 = arith.constant 0 : i32
    %c0_i32_0 = arith.constant 0 : i32
    %c0_i32_1 = arith.constant 0 : i32
    return %c0_i32, %c0_i32_0 : i32, i32
  }
  func.func @transform_2(%arg0: i32) -> (i32, i32) {
    %c0_i32 = arith.constant 0 : i32
    %c0_i32_0 = arith.constant 0 : i32
    %c0_i32_1 = arith.constant 0 : i32
    return %c0_i32, %c0_i32_0 : i32, i32
  }
  func.func @transform_3(%arg0: i32) -> (i32, i32) {
    %c0_i32 = arith.constant 0 : i32
    %c0_i32_0 = arith.constant 0 : i32
    %c0_i32_1 = arith.constant 0 : i32
    return %c0_i32, %c0_i32_0 : i32, i32
  }
  func.func @transform_4(%arg0: i32) -> (i32, i32) {
    %c0_i32 = arith.constant 0 : i32
    %c0_i32_0 = arith.constant 0 : i32
    %c0_i32_1 = arith.constant 0 : i32
    return %c0_i32, %c0_i32_0 : i32, i32
  }
  func.func @transform_5(%arg0: i32) -> (i32, i32) {
    %c0_i32 = arith.constant 0 : i32
    %c0_i32_0 = arith.constant 0 : i32
    %c0_i32_1 = arith.constant 0 : i32
    return %c0_i32, %c0_i32_0 : i32, i32
  }
  func.func @transform_6(%arg0: i32) -> (i32, i32) {
    %c0_i32 = arith.constant 0 : i32
    %c0_i32_0 = arith.constant 0 : i32
    %c0_i32_1 = arith.constant 0 : i32
    return %c0_i32, %c0_i32_0 : i32, i32
  }
  func.func @transform_7(%arg0: i32) -> (i32, i32) {
    %c0_i32 = arith.constant 0 : i32
    %c0_i32_0 = arith.constant 0 : i32
    %c0_i32_1 = arith.constant 0 : i32
    return %c0_i32, %c0_i32_0 : i32, i32
  }
  func.func @transform_8(%arg0: i32) -> (i32, i32) {
    %c0_i32 = arith.constant 0 : i32
    %c0_i32_0 = arith.constant 0 : i32
    %c0_i32_1 = arith.constant 0 : i32
    return %c0_i32, %c0_i32_0 : i32, i32
  }
  func.func @transform_9(%arg0: i32) -> (i32, i32) {
    %c0_i32 = arith.constant 0 : i32
    %c0_i32_0 = arith.constant 0 : i32
    %c0_i32_1 = arith.constant 0 : i32
    return %c0_i32, %c0_i32_0 : i32, i32
  }
  func.func @transform_10(%arg0: i32) -> (i32, i32) {
    %c0_i32 = arith.constant 0 : i32
    %c0_i32_0 = arith.constant 0 : i32
    %c0_i32_1 = arith.constant 0 : i32
    return %c0_i32, %c0_i32_0 : i32, i32
  }
  func.func @transform_11(%arg0: i32) -> (i32, i32) {
    %c0_i32 = arith.constant 0 : i32
    %c0_i32_0 = arith.constant 0 : i32
    %c0_i32_1 = arith.constant 0 : i32
    return %c0_i32, %c0_i32_0 : i32, i32
  }
  func.func @transform_12(%arg0: i32) -> (i32, i32) {
    %c0_i32 = arith.constant 0 : i32
    %c0_i32_0 = arith.constant 0 : i32
    %c0_i32_1 = arith.constant 0 : i32
    return %c0_i32, %c0_i32_0 : i32, i32
  }
  func.func @transform_13(%arg0: i32) -> (i32, i32) {
    %c0_i32 = arith.constant 0 : i32
    %c0_i32_0 = arith.constant 0 : i32
    %c0_i32_1 = arith.constant 0 : i32
    return %c0_i32, %c0_i32_0 : i32, i32
  }
  func.func @transform_14(%arg0: i32) -> (i32, i32) {
    %c0_i32 = arith.constant 0 : i32
    %c0_i32_0 = arith.constant 0 : i32
    %c0_i32_1 = arith.constant 0 : i32
    return %c0_i32, %c0_i32_0 : i32, i32
  }
  func.func @transform_15(%arg0: i32) -> (i32, i32) {
    %c0_i32 = arith.constant 0 : i32
    %c0_i32_0 = arith.constant 0 : i32
    %c0_i32_1 = arith.constant 0 : i32
    return %c0_i32, %c0_i32_0 : i32, i32
  }
  func.func @transform_16(%arg0: i32) -> (i32, i32) {
    %c0_i32 = arith.constant 0 : i32
    %c0_i32_0 = arith.constant 0 : i32
    %c0_i32_1 = arith.constant 0 : i32
    return %c0_i32, %c0_i32_0 : i32, i32
  }
  func.func @transform_17(%arg0: i32) -> (i32, i32) {
    %c0_i32 = arith.constant 0 : i32
    %c0_i32_0 = arith.constant 0 : i32
    %c0_i32_1 = arith.constant 0 : i32
    return %c0_i32, %c0_i32_0 : i32, i32
  }
  func.func @transform_18(%arg0: i32) -> (i32, i32) {
    %c0_i32 = arith.constant 0 : i32
    %c0_i32_0 = arith.constant 0 : i32
    %c0_i32_1 = arith.constant 0 : i32
    return %c0_i32, %c0_i32_0 : i32, i32
  }
  func.func @transform_19(%arg0: i32) -> (i32, i32) {
    %c0_i32 = arith.constant 0 : i32
    %c0_i32_0 = arith.constant 0 : i32
    %c0_i32_1 = arith.constant 0 : i32
    return %c0_i32, %c0_i32_0 : i32, i32
  }
  func.func @transform_20(%arg0: i32) -> (i32, i32) {
    %c0_i32 = arith.constant 0 : i32
    %c0_i32_0 = arith.constant 0 : i32
    %c0_i32_1 = arith.constant 0 : i32
    return %c0_i32, %c0_i32_0 : i32, i32
  }
  func.func @transform_21(%arg0: i32) -> (i32, i32, i32) {
    %c0_i32 = arith.constant 0 : i32
    %c0_i32_0 = arith.constant 0 : i32
    %c0_i32_1 = arith.constant 0 : i32
    return %arg0, %c0_i32, %c0_i32_0 : i32, i32, i32
  }
}

</mosaic_0001>

<llo_original>
// kernel: forward.1
$region0: #{forward.1}
  #allocation0 [shape = 'u32[]', space=smem, size = 0x4, offset = 0x4, fixed_abs, tag = 'smem constant byte address 0x4 - core index']
  #allocation1 [shape = 'u32[144,128]{1,0:T(1,128)}', space=vmem, size = 0x12000, scoped, tag = 'internal scratch']
  #allocation2 [shape = 'f32[40,512]{1,0:T(8,128)}', space=vmem, size = 0x14000, scoped, tag = 'scratch operand']
  #allocation3 [shape = 'f32[728,256]{1,0:T(8,128)}', space=vmem, size = 0xb6000, scoped, tag = 'scratch operand']
  #allocation4 [shape = 'f32[1,1]{1,0:T(1,128)S(1)}', space=vmem, size = 0x200, scoped, tag = 'scoped memory for forward.1']
  #allocation5 [shape = 'f32[1,1]{1,0:T(1,128)S(1)}', space=vmem, size = 0x200, scoped, tag = 'scoped memory for forward.1']
  %s0 = inlined_call_operand.hbm [shape: f32[2,1,256], index: 0, kind: input, shape index: {}]
  %s1 = inlined_call_operand.hbm [shape: f32[20,200], index: 1, kind: input, shape index: {}]
  %s2 = inlined_call_operand.vmem [shape: f32[20,1], index: 2, kind: input, shape index: {}]
  %s3 = inlined_call_operand.hbm [shape: f32[10,360], index: 3, kind: input, shape index: {}]
  %s4 = inlined_call_operand.vmem [shape: f32[10,1], index: 4, kind: input, shape index: {}]
  %s5 = inlined_call_operand.vmem [shape: f32[10,600], index: 5, kind: input, shape index: {}]
  %s6 = inlined_call_operand.vmem [shape: f32[10,1], index: 6, kind: input, shape index: {}]
  %s7 = inlined_call_operand.hbm [shape: f32[10,240], index: 7, kind: input, shape index: {}]
  %s8 = inlined_call_operand.vmem [shape: f32[10,1], index: 8, kind: input, shape index: {}]
  %s9 = inlined_call_operand.vmem [shape: f32[10,480], index: 9, kind: input, shape index: {}]
  %s10 = inlined_call_operand.vmem [shape: f32[10,1], index: 10, kind: input, shape index: {}]
  %s11 = inlined_call_operand.hbm [shape: f32[10,240], index: 11, kind: input, shape index: {}]
  %s12 = inlined_call_operand.vmem [shape: f32[10,1], index: 12, kind: input, shape index: {}]
  %s13 = inlined_call_operand.vmem [shape: f32[7,160], index: 13, kind: input, shape index: {}]
  %s14 = inlined_call_operand.vmem [shape: f32[7,1], index: 14, kind: input, shape index: {}]
  %s15 = inlined_call_operand.vmem [shape: f32[3,40], index: 15, kind: input, shape index: {}]
  %s16 = inlined_call_operand.vmem [shape: f32[3,1], index: 16, kind: input, shape index: {}]
  %s17 = inlined_call_operand.vmem [shape: f32[1,80], index: 17, kind: input, shape index: {}]
  %s18 = inlined_call_operand.<no memory space> [shape: f32[1,1], index: 18, kind: input, shape index: {}]
  %s19 = inlined_call_operand.vmem [shape: f32[1,728], index: 19, kind: input, shape index: {}]
  %s20 = inlined_call_operand.<no memory space> [shape: f32[1,1], index: 20, kind: input, shape index: {}]
  %s21 = inlined_call_operand.vmem [shape: f32[2,1,256], index: 21, kind: output, shape index: {}]
  %s22 = sld [smem:[#allocation0]]
  $region137: #{forward.1} parent=0
    _
  %s24 = ssub.s32 1, %s22
  %s25 = scalar_select 0, %s24, %s22
  %v26 = vstv %s18
  %27 = vst [vmem:[#allocation4] sm:$0x1] %v26
  %v28 = vstv %s20
  %29 = vst [vmem:[#allocation5] sm:$0x1] %v28
  $region1: #{forward.1} parent=0
    #allocation6 [shape = 'u8[2048]{0}', space=vmem, size = 0x800, scoped, tag = 'input window, operand 0']
    #allocation7 [shape = 's32[2]{0}', space=sflag, size = 0x8, scoped, tag = 'scoped memory for forward.1']
    #allocation8 [shape = 'u8[24576]{0}', space=vmem, size = 0x6000, scoped, tag = 'input window, operand 1, single buffered']
    #allocation9 [shape = 's32[1]{0}', space=sflag, size = 0x4, scoped, tag = 'scoped memory for forward.1']
    #allocation10 [shape = 'u8[24576]{0}', space=vmem, size = 0x6000, scoped, tag = 'input window, operand 3, single buffered']
    #allocation11 [shape = 'u8[16384]{0}', space=vmem, size = 0x4000, scoped, tag = 'input window, operand 7, single buffered']
    #allocation12 [shape = 's32[1]{0}', space=sflag, size = 0x4, scoped, tag = 'scoped memory for forward.1']
    #allocation13 [shape = 'u8[16384]{0}', space=vmem, size = 0x4000, scoped, tag = 'input window, operand 11, single buffered']
    %30 = vsyncpa [#allocation7], 0
    %s31 = scalar_lea.sflag [#allocation7], 1
    %32 = vsyncpa %s31, 0
    %33 = vsyncpa [#allocation9], 0
    %34 = vsyncpa [#allocation12], 0
    loop: start=0, step=1, limit=4
    $region2: #{forward.1} parent=1 // loop_pre_header
      _
    $region3: #{forward.1} parent=1 // loop_header
      %s36 = sphi 0, %s40
      %p37 = scmp.ge.s32.totalorder %s36, 4
      %s46 = sphi 0, %s48
      %s49 = sphi 0, %s46
      %s50 = sphi 0, %s49
      %s66 = sphi 0, %s50
      %s70 = sphi 0, %s70
      %s72 = sphi 0, %s70
      %s73 = sphi 0, %s72
      %s87 = sphi 0, %s73
      %s91 = sphi 0, %s91
      %s93 = sphi 0, %s91
      %s94 = sphi 0, %s93
      %s108 = sphi 0, %s94
      %s112 = sphi 0, %s112
      %s114 = sphi 0, %s112
      %s115 = sphi 0, %s114
      %s129 = sphi 0, %s115
      %s133 = sphi 0, %s133
      %s135 = sphi 0, %s133
      %s136 = sphi 0, %s135
      %s150 = sphi 0, %s136
      %s154 = sphi 0, %s154
      %s156 = sphi 0, %s154
      %s157 = sphi 0, %s156
      %s171 = sphi 0, %s157
      %s175 = sphi 0, %s175
      %s177 = sphi 0, %s175
      %s178 = sphi 0, %s177
      %s192 = sphi 0, %s178
      %s196 = sphi 0, %s196
      %s198 = sphi 0, %s196
      %s199 = sphi 0, %s198
      %s213 = sphi 0, %s199
      %s217 = sphi 0, %s217
      %s219 = sphi 0, %s217
      %s220 = sphi 0, %s219
      %s234 = sphi 0, %s220
      %s238 = sphi 0, %s238
      %s240 = sphi 0, %s238
      %s241 = sphi 0, %s240
      %s255 = sphi 0, %s241
      %s259 = sphi 0, %s259
      %s261 = sphi 0, %s259
      %s262 = sphi 0, %s261
      %s276 = sphi 0, %s262
      %s280 = sphi 0, %s280
      %s282 = sphi 0, %s280
      %s283 = sphi 0, %s282
      %s297 = sphi 0, %s283
      %s301 = sphi 0, %s301
      %s303 = sphi 0, %s301
      %s304 = sphi 0, %s303
      %s318 = sphi 0, %s304
      %s322 = sphi 0, %s322
      %s324 = sphi 0, %s322
      %s325 = sphi 0, %s324
      %s339 = sphi 0, %s325
      %s343 = sphi 0, %s343
      %s345 = sphi 0, %s343
      %s346 = sphi 0, %s345
      %s360 = sphi 0, %s346
      %s364 = sphi 0, %s364
      %s366 = sphi 0, %s364
      %s367 = sphi 0, %s366
      %s381 = sphi 0, %s367
      %s385 = sphi 0, %s385
      %s387 = sphi 0, %s385
      %s388 = sphi 0, %s387
      %s402 = sphi 0, %s388
      %s406 = sphi 0, %s406
      %s408 = sphi 0, %s406
      %s409 = sphi 0, %s408
      %s423 = sphi 0, %s409
      %s427 = sphi 0, %s427
      %s429 = sphi 0, %s427
      %s430 = sphi 0, %s429
      %s444 = sphi 0, %s430
      %s448 = sphi 0, %s448
      %s450 = sphi 0, %s448
      %s451 = sphi 0, %s450
      %s465 = sphi 0, %s451
      %s469 = sphi 0, %s469
      %s471 = sphi 0, %s469
      %s472 = sphi 0, %s471
      %s486 = sphi 0, %s472
      %s492 = sphi 0, %s494
      %s495 = sphi 0, %s492
      %s496 = sphi 0, %s495
      %s512 = sphi 0, %s496
    $region4: #{forward.1} parent=1 // loop_header_branch
      %39 = sbr.rel (%p37) target = $region8
    $region5: #{forward.1} parent=1 // loop_body
      %s41 = ssub.s32 %s36, 1
      %s42 = ssub.s32 %s36, 2
      %s43 = sadd.s32 %s36, 1
      %s44 = ssub.s32 %s36, %s43
      %p45 = scmp.eq.s32.totalorder %s44, 0
      %s47 = sadd.s32 %s46, 1
      %s48 = scalar_select %p45, %s46, %s47
      %p51 = pneg %p45
      %p52 = scmp.eq.s32.totalorder %s36, 1
      %p53 = por %p51, %p52
      %p54 = scmp.ne.s32.totalorder %s46, %s49
      %p55 = scmp.eq.s32.totalorder %s36, 0
      %p56 = por %p54, %p55
      %p57 = scmp.ne.s32.totalorder %s46, %s49
      %p58 = scmp.eq.s32.totalorder %s41, 1
      %p59 = por %p57, %p58
      %p60 = scmp.ne.s32.totalorder %s49, %s50
      %p61 = scmp.eq.s32.totalorder %s41, 0
      %p62 = por %p60, %p61
      %p63 = scmp.ne.s32.totalorder %s49, %s50
      %p64 = scmp.eq.s32.totalorder %s42, 1
      %p65 = por %p63, %p64
      %p67 = scmp.ne.s32.totalorder %s50, %s66
      %p68 = scmp.eq.s32.totalorder %s42, 0
      %p69 = por %p67, %p68
      %s71 = sadd.s32 %s70, 1
      %p74 = scmp.eq.s32.totalorder %s36, 1
      %p75 = scmp.ne.s32.totalorder %s70, %s72
      %p76 = scmp.eq.s32.totalorder %s36, 0
      %p77 = por %p75, %p76
      %p78 = scmp.ne.s32.totalorder %s70, %s72
      %p79 = scmp.eq.s32.totalorder %s41, 1
      %p80 = por %p78, %p79
      %p81 = scmp.ne.s32.totalorder %s72, %s73
      %p82 = scmp.eq.s32.totalorder %s41, 0
      %p83 = por %p81, %p82
      %p84 = scmp.ne.s32.totalorder %s72, %s73
      %p85 = scmp.eq.s32.totalorder %s42, 1
      %p86 = por %p84, %p85
      %p88 = scmp.ne.s32.totalorder %s73, %s87
      %p89 = scmp.eq.s32.totalorder %s42, 0
      %p90 = por %p88, %p89
      %s92 = sadd.s32 %s91, 1
      %p95 = scmp.eq.s32.totalorder %s36, 1
      %p96 = scmp.ne.s32.totalorder %s91, %s93
      %p97 = scmp.eq.s32.totalorder %s36, 0
      %p98 = por %p96, %p97
      %p99 = scmp.ne.s32.totalorder %s91, %s93
      %p100 = scmp.eq.s32.totalorder %s41, 1
      %p101 = por %p99, %p100
      %p102 = scmp.ne.s32.totalorder %s93, %s94
      %p103 = scmp.eq.s32.totalorder %s41, 0
      %p104 = por %p102, %p103
      %p105 = scmp.ne.s32.totalorder %s93, %s94
      %p106 = scmp.eq.s32.totalorder %s42, 1
      %p107 = por %p105, %p106
      %p109 = scmp.ne.s32.totalorder %s94, %s108
      %p110 = scmp.eq.s32.totalorder %s42, 0
      %p111 = por %p109, %p110
      %s113 = sadd.s32 %s112, 1
      %p116 = scmp.eq.s32.totalorder %s36, 1
      %p117 = scmp.ne.s32.totalorder %s112, %s114
      %p118 = scmp.eq.s32.totalorder %s36, 0
      %p119 = por %p117, %p118
      %p120 = scmp.ne.s32.totalorder %s112, %s114
      %p121 = scmp.eq.s32.totalorder %s41, 1
      %p122 = por %p120, %p121
      %p123 = scmp.ne.s32.totalorder %s114, %s115
      %p124 = scmp.eq.s32.totalorder %s41, 0
      %p125 = por %p123, %p124
      %p126 = scmp.ne.s32.totalorder %s114, %s115
      %p127 = scmp.eq.s32.totalorder %s42, 1
      %p128 = por %p126, %p127
      %p130 = scmp.ne.s32.totalorder %s115, %s129
      %p131 = scmp.eq.s32.totalorder %s42, 0
      %p132 = por %p130, %p131
      %s134 = sadd.s32 %s133, 1
      %p137 = scmp.eq.s32.totalorder %s36, 1
      %p138 = scmp.ne.s32.totalorder %s133, %s135
      %p139 = scmp.eq.s32.totalorder %s36, 0
      %p140 = por %p138, %p139
      %p141 = scmp.ne.s32.totalorder %s133, %s135
      %p142 = scmp.eq.s32.totalorder %s41, 1
      %p143 = por %p141, %p142
      %p144 = scmp.ne.s32.totalorder %s135, %s136
      %p145 = scmp.eq.s32.totalorder %s41, 0
      %p146 = por %p144, %p145
      %p147 = scmp.ne.s32.totalorder %s135, %s136
      %p148 = scmp.eq.s32.totalorder %s42, 1
      %p149 = por %p147, %p148
      %p151 = scmp.ne.s32.totalorder %s136, %s150
      %p152 = scmp.eq.s32.totalorder %s42, 0
      %p153 = por %p151, %p152
      %s155 = sadd.s32 %s154, 1
      %p158 = scmp.eq.s32.totalorder %s36, 1
      %p159 = scmp.ne.s32.totalorder %s154, %s156
      %p160 = scmp.eq.s32.totalorder %s36, 0
      %p161 = por %p159, %p160
      %p162 = scmp.ne.s32.totalorder %s154, %s156
      %p163 = scmp.eq.s32.totalorder %s41, 1
      %p164 = por %p162, %p163
      %p165 = scmp.ne.s32.totalorder %s156, %s157
      %p166 = scmp.eq.s32.totalorder %s41, 0
      %p167 = por %p165, %p166
      %p168 = scmp.ne.s32.totalorder %s156, %s157
      %p169 = scmp.eq.s32.totalorder %s42, 1
      %p170 = por %p168, %p169
      %p172 = scmp.ne.s32.totalorder %s157, %s171
      %p173 = scmp.eq.s32.totalorder %s42, 0
      %p174 = por %p172, %p173
      %s176 = sadd.s32 %s175, 1
      %p179 = scmp.eq.s32.totalorder %s36, 1
      %p180 = scmp.ne.s32.totalorder %s175, %s177
      %p181 = scmp.eq.s32.totalorder %s36, 0
      %p182 = por %p180, %p181
      %p183 = scmp.ne.s32.totalorder %s175, %s177
      %p184 = scmp.eq.s32.totalorder %s41, 1
      %p185 = por %p183, %p184
      %p186 = scmp.ne.s32.totalorder %s177, %s178
      %p187 = scmp.eq.s32.totalorder %s41, 0
      %p188 = por %p186, %p187
      %p189 = scmp.ne.s32.totalorder %s177, %s178
      %p190 = scmp.eq.s32.totalorder %s42, 1
      %p191 = por %p189, %p190
      %p193 = scmp.ne.s32.totalorder %s178, %s192
      %p194 = scmp.eq.s32.totalorder %s42, 0
      %p195 = por %p193, %p194
      %s197 = sadd.s32 %s196, 1
      %p200 = scmp.eq.s32.totalorder %s36, 1
      %p201 = scmp.ne.s32.totalorder %s196, %s198
      %p202 = scmp.eq.s32.totalorder %s36, 0
      %p203 = por %p201, %p202
      %p204 = scmp.ne.s32.totalorder %s196, %s198
      %p205 = scmp.eq.s32.totalorder %s41, 1
      %p206 = por %p204, %p205
      %p207 = scmp.ne.s32.totalorder %s198, %s199
      %p208 = scmp.eq.s32.totalorder %s41, 0
      %p209 = por %p207, %p208
      %p210 = scmp.ne.s32.totalorder %s198, %s199
      %p211 = scmp.eq.s32.totalorder %s42, 1
      %p212 = por %p210, %p211
      %p214 = scmp.ne.s32.totalorder %s199, %s213
      %p215 = scmp.eq.s32.totalorder %s42, 0
      %p216 = por %p214, %p215
      %s218 = sadd.s32 %s217, 1
      %p221 = scmp.eq.s32.totalorder %s36, 1
      %p222 = scmp.ne.s32.totalorder %s217, %s219
      %p223 = scmp.eq.s32.totalorder %s36, 0
      %p224 = por %p222, %p223
      %p225 = scmp.ne.s32.totalorder %s217, %s219
      %p226 = scmp.eq.s32.totalorder %s41, 1
      %p227 = por %p225, %p226
      %p228 = scmp.ne.s32.totalorder %s219, %s220
      %p229 = scmp.eq.s32.totalorder %s41, 0
      %p230 = por %p228, %p229
      %p231 = scmp.ne.s32.totalorder %s219, %s220
      %p232 = scmp.eq.s32.totalorder %s42, 1
      %p233 = por %p231, %p232
      %p235 = scmp.ne.s32.totalorder %s220, %s234
      %p236 = scmp.eq.s32.totalorder %s42, 0
      %p237 = por %p235, %p236
      %s239 = sadd.s32 %s238, 1
      %p242 = scmp.eq.s32.totalorder %s36, 1
      %p243 = scmp.ne.s32.totalorder %s238, %s240
      %p244 = scmp.eq.s32.totalorder %s36, 0
      %p245 = por %p243, %p244
      %p246 = scmp.ne.s32.totalorder %s238, %s240
      %p247 = scmp.eq.s32.totalorder %s41, 1
      %p248 = por %p246, %p247
      %p249 = scmp.ne.s32.totalorder %s240, %s241
      %p250 = scmp.eq.s32.totalorder %s41, 0
      %p251 = por %p249, %p250
      %p252 = scmp.ne.s32.totalorder %s240, %s241
      %p253 = scmp.eq.s32.totalorder %s42, 1
      %p254 = por %p252, %p253
      %p256 = scmp.ne.s32.totalorder %s241, %s255
      %p257 = scmp.eq.s32.totalorder %s42, 0
      %p258 = por %p256, %p257
      %s260 = sadd.s32 %s259, 1
      %p263 = scmp.eq.s32.totalorder %s36, 1
      %p264 = scmp.ne.s32.totalorder %s259, %s261
      %p265 = scmp.eq.s32.totalorder %s36, 0
      %p266 = por %p264, %p265
      %p267 = scmp.ne.s32.totalorder %s259, %s261
      %p268 = scmp.eq.s32.totalorder %s41, 1
      %p269 = por %p267, %p268
      %p270 = scmp.ne.s32.totalorder %s261, %s262
      %p271 = scmp.eq.s32.totalorder %s41, 0
      %p272 = por %p270, %p271
      %p273 = scmp.ne.s32.totalorder %s261, %s262
      %p274 = scmp.eq.s32.totalorder %s42, 1
      %p275 = por %p273, %p274
      %p277 = scmp.ne.s32.totalorder %s262, %s276
      %p278 = scmp.eq.s32.totalorder %s42, 0
      %p279 = por %p277, %p278
      %s281 = sadd.s32 %s280, 1
      %p284 = scmp.eq.s32.totalorder %s36, 1
      %p285 = scmp.ne.s32.totalorder %s280, %s282
      %p286 = scmp.eq.s32.totalorder %s36, 0
      %p287 = por %p285, %p286
      %p288 = scmp.ne.s32.totalorder %s280, %s282
      %p289 = scmp.eq.s32.totalorder %s41, 1
      %p290 = por %p288, %p289
      %p291 = scmp.ne.s32.totalorder %s282, %s283
      %p292 = scmp.eq.s32.totalorder %s41, 0
      %p293 = por %p291, %p292
      %p294 = scmp.ne.s32.totalorder %s282, %s283
      %p295 = scmp.eq.s32.totalorder %s42, 1
      %p296 = por %p294, %p295
      %p298 = scmp.ne.s32.totalorder %s283, %s297
      %p299 = scmp.eq.s32.totalorder %s42, 0
      %p300 = por %p298, %p299
      %s302 = sadd.s32 %s301, 1
      %p305 = scmp.eq.s32.totalorder %s36, 1
      %p306 = scmp.ne.s32.totalorder %s301, %s303
      %p307 = scmp.eq.s32.totalorder %s36, 0
      %p308 = por %p306, %p307
      %p309 = scmp.ne.s32.totalorder %s301, %s303
      %p310 = scmp.eq.s32.totalorder %s41, 1
      %p311 = por %p309, %p310
      %p312 = scmp.ne.s32.totalorder %s303, %s304
      %p313 = scmp.eq.s32.totalorder %s41, 0
      %p314 = por %p312, %p313
      %p315 = scmp.ne.s32.totalorder %s303, %s304
      %p316 = scmp.eq.s32.totalorder %s42, 1
      %p317 = por %p315, %p316
      %p319 = scmp.ne.s32.totalorder %s304, %s318
      %p320 = scmp.eq.s32.totalorder %s42, 0
      %p321 = por %p319, %p320
      %s323 = sadd.s32 %s322, 1
      %p326 = scmp.eq.s32.totalorder %s36, 1
      %p327 = scmp.ne.s32.totalorder %s322, %s324
      %p328 = scmp.eq.s32.totalorder %s36, 0
      %p329 = por %p327, %p328
      %p330 = scmp.ne.s32.totalorder %s322, %s324
      %p331 = scmp.eq.s32.totalorder %s41, 1
      %p332 = por %p330, %p331
      %p333 = scmp.ne.s32.totalorder %s324, %s325
      %p334 = scmp.eq.s32.totalorder %s41, 0
      %p335 = por %p333, %p334
      %p336 = scmp.ne.s32.totalorder %s324, %s325
      %p337 = scmp.eq.s32.totalorder %s42, 1
      %p338 = por %p336, %p337
      %p340 = scmp.ne.s32.totalorder %s325, %s339
      %p341 = scmp.eq.s32.totalorder %s42, 0
      %p342 = por %p340, %p341
      %s344 = sadd.s32 %s343, 1
      %p347 = scmp.eq.s32.totalorder %s36, 1
      %p348 = scmp.ne.s32.totalorder %s343, %s345
      %p349 = scmp.eq.s32.totalorder %s36, 0
      %p350 = por %p348, %p349
      %p351 = scmp.ne.s32.totalorder %s343, %s345
      %p352 = scmp.eq.s32.totalorder %s41, 1
      %p353 = por %p351, %p352
      %p354 = scmp.ne.s32.totalorder %s345, %s346
      %p355 = scmp.eq.s32.totalorder %s41, 0
      %p356 = por %p354, %p355
      %p357 = scmp.ne.s32.totalorder %s345, %s346
      %p358 = scmp.eq.s32.totalorder %s42, 1
      %p359 = por %p357, %p358
      %p361 = scmp.ne.s32.totalorder %s346, %s360
      %p362 = scmp.eq.s32.totalorder %s42, 0
      %p363 = por %p361, %p362
      %s365 = sadd.s32 %s364, 1
      %p368 = scmp.eq.s32.totalorder %s36, 1
      %p369 = scmp.ne.s32.totalorder %s364, %s366
      %p370 = scmp.eq.s32.totalorder %s36, 0
      %p371 = por %p369, %p370
      %p372 = scmp.ne.s32.totalorder %s364, %s366
      %p373 = scmp.eq.s32.totalorder %s41, 1
      %p374 = por %p372, %p373
      %p375 = scmp.ne.s32.totalorder %s366, %s367
      %p376 = scmp.eq.s32.totalorder %s41, 0
      %p377 = por %p375, %p376
      %p378 = scmp.ne.s32.totalorder %s366, %s367
      %p379 = scmp.eq.s32.totalorder %s42, 1
      %p380 = por %p378, %p379
      %p382 = scmp.ne.s32.totalorder %s367, %s381
      %p383 = scmp.eq.s32.totalorder %s42, 0
      %p384 = por %p382, %p383
      %s386 = sadd.s32 %s385, 1
      %p389 = scmp.eq.s32.totalorder %s36, 1
      %p390 = scmp.ne.s32.totalorder %s385, %s387
      %p391 = scmp.eq.s32.totalorder %s36, 0
      %p392 = por %p390, %p391
      %p393 = scmp.ne.s32.totalorder %s385, %s387
      %p394 = scmp.eq.s32.totalorder %s41, 1
      %p395 = por %p393, %p394
      %p396 = scmp.ne.s32.totalorder %s387, %s388
      %p397 = scmp.eq.s32.totalorder %s41, 0
      %p398 = por %p396, %p397
      %p399 = scmp.ne.s32.totalorder %s387, %s388
      %p400 = scmp.eq.s32.totalorder %s42, 1
      %p401 = por %p399, %p400
      %p403 = scmp.ne.s32.totalorder %s388, %s402
      %p404 = scmp.eq.s32.totalorder %s42, 0
      %p405 = por %p403, %p404
      %s407 = sadd.s32 %s406, 1
      %p410 = scmp.eq.s32.totalorder %s36, 1
      %p411 = scmp.ne.s32.totalorder %s406, %s408
      %p412 = scmp.eq.s32.totalorder %s36, 0
      %p413 = por %p411, %p412
      %p414 = scmp.ne.s32.totalorder %s406, %s408
      %p415 = scmp.eq.s32.totalorder %s41, 1
      %p416 = por %p414, %p415
      %p417 = scmp.ne.s32.totalorder %s408, %s409
      %p418 = scmp.eq.s32.totalorder %s41, 0
      %p419 = por %p417, %p418
      %p420 = scmp.ne.s32.totalorder %s408, %s409
      %p421 = scmp.eq.s32.totalorder %s42, 1
      %p422 = por %p420, %p421
      %p424 = scmp.ne.s32.totalorder %s409, %s423
      %p425 = scmp.eq.s32.totalorder %s42, 0
      %p426 = por %p424, %p425
      %s428 = sadd.s32 %s427, 1
      %p431 = scmp.eq.s32.totalorder %s36, 1
      %p432 = scmp.ne.s32.totalorder %s427, %s429
      %p433 = scmp.eq.s32.totalorder %s36, 0
      %p434 = por %p432, %p433
      %p435 = scmp.ne.s32.totalorder %s427, %s429
      %p436 = scmp.eq.s32.totalorder %s41, 1
      %p437 = por %p435, %p436
      %p438 = scmp.ne.s32.totalorder %s429, %s430
      %p439 = scmp.eq.s32.totalorder %s41, 0
      %p440 = por %p438, %p439
      %p441 = scmp.ne.s32.totalorder %s429, %s430
      %p442 = scmp.eq.s32.totalorder %s42, 1
      %p443 = por %p441, %p442
      %p445 = scmp.ne.s32.totalorder %s430, %s444
      %p446 = scmp.eq.s32.totalorder %s42, 0
      %p447 = por %p445, %p446
      %s449 = sadd.s32 %s448, 1
      %p452 = scmp.eq.s32.totalorder %s36, 1
      %p453 = scmp.ne.s32.totalorder %s448, %s450
      %p454 = scmp.eq.s32.totalorder %s36, 0
      %p455 = por %p453, %p454
      %p456 = scmp.ne.s32.totalorder %s448, %s450
      %p457 = scmp.eq.s32.totalorder %s41, 1
      %p458 = por %p456, %p457
      %p459 = scmp.ne.s32.totalorder %s450, %s451
      %p460 = scmp.eq.s32.totalorder %s41, 0
      %p461 = por %p459, %p460
      %p462 = scmp.ne.s32.totalorder %s450, %s451
      %p463 = scmp.eq.s32.totalorder %s42, 1
      %p464 = por %p462, %p463
      %p466 = scmp.ne.s32.totalorder %s451, %s465
      %p467 = scmp.eq.s32.totalorder %s42, 0
      %p468 = por %p466, %p467
      %s470 = sadd.s32 %s469, 1
      %p473 = scmp.eq.s32.totalorder %s36, 1
      %p474 = scmp.ne.s32.totalorder %s469, %s471
      %p475 = scmp.eq.s32.totalorder %s36, 0
      %p476 = por %p474, %p475
      %p477 = scmp.ne.s32.totalorder %s469, %s471
      %p478 = scmp.eq.s32.totalorder %s41, 1
      %p479 = por %p477, %p478
      %p480 = scmp.ne.s32.totalorder %s471, %s472
      %p481 = scmp.eq.s32.totalorder %s41, 0
      %p482 = por %p480, %p481
      %p483 = scmp.ne.s32.totalorder %s471, %s472
      %p484 = scmp.eq.s32.totalorder %s42, 1
      %p485 = por %p483, %p484
      %p487 = scmp.ne.s32.totalorder %s472, %s486
      %p488 = scmp.eq.s32.totalorder %s42, 0
      %p489 = por %p487, %p488
      %s490 = ssub.s32 %s36, %s43
      %p491 = scmp.eq.s32.totalorder %s490, 0
      %s493 = sadd.s32 %s492, 1
      %s494 = scalar_select %p491, %s492, %s493
      %p497 = pneg %p491
      %p498 = scmp.eq.s32.totalorder %s36, 1
      %p499 = por %p497, %p498
      %p500 = scmp.ne.s32.totalorder %s492, %s495
      %p501 = scmp.eq.s32.totalorder %s36, 0
      %p502 = por %p500, %p501
      %p503 = scmp.ne.s32.totalorder %s492, %s495
      %p504 = scmp.eq.s32.totalorder %s41, 1
      %p505 = por %p503, %p504
      %p506 = scmp.ne.s32.totalorder %s495, %s496
      %p507 = scmp.eq.s32.totalorder %s41, 0
      %p508 = por %p506, %p507
      %p509 = scmp.ne.s32.totalorder %s495, %s496
      %p510 = scmp.eq.s32.totalorder %s42, 1
      %p511 = por %p509, %p510
      %p513 = scmp.ne.s32.totalorder %s496, %s512
      %p514 = scmp.eq.s32.totalorder %s42, 0
      %p515 = por %p513, %p514
      %p516 = scmp.le.s32.totalorder 1, %s36
      %p517 = scmp.lt.s32.totalorder %s36, 3
      %p518 = pnand %p516, %p517
      %p519 = pneg %p518
      // Predicated region
      $region9: #{forward.1} parent=5 // pred_check
        _
      $region10: #{forward.1} parent=5 // pred_check_branch
        %521 = sbr.rel (%p518) target = $region12
      $region11: #{forward.1} parent=5 // pred_region
        %s522 = ssub.s32 %s36, 1
        // Predicated region
        $region13: #{forward.1} parent=11 // pred_check
          %p523 = pneg %p83
        $region14: #{forward.1} parent=11 // pred_check_branch
          %525 = sbr.rel (%p523) target = $region16
        $region15: #{forward.1} parent=11 // pred_region
          %s527 = ssub.s32 768, 768
          %528 = vsyncadd [#allocation9], %s527
          %s529 = sshll.u32 [#allocation8], 4
          %s530 = int_to_ptr.vmem [resolvable:$true] %s529
          %535 = dma.hbm_to_vmem [thread:$0]  %s1, 768, %s530, [#allocation9], 256, 256, 16
        $region16: #{forward.1} parent=11 // pred_fallthru
          _
        // Predicated region
        $region17: #{forward.1} parent=11 // pred_check
          %p536 = pneg %p104
        $region18: #{forward.1} parent=11 // pred_check_branch
          %538 = sbr.rel (%p536) target = $region20
        $region19: #{forward.1} parent=11 // pred_region
          _
        $region20: #{forward.1} parent=11 // pred_fallthru
          _
        // Predicated region
        $region21: #{forward.1} parent=11 // pred_check
          %p539 = pneg %p125
        $region22: #{forward.1} parent=11 // pred_check_branch
          %541 = sbr.rel (%p539) target = $region24
        $region23: #{forward.1} parent=11 // pred_region
          %s543 = ssub.s32 768, 768
          %544 = vsyncadd [#allocation9], %s543
          %s545 = sshll.u32 [#allocation10], 4
          %s546 = int_to_ptr.vmem [resolvable:$true] %s545
          %551 = dma.hbm_to_vmem [thread:$0]  %s3, 768, %s546, [#allocation9], 384, 384, 24
        $region24: #{forward.1} parent=11 // pred_fallthru
          _
        // Predicated region
        $region25: #{forward.1} parent=11 // pred_check
          %p552 = pneg %p146
        $region26: #{forward.1} parent=11 // pred_check_branch
          %554 = sbr.rel (%p552) target = $region28
        $region27: #{forward.1} parent=11 // pred_region
          _
        $region28: #{forward.1} parent=11 // pred_fallthru
          _
        // Predicated region
        $region29: #{forward.1} parent=11 // pred_check
          %p555 = pneg %p167
        $region30: #{forward.1} parent=11 // pred_check_branch
          %557 = sbr.rel (%p555) target = $region32
        $region31: #{forward.1} parent=11 // pred_region
          _
        $region32: #{forward.1} parent=11 // pred_fallthru
          _
        // Predicated region
        $region33: #{forward.1} parent=11 // pred_check
          %p558 = pneg %p188
        $region34: #{forward.1} parent=11 // pred_check_branch
          %560 = sbr.rel (%p558) target = $region36
        $region35: #{forward.1} parent=11 // pred_region
          _
        $region36: #{forward.1} parent=11 // pred_fallthru
          _
        // Predicated region
        $region37: #{forward.1} parent=11 // pred_check
          %p561 = pneg %p209
        $region38: #{forward.1} parent=11 // pred_check_branch
          %563 = sbr.rel (%p561) target = $region40
        $region39: #{forward.1} parent=11 // pred_region
          %s565 = ssub.s32 512, 512
          %566 = vsyncadd [#allocation12], %s565
          %s567 = sshll.u32 [#allocation11], 4
          %s568 = int_to_ptr.vmem [resolvable:$true] %s567
          %573 = dma.hbm_to_vmem [thread:$0]  %s7, 512, %s568, [#allocation12], 256, 256, 16
        $region40: #{forward.1} parent=11 // pred_fallthru
          _
        // Predicated region
        $region41: #{forward.1} parent=11 // pred_check
          %p574 = pneg %p230
        $region42: #{forward.1} parent=11 // pred_check_branch
          %576 = sbr.rel (%p574) target = $region44
        $region43: #{forward.1} parent=11 // pred_region
          _
        $region44: #{forward.1} parent=11 // pred_fallthru
          _
        // Predicated region
        $region45: #{forward.1} parent=11 // pred_check
          %p577 = pneg %p251
        $region46: #{forward.1} parent=11 // pred_check_branch
          %579 = sbr.rel (%p577) target = $region48
        $region47: #{forward.1} parent=11 // pred_region
          _
        $region48: #{forward.1} parent=11 // pred_fallthru
          _
        // Predicated region
        $region49: #{forward.1} parent=11 // pred_check
          %p580 = pneg %p272
        $region50: #{forward.1} parent=11 // pred_check_branch
          %582 = sbr.rel (%p580) target = $region52
        $region51: #{forward.1} parent=11 // pred_region
          _
        $region52: #{forward.1} parent=11 // pred_fallthru
          _
        // Predicated region
        $region53: #{forward.1} parent=11 // pred_check
          %p583 = pneg %p293
        $region54: #{forward.1} parent=11 // pred_check_branch
          %585 = sbr.rel (%p583) target = $region56
        $region55: #{forward.1} parent=11 // pred_region
          %s587 = ssub.s32 512, 512
          %588 = vsyncadd [#allocation12], %s587
          %s589 = sshll.u32 [#allocation13], 4
          %s590 = int_to_ptr.vmem [resolvable:$true] %s589
          %595 = dma.hbm_to_vmem [thread:$0]  %s11, 512, %s590, [#allocation12], 256, 256, 16
        $region56: #{forward.1} parent=11 // pred_fallthru
          _
        // Predicated region
        $region57: #{forward.1} parent=11 // pred_check
          %p596 = pneg %p314
        $region58: #{forward.1} parent=11 // pred_check_branch
          %598 = sbr.rel (%p596) target = $region60
        $region59: #{forward.1} parent=11 // pred_region
          _
        $region60: #{forward.1} parent=11 // pred_fallthru
          _
        // Predicated region
        $region61: #{forward.1} parent=11 // pred_check
          %p599 = pneg %p335
        $region62: #{forward.1} parent=11 // pred_check_branch
          %601 = sbr.rel (%p599) target = $region64
        $region63: #{forward.1} parent=11 // pred_region
          _
        $region64: #{forward.1} parent=11 // pred_fallthru
          _
        // Predicated region
        $region65: #{forward.1} parent=11 // pred_check
          %p602 = pneg %p356
        $region66: #{forward.1} parent=11 // pred_check_branch
          %604 = sbr.rel (%p602) target = $region68
        $region67: #{forward.1} parent=11 // pred_region
          _
        $region68: #{forward.1} parent=11 // pred_fallthru
          _
        // Predicated region
        $region69: #{forward.1} parent=11 // pred_check
          %p605 = pneg %p377
        $region70: #{forward.1} parent=11 // pred_check_branch
          %607 = sbr.rel (%p605) target = $region72
        $region71: #{forward.1} parent=11 // pred_region
          _
        $region72: #{forward.1} parent=11 // pred_fallthru
          _
        // Predicated region
        $region73: #{forward.1} parent=11 // pred_check
          %p608 = pneg %p398
        $region74: #{forward.1} parent=11 // pred_check_branch
          %610 = sbr.rel (%p608) target = $region76
        $region75: #{forward.1} parent=11 // pred_region
          _
        $region76: #{forward.1} parent=11 // pred_fallthru
          _
        // Predicated region
        $region77: #{forward.1} parent=11 // pred_check
          %p611 = pneg %p419
        $region78: #{forward.1} parent=11 // pred_check_branch
          %613 = sbr.rel (%p611) target = $region80
        $region79: #{forward.1} parent=11 // pred_region
          _
        $region80: #{forward.1} parent=11 // pred_fallthru
          _
        // Predicated region
        $region81: #{forward.1} parent=11 // pred_check
          %p614 = pneg %p440
        $region82: #{forward.1} parent=11 // pred_check_branch
          %616 = sbr.rel (%p614) target = $region84
        $region83: #{forward.1} parent=11 // pred_region
          _
        $region84: #{forward.1} parent=11 // pred_fallthru
          _
        // Predicated region
        $region85: #{forward.1} parent=11 // pred_check
          %p617 = pneg %p461
        $region86: #{forward.1} parent=11 // pred_check_branch
          %619 = sbr.rel (%p617) target = $region88
        $region87: #{forward.1} parent=11 // pred_region
          _
        $region88: #{forward.1} parent=11 // pred_fallthru
          _
        // Predicated region
        $region89: #{forward.1} parent=11 // pred_check
          %p620 = pneg %p482
        $region90: #{forward.1} parent=11 // pred_check_branch
          %622 = sbr.rel (%p620) target = $region92
        $region91: #{forward.1} parent=11 // pred_region
          _
        $region92: #{forward.1} parent=11 // pred_fallthru
          _
      $region12: #{forward.1} parent=5 // pred_fallthru
        _
      %p623 = scmp.lt.s32.totalorder %s36, 2
      // Predicated region
      $region93: #{forward.1} parent=5 // pred_check
        %p624 = pneg %p623
      $region94: #{forward.1} parent=5 // pred_check_branch
        %626 = sbr.rel (%p624) target = $region96
      $region95: #{forward.1} parent=5 // pred_region
        // Predicated region
        $region97: #{forward.1} parent=95 // pred_check
          %p627 = pneg %p56
        $region98: #{forward.1} parent=95 // pred_check_branch
          %629 = sbr.rel (%p627) target = $region100
        $region99: #{forward.1} parent=95 // pred_region
          %s630 = sand.u32 %s46, 1
          %s631 = scalar_lea.sflag [#allocation7], %s630
          %s632 = sand.u32 %s46, 1
          %s633 = smul.addr %s632, 2
          %s634 = scalar_lea.vmem [#allocation6], %s633
          %s636 = ssub.s32 32, 32
          %637 = vsyncadd %s631, %s636
          %s638 = smul.addr %s36, 2
          %s639 = smul.addr %s638, 16
          %s640 = scalar_lea.hbm %s0, %s639
          %s642 = sshll.u32 %s634, 4
          %s643 = int_to_ptr.vmem [resolvable:$true] %s642
          %645 = dma.hbm_to_vmem [thread:$0]  %s640, 32, %s643, %s631
        $region100: #{forward.1} parent=95 // pred_fallthru
          _
      $region96: #{forward.1} parent=5 // pred_fallthru
        _
      %p646 = scmp.le.s32.totalorder 1, %s36
      %p647 = scmp.lt.s32.totalorder %s36, 3
      %p648 = pnand %p646, %p647
      %p649 = pneg %p648
      // Predicated region
      $region101: #{forward.1} parent=5 // pred_check
        _
      $region102: #{forward.1} parent=5 // pred_check_branch
        %651 = sbr.rel (%p648) target = $region104
      $region103: #{forward.1} parent=5 // pred_region
        %s652 = ssub.s32 %s36, 1
        %s653 = sand.u32 %s49, 1
        %s654 = scalar_lea.sflag [#allocation7], %s653
        %s655 = sand.u32 %s49, 1
        %s656 = smul.addr %s655, 2
        %s657 = scalar_lea.vmem [#allocation6], %s656
        // Predicated region
        $region105: #{forward.1} parent=103 // pred_check
          %p658 = pneg %p62
        $region106: #{forward.1} parent=103 // pred_check_branch
          %660 = sbr.rel (%p658) target = $region108
        $region107: #{forward.1} parent=103 // pred_region
          %661 = dma.done %s654, 32
        $region108: #{forward.1} parent=103 // pred_fallthru
          _
        // Predicated region
        $region109: #{forward.1} parent=103 // pred_check
          %p662 = pneg %p83
        $region110: #{forward.1} parent=103 // pred_check_branch
          %664 = sbr.rel (%p662) target = $region112
        $region111: #{forward.1} parent=103 // pred_region
          %665 = dma.done [#allocation9], 768
        $region112: #{forward.1} parent=103 // pred_fallthru
          _
        // Predicated region
        $region113: #{forward.1} parent=103 // pred_check
          %p666 = pneg %p125
        $region114: #{forward.1} parent=103 // pred_check_branch
          %668 = sbr.rel (%p666) target = $region116
        $region115: #{forward.1} parent=103 // pred_region
          %669 = dma.done [#allocation9], 768
        $region116: #{forward.1} parent=103 // pred_fallthru
          _
        // Predicated region
        $region117: #{forward.1} parent=103 // pred_check
          %p670 = pneg %p209
        $region118: #{forward.1} parent=103 // pred_check_branch
          %672 = sbr.rel (%p670) target = $region120
        $region119: #{forward.1} parent=103 // pred_region
          %673 = dma.done [#allocation12], 512
        $region120: #{forward.1} parent=103 // pred_fallthru
          _
        // Predicated region
        $region121: #{forward.1} parent=103 // pred_check
          %p674 = pneg %p293
        $region122: #{forward.1} parent=103 // pred_check_branch
          %676 = sbr.rel (%p674) target = $region124
        $region123: #{forward.1} parent=103 // pred_region
          %677 = dma.done [#allocation12], 512
        $region124: #{forward.1} parent=103 // pred_fallthru
          _
        %s678 = sand.u32 %s49, 1
        %s679 = scalar_lea.sflag [#allocation7], %s678
        %s680 = sand.u32 %s49, 1
        %s681 = smul.addr %s680, 2
        %s682 = scalar_lea.vmem [#allocation6], %s681
        %p683 = pneg %p62
        %p684 = pneg %p59
        %p685 = pneg %p83
        %p686 = pneg %p80
        %p687 = pneg %p104
        %p688 = pneg %p101
        %p689 = pneg %p125
        %p690 = pneg %p122
        %p691 = pneg %p146
        %p692 = pneg %p143
        %p693 = pneg %p167
        %p694 = pneg %p164
        %p695 = pneg %p188
        %p696 = pneg %p185
        %p697 = pneg %p209
        %p698 = pneg %p206
        %p699 = pneg %p230
        %p700 = pneg %p227
        %p701 = pneg %p251
        %p702 = pneg %p248
        %p703 = pneg %p272
        %p704 = pneg %p269
        %p705 = pneg %p293
        %p706 = pneg %p290
        %p707 = pneg %p314
        %p708 = pneg %p311
        %p709 = pneg %p335
        %p710 = pneg %p332
        %p711 = pneg %p356
        %p712 = pneg %p353
        %p713 = pneg %p377
        %p714 = pneg %p374
        %p715 = pneg %p398
        %p716 = pneg %p395
        %p717 = pneg %p419
        %p718 = pneg %p416
        %p719 = pneg %p440
        %p720 = pneg %p437
        %p721 = pneg %p461
        %p722 = pneg %p458
        %p723 = pneg %p482
        %p724 = pneg %p479
        %p725 = pneg %p508
        %p726 = pneg %p505
        %p727 = scmp.lt.s32.totalorder %s41, 1
        %s728 = scalar_select %p727, %s41, 1
        %s729 = smul.addr %s728, 2
        %s730 = scalar_lea.vmem %s21, %s729
        %p731 = scmp.lt.s32.totalorder %s41, 1
        %s732 = scalar_select %p731, %s41, 1
        %s733 = smul.addr %s732, 2
        %s734 = scalar_lea.vmem %s21, %s733
        %735 = vst [vmem:[#allocation2] sm:$0xff] 0.0
        %736 = vst [vmem:[#allocation2 + $0x8] sm:$0xff] 0.0
        %737 = vst [vmem:[#allocation2 + $0x10] sm:$0xff] 0.0
        %738 = vst [vmem:[#allocation2 + $0x18] sm:$0xff] 0.0
        %739 = vst [vmem:[#allocation2 + $0x20] sm:$0xff] 0.0
        %740 = vst [vmem:[#allocation2 + $0x28] sm:$0xff] 0.0
        %741 = vst [vmem:[#allocation2 + $0x30] sm:$0xff] 0.0
        %742 = vst [vmem:[#allocation2 + $0x38] sm:$0xff] 0.0
        %743 = vst [vmem:[#allocation2 + $0x40] sm:$0xff] 0.0
        %744 = vst [vmem:[#allocation2 + $0x48] sm:$0xff] 0.0
        %745 = vst [vmem:[#allocation2 + $0x50] sm:$0xff] 0.0
        %746 = vst [vmem:[#allocation2 + $0x58] sm:$0xff] 0.0
        %747 = vst [vmem:[#allocation2 + $0x60] sm:$0xff] 0.0
        %748 = vst [vmem:[#allocation2 + $0x68] sm:$0xff] 0.0
        %749 = vst [vmem:[#allocation2 + $0x70] sm:$0xff] 0.0
        %750 = vst [vmem:[#allocation2 + $0x78] sm:$0xff] 0.0
        %751 = vst [vmem:[#allocation2 + $0x80] sm:$0xff] 0.0
        %752 = vst [vmem:[#allocation2 + $0x88] sm:$0xff] 0.0
        %753 = vst [vmem:[#allocation2 + $0x90] sm:$0xff] 0.0
        %754 = vst [vmem:[#allocation2 + $0x98] sm:$0xff] 0.0
        %v755 = vld [vmem:[%s657] sm:$0x3]
        %v756 = vlaneseq
        %vm757 = vcmp.ge.s32.totalorder %v756, 0
        %vm758 = vcmp.lt.s32.totalorder %v756, 256
        %vm759 = vmand %vm757, %vm758
        %s760 = scalar_lea.vmem [#allocation2], 8
        %761 = vst.msk [vmem:[%s760] ss:$8 sm:$0x3] %vm759, %v755
        %762 = vst.msk [vmem:[%s760] ss:$8 sm:$0x0] %vm759, %v755
        %v763 = vld [vmem:[#allocation2] sm:$0xff]
        %v764 = vld [vmem:[#allocation2 + $0x8] sm:$0xff]
        %v765 = vld [vmem:[#allocation2 + $0x10] sm:$0xff]
        %v766 = vld [vmem:[#allocation2 + $0x18] sm:$0xff]
        %770 = vrot.lane.b32.xlu0 %v763, 12
        %v771 = vpop.permute.xlu0 %770
        %772 = vrot.lane.b32.xlu0 %v764, 12
        %v773 = vpop.permute.xlu0 %772
        %774 = vrot.lane.b32.xlu0 %v765, 12
        %v775 = vpop.permute.xlu0 %774
        %vm776 = vcmask 97280
        %v777 = vsel %vm776, %v771, %v773
        %v778 = vsel %vm776, %v773, %v775
        %781 = vst [vmem:[#allocation3] sm:$0xff] %v777
        %782 = vst [vmem:[#allocation3 + $0x8] sm:$0xff] %v778
        %783 = vrot.lane.b32.xlu0 %v763, 11
        %v784 = vpop.permute.xlu0 %783
        %785 = vrot.lane.b32.xlu0 %v764, 11
        %v786 = vpop.permute.xlu0 %785
        %787 = vrot.lane.b32.xlu0 %v765, 11
        %v788 = vpop.permute.xlu0 %787
        %vm789 = vcmask 89088
        %v790 = vsel %vm789, %v784, %v786
        %v791 = vsel %vm789, %v786, %v788
        %794 = vst [vmem:[#allocation3 + $0x10] sm:$0xff] %v790
        %795 = vst [vmem:[#allocation3 + $0x18] sm:$0xff] %v791
        %796 = vrot.lane.b32.xlu0 %v763, 10
        %v797 = vpop.permute.xlu0 %796
        %798 = vrot.lane.b32.xlu0 %v764, 10
        %v799 = vpop.permute.xlu0 %798
        %800 = vrot.lane.b32.xlu0 %v765, 10
        %v801 = vpop.permute.xlu0 %800
        %vm802 = vcmask 80896
        %v803 = vsel %vm802, %v797, %v799
        %v804 = vsel %vm802, %v799, %v801
        %807 = vst [vmem:[#allocation3 + $0x20] sm:$0xff] %v803
        %808 = vst [vmem:[#allocation3 + $0x28] sm:$0xff] %v804
        %809 = vrot.lane.b32.xlu0 %v763, 9
        %v810 = vpop.permute.xlu0 %809
        %811 = vrot.lane.b32.xlu0 %v764, 9
        %v812 = vpop.permute.xlu0 %811
        %813 = vrot.lane.b32.xlu0 %v765, 9
        %v814 = vpop.permute.xlu0 %813
        %vm815 = vcmask 72704
        %v816 = vsel %vm815, %v810, %v812
        %v817 = vsel %vm815, %v812, %v814
        %820 = vst [vmem:[#allocation3 + $0x30] sm:$0xff] %v816
        %821 = vst [vmem:[#allocation3 + $0x38] sm:$0xff] %v817
        %822 = vrot.lane.b32.xlu0 %v763, 8
        %v823 = vpop.permute.xlu0 %822
        %824 = vrot.lane.b32.xlu0 %v764, 8
        %v825 = vpop.permute.xlu0 %824
        %826 = vrot.lane.b32.xlu0 %v765, 8
        %v827 = vpop.permute.xlu0 %826
        %vm828 = vcmask 64512
        %v829 = vsel %vm828, %v823, %v825
        %v830 = vsel %vm828, %v825, %v827
        %833 = vst [vmem:[#allocation3 + $0x40] sm:$0xff] %v829
        %834 = vst [vmem:[#allocation3 + $0x48] sm:$0xff] %v830
        %835 = vrot.lane.b32.xlu0 %v763, 7
        %v836 = vpop.permute.xlu0 %835
        %837 = vrot.lane.b32.xlu0 %v764, 7
        %v838 = vpop.permute.xlu0 %837
        %839 = vrot.lane.b32.xlu0 %v765, 7
        %v840 = vpop.permute.xlu0 %839
        %vm841 = vcmask 56320
        %v842 = vsel %vm841, %v836, %v838
        %v843 = vsel %vm841, %v838, %v840
        %846 = vst [vmem:[#allocation3 + $0x50] sm:$0xff] %v842
        %847 = vst [vmem:[#allocation3 + $0x58] sm:$0xff] %v843
        %848 = vrot.lane.b32.xlu0 %v763, 6
        %v849 = vpop.permute.xlu0 %848
        %850 = vrot.lane.b32.xlu0 %v764, 6
        %v851 = vpop.permute.xlu0 %850
        %852 = vrot.lane.b32.xlu0 %v765, 6
        %v853 = vpop.permute.xlu0 %852
        %vm854 = vcmask 48128
        %v855 = vsel %vm854, %v849, %v851
        %v856 = vsel %vm854, %v851, %v853
        %859 = vst [vmem:[#allocation3 + $0x60] sm:$0xff] %v855
        %860 = vst [vmem:[#allocation3 + $0x68] sm:$0xff] %v856
        %861 = vrot.lane.b32.xlu0 %v763, 5
        %v862 = vpop.permute.xlu0 %861
        %863 = vrot.lane.b32.xlu0 %v764, 5
        %v864 = vpop.permute.xlu0 %863
        %865 = vrot.lane.b32.xlu0 %v765, 5
        %v866 = vpop.permute.xlu0 %865
        %vm867 = vcmask 39936
        %v868 = vsel %vm867, %v862, %v864
        %v869 = vsel %vm867, %v864, %v866
        %872 = vst [vmem:[#allocation3 + $0x70] sm:$0xff] %v868
        %873 = vst [vmem:[#allocation3 + $0x78] sm:$0xff] %v869
        %874 = vrot.lane.b32.xlu0 %v763, 4
        %v875 = vpop.permute.xlu0 %874
        %876 = vrot.lane.b32.xlu0 %v764, 4
        %v877 = vpop.permute.xlu0 %876
        %878 = vrot.lane.b32.xlu0 %v765, 4
        %v879 = vpop.permute.xlu0 %878
        %vm880 = vcmask 31744
        %v881 = vsel %vm880, %v875, %v877
        %v882 = vsel %vm880, %v877, %v879
        %885 = vst [vmem:[#allocation3 + $0x80] sm:$0xff] %v881
        %886 = vst [vmem:[#allocation3 + $0x88] sm:$0xff] %v882
        %887 = vrot.lane.b32.xlu0 %v763, 3
        %v888 = vpop.permute.xlu0 %887
        %889 = vrot.lane.b32.xlu0 %v764, 3
        %v890 = vpop.permute.xlu0 %889
        %891 = vrot.lane.b32.xlu0 %v765, 3
        %v892 = vpop.permute.xlu0 %891
        %vm893 = vcmask 23552
        %v894 = vsel %vm893, %v888, %v890
        %v895 = vsel %vm893, %v890, %v892
        %898 = vst [vmem:[#allocation3 + $0x90] sm:$0xff] %v894
        %899 = vst [vmem:[#allocation3 + $0x98] sm:$0xff] %v895
        %900 = vrot.lane.b32.xlu0 %v763, 2
        %v901 = vpop.permute.xlu0 %900
        %902 = vrot.lane.b32.xlu0 %v764, 2
        %v903 = vpop.permute.xlu0 %902
        %904 = vrot.lane.b32.xlu0 %v765, 2
        %v905 = vpop.permute.xlu0 %904
        %vm906 = vcmask 15360
        %v907 = vsel %vm906, %v901, %v903
        %v908 = vsel %vm906, %v903, %v905
        %911 = vst [vmem:[#allocation3 + $0xa0] sm:$0xff] %v907
        %912 = vst [vmem:[#allocation3 + $0xa8] sm:$0xff] %v908
        %913 = vrot.lane.b32.xlu0 %v763, 1
        %v914 = vpop.permute.xlu0 %913
        %915 = vrot.lane.b32.xlu0 %v764, 1
        %v916 = vpop.permute.xlu0 %915
        %917 = vrot.lane.b32.xlu0 %v765, 1
        %v918 = vpop.permute.xlu0 %917
        %vm919 = vcmask 7168
        %v920 = vsel %vm919, %v914, %v916
        %v921 = vsel %vm919, %v916, %v918
        %924 = vst [vmem:[#allocation3 + $0xb0] sm:$0xff] %v920
        %925 = vst [vmem:[#allocation3 + $0xb8] sm:$0xff] %v921
        %926 = vst [vmem:[#allocation3 + $0xc0] sm:$0xff] %v764
        %927 = vst [vmem:[#allocation3 + $0xc8] sm:$0xff] %v765
        %929 = vrot.lane.b32.xlu0 %v764, 127
        %v930 = vpop.permute.xlu0 %929
        %931 = vrot.lane.b32.xlu0 %v765, 127
        %v932 = vpop.permute.xlu0 %931
        %933 = vrot.lane.b32.xlu0 %v766, 127
        %v934 = vpop.permute.xlu0 %933
        %vm935 = vcmask 1039360
        %v936 = vsel %vm935, %v930, %v932
        %v937 = vsel %vm935, %v932, %v934
        %940 = vst [vmem:[#allocation3 + $0xd0] sm:$0xff] %v936
        %941 = vst [vmem:[#allocation3 + $0xd8] sm:$0xff] %v937
        %942 = vrot.lane.b32.xlu0 %v764, 126
        %v943 = vpop.permute.xlu0 %942
        %944 = vrot.lane.b32.xlu0 %v765, 126
        %v945 = vpop.permute.xlu0 %944
        %946 = vrot.lane.b32.xlu0 %v766, 126
        %v947 = vpop.permute.xlu0 %946
        %vm948 = vcmask 1031168
        %v949 = vsel %vm948, %v943, %v945
        %v950 = vsel %vm948, %v945, %v947
        %953 = vst [vmem:[#allocation3 + $0xe0] sm:$0xff] %v949
        %954 = vst [vmem:[#allocation3 + $0xe8] sm:$0xff] %v950
        %955 = vrot.lane.b32.xlu0 %v764, 125
        %v956 = vpop.permute.xlu0 %955
        %957 = vrot.lane.b32.xlu0 %v765, 125
        %v958 = vpop.permute.xlu0 %957
        %959 = vrot.lane.b32.xlu0 %v766, 125
        %v960 = vpop.permute.xlu0 %959
        %vm961 = vcmask 1022976
        %v962 = vsel %vm961, %v956, %v958
        %v963 = vsel %vm961, %v958, %v960
        %966 = vst [vmem:[#allocation3 + $0xf0] sm:$0xff] %v962
        %967 = vst [vmem:[#allocation3 + $0xf8] sm:$0xff] %v963
        %968 = vrot.lane.b32.xlu0 %v764, 124
        %v969 = vpop.permute.xlu0 %968
        %970 = vrot.lane.b32.xlu0 %v765, 124
        %v971 = vpop.permute.xlu0 %970
        %972 = vrot.lane.b32.xlu0 %v766, 124
        %v973 = vpop.permute.xlu0 %972
        %vm974 = vcmask 1014784
        %v975 = vsel %vm974, %v969, %v971
        %v976 = vsel %vm974, %v971, %v973
        %979 = vst [vmem:[#allocation3 + $0x100] sm:$0xff] %v975
        %980 = vst [vmem:[#allocation3 + $0x108] sm:$0xff] %v976
        %981 = vrot.lane.b32.xlu0 %v764, 123
        %v982 = vpop.permute.xlu0 %981
        %983 = vrot.lane.b32.xlu0 %v765, 123
        %v984 = vpop.permute.xlu0 %983
        %985 = vrot.lane.b32.xlu0 %v766, 123
        %v986 = vpop.permute.xlu0 %985
        %vm987 = vcmask 1006592
        %v988 = vsel %vm987, %v982, %v984
        %v989 = vsel %vm987, %v984, %v986
        %992 = vst [vmem:[#allocation3 + $0x110] sm:$0xff] %v988
        %993 = vst [vmem:[#allocation3 + $0x118] sm:$0xff] %v989
        %994 = vrot.lane.b32.xlu0 %v764, 122
        %v995 = vpop.permute.xlu0 %994
        %996 = vrot.lane.b32.xlu0 %v765, 122
        %v997 = vpop.permute.xlu0 %996
        %998 = vrot.lane.b32.xlu0 %v766, 122
        %v999 = vpop.permute.xlu0 %998
        %vm1000 = vcmask 998400
        %v1001 = vsel %vm1000, %v995, %v997
        %v1002 = vsel %vm1000, %v997, %v999
        %1005 = vst [vmem:[#allocation3 + $0x120] sm:$0xff] %v1001
        %1006 = vst [vmem:[#allocation3 + $0x128] sm:$0xff] %v1002
        %1007 = vrot.lane.b32.xlu0 %v764, 121
        %v1008 = vpop.permute.xlu0 %1007
        %1009 = vrot.lane.b32.xlu0 %v765, 121
        %v1010 = vpop.permute.xlu0 %1009
        %1011 = vrot.lane.b32.xlu0 %v766, 121
        %v1012 = vpop.permute.xlu0 %1011
        %vm1013 = vcmask 990208
        %v1014 = vsel %vm1013, %v1008, %v1010
        %v1015 = vsel %vm1013, %v1010, %v1012
        %1018 = vst [vmem:[#allocation3 + $0x130] sm:$0xff] %v1014
        %1019 = vst [vmem:[#allocation3 + $0x138] sm:$0xff] %v1015
        %1020 = vrot.lane.b32.xlu0 %v764, 120
        %v1021 = vpop.permute.xlu0 %1020
        %1022 = vrot.lane.b32.xlu0 %v765, 120
        %v1023 = vpop.permute.xlu0 %1022
        %1024 = vrot.lane.b32.xlu0 %v766, 120
        %v1025 = vpop.permute.xlu0 %1024
        %vm1026 = vcmask 982016
        %v1027 = vsel %vm1026, %v1021, %v1023
        %v1028 = vsel %vm1026, %v1023, %v1025
        %1031 = vst [vmem:[#allocation3 + $0x140] sm:$0xff] %v1027
        %1032 = vst [vmem:[#allocation3 + $0x148] sm:$0xff] %v1028
        %1033 = vrot.lane.b32.xlu0 %v764, 119
        %v1034 = vpop.permute.xlu0 %1033
        %1035 = vrot.lane.b32.xlu0 %v765, 119
        %v1036 = vpop.permute.xlu0 %1035
        %1037 = vrot.lane.b32.xlu0 %v766, 119
        %v1038 = vpop.permute.xlu0 %1037
        %vm1039 = vcmask 973824
        %v1040 = vsel %vm1039, %v1034, %v1036
        %v1041 = vsel %vm1039, %v1036, %v1038
        %1044 = vst [vmem:[#allocation3 + $0x150] sm:$0xff] %v1040
        %1045 = vst [vmem:[#allocation3 + $0x158] sm:$0xff] %v1041
        %1046 = vrot.lane.b32.xlu0 %v764, 118
        %v1047 = vpop.permute.xlu0 %1046
        %1048 = vrot.lane.b32.xlu0 %v765, 118
        %v1049 = vpop.permute.xlu0 %1048
        %1050 = vrot.lane.b32.xlu0 %v766, 118
        %v1051 = vpop.permute.xlu0 %1050
        %vm1052 = vcmask 965632
        %v1053 = vsel %vm1052, %v1047, %v1049
        %v1054 = vsel %vm1052, %v1049, %v1051
        %1057 = vst [vmem:[#allocation3 + $0x160] sm:$0xff] %v1053
        %1058 = vst [vmem:[#allocation3 + $0x168] sm:$0xff] %v1054
        %1059 = vrot.lane.b32.xlu0 %v764, 117
        %v1060 = vpop.permute.xlu0 %1059
        %1061 = vrot.lane.b32.xlu0 %v765, 117
        %v1062 = vpop.permute.xlu0 %1061
        %1063 = vrot.lane.b32.xlu0 %v766, 117
        %v1064 = vpop.permute.xlu0 %1063
        %vm1065 = vcmask 957440
        %v1066 = vsel %vm1065, %v1060, %v1062
        %v1067 = vsel %vm1065, %v1062, %v1064
        %1070 = vst [vmem:[#allocation3 + $0x170] sm:$0xff] %v1066
        %1071 = vst [vmem:[#allocation3 + $0x178] sm:$0xff] %v1067
        %1072 = vrot.lane.b32.xlu0 %v764, 116
        %v1073 = vpop.permute.xlu0 %1072
        %1074 = vrot.lane.b32.xlu0 %v765, 116
        %v1075 = vpop.permute.xlu0 %1074
        %1076 = vrot.lane.b32.xlu0 %v766, 116
        %v1077 = vpop.permute.xlu0 %1076
        %vm1078 = vcmask 949248
        %v1079 = vsel %vm1078, %v1073, %v1075
        %v1080 = vsel %vm1078, %v1075, %v1077
        %1083 = vst [vmem:[#allocation3 + $0x180] sm:$0xff] %v1079
        %1084 = vst [vmem:[#allocation3 + $0x188] sm:$0xff] %v1080
        %v1085 = vld [vmem:[#allocation8] sm:$0xff]
        %v1086 = vld [vmem:[#allocation8 + $0x8] sm:$0xff]
        %v1087 = vld [vmem:[#allocation8 + $0x10] sm:$0xff]
        %v1088 = vld [vmem:[#allocation8 + $0x18] sm:$0xff]
        %v1089 = vld [vmem:[#allocation8 + $0x20] sm:$0xf]
        %v1090 = vld [vmem:[#allocation8 + $0x28] sm:$0xf]
        %v1091 = vld [vmem:[#allocation3] sm:$0xff]
        %v1092 = vld [vmem:[#allocation3 + $0x8] sm:$0xff]
        %v1093 = vld [vmem:[#allocation3 + $0x10] sm:$0xff]
        %v1094 = vld [vmem:[#allocation3 + $0x18] sm:$0xff]
        %v1095 = vld [vmem:[#allocation3 + $0x20] sm:$0xff]
        %v1096 = vld [vmem:[#allocation3 + $0x28] sm:$0xff]
        %v1097 = vld [vmem:[#allocation3 + $0x30] sm:$0xff]
        %v1098 = vld [vmem:[#allocation3 + $0x38] sm:$0xff]
        %v1099 = vld [vmem:[#allocation3 + $0x40] sm:$0xff]
        %v1100 = vld [vmem:[#allocation3 + $0x48] sm:$0xff]
        %v1101 = vld [vmem:[#allocation3 + $0x50] sm:$0xff]
        %v1102 = vld [vmem:[#allocation3 + $0x58] sm:$0xff]
        %v1103 = vld [vmem:[#allocation3 + $0x60] sm:$0xff]
        %v1104 = vld [vmem:[#allocation3 + $0x68] sm:$0xff]
        %v1105 = vld [vmem:[#allocation3 + $0x70] sm:$0xff]
        %v1106 = vld [vmem:[#allocation3 + $0x78] sm:$0xff]
        %v1107 = vld [vmem:[#allocation3 + $0x80] sm:$0xff]
        %v1108 = vld [vmem:[#allocation3 + $0x88] sm:$0xff]
        %v1109 = vld [vmem:[#allocation3 + $0x90] sm:$0xff]
        %v1110 = vld [vmem:[#allocation3 + $0x98] sm:$0xff]
        %v1111 = vld [vmem:[#allocation3 + $0xa0] sm:$0xff]
        %v1112 = vld [vmem:[#allocation3 + $0xa8] sm:$0xff]
        %v1113 = vld [vmem:[#allocation3 + $0xb0] sm:$0xff]
        %v1114 = vld [vmem:[#allocation3 + $0xb8] sm:$0xff]
        %v1115 = vld [vmem:[#allocation3 + $0xc0] sm:$0xff]
        %v1116 = vld [vmem:[#allocation3 + $0xc8] sm:$0xff]
        %v1117 = vld [vmem:[#allocation3 + $0xd0] sm:$0xff]
        %v1118 = vld [vmem:[#allocation3 + $0xd8] sm:$0xff]
        %v1119 = vld [vmem:[#allocation3 + $0xe0] sm:$0xff]
        %v1120 = vld [vmem:[#allocation3 + $0xe8] sm:$0xff]
        %v1121 = vld [vmem:[#allocation3 + $0xf0] sm:$0xff]
        %v1122 = vld [vmem:[#allocation3 + $0xf8] sm:$0xff]
        %v1123 = vld [vmem:[#allocation3 + $0x100] sm:$0xff]
        %v1124 = vld [vmem:[#allocation3 + $0x108] sm:$0xff]
        %v1125 = vld [vmem:[#allocation3 + $0x110] sm:$0xff]
        %v1126 = vld [vmem:[#allocation3 + $0x118] sm:$0xff]
        %v1127 = vld [vmem:[#allocation3 + $0x120] sm:$0xff]
        %v1128 = vld [vmem:[#allocation3 + $0x128] sm:$0xff]
        %v1129 = vld [vmem:[#allocation3 + $0x130] sm:$0xff]
        %v1130 = vld [vmem:[#allocation3 + $0x138] sm:$0xff]
        %v1131 = vld [vmem:[#allocation3 + $0x140] sm:$0xff]
        %v1132 = vld [vmem:[#allocation3 + $0x148] sm:$0xff]
        %v1133 = vld [vmem:[#allocation3 + $0x150] sm:$0xff]
        %v1134 = vld [vmem:[#allocation3 + $0x158] sm:$0xff]
        %v1135 = vld [vmem:[#allocation3 + $0x160] sm:$0xff]
        %v1136 = vld [vmem:[#allocation3 + $0x168] sm:$0xff]
        %v1137 = vld [vmem:[#allocation3 + $0x170] sm:$0xff]
        %v1138 = vld [vmem:[#allocation3 + $0x178] sm:$0xff]
        %v1139 = vld [vmem:[#allocation3 + $0x180] sm:$0xff]
        %v1140 = vld [vmem:[#allocation3 + $0x188] sm:$0xff]
        %v1141 = vld [vmem:[%s2] sm:$0xff]
        %v1142 = vld [vmem:[%s2 + $0x8] sm:$0xff]
        %v1143 = vld [vmem:[%s2 + $0x10] sm:$0xf]
        %1145 = vset.pattern.permute.xlu0 0
        %1146 = vperm.xlu0 %1145, %v1141
        %v1147 = vpop.permute.xlu0 %1146
        %1150 = vset.pattern.permute.xlu0 0
        %1151 = vperm.xlu0 %1150, %v1142
        %v1152 = vpop.permute.xlu0 %1151
        %1155 = vset.pattern.permute.xlu0 0
        %1156 = vperm.xlu0 %1155, %v1143
        %v1157 = vpop.permute.xlu0 %1156
        %vm1159 = vcmask 588800
        %v1161 = vsel %vm1159, %v1086, 0
        %v1164 = vsel %vm1159, %v1088, 0
        %v1167 = vsel %vm1159, %v1090, 0
        %1169 = vmatprep.subr.mxu0 %v1092
        %1170 = vmatpush1.msra.mxu0 %v1091
        %1171 = vmatprep.subr.mxu0 %v1094
        %1172 = vmatpush1.msra.mxu0 %v1093
        %1173 = vmatprep.subr.mxu0 %v1096
        %1174 = vmatpush1.msra.mxu0 %v1095
        %1175 = vmatprep.subr.mxu0 %v1098
        %1176 = vmatpush1.msra.mxu0 %v1097
        %1177 = vmatprep.subr.mxu0 %v1100
        %1178 = vmatpush1.msra.mxu0 %v1099
        %1179 = vmatprep.subr.mxu0 %v1102
        %1180 = vmatpush1.msra.mxu0 %v1101
        %1181 = vmatprep.subr.mxu0 %v1104
        %1182 = vmatpush1.msra.mxu0 %v1103
        %1183 = vmatprep.subr.mxu0 %v1106
        %1184 = vmatpush1.msra.mxu0 %v1105
        %1185 = vmatprep.subr.mxu0 %v1108
        %1186 = vmatpush1.msra.mxu0 %v1107
        %1187 = vmatprep.subr.mxu0 %v1110
        %1188 = vmatpush1.msra.mxu0 %v1109
        %1189 = vmatprep.subr.mxu0 %v1112
        %1190 = vmatpush1.msra.mxu0 %v1111
        %1191 = vmatprep.subr.mxu0 %v1114
        %1192 = vmatpush1.msra.mxu0 %v1113
        %1193 = vmatprep.subr.mxu0 %v1116
        %1194 = vmatpush1.msra.mxu0 %v1115
        %1195 = vmatprep.subr.mxu0 %v1118
        %1196 = vmatpush1.msra.mxu0 %v1117
        %1197 = vmatprep.subr.mxu0 %v1120
        %1198 = vmatpush1.msra.mxu0 %v1119
        %1199 = vmatprep.subr.mxu0 %v1122
        %1200 = vmatpush1.msra.mxu0 %v1121
        %1201 = vmatprep.subr.mxu0 %v1124
        %1202 = vmatpush1.msra.mxu0 %v1123
        %1203 = vmatprep.subr.mxu0 %v1126
        %1204 = vmatpush1.msra.mxu0 %v1125
        %1205 = vmatprep.subr.mxu0 %v1128
        %1206 = vmatpush1.msra.mxu0 %v1127
        %1207 = vmatprep.subr.mxu0 %v1130
        %1208 = vmatpush1.msra.mxu0 %v1129
        %1209 = vmatprep.subr.mxu0 %v1132
        %1210 = vmatpush1.msra.mxu0 %v1131
        %1211 = vmatprep.subr.mxu0 %v1134
        %1212 = vmatpush1.msra.mxu0 %v1133
        %1213 = vmatprep.subr.mxu0 %v1136
        %1214 = vmatpush1.msra.mxu0 %v1135
        %1215 = vmatprep.subr.mxu0 %v1138
        %1216 = vmatpush1.msra.mxu0 %v1137
        %1217 = vmatprep.subr.mxu0 %v1140
        %1218 = vmatpush1.msra.mxu0 %v1139
        %1219 = vmatprep.subr.mxu0 0.0
        %1220 = vmatpush1.msra.mxu0 0.0
        %1221 = vmatprep.subr.mxu0 0.0
        %1222 = vmatpush1.msra.mxu0 0.0
        %1223 = vmatprep.subr.mxu0 0.0
        %1224 = vmatpush1.msra.mxu0 0.0
        %1225 = vmatprep.subr.mxu0 0.0
        %1226 = vmatpush1.msra.mxu0 0.0
        %1227 = vmatprep.subr.mxu0 0.0
        %1228 = vmatpush1.msra.mxu0 0.0
        %1229 = vmatprep.subr.mxu0 0.0
        %1230 = vmatpush1.msra.mxu0 0.0
        %1231 = vmatprep.subr.mxu0 0.0
        %1232 = vmatpush1.msra.mxu0 0.0
        %1233 = vmatprep.mubr.f32.mxu0 %v1161
        %1234 = vmatmul.mubr.f32.gmra.mrb[0].mxu0 %v1085
        %v1235 = vpop.f32.mrb[0].mxu0
        %v1236 = vadd.f32 %v1147, %v1235
        %v1237 = vpop.f32.mrb[0].mxu0
        %v1238 = vadd.f32 %v1147, %v1237
        %1239 = vmatprep.mubr.f32.mxu0 %v1164
        %1240 = vmatmul.mubr.f32.gmra.mrb[0].mxu0 %v1087
        %v1241 = vpop.f32.mrb[0].mxu0
        %v1242 = vadd.f32 %v1152, %v1241
        %v1243 = vpop.f32.mrb[0].mxu0
        %v1244 = vadd.f32 %v1152, %v1243
        %1245 = vmatprep.mubr.f32.mxu0 %v1167
        %1246 = vmatmul.mubr.f32.gmra.mrb[0].mxu0 %v1089
        %v1247 = vpop.f32.mrb[0].mxu0
        %v1248 = vadd.f32 %v1157, %v1247
        %v1249 = vpop.f32.mrb[0].mxu0
        %v1250 = vadd.f32 %v1157, %v1249
        %1251 = vdwg.mxu0
        %vm1252 = vcmp.ge.f32.partialorder %v1236, 0.0
        %vm1253 = vcmp.ge.f32.partialorder %v1238, 0.0
        %vm1254 = vcmp.ge.f32.partialorder %v1242, 0.0
        %vm1255 = vcmp.ge.f32.partialorder %v1244, 0.0
        %vm1256 = vcmp.ge.f32.partialorder %v1248, 0.0
        %vm1257 = vcmp.ge.f32.partialorder %v1250, 0.0
        %v1258 = vmul.f32 %v1236, 0.01
        %v1259 = vmul.f32 %v1238, 0.01
        %v1260 = vmul.f32 %v1242, 0.01
        %v1261 = vmul.f32 %v1244, 0.01
        %v1262 = vmul.f32 %v1248, 0.01
        %v1263 = vmul.f32 %v1250, 0.01
        %v1264 = vsel %vm1252, %v1236, %v1258
        %v1265 = vsel %vm1253, %v1238, %v1259
        %v1266 = vsel %vm1254, %v1242, %v1260
        %v1267 = vsel %vm1255, %v1244, %v1261
        %v1268 = vsel %vm1256, %v1248, %v1262
        %v1269 = vsel %vm1257, %v1250, %v1263
        %1270 = vst [vmem:[#allocation2 + $0x8] sm:$0xff] %v1264
        %1271 = vst [vmem:[#allocation2 + $0x10] sm:$0xff] %v1265
        %1272 = vst [vmem:[#allocation2 + $0x28] sm:$0xff] %v1266
        %1273 = vst [vmem:[#allocation2 + $0x30] sm:$0xff] %v1267
        %1274 = vst [vmem:[#allocation2 + $0x48] sm:$0xf] %v1268
        %1275 = vst [vmem:[#allocation2 + $0x50] sm:$0xf] %v1269
        %v1276 = vld [vmem:[#allocation2] sm:$0xff]
        %v1277 = vld [vmem:[#allocation2 + $0x8] sm:$0xff]
        %v1278 = vld [vmem:[#allocation2 + $0x10] sm:$0xff]
        %v1279 = vld [vmem:[#allocation2 + $0x18] sm:$0xff]
        %v1280 = vld [vmem:[#allocation2 + $0x20] sm:$0xff]
        %v1281 = vld [vmem:[#allocation2 + $0x28] sm:$0xff]
        %v1282 = vld [vmem:[#allocation2 + $0x30] sm:$0xff]
        %v1283 = vld [vmem:[#allocation2 + $0x38] sm:$0xff]
        %v1284 = vld [vmem:[#allocation2 + $0x40] sm:$0xff]
        %v1285 = vld [vmem:[#allocation2 + $0x48] sm:$0xff]
        %v1286 = vld [vmem:[#allocation2 + $0x50] sm:$0xff]
        %v1287 = vld [vmem:[#allocation2 + $0x58] sm:$0xff]
        %1297 = vrot.lane.b32.xlu0 %v1276, 7
        %v1298 = vpop.permute.xlu0 %1297
        %1299 = vrot.lane.b32.xlu0 %v1277, 7
        %v1300 = vpop.permute.xlu0 %1299
        %1301 = vrot.lane.b32.xlu0 %v1278, 7
        %v1302 = vpop.permute.xlu0 %1301
        %1303 = vrot.lane.b32.xlu0 %v1280, 7
        %v1304 = vpop.permute.xlu0 %1303
        %1305 = vrot.lane.b32.xlu0 %v1281, 7
        %v1306 = vpop.permute.xlu0 %1305
        %1307 = vrot.lane.b32.xlu0 %v1282, 7
        %v1308 = vpop.permute.xlu0 %1307
        %1309 = vrot.lane.b32.xlu0 %v1284, 7
        %v1310 = vpop.permute.xlu0 %1309
        %1311 = vrot.lane.b32.xlu0 %v1285, 7
        %v1312 = vpop.permute.xlu0 %1311
        %1313 = vrot.lane.b32.xlu0 %v1286, 7
        %v1314 = vpop.permute.xlu0 %1313
        %v1315 = vsel %vm841, %v1298, %v1300
        %v1316 = vsel %vm841, %v1300, %v1302
        %v1317 = vsel %vm841, %v1304, %v1306
        %v1318 = vsel %vm841, %v1306, %v1308
        %v1319 = vsel %vm841, %v1310, %v1312
        %v1320 = vsel %vm841, %v1312, %v1314
        %1327 = vst [vmem:[#allocation3] sm:$0xff] %v1315
        %1328 = vst [vmem:[#allocation3 + $0x8] sm:$0xff] %v1316
        %1329 = vst [vmem:[#allocation3 + $0x10] sm:$0xff] %v1317
        %1330 = vst [vmem:[#allocation3 + $0x18] sm:$0xff] %v1318
        %1331 = vst [vmem:[#allocation3 + $0x20] sm:$0xff] %v1319
        %1332 = vst [vmem:[#allocation3 + $0x28] sm:$0xff] %v1320
        %1333 = vrot.lane.b32.xlu0 %v1276, 6
        %v1334 = vpop.permute.xlu0 %1333
        %1335 = vrot.lane.b32.xlu0 %v1277, 6
        %v1336 = vpop.permute.xlu0 %1335
        %1337 = vrot.lane.b32.xlu0 %v1278, 6
        %v1338 = vpop.permute.xlu0 %1337
        %1339 = vrot.lane.b32.xlu0 %v1280, 6
        %v1340 = vpop.permute.xlu0 %1339
        %1341 = vrot.lane.b32.xlu0 %v1281, 6
        %v1342 = vpop.permute.xlu0 %1341
        %1343 = vrot.lane.b32.xlu0 %v1282, 6
        %v1344 = vpop.permute.xlu0 %1343
        %1345 = vrot.lane.b32.xlu0 %v1284, 6
        %v1346 = vpop.permute.xlu0 %1345
        %1347 = vrot.lane.b32.xlu0 %v1285, 6
        %v1348 = vpop.permute.xlu0 %1347
        %1349 = vrot.lane.b32.xlu0 %v1286, 6
        %v1350 = vpop.permute.xlu0 %1349
        %v1351 = vsel %vm854, %v1334, %v1336
        %v1352 = vsel %vm854, %v1336, %v1338
        %v1353 = vsel %vm854, %v1340, %v1342
        %v1354 = vsel %vm854, %v1342, %v1344
        %v1355 = vsel %vm854, %v1346, %v1348
        %v1356 = vsel %vm854, %v1348, %v1350
        %1363 = vst [vmem:[#allocation3 + $0x30] sm:$0xff] %v1351
        %1364 = vst [vmem:[#allocation3 + $0x38] sm:$0xff] %v1352
        %1365 = vst [vmem:[#allocation3 + $0x40] sm:$0xff] %v1353
        %1366 = vst [vmem:[#allocation3 + $0x48] sm:$0xff] %v1354
        %1367 = vst [vmem:[#allocation3 + $0x50] sm:$0xff] %v1355
        %1368 = vst [vmem:[#allocation3 + $0x58] sm:$0xff] %v1356
        %1369 = vrot.lane.b32.xlu0 %v1276, 5
        %v1370 = vpop.permute.xlu0 %1369
        %1371 = vrot.lane.b32.xlu0 %v1277, 5
        %v1372 = vpop.permute.xlu0 %1371
        %1373 = vrot.lane.b32.xlu0 %v1278, 5
        %v1374 = vpop.permute.xlu0 %1373
        %1375 = vrot.lane.b32.xlu0 %v1280, 5
        %v1376 = vpop.permute.xlu0 %1375
        %1377 = vrot.lane.b32.xlu0 %v1281, 5
        %v1378 = vpop.permute.xlu0 %1377
        %1379 = vrot.lane.b32.xlu0 %v1282, 5
        %v1380 = vpop.permute.xlu0 %1379
        %1381 = vrot.lane.b32.xlu0 %v1284, 5
        %v1382 = vpop.permute.xlu0 %1381
        %1383 = vrot.lane.b32.xlu0 %v1285, 5
        %v1384 = vpop.permute.xlu0 %1383
        %1385 = vrot.lane.b32.xlu0 %v1286, 5
        %v1386 = vpop.permute.xlu0 %1385
        %v1387 = vsel %vm867, %v1370, %v1372
        %v1388 = vsel %vm867, %v1372, %v1374
        %v1389 = vsel %vm867, %v1376, %v1378
        %v1390 = vsel %vm867, %v1378, %v1380
        %v1391 = vsel %vm867, %v1382, %v1384
        %v1392 = vsel %vm867, %v1384, %v1386
        %1399 = vst [vmem:[#allocation3 + $0x60] sm:$0xff] %v1387
        %1400 = vst [vmem:[#allocation3 + $0x68] sm:$0xff] %v1388
        %1401 = vst [vmem:[#allocation3 + $0x70] sm:$0xff] %v1389
        %1402 = vst [vmem:[#allocation3 + $0x78] sm:$0xff] %v1390
        %1403 = vst [vmem:[#allocation3 + $0x80] sm:$0xff] %v1391
        %1404 = vst [vmem:[#allocation3 + $0x88] sm:$0xff] %v1392
        %1405 = vrot.lane.b32.xlu0 %v1276, 4
        %v1406 = vpop.permute.xlu0 %1405
        %1407 = vrot.lane.b32.xlu0 %v1277, 4
        %v1408 = vpop.permute.xlu0 %1407
        %1409 = vrot.lane.b32.xlu0 %v1278, 4
        %v1410 = vpop.permute.xlu0 %1409
        %1411 = vrot.lane.b32.xlu0 %v1280, 4
        %v1412 = vpop.permute.xlu0 %1411
        %1413 = vrot.lane.b32.xlu0 %v1281, 4
        %v1414 = vpop.permute.xlu0 %1413
        %1415 = vrot.lane.b32.xlu0 %v1282, 4
        %v1416 = vpop.permute.xlu0 %1415
        %1417 = vrot.lane.b32.xlu0 %v1284, 4
        %v1418 = vpop.permute.xlu0 %1417
        %1419 = vrot.lane.b32.xlu0 %v1285, 4
        %v1420 = vpop.permute.xlu0 %1419
        %1421 = vrot.lane.b32.xlu0 %v1286, 4
        %v1422 = vpop.permute.xlu0 %1421
        %v1423 = vsel %vm880, %v1406, %v1408
        %v1424 = vsel %vm880, %v1408, %v1410
        %v1425 = vsel %vm880, %v1412, %v1414
        %v1426 = vsel %vm880, %v1414, %v1416
        %v1427 = vsel %vm880, %v1418, %v1420
        %v1428 = vsel %vm880, %v1420, %v1422
        %1435 = vst [vmem:[#allocation3 + $0x90] sm:$0xff] %v1423
        %1436 = vst [vmem:[#allocation3 + $0x98] sm:$0xff] %v1424
        %1437 = vst [vmem:[#allocation3 + $0xa0] sm:$0xff] %v1425
        %1438 = vst [vmem:[#allocation3 + $0xa8] sm:$0xff] %v1426
        %1439 = vst [vmem:[#allocation3 + $0xb0] sm:$0xff] %v1427
        %1440 = vst [vmem:[#allocation3 + $0xb8] sm:$0xff] %v1428
        %1441 = vrot.lane.b32.xlu0 %v1276, 3
        %v1442 = vpop.permute.xlu0 %1441
        %1443 = vrot.lane.b32.xlu0 %v1277, 3
        %v1444 = vpop.permute.xlu0 %1443
        %1445 = vrot.lane.b32.xlu0 %v1278, 3
        %v1446 = vpop.permute.xlu0 %1445
        %1447 = vrot.lane.b32.xlu0 %v1280, 3
        %v1448 = vpop.permute.xlu0 %1447
        %1449 = vrot.lane.b32.xlu0 %v1281, 3
        %v1450 = vpop.permute.xlu0 %1449
        %1451 = vrot.lane.b32.xlu0 %v1282, 3
        %v1452 = vpop.permute.xlu0 %1451
        %1453 = vrot.lane.b32.xlu0 %v1284, 3
        %v1454 = vpop.permute.xlu0 %1453
        %1455 = vrot.lane.b32.xlu0 %v1285, 3
        %v1456 = vpop.permute.xlu0 %1455
        %1457 = vrot.lane.b32.xlu0 %v1286, 3
        %v1458 = vpop.permute.xlu0 %1457
        %v1459 = vsel %vm893, %v1442, %v1444
        %v1460 = vsel %vm893, %v1444, %v1446
        %v1461 = vsel %vm893, %v1448, %v1450
        %v1462 = vsel %vm893, %v1450, %v1452
        %v1463 = vsel %vm893, %v1454, %v1456
        %v1464 = vsel %vm893, %v1456, %v1458
        %1471 = vst [vmem:[#allocation3 + $0xc0] sm:$0xff] %v1459
        %1472 = vst [vmem:[#allocation3 + $0xc8] sm:$0xff] %v1460
        %1473 = vst [vmem:[#allocation3 + $0xd0] sm:$0xff] %v1461
        %1474 = vst [vmem:[#allocation3 + $0xd8] sm:$0xff] %v1462
        %1475 = vst [vmem:[#allocation3 + $0xe0] sm:$0xff] %v1463
        %1476 = vst [vmem:[#allocation3 + $0xe8] sm:$0xff] %v1464
        %1477 = vrot.lane.b32.xlu0 %v1276, 2
        %v1478 = vpop.permute.xlu0 %1477
        %1479 = vrot.lane.b32.xlu0 %v1277, 2
        %v1480 = vpop.permute.xlu0 %1479
        %1481 = vrot.lane.b32.xlu0 %v1278, 2
        %v1482 = vpop.permute.xlu0 %1481
        %1483 = vrot.lane.b32.xlu0 %v1280, 2
        %v1484 = vpop.permute.xlu0 %1483
        %1485 = vrot.lane.b32.xlu0 %v1281, 2
        %v1486 = vpop.permute.xlu0 %1485
        %1487 = vrot.lane.b32.xlu0 %v1282, 2
        %v1488 = vpop.permute.xlu0 %1487
        %1489 = vrot.lane.b32.xlu0 %v1284, 2
        %v1490 = vpop.permute.xlu0 %1489
        %1491 = vrot.lane.b32.xlu0 %v1285, 2
        %v1492 = vpop.permute.xlu0 %1491
        %1493 = vrot.lane.b32.xlu0 %v1286, 2
        %v1494 = vpop.permute.xlu0 %1493
        %v1495 = vsel %vm906, %v1478, %v1480
        %v1496 = vsel %vm906, %v1480, %v1482
        %v1497 = vsel %vm906, %v1484, %v1486
        %v1498 = vsel %vm906, %v1486, %v1488
        %v1499 = vsel %vm906, %v1490, %v1492
        %v1500 = vsel %vm906, %v1492, %v1494
        %1507 = vst [vmem:[#allocation3 + $0xf0] sm:$0xff] %v1495
        %1508 = vst [vmem:[#allocation3 + $0xf8] sm:$0xff] %v1496
        %1509 = vst [vmem:[#allocation3 + $0x100] sm:$0xff] %v1497
        %1510 = vst [vmem:[#allocation3 + $0x108] sm:$0xff] %v1498
        %1511 = vst [vmem:[#allocation3 + $0x110] sm:$0xff] %v1499
        %1512 = vst [vmem:[#allocation3 + $0x118] sm:$0xff] %v1500
        %1513 = vrot.lane.b32.xlu0 %v1276, 1
        %v1514 = vpop.permute.xlu0 %1513
        %1515 = vrot.lane.b32.xlu0 %v1277, 1
        %v1516 = vpop.permute.xlu0 %1515
        %1517 = vrot.lane.b32.xlu0 %v1278, 1
        %v1518 = vpop.permute.xlu0 %1517
        %1519 = vrot.lane.b32.xlu0 %v1280, 1
        %v1520 = vpop.permute.xlu0 %1519
        %1521 = vrot.lane.b32.xlu0 %v1281, 1
        %v1522 = vpop.permute.xlu0 %1521
        %1523 = vrot.lane.b32.xlu0 %v1282, 1
        %v1524 = vpop.permute.xlu0 %1523
        %1525 = vrot.lane.b32.xlu0 %v1284, 1
        %v1526 = vpop.permute.xlu0 %1525
        %1527 = vrot.lane.b32.xlu0 %v1285, 1
        %v1528 = vpop.permute.xlu0 %1527
        %1529 = vrot.lane.b32.xlu0 %v1286, 1
        %v1530 = vpop.permute.xlu0 %1529
        %v1531 = vsel %vm919, %v1514, %v1516
        %v1532 = vsel %vm919, %v1516, %v1518
        %v1533 = vsel %vm919, %v1520, %v1522
        %v1534 = vsel %vm919, %v1522, %v1524
        %v1535 = vsel %vm919, %v1526, %v1528
        %v1536 = vsel %vm919, %v1528, %v1530
        %1543 = vst [vmem:[#allocation3 + $0x120] sm:$0xff] %v1531
        %1544 = vst [vmem:[#allocation3 + $0x128] sm:$0xff] %v1532
        %1545 = vst [vmem:[#allocation3 + $0x130] sm:$0xff] %v1533
        %1546 = vst [vmem:[#allocation3 + $0x138] sm:$0xff] %v1534
        %1547 = vst [vmem:[#allocation3 + $0x140] sm:$0xff] %v1535
        %1548 = vst [vmem:[#allocation3 + $0x148] sm:$0xff] %v1536
        %1549 = vst [vmem:[#allocation3 + $0x150] sm:$0xff] %v1277
        %1550 = vst [vmem:[#allocation3 + $0x158] sm:$0xff] %v1278
        %1551 = vst [vmem:[#allocation3 + $0x160] sm:$0xff] %v1281
        %1552 = vst [vmem:[#allocation3 + $0x168] sm:$0xff] %v1282
        %1553 = vst [vmem:[#allocation3 + $0x170] sm:$0xff] %v1285
        %1554 = vst [vmem:[#allocation3 + $0x178] sm:$0xff] %v1286
        %1558 = vrot.lane.b32.xlu0 %v1277, 127
        %v1559 = vpop.permute.xlu0 %1558
        %1560 = vrot.lane.b32.xlu0 %v1278, 127
        %v1561 = vpop.permute.xlu0 %1560
        %1562 = vrot.lane.b32.xlu0 %v1279, 127
        %v1563 = vpop.permute.xlu0 %1562
        %1564 = vrot.lane.b32.xlu0 %v1281, 127
        %v1565 = vpop.permute.xlu0 %1564
        %1566 = vrot.lane.b32.xlu0 %v1282, 127
        %v1567 = vpop.permute.xlu0 %1566
        %1568 = vrot.lane.b32.xlu0 %v1283, 127
        %v1569 = vpop.permute.xlu0 %1568
        %1570 = vrot.lane.b32.xlu0 %v1285, 127
        %v1571 = vpop.permute.xlu0 %1570
        %1572 = vrot.lane.b32.xlu0 %v1286, 127
        %v1573 = vpop.permute.xlu0 %1572
        %1574 = vrot.lane.b32.xlu0 %v1287, 127
        %v1575 = vpop.permute.xlu0 %1574
        %v1576 = vsel %vm935, %v1559, %v1561
        %v1577 = vsel %vm935, %v1561, %v1563
        %v1578 = vsel %vm935, %v1565, %v1567
        %v1579 = vsel %vm935, %v1567, %v1569
        %v1580 = vsel %vm935, %v1571, %v1573
        %v1581 = vsel %vm935, %v1573, %v1575
        %1588 = vst [vmem:[#allocation3 + $0x180] sm:$0xff] %v1576
        %1589 = vst [vmem:[#allocation3 + $0x188] sm:$0xff] %v1577
        %1590 = vst [vmem:[#allocation3 + $0x190] sm:$0xff] %v1578
        %1591 = vst [vmem:[#allocation3 + $0x198] sm:$0xff] %v1579
        %1592 = vst [vmem:[#allocation3 + $0x1a0] sm:$0xff] %v1580
        %1593 = vst [vmem:[#allocation3 + $0x1a8] sm:$0xff] %v1581
        %1594 = vrot.lane.b32.xlu0 %v1277, 126
        %v1595 = vpop.permute.xlu0 %1594
        %1596 = vrot.lane.b32.xlu0 %v1278, 126
        %v1597 = vpop.permute.xlu0 %1596
        %1598 = vrot.lane.b32.xlu0 %v1279, 126
        %v1599 = vpop.permute.xlu0 %1598
        %1600 = vrot.lane.b32.xlu0 %v1281, 126
        %v1601 = vpop.permute.xlu0 %1600
        %1602 = vrot.lane.b32.xlu0 %v1282, 126
        %v1603 = vpop.permute.xlu0 %1602
        %1604 = vrot.lane.b32.xlu0 %v1283, 126
        %v1605 = vpop.permute.xlu0 %1604
        %1606 = vrot.lane.b32.xlu0 %v1285, 126
        %v1607 = vpop.permute.xlu0 %1606
        %1608 = vrot.lane.b32.xlu0 %v1286, 126
        %v1609 = vpop.permute.xlu0 %1608
        %1610 = vrot.lane.b32.xlu0 %v1287, 126
        %v1611 = vpop.permute.xlu0 %1610
        %v1612 = vsel %vm948, %v1595, %v1597
        %v1613 = vsel %vm948, %v1597, %v1599
        %v1614 = vsel %vm948, %v1601, %v1603
        %v1615 = vsel %vm948, %v1603, %v1605
        %v1616 = vsel %vm948, %v1607, %v1609
        %v1617 = vsel %vm948, %v1609, %v1611
        %1624 = vst [vmem:[#allocation3 + $0x1b0] sm:$0xff] %v1612
        %1625 = vst [vmem:[#allocation3 + $0x1b8] sm:$0xff] %v1613
        %1626 = vst [vmem:[#allocation3 + $0x1c0] sm:$0xff] %v1614
        %1627 = vst [vmem:[#allocation3 + $0x1c8] sm:$0xff] %v1615
        %1628 = vst [vmem:[#allocation3 + $0x1d0] sm:$0xff] %v1616
        %1629 = vst [vmem:[#allocation3 + $0x1d8] sm:$0xff] %v1617
        %1630 = vrot.lane.b32.xlu0 %v1277, 125
        %v1631 = vpop.permute.xlu0 %1630
        %1632 = vrot.lane.b32.xlu0 %v1278, 125
        %v1633 = vpop.permute.xlu0 %1632
        %1634 = vrot.lane.b32.xlu0 %v1279, 125
        %v1635 = vpop.permute.xlu0 %1634
        %1636 = vrot.lane.b32.xlu0 %v1281, 125
        %v1637 = vpop.permute.xlu0 %1636
        %1638 = vrot.lane.b32.xlu0 %v1282, 125
        %v1639 = vpop.permute.xlu0 %1638
        %1640 = vrot.lane.b32.xlu0 %v1283, 125
        %v1641 = vpop.permute.xlu0 %1640
        %1642 = vrot.lane.b32.xlu0 %v1285, 125
        %v1643 = vpop.permute.xlu0 %1642
        %1644 = vrot.lane.b32.xlu0 %v1286, 125
        %v1645 = vpop.permute.xlu0 %1644
        %1646 = vrot.lane.b32.xlu0 %v1287, 125
        %v1647 = vpop.permute.xlu0 %1646
        %v1648 = vsel %vm961, %v1631, %v1633
        %v1649 = vsel %vm961, %v1633, %v1635
        %v1650 = vsel %vm961, %v1637, %v1639
        %v1651 = vsel %vm961, %v1639, %v1641
        %v1652 = vsel %vm961, %v1643, %v1645
        %v1653 = vsel %vm961, %v1645, %v1647
        %1660 = vst [vmem:[#allocation3 + $0x1e0] sm:$0xff] %v1648
        %1661 = vst [vmem:[#allocation3 + $0x1e8] sm:$0xff] %v1649
        %1662 = vst [vmem:[#allocation3 + $0x1f0] sm:$0xff] %v1650
        %1663 = vst [vmem:[#allocation3 + $0x1f8] sm:$0xff] %v1651
        %1664 = vst [vmem:[#allocation3 + $0x200] sm:$0xff] %v1652
        %1665 = vst [vmem:[#allocation3 + $0x208] sm:$0xff] %v1653
        %1666 = vrot.lane.b32.xlu0 %v1277, 124
        %v1667 = vpop.permute.xlu0 %1666
        %1668 = vrot.lane.b32.xlu0 %v1278, 124
        %v1669 = vpop.permute.xlu0 %1668
        %1670 = vrot.lane.b32.xlu0 %v1279, 124
        %v1671 = vpop.permute.xlu0 %1670
        %1672 = vrot.lane.b32.xlu0 %v1281, 124
        %v1673 = vpop.permute.xlu0 %1672
        %1674 = vrot.lane.b32.xlu0 %v1282, 124
        %v1675 = vpop.permute.xlu0 %1674
        %1676 = vrot.lane.b32.xlu0 %v1283, 124
        %v1677 = vpop.permute.xlu0 %1676
        %1678 = vrot.lane.b32.xlu0 %v1285, 124
        %v1679 = vpop.permute.xlu0 %1678
        %1680 = vrot.lane.b32.xlu0 %v1286, 124
        %v1681 = vpop.permute.xlu0 %1680
        %1682 = vrot.lane.b32.xlu0 %v1287, 124
        %v1683 = vpop.permute.xlu0 %1682
        %v1684 = vsel %vm974, %v1667, %v1669
        %v1685 = vsel %vm974, %v1669, %v1671
        %v1686 = vsel %vm974, %v1673, %v1675
        %v1687 = vsel %vm974, %v1675, %v1677
        %v1688 = vsel %vm974, %v1679, %v1681
        %v1689 = vsel %vm974, %v1681, %v1683
        %1696 = vst [vmem:[#allocation3 + $0x210] sm:$0xff] %v1684
        %1697 = vst [vmem:[#allocation3 + $0x218] sm:$0xff] %v1685
        %1698 = vst [vmem:[#allocation3 + $0x220] sm:$0xff] %v1686
        %1699 = vst [vmem:[#allocation3 + $0x228] sm:$0xff] %v1687
        %1700 = vst [vmem:[#allocation3 + $0x230] sm:$0xff] %v1688
        %1701 = vst [vmem:[#allocation3 + $0x238] sm:$0xff] %v1689
        %1702 = vrot.lane.b32.xlu0 %v1277, 123
        %v1703 = vpop.permute.xlu0 %1702
        %1704 = vrot.lane.b32.xlu0 %v1278, 123
        %v1705 = vpop.permute.xlu0 %1704
        %1706 = vrot.lane.b32.xlu0 %v1279, 123
        %v1707 = vpop.permute.xlu0 %1706
        %1708 = vrot.lane.b32.xlu0 %v1281, 123
        %v1709 = vpop.permute.xlu0 %1708
        %1710 = vrot.lane.b32.xlu0 %v1282, 123
        %v1711 = vpop.permute.xlu0 %1710
        %1712 = vrot.lane.b32.xlu0 %v1283, 123
        %v1713 = vpop.permute.xlu0 %1712
        %1714 = vrot.lane.b32.xlu0 %v1285, 123
        %v1715 = vpop.permute.xlu0 %1714
        %1716 = vrot.lane.b32.xlu0 %v1286, 123
        %v1717 = vpop.permute.xlu0 %1716
        %1718 = vrot.lane.b32.xlu0 %v1287, 123
        %v1719 = vpop.permute.xlu0 %1718
        %v1720 = vsel %vm987, %v1703, %v1705
        %v1721 = vsel %vm987, %v1705, %v1707
        %v1722 = vsel %vm987, %v1709, %v1711
        %v1723 = vsel %vm987, %v1711, %v1713
        %v1724 = vsel %vm987, %v1715, %v1717
        %v1725 = vsel %vm987, %v1717, %v1719
        %1732 = vst [vmem:[#allocation3 + $0x240] sm:$0xff] %v1720
        %1733 = vst [vmem:[#allocation3 + $0x248] sm:$0xff] %v1721
        %1734 = vst [vmem:[#allocation3 + $0x250] sm:$0xff] %v1722
        %1735 = vst [vmem:[#allocation3 + $0x258] sm:$0xff] %v1723
        %1736 = vst [vmem:[#allocation3 + $0x260] sm:$0xff] %v1724
        %1737 = vst [vmem:[#allocation3 + $0x268] sm:$0xff] %v1725
        %1738 = vrot.lane.b32.xlu0 %v1277, 122
        %v1739 = vpop.permute.xlu0 %1738
        %1740 = vrot.lane.b32.xlu0 %v1278, 122
        %v1741 = vpop.permute.xlu0 %1740
        %1742 = vrot.lane.b32.xlu0 %v1279, 122
        %v1743 = vpop.permute.xlu0 %1742
        %1744 = vrot.lane.b32.xlu0 %v1281, 122
        %v1745 = vpop.permute.xlu0 %1744
        %1746 = vrot.lane.b32.xlu0 %v1282, 122
        %v1747 = vpop.permute.xlu0 %1746
        %1748 = vrot.lane.b32.xlu0 %v1283, 122
        %v1749 = vpop.permute.xlu0 %1748
        %1750 = vrot.lane.b32.xlu0 %v1285, 122
        %v1751 = vpop.permute.xlu0 %1750
        %1752 = vrot.lane.b32.xlu0 %v1286, 122
        %v1753 = vpop.permute.xlu0 %1752
        %1754 = vrot.lane.b32.xlu0 %v1287, 122
        %v1755 = vpop.permute.xlu0 %1754
        %v1756 = vsel %vm1000, %v1739, %v1741
        %v1757 = vsel %vm1000, %v1741, %v1743
        %v1758 = vsel %vm1000, %v1745, %v1747
        %v1759 = vsel %vm1000, %v1747, %v1749
        %v1760 = vsel %vm1000, %v1751, %v1753
        %v1761 = vsel %vm1000, %v1753, %v1755
        %1768 = vst [vmem:[#allocation3 + $0x270] sm:$0xff] %v1756
        %1769 = vst [vmem:[#allocation3 + $0x278] sm:$0xff] %v1757
        %1770 = vst [vmem:[#allocation3 + $0x280] sm:$0xff] %v1758
        %1771 = vst [vmem:[#allocation3 + $0x288] sm:$0xff] %v1759
        %1772 = vst [vmem:[#allocation3 + $0x290] sm:$0xff] %v1760
        %1773 = vst [vmem:[#allocation3 + $0x298] sm:$0xff] %v1761
        %1774 = vrot.lane.b32.xlu0 %v1277, 121
        %v1775 = vpop.permute.xlu0 %1774
        %1776 = vrot.lane.b32.xlu0 %v1278, 121
        %v1777 = vpop.permute.xlu0 %1776
        %1778 = vrot.lane.b32.xlu0 %v1279, 121
        %v1779 = vpop.permute.xlu0 %1778
        %1780 = vrot.lane.b32.xlu0 %v1281, 121
        %v1781 = vpop.permute.xlu0 %1780
        %1782 = vrot.lane.b32.xlu0 %v1282, 121
        %v1783 = vpop.permute.xlu0 %1782
        %1784 = vrot.lane.b32.xlu0 %v1283, 121
        %v1785 = vpop.permute.xlu0 %1784
        %1786 = vrot.lane.b32.xlu0 %v1285, 121
        %v1787 = vpop.permute.xlu0 %1786
        %1788 = vrot.lane.b32.xlu0 %v1286, 121
        %v1789 = vpop.permute.xlu0 %1788
        %1790 = vrot.lane.b32.xlu0 %v1287, 121
        %v1791 = vpop.permute.xlu0 %1790
        %v1792 = vsel %vm1013, %v1775, %v1777
        %v1793 = vsel %vm1013, %v1777, %v1779
        %v1794 = vsel %vm1013, %v1781, %v1783
        %v1795 = vsel %vm1013, %v1783, %v1785
        %v1796 = vsel %vm1013, %v1787, %v1789
        %v1797 = vsel %vm1013, %v1789, %v1791
        %1804 = vst [vmem:[#allocation3 + $0x2a0] sm:$0xff] %v1792
        %1805 = vst [vmem:[#allocation3 + $0x2a8] sm:$0xff] %v1793
        %1806 = vst [vmem:[#allocation3 + $0x2b0] sm:$0xff] %v1794
        %1807 = vst [vmem:[#allocation3 + $0x2b8] sm:$0xff] %v1795
        %1808 = vst [vmem:[#allocation3 + $0x2c0] sm:$0xff] %v1796
        %1809 = vst [vmem:[#allocation3 + $0x2c8] sm:$0xff] %v1797
        %v1810 = vld [vmem:[#allocation10] sm:$0xff]
        %v1811 = vld [vmem:[#allocation10 + $0x8] sm:$0xff]
        %v1812 = vld [vmem:[#allocation10 + $0x10] sm:$0xff]
        %v1813 = vld [vmem:[#allocation10 + $0x18] sm:$0x3]
        %v1814 = vld [vmem:[#allocation10 + $0x20] sm:$0x3]
        %v1815 = vld [vmem:[#allocation10 + $0x28] sm:$0x3]
        %v1816 = vld [vmem:[#allocation3] sm:$0xff]
        %v1817 = vld [vmem:[#allocation3 + $0x8] sm:$0xff]
        %v1818 = vld [vmem:[#allocation3 + $0x10] sm:$0xff]
        %v1819 = vld [vmem:[#allocation3 + $0x18] sm:$0xff]
        %v1820 = vld [vmem:[#allocation3 + $0x20] sm:$0xff]
        %v1821 = vld [vmem:[#allocation3 + $0x28] sm:$0xff]
        %v1822 = vld [vmem:[#allocation3 + $0x30] sm:$0xff]
        %v1823 = vld [vmem:[#allocation3 + $0x38] sm:$0xff]
        %v1824 = vld [vmem:[#allocation3 + $0x40] sm:$0xff]
        %v1825 = vld [vmem:[#allocation3 + $0x48] sm:$0xff]
        %v1826 = vld [vmem:[#allocation3 + $0x50] sm:$0xff]
        %v1827 = vld [vmem:[#allocation3 + $0x58] sm:$0xff]
        %v1828 = vld [vmem:[#allocation3 + $0x60] sm:$0xff]
        %v1829 = vld [vmem:[#allocation3 + $0x68] sm:$0xff]
        %v1830 = vld [vmem:[#allocation3 + $0x70] sm:$0xff]
        %v1831 = vld [vmem:[#allocation3 + $0x78] sm:$0xff]
        %v1832 = vld [vmem:[#allocation3 + $0x80] sm:$0xff]
        %v1833 = vld [vmem:[#allocation3 + $0x88] sm:$0xff]
        %v1834 = vld [vmem:[#allocation3 + $0x90] sm:$0xff]
        %v1835 = vld [vmem:[#allocation3 + $0x98] sm:$0xff]
        %v1836 = vld [vmem:[#allocation3 + $0xa0] sm:$0xff]
        %v1837 = vld [vmem:[#allocation3 + $0xa8] sm:$0xff]
        %v1838 = vld [vmem:[#allocation3 + $0xb0] sm:$0xff]
        %v1839 = vld [vmem:[#allocation3 + $0xb8] sm:$0xff]
        %v1840 = vld [vmem:[#allocation3 + $0xc0] sm:$0xff]
        %v1841 = vld [vmem:[#allocation3 + $0xc8] sm:$0xff]
        %v1842 = vld [vmem:[#allocation3 + $0xd0] sm:$0xff]
        %v1843 = vld [vmem:[#allocation3 + $0xd8] sm:$0xff]
        %v1844 = vld [vmem:[#allocation3 + $0xe0] sm:$0xff]
        %v1845 = vld [vmem:[#allocation3 + $0xe8] sm:$0xff]
        %v1846 = vld [vmem:[#allocation3 + $0xf0] sm:$0xff]
        %v1847 = vld [vmem:[#allocation3 + $0xf8] sm:$0xff]
        %v1848 = vld [vmem:[#allocation3 + $0x100] sm:$0xff]
        %v1849 = vld [vmem:[#allocation3 + $0x108] sm:$0xff]
        %v1850 = vld [vmem:[#allocation3 + $0x110] sm:$0xff]
        %v1851 = vld [vmem:[#allocation3 + $0x118] sm:$0xff]
        %v1852 = vld [vmem:[#allocation3 + $0x120] sm:$0xff]
        %v1853 = vld [vmem:[#allocation3 + $0x128] sm:$0xff]
        %v1854 = vld [vmem:[#allocation3 + $0x130] sm:$0xff]
        %v1855 = vld [vmem:[#allocation3 + $0x138] sm:$0xff]
        %v1856 = vld [vmem:[#allocation3 + $0x140] sm:$0xff]
        %v1857 = vld [vmem:[#allocation3 + $0x148] sm:$0xff]
        %v1858 = vld [vmem:[#allocation3 + $0x150] sm:$0xff]
        %v1859 = vld [vmem:[#allocation3 + $0x158] sm:$0xff]
        %v1860 = vld [vmem:[#allocation3 + $0x160] sm:$0xff]
        %v1861 = vld [vmem:[#allocation3 + $0x168] sm:$0xff]
        %v1862 = vld [vmem:[#allocation3 + $0x170] sm:$0xff]
        %v1863 = vld [vmem:[#allocation3 + $0x178] sm:$0xff]
        %v1864 = vld [vmem:[#allocation3 + $0x180] sm:$0xff]
        %v1865 = vld [vmem:[#allocation3 + $0x188] sm:$0xff]
        %v1866 = vld [vmem:[#allocation3 + $0x190] sm:$0xff]
        %v1867 = vld [vmem:[#allocation3 + $0x198] sm:$0xff]
        %v1868 = vld [vmem:[#allocation3 + $0x1a0] sm:$0xff]
        %v1869 = vld [vmem:[#allocation3 + $0x1a8] sm:$0xff]
        %v1870 = vld [vmem:[#allocation3 + $0x1b0] sm:$0xff]
        %v1871 = vld [vmem:[#allocation3 + $0x1b8] sm:$0xff]
        %v1872 = vld [vmem:[#allocation3 + $0x1c0] sm:$0xff]
        %v1873 = vld [vmem:[#allocation3 + $0x1c8] sm:$0xff]
        %v1874 = vld [vmem:[#allocation3 + $0x1d0] sm:$0xff]
        %v1875 = vld [vmem:[#allocation3 + $0x1d8] sm:$0xff]
        %v1876 = vld [vmem:[#allocation3 + $0x1e0] sm:$0xff]
        %v1877 = vld [vmem:[#allocation3 + $0x1e8] sm:$0xff]
        %v1878 = vld [vmem:[#allocation3 + $0x1f0] sm:$0xff]
        %v1879 = vld [vmem:[#allocation3 + $0x1f8] sm:$0xff]
        %v1880 = vld [vmem:[#allocation3 + $0x200] sm:$0xff]
        %v1881 = vld [vmem:[#allocation3 + $0x208] sm:$0xff]
        %v1882 = vld [vmem:[#allocation3 + $0x210] sm:$0xff]
        %v1883 = vld [vmem:[#allocation3 + $0x218] sm:$0xff]
        %v1884 = vld [vmem:[#allocation3 + $0x220] sm:$0xff]
        %v1885 = vld [vmem:[#allocation3 + $0x228] sm:$0xff]
        %v1886 = vld [vmem:[#allocation3 + $0x230] sm:$0xff]
        %v1887 = vld [vmem:[#allocation3 + $0x238] sm:$0xff]
        %v1888 = vld [vmem:[#allocation3 + $0x240] sm:$0xff]
        %v1889 = vld [vmem:[#allocation3 + $0x248] sm:$0xff]
        %v1890 = vld [vmem:[#allocation3 + $0x250] sm:$0xff]
        %v1891 = vld [vmem:[#allocation3 + $0x258] sm:$0xff]
        %v1892 = vld [vmem:[#allocation3 + $0x260] sm:$0xff]
        %v1893 = vld [vmem:[#allocation3 + $0x268] sm:$0xff]
        %v1894 = vld [vmem:[#allocation3 + $0x270] sm:$0xff]
        %v1895 = vld [vmem:[#allocation3 + $0x278] sm:$0xff]
        %v1896 = vld [vmem:[#allocation3 + $0x280] sm:$0xff]
        %v1897 = vld [vmem:[#allocation3 + $0x288] sm:$0xff]
        %v1898 = vld [vmem:[#allocation3 + $0x290] sm:$0xff]
        %v1899 = vld [vmem:[#allocation3 + $0x298] sm:$0xff]
        %v1900 = vld [vmem:[#allocation3 + $0x2a0] sm:$0xff]
        %v1901 = vld [vmem:[#allocation3 + $0x2a8] sm:$0xff]
        %v1902 = vld [vmem:[#allocation3 + $0x2b0] sm:$0xff]
        %v1903 = vld [vmem:[#allocation3 + $0x2b8] sm:$0xff]
        %v1904 = vld [vmem:[#allocation3 + $0x2c0] sm:$0xff]
        %v1905 = vld [vmem:[#allocation3 + $0x2c8] sm:$0xff]
        %v1906 = vld [vmem:[%s4] sm:$0xff]
        %v1907 = vld [vmem:[%s4 + $0x8] sm:$0x3]
        %1909 = vset.pattern.permute.xlu0 0
        %1910 = vperm.xlu0 %1909, %v1906
        %v1911 = vpop.permute.xlu0 %1910
        %1914 = vset.pattern.permute.xlu0 0
        %1915 = vperm.xlu0 %1914, %v1907
        %v1916 = vpop.permute.xlu0 %1915
        %vm1918 = vcmask 850944
        %v1920 = vsel %vm1918, %v1812, 0
        %v1923 = vsel %vm1918, %v1815, 0
        %1925 = vmatprep.subr.mxu0 %v1817
        %1926 = vmatpush1.msra.mxu0 %v1816
        %1927 = vmatprep.subr.mxu0 %v1819
        %1928 = vmatpush1.msra.mxu0 %v1818
        %1929 = vmatprep.subr.mxu0 %v1821
        %1930 = vmatpush1.msra.mxu0 %v1820
        %1931 = vmatprep.subr.mxu0 %v1823
        %1932 = vmatpush1.msra.mxu0 %v1822
        %1933 = vmatprep.subr.mxu0 %v1825
        %1934 = vmatpush1.msra.mxu0 %v1824
        %1935 = vmatprep.subr.mxu0 %v1827
        %1936 = vmatpush1.msra.mxu0 %v1826
        %1937 = vmatprep.subr.mxu0 %v1829
        %1938 = vmatpush1.msra.mxu0 %v1828
        %1939 = vmatprep.subr.mxu0 %v1831
        %1940 = vmatpush1.msra.mxu0 %v1830
        %1941 = vmatprep.subr.mxu0 %v1833
        %1942 = vmatpush1.msra.mxu0 %v1832
        %1943 = vmatprep.subr.mxu0 %v1835
        %1944 = vmatpush1.msra.mxu0 %v1834
        %1945 = vmatprep.subr.mxu0 %v1837
        %1946 = vmatpush1.msra.mxu0 %v1836
        %1947 = vmatprep.subr.mxu0 %v1839
        %1948 = vmatpush1.msra.mxu0 %v1838
        %1949 = vmatprep.subr.mxu0 %v1841
        %1950 = vmatpush1.msra.mxu0 %v1840
        %1951 = vmatprep.subr.mxu0 %v1843
        %1952 = vmatpush1.msra.mxu0 %v1842
        %1953 = vmatprep.subr.mxu0 %v1845
        %1954 = vmatpush1.msra.mxu0 %v1844
        %1955 = vmatprep.subr.mxu0 %v1847
        %1956 = vmatpush1.msra.mxu0 %v1846
        %1957 = vmatprep.subr.mxu0 %v1849
        %1958 = vmatpush1.msra.mxu0 %v1848
        %1959 = vmatprep.subr.mxu0 %v1851
        %1960 = vmatpush1.msra.mxu0 %v1850
        %1961 = vmatprep.subr.mxu0 %v1853
        %1962 = vmatpush1.msra.mxu0 %v1852
        %1963 = vmatprep.subr.mxu0 %v1855
        %1964 = vmatpush1.msra.mxu0 %v1854
        %1965 = vmatprep.subr.mxu0 %v1857
        %1966 = vmatpush1.msra.mxu0 %v1856
        %1967 = vmatprep.subr.mxu0 %v1859
        %1968 = vmatpush1.msra.mxu0 %v1858
        %1969 = vmatprep.subr.mxu0 %v1861
        %1970 = vmatpush1.msra.mxu0 %v1860
        %1971 = vmatprep.subr.mxu0 %v1863
        %1972 = vmatpush1.msra.mxu0 %v1862
        %1973 = vmatprep.subr.mxu0 %v1865
        %1974 = vmatpush1.msra.mxu0 %v1864
        %1975 = vmatprep.subr.mxu0 %v1867
        %1976 = vmatpush1.msra.mxu0 %v1866
        %1977 = vmatprep.subr.mxu0 %v1869
        %1978 = vmatpush1.msra.mxu0 %v1868
        %1979 = vmatprep.subr.mxu0 %v1871
        %1980 = vmatpush1.msra.mxu0 %v1870
        %1981 = vmatprep.subr.mxu0 %v1873
        %1982 = vmatpush1.msra.mxu0 %v1872
        %1983 = vmatprep.subr.mxu0 %v1875
        %1984 = vmatpush1.msra.mxu0 %v1874
        %1985 = vmatprep.subr.mxu0 %v1877
        %1986 = vmatpush1.msra.mxu0 %v1876
        %1987 = vmatprep.subr.mxu0 %v1879
        %1988 = vmatpush1.msra.mxu0 %v1878
        %1989 = vmatprep.mubr.f32.mxu0 %v1811
        %1990 = vmatmul.mubr.f32.gmra.mrb[0].mxu0 %v1810
        %v1991 = vpop.f32.mrb[0].mxu0
        %v1992 = vadd.f32 %v1911, %v1991
        %v1993 = vpop.f32.mrb[0].mxu0
        %v1994 = vadd.f32 %v1911, %v1993
        %1995 = vmatprep.mubr.f32.mxu0 %v1814
        %1996 = vmatmul.mubr.f32.gmra.mrb[0].mxu0 %v1813
        %v1997 = vpop.f32.mrb[0].mxu0
        %v1998 = vadd.f32 %v1916, %v1997
        %v1999 = vpop.f32.mrb[0].mxu0
        %v2000 = vadd.f32 %v1916, %v1999
        %2001 = vdwg.mxu0
        %2002 = vmatprep.subr.mxu0 %v1881
        %2003 = vmatpush1.msra.mxu0 %v1880
        %2004 = vmatprep.subr.mxu0 %v1883
        %2005 = vmatpush1.msra.mxu0 %v1882
        %2006 = vmatprep.subr.mxu0 %v1885
        %2007 = vmatpush1.msra.mxu0 %v1884
        %2008 = vmatprep.subr.mxu0 %v1887
        %2009 = vmatpush1.msra.mxu0 %v1886
        %2010 = vmatprep.subr.mxu0 %v1889
        %2011 = vmatpush1.msra.mxu0 %v1888
        %2012 = vmatprep.subr.mxu0 %v1891
        %2013 = vmatpush1.msra.mxu0 %v1890
        %2014 = vmatprep.subr.mxu0 %v1893
        %2015 = vmatpush1.msra.mxu0 %v1892
        %2016 = vmatprep.subr.mxu0 %v1895
        %2017 = vmatpush1.msra.mxu0 %v1894
        %2018 = vmatprep.subr.mxu0 %v1897
        %2019 = vmatpush1.msra.mxu0 %v1896
        %2020 = vmatprep.subr.mxu0 %v1899
        %2021 = vmatpush1.msra.mxu0 %v1898
        %2022 = vmatprep.subr.mxu0 %v1901
        %2023 = vmatpush1.msra.mxu0 %v1900
        %2024 = vmatprep.subr.mxu0 %v1903
        %2025 = vmatpush1.msra.mxu0 %v1902
        %2026 = vmatprep.subr.mxu0 %v1905
        %2027 = vmatpush1.msra.mxu0 %v1904
        %2028 = vmatprep.subr.mxu0 0.0
        %2029 = vmatpush1.msra.mxu0 0.0
        %2030 = vmatprep.subr.mxu0 0.0
        %2031 = vmatpush1.msra.mxu0 0.0
        %2032 = vmatprep.subr.mxu0 0.0
        %2033 = vmatpush1.msra.mxu0 0.0
        %2034 = vmatprep.subr.mxu0 0.0
        %2035 = vmatpush1.msra.mxu0 0.0
        %2036 = vmatprep.subr.mxu0 0.0
        %2037 = vmatpush1.msra.mxu0 0.0
        %2038 = vmatprep.subr.mxu0 0.0
        %2039 = vmatpush1.msra.mxu0 0.0
        %2040 = vmatprep.subr.mxu0 0.0
        %2041 = vmatpush1.msra.mxu0 0.0
        %2042 = vmatprep.subr.mxu0 0.0
        %2043 = vmatpush1.msra.mxu0 0.0
        %2044 = vmatprep.subr.mxu0 0.0
        %2045 = vmatpush1.msra.mxu0 0.0
        %2046 = vmatprep.subr.mxu0 0.0
        %2047 = vmatpush1.msra.mxu0 0.0
        %2048 = vmatprep.subr.mxu0 0.0
        %2049 = vmatpush1.msra.mxu0 0.0
        %2050 = vmatprep.subr.mxu0 0.0
        %2051 = vmatpush1.msra.mxu0 0.0
        %2052 = vmatprep.subr.mxu0 0.0
        %2053 = vmatpush1.msra.mxu0 0.0
        %2054 = vmatprep.subr.mxu0 0.0
        %2055 = vmatpush1.msra.mxu0 0.0
        %2056 = vmatprep.subr.mxu0 0.0
        %2057 = vmatpush1.msra.mxu0 0.0
        %2058 = vmatprep.subr.mxu0 0.0
        %2059 = vmatpush1.msra.mxu0 0.0
        %2060 = vmatprep.subr.mxu0 0.0
        %2061 = vmatpush1.msra.mxu0 0.0
        %2062 = vmatprep.subr.mxu0 0.0
        %2063 = vmatpush1.msra.mxu0 0.0
        %2064 = vmatprep.subr.mxu0 0.0
        %2065 = vmatpush1.msra.mxu0 0.0
        %2066 = vmatprep.mubr.f32.mxu0 0.0
        %2067 = vmatmul.mubr.f32.gmra.mrb[0].mxu0 %v1920
        %v2068 = vpop.f32.mrb[0].mxu0
        %v2069 = vadd.f32 %v1992, %v2068
        %v2070 = vpop.f32.mrb[0].mxu0
        %v2071 = vadd.f32 %v1994, %v2070
        %2072 = vmatprep.mubr.f32.mxu0 0.0
        %2073 = vmatmul.mubr.f32.gmra.mrb[0].mxu0 %v1923
        %v2074 = vpop.f32.mrb[0].mxu0
        %v2075 = vadd.f32 %v1998, %v2074
        %v2076 = vpop.f32.mrb[0].mxu0
        %v2077 = vadd.f32 %v2000, %v2076
        %2078 = vdwg.mxu0
        %vm2079 = vcmp.ge.f32.partialorder %v2069, 0.0
        %vm2080 = vcmp.ge.f32.partialorder %v2071, 0.0
        %vm2081 = vcmp.ge.f32.partialorder %v2075, 0.0
        %vm2082 = vcmp.ge.f32.partialorder %v2077, 0.0
        %v2083 = vmul.f32 %v2069, 0.01
        %v2084 = vmul.f32 %v2071, 0.01
        %v2085 = vmul.f32 %v2075, 0.01
        %v2086 = vmul.f32 %v2077, 0.01
        %v2087 = vsel %vm2079, %v2069, %v2083
        %v2088 = vsel %vm2080, %v2071, %v2084
        %v2089 = vsel %vm2081, %v2075, %v2085
        %v2090 = vsel %vm2082, %v2077, %v2086
        %2091 = vst [vmem:[#allocation2 + $0x68] sm:$0xff] %v2087
        %2092 = vst [vmem:[#allocation2 + $0x70] sm:$0xff] %v2088
        %2093 = vst [vmem:[#allocation2 + $0x88] sm:$0x3] %v2089
        %2094 = vst [vmem:[#allocation2 + $0x90] sm:$0x3] %v2090
        %v2095 = vld [vmem:[#allocation2] sm:$0xff]
        %v2096 = vld [vmem:[#allocation2 + $0x8] sm:$0xff]
        %v2097 = vld [vmem:[#allocation2 + $0x10] sm:$0xff]
        %v2098 = vld [vmem:[#allocation2 + $0x18] sm:$0xff]
        %v2099 = vld [vmem:[#allocation2 + $0x20] sm:$0xff]
        %v2100 = vld [vmem:[#allocation2 + $0x28] sm:$0xff]
        %v2101 = vld [vmem:[#allocation2 + $0x30] sm:$0xff]
        %v2102 = vld [vmem:[#allocation2 + $0x38] sm:$0xff]
        %v2103 = vld [vmem:[#allocation2 + $0x40] sm:$0xff]
        %v2104 = vld [vmem:[#allocation2 + $0x48] sm:$0xff]
        %v2105 = vld [vmem:[#allocation2 + $0x50] sm:$0xff]
        %v2106 = vld [vmem:[#allocation2 + $0x58] sm:$0xff]
        %v2107 = vld [vmem:[#allocation2 + $0x60] sm:$0xff]
        %v2108 = vld [vmem:[#allocation2 + $0x68] sm:$0xff]
        %v2109 = vld [vmem:[#allocation2 + $0x70] sm:$0xff]
        %v2110 = vld [vmem:[#allocation2 + $0x78] sm:$0xff]
        %v2111 = vld [vmem:[#allocation2 + $0x80] sm:$0xff]
        %v2112 = vld [vmem:[#allocation2 + $0x88] sm:$0xff]
        %v2113 = vld [vmem:[#allocation2 + $0x90] sm:$0xff]
        %v2114 = vld [vmem:[#allocation2 + $0x98] sm:$0xff]
        %2130 = vrot.lane.b32.xlu0 %v2095, 7
        %v2131 = vpop.permute.xlu0 %2130
        %2132 = vrot.lane.b32.xlu0 %v2096, 7
        %v2133 = vpop.permute.xlu0 %2132
        %2134 = vrot.lane.b32.xlu0 %v2097, 7
        %v2135 = vpop.permute.xlu0 %2134
        %2136 = vrot.lane.b32.xlu0 %v2099, 7
        %v2137 = vpop.permute.xlu0 %2136
        %2138 = vrot.lane.b32.xlu0 %v2100, 7
        %v2139 = vpop.permute.xlu0 %2138
        %2140 = vrot.lane.b32.xlu0 %v2101, 7
        %v2141 = vpop.permute.xlu0 %2140
        %2142 = vrot.lane.b32.xlu0 %v2103, 7
        %v2143 = vpop.permute.xlu0 %2142
        %2144 = vrot.lane.b32.xlu0 %v2104, 7
        %v2145 = vpop.permute.xlu0 %2144
        %2146 = vrot.lane.b32.xlu0 %v2105, 7
        %v2147 = vpop.permute.xlu0 %2146
        %2148 = vrot.lane.b32.xlu0 %v2107, 7
        %v2149 = vpop.permute.xlu0 %2148
        %2150 = vrot.lane.b32.xlu0 %v2108, 7
        %v2151 = vpop.permute.xlu0 %2150
        %2152 = vrot.lane.b32.xlu0 %v2109, 7
        %v2153 = vpop.permute.xlu0 %2152
        %2154 = vrot.lane.b32.xlu0 %v2111, 7
        %v2155 = vpop.permute.xlu0 %2154
        %2156 = vrot.lane.b32.xlu0 %v2112, 7
        %v2157 = vpop.permute.xlu0 %2156
        %2158 = vrot.lane.b32.xlu0 %v2113, 7
        %v2159 = vpop.permute.xlu0 %2158
        %v2160 = vsel %vm841, %v2131, %v2133
        %v2161 = vsel %vm841, %v2133, %v2135
        %v2162 = vsel %vm841, %v2137, %v2139
        %v2163 = vsel %vm841, %v2139, %v2141
        %v2164 = vsel %vm841, %v2143, %v2145
        %v2165 = vsel %vm841, %v2145, %v2147
        %v2166 = vsel %vm841, %v2149, %v2151
        %v2167 = vsel %vm841, %v2151, %v2153
        %v2168 = vsel %vm841, %v2155, %v2157
        %v2169 = vsel %vm841, %v2157, %v2159
        %2180 = vst [vmem:[#allocation3] sm:$0xff] %v2160
        %2181 = vst [vmem:[#allocation3 + $0x8] sm:$0xff] %v2161
        %2182 = vst [vmem:[#allocation3 + $0x10] sm:$0xff] %v2162
        %2183 = vst [vmem:[#allocation3 + $0x18] sm:$0xff] %v2163
        %2184 = vst [vmem:[#allocation3 + $0x20] sm:$0xff] %v2164
        %2185 = vst [vmem:[#allocation3 + $0x28] sm:$0xff] %v2165
        %2186 = vst [vmem:[#allocation3 + $0x30] sm:$0xff] %v2166
        %2187 = vst [vmem:[#allocation3 + $0x38] sm:$0xff] %v2167
        %2188 = vst [vmem:[#allocation3 + $0x40] sm:$0xff] %v2168
        %2189 = vst [vmem:[#allocation3 + $0x48] sm:$0xff] %v2169
        %2190 = vrot.lane.b32.xlu0 %v2095, 6
        %v2191 = vpop.permute.xlu0 %2190
        %2192 = vrot.lane.b32.xlu0 %v2096, 6
        %v2193 = vpop.permute.xlu0 %2192
        %2194 = vrot.lane.b32.xlu0 %v2097, 6
        %v2195 = vpop.permute.xlu0 %2194
        %2196 = vrot.lane.b32.xlu0 %v2099, 6
        %v2197 = vpop.permute.xlu0 %2196
        %2198 = vrot.lane.b32.xlu0 %v2100, 6
        %v2199 = vpop.permute.xlu0 %2198
        %2200 = vrot.lane.b32.xlu0 %v2101, 6
        %v2201 = vpop.permute.xlu0 %2200
        %2202 = vrot.lane.b32.xlu0 %v2103, 6
        %v2203 = vpop.permute.xlu0 %2202
        %2204 = vrot.lane.b32.xlu0 %v2104, 6
        %v2205 = vpop.permute.xlu0 %2204
        %2206 = vrot.lane.b32.xlu0 %v2105, 6
        %v2207 = vpop.permute.xlu0 %2206
        %2208 = vrot.lane.b32.xlu0 %v2107, 6
        %v2209 = vpop.permute.xlu0 %2208
        %2210 = vrot.lane.b32.xlu0 %v2108, 6
        %v2211 = vpop.permute.xlu0 %2210
        %2212 = vrot.lane.b32.xlu0 %v2109, 6
        %v2213 = vpop.permute.xlu0 %2212
        %2214 = vrot.lane.b32.xlu0 %v2111, 6
        %v2215 = vpop.permute.xlu0 %2214
        %2216 = vrot.lane.b32.xlu0 %v2112, 6
        %v2217 = vpop.permute.xlu0 %2216
        %2218 = vrot.lane.b32.xlu0 %v2113, 6
        %v2219 = vpop.permute.xlu0 %2218
        %v2220 = vsel %vm854, %v2191, %v2193
        %v2221 = vsel %vm854, %v2193, %v2195
        %v2222 = vsel %vm854, %v2197, %v2199
        %v2223 = vsel %vm854, %v2199, %v2201
        %v2224 = vsel %vm854, %v2203, %v2205
        %v2225 = vsel %vm854, %v2205, %v2207
        %v2226 = vsel %vm854, %v2209, %v2211
        %v2227 = vsel %vm854, %v2211, %v2213
        %v2228 = vsel %vm854, %v2215, %v2217
        %v2229 = vsel %vm854, %v2217, %v2219
        %2240 = vst [vmem:[#allocation3 + $0x50] sm:$0xff] %v2220
        %2241 = vst [vmem:[#allocation3 + $0x58] sm:$0xff] %v2221
        %2242 = vst [vmem:[#allocation3 + $0x60] sm:$0xff] %v2222
        %2243 = vst [vmem:[#allocation3 + $0x68] sm:$0xff] %v2223
        %2244 = vst [vmem:[#allocation3 + $0x70] sm:$0xff] %v2224
        %2245 = vst [vmem:[#allocation3 + $0x78] sm:$0xff] %v2225
        %2246 = vst [vmem:[#allocation3 + $0x80] sm:$0xff] %v2226
        %2247 = vst [vmem:[#allocation3 + $0x88] sm:$0xff] %v2227
        %2248 = vst [vmem:[#allocation3 + $0x90] sm:$0xff] %v2228
        %2249 = vst [vmem:[#allocation3 + $0x98] sm:$0xff] %v2229
        %2250 = vrot.lane.b32.xlu0 %v2095, 5
        %v2251 = vpop.permute.xlu0 %2250
        %2252 = vrot.lane.b32.xlu0 %v2096, 5
        %v2253 = vpop.permute.xlu0 %2252
        %2254 = vrot.lane.b32.xlu0 %v2097, 5
        %v2255 = vpop.permute.xlu0 %2254
        %2256 = vrot.lane.b32.xlu0 %v2099, 5
        %v2257 = vpop.permute.xlu0 %2256
        %2258 = vrot.lane.b32.xlu0 %v2100, 5
        %v2259 = vpop.permute.xlu0 %2258
        %2260 = vrot.lane.b32.xlu0 %v2101, 5
        %v2261 = vpop.permute.xlu0 %2260
        %2262 = vrot.lane.b32.xlu0 %v2103, 5
        %v2263 = vpop.permute.xlu0 %2262
        %2264 = vrot.lane.b32.xlu0 %v2104, 5
        %v2265 = vpop.permute.xlu0 %2264
        %2266 = vrot.lane.b32.xlu0 %v2105, 5
        %v2267 = vpop.permute.xlu0 %2266
        %2268 = vrot.lane.b32.xlu0 %v2107, 5
        %v2269 = vpop.permute.xlu0 %2268
        %2270 = vrot.lane.b32.xlu0 %v2108, 5
        %v2271 = vpop.permute.xlu0 %2270
        %2272 = vrot.lane.b32.xlu0 %v2109, 5
        %v2273 = vpop.permute.xlu0 %2272
        %2274 = vrot.lane.b32.xlu0 %v2111, 5
        %v2275 = vpop.permute.xlu0 %2274
        %2276 = vrot.lane.b32.xlu0 %v2112, 5
        %v2277 = vpop.permute.xlu0 %2276
        %2278 = vrot.lane.b32.xlu0 %v2113, 5
        %v2279 = vpop.permute.xlu0 %2278
        %v2280 = vsel %vm867, %v2251, %v2253
        %v2281 = vsel %vm867, %v2253, %v2255
        %v2282 = vsel %vm867, %v2257, %v2259
        %v2283 = vsel %vm867, %v2259, %v2261
        %v2284 = vsel %vm867, %v2263, %v2265
        %v2285 = vsel %vm867, %v2265, %v2267
        %v2286 = vsel %vm867, %v2269, %v2271
        %v2287 = vsel %vm867, %v2271, %v2273
        %v2288 = vsel %vm867, %v2275, %v2277
        %v2289 = vsel %vm867, %v2277, %v2279
        %2300 = vst [vmem:[#allocation3 + $0xa0] sm:$0xff] %v2280
        %2301 = vst [vmem:[#allocation3 + $0xa8] sm:$0xff] %v2281
        %2302 = vst [vmem:[#allocation3 + $0xb0] sm:$0xff] %v2282
        %2303 = vst [vmem:[#allocation3 + $0xb8] sm:$0xff] %v2283
        %2304 = vst [vmem:[#allocation3 + $0xc0] sm:$0xff] %v2284
        %2305 = vst [vmem:[#allocation3 + $0xc8] sm:$0xff] %v2285
        %2306 = vst [vmem:[#allocation3 + $0xd0] sm:$0xff] %v2286
        %2307 = vst [vmem:[#allocation3 + $0xd8] sm:$0xff] %v2287
        %2308 = vst [vmem:[#allocation3 + $0xe0] sm:$0xff] %v2288
        %2309 = vst [vmem:[#allocation3 + $0xe8] sm:$0xff] %v2289
        %2310 = vrot.lane.b32.xlu0 %v2095, 4
        %v2311 = vpop.permute.xlu0 %2310
        %2312 = vrot.lane.b32.xlu0 %v2096, 4
        %v2313 = vpop.permute.xlu0 %2312
        %2314 = vrot.lane.b32.xlu0 %v2097, 4
        %v2315 = vpop.permute.xlu0 %2314
        %2316 = vrot.lane.b32.xlu0 %v2099, 4
        %v2317 = vpop.permute.xlu0 %2316
        %2318 = vrot.lane.b32.xlu0 %v2100, 4
        %v2319 = vpop.permute.xlu0 %2318
        %2320 = vrot.lane.b32.xlu0 %v2101, 4
        %v2321 = vpop.permute.xlu0 %2320
        %2322 = vrot.lane.b32.xlu0 %v2103, 4
        %v2323 = vpop.permute.xlu0 %2322
        %2324 = vrot.lane.b32.xlu0 %v2104, 4
        %v2325 = vpop.permute.xlu0 %2324
        %2326 = vrot.lane.b32.xlu0 %v2105, 4
        %v2327 = vpop.permute.xlu0 %2326
        %2328 = vrot.lane.b32.xlu0 %v2107, 4
        %v2329 = vpop.permute.xlu0 %2328
        %2330 = vrot.lane.b32.xlu0 %v2108, 4
        %v2331 = vpop.permute.xlu0 %2330
        %2332 = vrot.lane.b32.xlu0 %v2109, 4
        %v2333 = vpop.permute.xlu0 %2332
        %2334 = vrot.lane.b32.xlu0 %v2111, 4
        %v2335 = vpop.permute.xlu0 %2334
        %2336 = vrot.lane.b32.xlu0 %v2112, 4
        %v2337 = vpop.permute.xlu0 %2336
        %2338 = vrot.lane.b32.xlu0 %v2113, 4
        %v2339 = vpop.permute.xlu0 %2338
        %v2340 = vsel %vm880, %v2311, %v2313
        %v2341 = vsel %vm880, %v2313, %v2315
        %v2342 = vsel %vm880, %v2317, %v2319
        %v2343 = vsel %vm880, %v2319, %v2321
        %v2344 = vsel %vm880, %v2323, %v2325
        %v2345 = vsel %vm880, %v2325, %v2327
        %v2346 = vsel %vm880, %v2329, %v2331
        %v2347 = vsel %vm880, %v2331, %v2333
        %v2348 = vsel %vm880, %v2335, %v2337
        %v2349 = vsel %vm880, %v2337, %v2339
        %2360 = vst [vmem:[#allocation3 + $0xf0] sm:$0xff] %v2340
        %2361 = vst [vmem:[#allocation3 + $0xf8] sm:$0xff] %v2341
        %2362 = vst [vmem:[#allocation3 + $0x100] sm:$0xff] %v2342
        %2363 = vst [vmem:[#allocation3 + $0x108] sm:$0xff] %v2343
        %2364 = vst [vmem:[#allocation3 + $0x110] sm:$0xff] %v2344
        %2365 = vst [vmem:[#allocation3 + $0x118] sm:$0xff] %v2345
        %2366 = vst [vmem:[#allocation3 + $0x120] sm:$0xff] %v2346
        %2367 = vst [vmem:[#allocation3 + $0x128] sm:$0xff] %v2347
        %2368 = vst [vmem:[#allocation3 + $0x130] sm:$0xff] %v2348
        %2369 = vst [vmem:[#allocation3 + $0x138] sm:$0xff] %v2349
        %2370 = vrot.lane.b32.xlu0 %v2095, 3
        %v2371 = vpop.permute.xlu0 %2370
        %2372 = vrot.lane.b32.xlu0 %v2096, 3
        %v2373 = vpop.permute.xlu0 %2372
        %2374 = vrot.lane.b32.xlu0 %v2097, 3
        %v2375 = vpop.permute.xlu0 %2374
        %2376 = vrot.lane.b32.xlu0 %v2099, 3
        %v2377 = vpop.permute.xlu0 %2376
        %2378 = vrot.lane.b32.xlu0 %v2100, 3
        %v2379 = vpop.permute.xlu0 %2378
        %2380 = vrot.lane.b32.xlu0 %v2101, 3
        %v2381 = vpop.permute.xlu0 %2380
        %2382 = vrot.lane.b32.xlu0 %v2103, 3
        %v2383 = vpop.permute.xlu0 %2382
        %2384 = vrot.lane.b32.xlu0 %v2104, 3
        %v2385 = vpop.permute.xlu0 %2384
        %2386 = vrot.lane.b32.xlu0 %v2105, 3
        %v2387 = vpop.permute.xlu0 %2386
        %2388 = vrot.lane.b32.xlu0 %v2107, 3
        %v2389 = vpop.permute.xlu0 %2388
        %2390 = vrot.lane.b32.xlu0 %v2108, 3
        %v2391 = vpop.permute.xlu0 %2390
        %2392 = vrot.lane.b32.xlu0 %v2109, 3
        %v2393 = vpop.permute.xlu0 %2392
        %2394 = vrot.lane.b32.xlu0 %v2111, 3
        %v2395 = vpop.permute.xlu0 %2394
        %2396 = vrot.lane.b32.xlu0 %v2112, 3
        %v2397 = vpop.permute.xlu0 %2396
        %2398 = vrot.lane.b32.xlu0 %v2113, 3
        %v2399 = vpop.permute.xlu0 %2398
        %v2400 = vsel %vm893, %v2371, %v2373
        %v2401 = vsel %vm893, %v2373, %v2375
        %v2402 = vsel %vm893, %v2377, %v2379
        %v2403 = vsel %vm893, %v2379, %v2381
        %v2404 = vsel %vm893, %v2383, %v2385
        %v2405 = vsel %vm893, %v2385, %v2387
        %v2406 = vsel %vm893, %v2389, %v2391
        %v2407 = vsel %vm893, %v2391, %v2393
        %v2408 = vsel %vm893, %v2395, %v2397
        %v2409 = vsel %vm893, %v2397, %v2399
        %2420 = vst [vmem:[#allocation3 + $0x140] sm:$0xff] %v2400
        %2421 = vst [vmem:[#allocation3 + $0x148] sm:$0xff] %v2401
        %2422 = vst [vmem:[#allocation3 + $0x150] sm:$0xff] %v2402
        %2423 = vst [vmem:[#allocation3 + $0x158] sm:$0xff] %v2403
        %2424 = vst [vmem:[#allocation3 + $0x160] sm:$0xff] %v2404
        %2425 = vst [vmem:[#allocation3 + $0x168] sm:$0xff] %v2405
        %2426 = vst [vmem:[#allocation3 + $0x170] sm:$0xff] %v2406
        %2427 = vst [vmem:[#allocation3 + $0x178] sm:$0xff] %v2407
        %2428 = vst [vmem:[#allocation3 + $0x180] sm:$0xff] %v2408
        %2429 = vst [vmem:[#allocation3 + $0x188] sm:$0xff] %v2409
        %2430 = vrot.lane.b32.xlu0 %v2095, 2
        %v2431 = vpop.permute.xlu0 %2430
        %2432 = vrot.lane.b32.xlu0 %v2096, 2
        %v2433 = vpop.permute.xlu0 %2432
        %2434 = vrot.lane.b32.xlu0 %v2097, 2
        %v2435 = vpop.permute.xlu0 %2434
        %2436 = vrot.lane.b32.xlu0 %v2099, 2
        %v2437 = vpop.permute.xlu0 %2436
        %2438 = vrot.lane.b32.xlu0 %v2100, 2
        %v2439 = vpop.permute.xlu0 %2438
        %2440 = vrot.lane.b32.xlu0 %v2101, 2
        %v2441 = vpop.permute.xlu0 %2440
        %2442 = vrot.lane.b32.xlu0 %v2103, 2
        %v2443 = vpop.permute.xlu0 %2442
        %2444 = vrot.lane.b32.xlu0 %v2104, 2
        %v2445 = vpop.permute.xlu0 %2444
        %2446 = vrot.lane.b32.xlu0 %v2105, 2
        %v2447 = vpop.permute.xlu0 %2446
        %2448 = vrot.lane.b32.xlu0 %v2107, 2
        %v2449 = vpop.permute.xlu0 %2448
        %2450 = vrot.lane.b32.xlu0 %v2108, 2
        %v2451 = vpop.permute.xlu0 %2450
        %2452 = vrot.lane.b32.xlu0 %v2109, 2
        %v2453 = vpop.permute.xlu0 %2452
        %2454 = vrot.lane.b32.xlu0 %v2111, 2
        %v2455 = vpop.permute.xlu0 %2454
        %2456 = vrot.lane.b32.xlu0 %v2112, 2
        %v2457 = vpop.permute.xlu0 %2456
        %2458 = vrot.lane.b32.xlu0 %v2113, 2
        %v2459 = vpop.permute.xlu0 %2458
        %v2460 = vsel %vm906, %v2431, %v2433
        %v2461 = vsel %vm906, %v2433, %v2435
        %v2462 = vsel %vm906, %v2437, %v2439
        %v2463 = vsel %vm906, %v2439, %v2441
        %v2464 = vsel %vm906, %v2443, %v2445
        %v2465 = vsel %vm906, %v2445, %v2447
        %v2466 = vsel %vm906, %v2449, %v2451
        %v2467 = vsel %vm906, %v2451, %v2453
        %v2468 = vsel %vm906, %v2455, %v2457
        %v2469 = vsel %vm906, %v2457, %v2459
        %2480 = vst [vmem:[#allocation3 + $0x190] sm:$0xff] %v2460
        %2481 = vst [vmem:[#allocation3 + $0x198] sm:$0xff] %v2461
        %2482 = vst [vmem:[#allocation3 + $0x1a0] sm:$0xff] %v2462
        %2483 = vst [vmem:[#allocation3 + $0x1a8] sm:$0xff] %v2463
        %2484 = vst [vmem:[#allocation3 + $0x1b0] sm:$0xff] %v2464
        %2485 = vst [vmem:[#allocation3 + $0x1b8] sm:$0xff] %v2465
        %2486 = vst [vmem:[#allocation3 + $0x1c0] sm:$0xff] %v2466
        %2487 = vst [vmem:[#allocation3 + $0x1c8] sm:$0xff] %v2467
        %2488 = vst [vmem:[#allocation3 + $0x1d0] sm:$0xff] %v2468
        %2489 = vst [vmem:[#allocation3 + $0x1d8] sm:$0xff] %v2469
        %2490 = vrot.lane.b32.xlu0 %v2095, 1
        %v2491 = vpop.permute.xlu0 %2490
        %2492 = vrot.lane.b32.xlu0 %v2096, 1
        %v2493 = vpop.permute.xlu0 %2492
        %2494 = vrot.lane.b32.xlu0 %v2097, 1
        %v2495 = vpop.permute.xlu0 %2494
        %2496 = vrot.lane.b32.xlu0 %v2099, 1
        %v2497 = vpop.permute.xlu0 %2496
        %2498 = vrot.lane.b32.xlu0 %v2100, 1
        %v2499 = vpop.permute.xlu0 %2498
        %2500 = vrot.lane.b32.xlu0 %v2101, 1
        %v2501 = vpop.permute.xlu0 %2500
        %2502 = vrot.lane.b32.xlu0 %v2103, 1
        %v2503 = vpop.permute.xlu0 %2502
        %2504 = vrot.lane.b32.xlu0 %v2104, 1
        %v2505 = vpop.permute.xlu0 %2504
        %2506 = vrot.lane.b32.xlu0 %v2105, 1
        %v2507 = vpop.permute.xlu0 %2506
        %2508 = vrot.lane.b32.xlu0 %v2107, 1
        %v2509 = vpop.permute.xlu0 %2508
        %2510 = vrot.lane.b32.xlu0 %v2108, 1
        %v2511 = vpop.permute.xlu0 %2510
        %2512 = vrot.lane.b32.xlu0 %v2109, 1
        %v2513 = vpop.permute.xlu0 %2512
        %2514 = vrot.lane.b32.xlu0 %v2111, 1
        %v2515 = vpop.permute.xlu0 %2514
        %2516 = vrot.lane.b32.xlu0 %v2112, 1
        %v2517 = vpop.permute.xlu0 %2516
        %2518 = vrot.lane.b32.xlu0 %v2113, 1
        %v2519 = vpop.permute.xlu0 %2518
        %v2520 = vsel %vm919, %v2491, %v2493
        %v2521 = vsel %vm919, %v2493, %v2495
        %v2522 = vsel %vm919, %v2497, %v2499
        %v2523 = vsel %vm919, %v2499, %v2501
        %v2524 = vsel %vm919, %v2503, %v2505
        %v2525 = vsel %vm919, %v2505, %v2507
        %v2526 = vsel %vm919, %v2509, %v2511
        %v2527 = vsel %vm919, %v2511, %v2513
        %v2528 = vsel %vm919, %v2515, %v2517
        %v2529 = vsel %vm919, %v2517, %v2519
        %2540 = vst [vmem:[#allocation3 + $0x1e0] sm:$0xff] %v2520
        %2541 = vst [vmem:[#allocation3 + $0x1e8] sm:$0xff] %v2521
        %2542 = vst [vmem:[#allocation3 + $0x1f0] sm:$0xff] %v2522
        %2543 = vst [vmem:[#allocation3 + $0x1f8] sm:$0xff] %v2523
        %2544 = vst [vmem:[#allocation3 + $0x200] sm:$0xff] %v2524
        %2545 = vst [vmem:[#allocation3 + $0x208] sm:$0xff] %v2525
        %2546 = vst [vmem:[#allocation3 + $0x210] sm:$0xff] %v2526
        %2547 = vst [vmem:[#allocation3 + $0x218] sm:$0xff] %v2527
        %2548 = vst [vmem:[#allocation3 + $0x220] sm:$0xff] %v2528
        %2549 = vst [vmem:[#allocation3 + $0x228] sm:$0xff] %v2529
        %2550 = vst [vmem:[#allocation3 + $0x230] sm:$0xff] %v2096
        %2551 = vst [vmem:[#allocation3 + $0x238] sm:$0xff] %v2097
        %2552 = vst [vmem:[#allocation3 + $0x240] sm:$0xff] %v2100
        %2553 = vst [vmem:[#allocation3 + $0x248] sm:$0xff] %v2101
        %2554 = vst [vmem:[#allocation3 + $0x250] sm:$0xff] %v2104
        %2555 = vst [vmem:[#allocation3 + $0x258] sm:$0xff] %v2105
        %2556 = vst [vmem:[#allocation3 + $0x260] sm:$0xff] %v2108
        %2557 = vst [vmem:[#allocation3 + $0x268] sm:$0xff] %v2109
        %2558 = vst [vmem:[#allocation3 + $0x270] sm:$0xff] %v2112
        %2559 = vst [vmem:[#allocation3 + $0x278] sm:$0xff] %v2113
        %2565 = vrot.lane.b32.xlu0 %v2096, 127
        %v2566 = vpop.permute.xlu0 %2565
        %2567 = vrot.lane.b32.xlu0 %v2097, 127
        %v2568 = vpop.permute.xlu0 %2567
        %2569 = vrot.lane.b32.xlu0 %v2098, 127
        %v2570 = vpop.permute.xlu0 %2569
        %2571 = vrot.lane.b32.xlu0 %v2100, 127
        %v2572 = vpop.permute.xlu0 %2571
        %2573 = vrot.lane.b32.xlu0 %v2101, 127
        %v2574 = vpop.permute.xlu0 %2573
        %2575 = vrot.lane.b32.xlu0 %v2102, 127
        %v2576 = vpop.permute.xlu0 %2575
        %2577 = vrot.lane.b32.xlu0 %v2104, 127
        %v2578 = vpop.permute.xlu0 %2577
        %2579 = vrot.lane.b32.xlu0 %v2105, 127
        %v2580 = vpop.permute.xlu0 %2579
        %2581 = vrot.lane.b32.xlu0 %v2106, 127
        %v2582 = vpop.permute.xlu0 %2581
        %2583 = vrot.lane.b32.xlu0 %v2108, 127
        %v2584 = vpop.permute.xlu0 %2583
        %2585 = vrot.lane.b32.xlu0 %v2109, 127
        %v2586 = vpop.permute.xlu0 %2585
        %2587 = vrot.lane.b32.xlu0 %v2110, 127
        %v2588 = vpop.permute.xlu0 %2587
        %2589 = vrot.lane.b32.xlu0 %v2112, 127
        %v2590 = vpop.permute.xlu0 %2589
        %2591 = vrot.lane.b32.xlu0 %v2113, 127
        %v2592 = vpop.permute.xlu0 %2591
        %2593 = vrot.lane.b32.xlu0 %v2114, 127
        %v2594 = vpop.permute.xlu0 %2593
        %v2595 = vsel %vm935, %v2566, %v2568
        %v2596 = vsel %vm935, %v2568, %v2570
        %v2597 = vsel %vm935, %v2572, %v2574
        %v2598 = vsel %vm935, %v2574, %v2576
        %v2599 = vsel %vm935, %v2578, %v2580
        %v2600 = vsel %vm935, %v2580, %v2582
        %v2601 = vsel %vm935, %v2584, %v2586
        %v2602 = vsel %vm935, %v2586, %v2588
        %v2603 = vsel %vm935, %v2590, %v2592
        %v2604 = vsel %vm935, %v2592, %v2594
        %2615 = vst [vmem:[#allocation3 + $0x280] sm:$0xff] %v2595
        %2616 = vst [vmem:[#allocation3 + $0x288] sm:$0xff] %v2596
        %2617 = vst [vmem:[#allocation3 + $0x290] sm:$0xff] %v2597
        %2618 = vst [vmem:[#allocation3 + $0x298] sm:$0xff] %v2598
        %2619 = vst [vmem:[#allocation3 + $0x2a0] sm:$0xff] %v2599
        %2620 = vst [vmem:[#allocation3 + $0x2a8] sm:$0xff] %v2600
        %2621 = vst [vmem:[#allocation3 + $0x2b0] sm:$0xff] %v2601
        %2622 = vst [vmem:[#allocation3 + $0x2b8] sm:$0xff] %v2602
        %2623 = vst [vmem:[#allocation3 + $0x2c0] sm:$0xff] %v2603
        %2624 = vst [vmem:[#allocation3 + $0x2c8] sm:$0xff] %v2604
        %2625 = vrot.lane.b32.xlu0 %v2096, 126
        %v2626 = vpop.permute.xlu0 %2625
        %2627 = vrot.lane.b32.xlu0 %v2097, 126
        %v2628 = vpop.permute.xlu0 %2627
        %2629 = vrot.lane.b32.xlu0 %v2098, 126
        %v2630 = vpop.permute.xlu0 %2629
        %2631 = vrot.lane.b32.xlu0 %v2100, 126
        %v2632 = vpop.permute.xlu0 %2631
        %2633 = vrot.lane.b32.xlu0 %v2101, 126
        %v2634 = vpop.permute.xlu0 %2633
        %2635 = vrot.lane.b32.xlu0 %v2102, 126
        %v2636 = vpop.permute.xlu0 %2635
        %2637 = vrot.lane.b32.xlu0 %v2104, 126
        %v2638 = vpop.permute.xlu0 %2637
        %2639 = vrot.lane.b32.xlu0 %v2105, 126
        %v2640 = vpop.permute.xlu0 %2639
        %2641 = vrot.lane.b32.xlu0 %v2106, 126
        %v2642 = vpop.permute.xlu0 %2641
        %2643 = vrot.lane.b32.xlu0 %v2108, 126
        %v2644 = vpop.permute.xlu0 %2643
        %2645 = vrot.lane.b32.xlu0 %v2109, 126
        %v2646 = vpop.permute.xlu0 %2645
        %2647 = vrot.lane.b32.xlu0 %v2110, 126
        %v2648 = vpop.permute.xlu0 %2647
        %2649 = vrot.lane.b32.xlu0 %v2112, 126
        %v2650 = vpop.permute.xlu0 %2649
        %2651 = vrot.lane.b32.xlu0 %v2113, 126
        %v2652 = vpop.permute.xlu0 %2651
        %2653 = vrot.lane.b32.xlu0 %v2114, 126
        %v2654 = vpop.permute.xlu0 %2653
        %v2655 = vsel %vm948, %v2626, %v2628
        %v2656 = vsel %vm948, %v2628, %v2630
        %v2657 = vsel %vm948, %v2632, %v2634
        %v2658 = vsel %vm948, %v2634, %v2636
        %v2659 = vsel %vm948, %v2638, %v2640
        %v2660 = vsel %vm948, %v2640, %v2642
        %v2661 = vsel %vm948, %v2644, %v2646
        %v2662 = vsel %vm948, %v2646, %v2648
        %v2663 = vsel %vm948, %v2650, %v2652
        %v2664 = vsel %vm948, %v2652, %v2654
        %2675 = vst [vmem:[#allocation3 + $0x2d0] sm:$0xff] %v2655
        %2676 = vst [vmem:[#allocation3 + $0x2d8] sm:$0xff] %v2656
        %2677 = vst [vmem:[#allocation3 + $0x2e0] sm:$0xff] %v2657
        %2678 = vst [vmem:[#allocation3 + $0x2e8] sm:$0xff] %v2658
        %2679 = vst [vmem:[#allocation3 + $0x2f0] sm:$0xff] %v2659
        %2680 = vst [vmem:[#allocation3 + $0x2f8] sm:$0xff] %v2660
        %2681 = vst [vmem:[#allocation3 + $0x300] sm:$0xff] %v2661
        %2682 = vst [vmem:[#allocation3 + $0x308] sm:$0xff] %v2662
        %2683 = vst [vmem:[#allocation3 + $0x310] sm:$0xff] %v2663
        %2684 = vst [vmem:[#allocation3 + $0x318] sm:$0xff] %v2664
        %2685 = vrot.lane.b32.xlu0 %v2096, 125
        %v2686 = vpop.permute.xlu0 %2685
        %2687 = vrot.lane.b32.xlu0 %v2097, 125
        %v2688 = vpop.permute.xlu0 %2687
        %2689 = vrot.lane.b32.xlu0 %v2098, 125
        %v2690 = vpop.permute.xlu0 %2689
        %2691 = vrot.lane.b32.xlu0 %v2100, 125
        %v2692 = vpop.permute.xlu0 %2691
        %2693 = vrot.lane.b32.xlu0 %v2101, 125
        %v2694 = vpop.permute.xlu0 %2693
        %2695 = vrot.lane.b32.xlu0 %v2102, 125
        %v2696 = vpop.permute.xlu0 %2695
        %2697 = vrot.lane.b32.xlu0 %v2104, 125
        %v2698 = vpop.permute.xlu0 %2697
        %2699 = vrot.lane.b32.xlu0 %v2105, 125
        %v2700 = vpop.permute.xlu0 %2699
        %2701 = vrot.lane.b32.xlu0 %v2106, 125
        %v2702 = vpop.permute.xlu0 %2701
        %2703 = vrot.lane.b32.xlu0 %v2108, 125
        %v2704 = vpop.permute.xlu0 %2703
        %2705 = vrot.lane.b32.xlu0 %v2109, 125
        %v2706 = vpop.permute.xlu0 %2705
        %2707 = vrot.lane.b32.xlu0 %v2110, 125
        %v2708 = vpop.permute.xlu0 %2707
        %2709 = vrot.lane.b32.xlu0 %v2112, 125
        %v2710 = vpop.permute.xlu0 %2709
        %2711 = vrot.lane.b32.xlu0 %v2113, 125
        %v2712 = vpop.permute.xlu0 %2711
        %2713 = vrot.lane.b32.xlu0 %v2114, 125
        %v2714 = vpop.permute.xlu0 %2713
        %v2715 = vsel %vm961, %v2686, %v2688
        %v2716 = vsel %vm961, %v2688, %v2690
        %v2717 = vsel %vm961, %v2692, %v2694
        %v2718 = vsel %vm961, %v2694, %v2696
        %v2719 = vsel %vm961, %v2698, %v2700
        %v2720 = vsel %vm961, %v2700, %v2702
        %v2721 = vsel %vm961, %v2704, %v2706
        %v2722 = vsel %vm961, %v2706, %v2708
        %v2723 = vsel %vm961, %v2710, %v2712
        %v2724 = vsel %vm961, %v2712, %v2714
        %2735 = vst [vmem:[#allocation3 + $0x320] sm:$0xff] %v2715
        %2736 = vst [vmem:[#allocation3 + $0x328] sm:$0xff] %v2716
        %2737 = vst [vmem:[#allocation3 + $0x330] sm:$0xff] %v2717
        %2738 = vst [vmem:[#allocation3 + $0x338] sm:$0xff] %v2718
        %2739 = vst [vmem:[#allocation3 + $0x340] sm:$0xff] %v2719
        %2740 = vst [vmem:[#allocation3 + $0x348] sm:$0xff] %v2720
        %2741 = vst [vmem:[#allocation3 + $0x350] sm:$0xff] %v2721
        %2742 = vst [vmem:[#allocation3 + $0x358] sm:$0xff] %v2722
        %2743 = vst [vmem:[#allocation3 + $0x360] sm:$0xff] %v2723
        %2744 = vst [vmem:[#allocation3 + $0x368] sm:$0xff] %v2724
        %2745 = vrot.lane.b32.xlu0 %v2096, 124
        %v2746 = vpop.permute.xlu0 %2745
        %2747 = vrot.lane.b32.xlu0 %v2097, 124
        %v2748 = vpop.permute.xlu0 %2747
        %2749 = vrot.lane.b32.xlu0 %v2098, 124
        %v2750 = vpop.permute.xlu0 %2749
        %2751 = vrot.lane.b32.xlu0 %v2100, 124
        %v2752 = vpop.permute.xlu0 %2751
        %2753 = vrot.lane.b32.xlu0 %v2101, 124
        %v2754 = vpop.permute.xlu0 %2753
        %2755 = vrot.lane.b32.xlu0 %v2102, 124
        %v2756 = vpop.permute.xlu0 %2755
        %2757 = vrot.lane.b32.xlu0 %v2104, 124
        %v2758 = vpop.permute.xlu0 %2757
        %2759 = vrot.lane.b32.xlu0 %v2105, 124
        %v2760 = vpop.permute.xlu0 %2759
        %2761 = vrot.lane.b32.xlu0 %v2106, 124
        %v2762 = vpop.permute.xlu0 %2761
        %2763 = vrot.lane.b32.xlu0 %v2108, 124
        %v2764 = vpop.permute.xlu0 %2763
        %2765 = vrot.lane.b32.xlu0 %v2109, 124
        %v2766 = vpop.permute.xlu0 %2765
        %2767 = vrot.lane.b32.xlu0 %v2110, 124
        %v2768 = vpop.permute.xlu0 %2767
        %2769 = vrot.lane.b32.xlu0 %v2112, 124
        %v2770 = vpop.permute.xlu0 %2769
        %2771 = vrot.lane.b32.xlu0 %v2113, 124
        %v2772 = vpop.permute.xlu0 %2771
        %2773 = vrot.lane.b32.xlu0 %v2114, 124
        %v2774 = vpop.permute.xlu0 %2773
        %v2775 = vsel %vm974, %v2746, %v2748
        %v2776 = vsel %vm974, %v2748, %v2750
        %v2777 = vsel %vm974, %v2752, %v2754
        %v2778 = vsel %vm974, %v2754, %v2756
        %v2779 = vsel %vm974, %v2758, %v2760
        %v2780 = vsel %vm974, %v2760, %v2762
        %v2781 = vsel %vm974, %v2764, %v2766
        %v2782 = vsel %vm974, %v2766, %v2768
        %v2783 = vsel %vm974, %v2770, %v2772
        %v2784 = vsel %vm974, %v2772, %v2774
        %2795 = vst [vmem:[#allocation3 + $0x370] sm:$0xff] %v2775
        %2796 = vst [vmem:[#allocation3 + $0x378] sm:$0xff] %v2776
        %2797 = vst [vmem:[#allocation3 + $0x380] sm:$0xff] %v2777
        %2798 = vst [vmem:[#allocation3 + $0x388] sm:$0xff] %v2778
        %2799 = vst [vmem:[#allocation3 + $0x390] sm:$0xff] %v2779
        %2800 = vst [vmem:[#allocation3 + $0x398] sm:$0xff] %v2780
        %2801 = vst [vmem:[#allocation3 + $0x3a0] sm:$0xff] %v2781
        %2802 = vst [vmem:[#allocation3 + $0x3a8] sm:$0xff] %v2782
        %2803 = vst [vmem:[#allocation3 + $0x3b0] sm:$0xff] %v2783
        %2804 = vst [vmem:[#allocation3 + $0x3b8] sm:$0xff] %v2784
        %2805 = vrot.lane.b32.xlu0 %v2096, 123
        %v2806 = vpop.permute.xlu0 %2805
        %2807 = vrot.lane.b32.xlu0 %v2097, 123
        %v2808 = vpop.permute.xlu0 %2807
        %2809 = vrot.lane.b32.xlu0 %v2098, 123
        %v2810 = vpop.permute.xlu0 %2809
        %2811 = vrot.lane.b32.xlu0 %v2100, 123
        %v2812 = vpop.permute.xlu0 %2811
        %2813 = vrot.lane.b32.xlu0 %v2101, 123
        %v2814 = vpop.permute.xlu0 %2813
        %2815 = vrot.lane.b32.xlu0 %v2102, 123
        %v2816 = vpop.permute.xlu0 %2815
        %2817 = vrot.lane.b32.xlu0 %v2104, 123
        %v2818 = vpop.permute.xlu0 %2817
        %2819 = vrot.lane.b32.xlu0 %v2105, 123
        %v2820 = vpop.permute.xlu0 %2819
        %2821 = vrot.lane.b32.xlu0 %v2106, 123
        %v2822 = vpop.permute.xlu0 %2821
        %2823 = vrot.lane.b32.xlu0 %v2108, 123
        %v2824 = vpop.permute.xlu0 %2823
        %2825 = vrot.lane.b32.xlu0 %v2109, 123
        %v2826 = vpop.permute.xlu0 %2825
        %2827 = vrot.lane.b32.xlu0 %v2110, 123
        %v2828 = vpop.permute.xlu0 %2827
        %2829 = vrot.lane.b32.xlu0 %v2112, 123
        %v2830 = vpop.permute.xlu0 %2829
        %2831 = vrot.lane.b32.xlu0 %v2113, 123
        %v2832 = vpop.permute.xlu0 %2831
        %2833 = vrot.lane.b32.xlu0 %v2114, 123
        %v2834 = vpop.permute.xlu0 %2833
        %v2835 = vsel %vm987, %v2806, %v2808
        %v2836 = vsel %vm987, %v2808, %v2810
        %v2837 = vsel %vm987, %v2812, %v2814
        %v2838 = vsel %vm987, %v2814, %v2816
        %v2839 = vsel %vm987, %v2818, %v2820
        %v2840 = vsel %vm987, %v2820, %v2822
        %v2841 = vsel %vm987, %v2824, %v2826
        %v2842 = vsel %vm987, %v2826, %v2828
        %v2843 = vsel %vm987, %v2830, %v2832
        %v2844 = vsel %vm987, %v2832, %v2834
        %2855 = vst [vmem:[#allocation3 + $0x3c0] sm:$0xff] %v2835
        %2856 = vst [vmem:[#allocation3 + $0x3c8] sm:$0xff] %v2836
        %2857 = vst [vmem:[#allocation3 + $0x3d0] sm:$0xff] %v2837
        %2858 = vst [vmem:[#allocation3 + $0x3d8] sm:$0xff] %v2838
        %2859 = vst [vmem:[#allocation3 + $0x3e0] sm:$0xff] %v2839
        %2860 = vst [vmem:[#allocation3 + $0x3e8] sm:$0xff] %v2840
        %2861 = vst [vmem:[#allocation3 + $0x3f0] sm:$0xff] %v2841
        %2862 = vst [vmem:[#allocation3 + $0x3f8] sm:$0xff] %v2842
        %2863 = vst [vmem:[#allocation3 + $0x400] sm:$0xff] %v2843
        %2864 = vst [vmem:[#allocation3 + $0x408] sm:$0xff] %v2844
        %2865 = vrot.lane.b32.xlu0 %v2096, 122
        %v2866 = vpop.permute.xlu0 %2865
        %2867 = vrot.lane.b32.xlu0 %v2097, 122
        %v2868 = vpop.permute.xlu0 %2867
        %2869 = vrot.lane.b32.xlu0 %v2098, 122
        %v2870 = vpop.permute.xlu0 %2869
        %2871 = vrot.lane.b32.xlu0 %v2100, 122
        %v2872 = vpop.permute.xlu0 %2871
        %2873 = vrot.lane.b32.xlu0 %v2101, 122
        %v2874 = vpop.permute.xlu0 %2873
        %2875 = vrot.lane.b32.xlu0 %v2102, 122
        %v2876 = vpop.permute.xlu0 %2875
        %2877 = vrot.lane.b32.xlu0 %v2104, 122
        %v2878 = vpop.permute.xlu0 %2877
        %2879 = vrot.lane.b32.xlu0 %v2105, 122
        %v2880 = vpop.permute.xlu0 %2879
        %2881 = vrot.lane.b32.xlu0 %v2106, 122
        %v2882 = vpop.permute.xlu0 %2881
        %2883 = vrot.lane.b32.xlu0 %v2108, 122
        %v2884 = vpop.permute.xlu0 %2883
        %2885 = vrot.lane.b32.xlu0 %v2109, 122
        %v2886 = vpop.permute.xlu0 %2885
        %2887 = vrot.lane.b32.xlu0 %v2110, 122
        %v2888 = vpop.permute.xlu0 %2887
        %2889 = vrot.lane.b32.xlu0 %v2112, 122
        %v2890 = vpop.permute.xlu0 %2889
        %2891 = vrot.lane.b32.xlu0 %v2113, 122
        %v2892 = vpop.permute.xlu0 %2891
        %2893 = vrot.lane.b32.xlu0 %v2114, 122
        %v2894 = vpop.permute.xlu0 %2893
        %v2895 = vsel %vm1000, %v2866, %v2868
        %v2896 = vsel %vm1000, %v2868, %v2870
        %v2897 = vsel %vm1000, %v2872, %v2874
        %v2898 = vsel %vm1000, %v2874, %v2876
        %v2899 = vsel %vm1000, %v2878, %v2880
        %v2900 = vsel %vm1000, %v2880, %v2882
        %v2901 = vsel %vm1000, %v2884, %v2886
        %v2902 = vsel %vm1000, %v2886, %v2888
        %v2903 = vsel %vm1000, %v2890, %v2892
        %v2904 = vsel %vm1000, %v2892, %v2894
        %2915 = vst [vmem:[#allocation3 + $0x410] sm:$0xff] %v2895
        %2916 = vst [vmem:[#allocation3 + $0x418] sm:$0xff] %v2896
        %2917 = vst [vmem:[#allocation3 + $0x420] sm:$0xff] %v2897
        %2918 = vst [vmem:[#allocation3 + $0x428] sm:$0xff] %v2898
        %2919 = vst [vmem:[#allocation3 + $0x430] sm:$0xff] %v2899
        %2920 = vst [vmem:[#allocation3 + $0x438] sm:$0xff] %v2900
        %2921 = vst [vmem:[#allocation3 + $0x440] sm:$0xff] %v2901
        %2922 = vst [vmem:[#allocation3 + $0x448] sm:$0xff] %v2902
        %2923 = vst [vmem:[#allocation3 + $0x450] sm:$0xff] %v2903
        %2924 = vst [vmem:[#allocation3 + $0x458] sm:$0xff] %v2904
        %2925 = vrot.lane.b32.xlu0 %v2096, 121
        %v2926 = vpop.permute.xlu0 %2925
        %2927 = vrot.lane.b32.xlu0 %v2097, 121
        %v2928 = vpop.permute.xlu0 %2927
        %2929 = vrot.lane.b32.xlu0 %v2098, 121
        %v2930 = vpop.permute.xlu0 %2929
        %2931 = vrot.lane.b32.xlu0 %v2100, 121
        %v2932 = vpop.permute.xlu0 %2931
        %2933 = vrot.lane.b32.xlu0 %v2101, 121
        %v2934 = vpop.permute.xlu0 %2933
        %2935 = vrot.lane.b32.xlu0 %v2102, 121
        %v2936 = vpop.permute.xlu0 %2935
        %2937 = vrot.lane.b32.xlu0 %v2104, 121
        %v2938 = vpop.permute.xlu0 %2937
        %2939 = vrot.lane.b32.xlu0 %v2105, 121
        %v2940 = vpop.permute.xlu0 %2939
        %2941 = vrot.lane.b32.xlu0 %v2106, 121
        %v2942 = vpop.permute.xlu0 %2941
        %2943 = vrot.lane.b32.xlu0 %v2108, 121
        %v2944 = vpop.permute.xlu0 %2943
        %2945 = vrot.lane.b32.xlu0 %v2109, 121
        %v2946 = vpop.permute.xlu0 %2945
        %2947 = vrot.lane.b32.xlu0 %v2110, 121
        %v2948 = vpop.permute.xlu0 %2947
        %2949 = vrot.lane.b32.xlu0 %v2112, 121
        %v2950 = vpop.permute.xlu0 %2949
        %2951 = vrot.lane.b32.xlu0 %v2113, 121
        %v2952 = vpop.permute.xlu0 %2951
        %2953 = vrot.lane.b32.xlu0 %v2114, 121
        %v2954 = vpop.permute.xlu0 %2953
        %v2955 = vsel %vm1013, %v2926, %v2928
        %v2956 = vsel %vm1013, %v2928, %v2930
        %v2957 = vsel %vm1013, %v2932, %v2934
        %v2958 = vsel %vm1013, %v2934, %v2936
        %v2959 = vsel %vm1013, %v2938, %v2940
        %v2960 = vsel %vm1013, %v2940, %v2942
        %v2961 = vsel %vm1013, %v2944, %v2946
        %v2962 = vsel %vm1013, %v2946, %v2948
        %v2963 = vsel %vm1013, %v2950, %v2952
        %v2964 = vsel %vm1013, %v2952, %v2954
        %2975 = vst [vmem:[#allocation3 + $0x460] sm:$0xff] %v2955
        %2976 = vst [vmem:[#allocation3 + $0x468] sm:$0xff] %v2956
        %2977 = vst [vmem:[#allocation3 + $0x470] sm:$0xff] %v2957
        %2978 = vst [vmem:[#allocation3 + $0x478] sm:$0xff] %v2958
        %2979 = vst [vmem:[#allocation3 + $0x480] sm:$0xff] %v2959
        %2980 = vst [vmem:[#allocation3 + $0x488] sm:$0xff] %v2960
        %2981 = vst [vmem:[#allocation3 + $0x490] sm:$0xff] %v2961
        %2982 = vst [vmem:[#allocation3 + $0x498] sm:$0xff] %v2962
        %2983 = vst [vmem:[#allocation3 + $0x4a0] sm:$0xff] %v2963
        %2984 = vst [vmem:[#allocation3 + $0x4a8] sm:$0xff] %v2964
        %v2985 = vld [vmem:[%s5] sm:$0xff]
        %v2986 = vld [vmem:[%s5 + $0x8] sm:$0xff]
        %v2987 = vld [vmem:[%s5 + $0x10] sm:$0xff]
        %v2988 = vld [vmem:[%s5 + $0x18] sm:$0xff]
        %v2989 = vld [vmem:[%s5 + $0x20] sm:$0xff]
        %v2990 = vld [vmem:[%s5 + $0x28] sm:$0x3]
        %v2991 = vld [vmem:[%s5 + $0x30] sm:$0x3]
        %v2992 = vld [vmem:[%s5 + $0x38] sm:$0x3]
        %v2993 = vld [vmem:[%s5 + $0x40] sm:$0x3]
        %v2994 = vld [vmem:[%s5 + $0x48] sm:$0x3]
        %v2995 = vld [vmem:[#allocation3] sm:$0xff]
        %v2996 = vld [vmem:[#allocation3 + $0x8] sm:$0xff]
        %v2997 = vld [vmem:[#allocation3 + $0x10] sm:$0xff]
        %v2998 = vld [vmem:[#allocation3 + $0x18] sm:$0xff]
        %v2999 = vld [vmem:[#allocation3 + $0x20] sm:$0xff]
        %v3000 = vld [vmem:[#allocation3 + $0x28] sm:$0xff]
        %v3001 = vld [vmem:[#allocation3 + $0x30] sm:$0xff]
        %v3002 = vld [vmem:[#allocation3 + $0x38] sm:$0xff]
        %v3003 = vld [vmem:[#allocation3 + $0x40] sm:$0xff]
        %v3004 = vld [vmem:[#allocation3 + $0x48] sm:$0xff]
        %v3005 = vld [vmem:[#allocation3 + $0x50] sm:$0xff]
        %v3006 = vld [vmem:[#allocation3 + $0x58] sm:$0xff]
        %v3007 = vld [vmem:[#allocation3 + $0x60] sm:$0xff]
        %v3008 = vld [vmem:[#allocation3 + $0x68] sm:$0xff]
        %v3009 = vld [vmem:[#allocation3 + $0x70] sm:$0xff]
        %v3010 = vld [vmem:[#allocation3 + $0x78] sm:$0xff]
        %v3011 = vld [vmem:[#allocation3 + $0x80] sm:$0xff]
        %v3012 = vld [vmem:[#allocation3 + $0x88] sm:$0xff]
        %v3013 = vld [vmem:[#allocation3 + $0x90] sm:$0xff]
        %v3014 = vld [vmem:[#allocation3 + $0x98] sm:$0xff]
        %v3015 = vld [vmem:[#allocation3 + $0xa0] sm:$0xff]
        %v3016 = vld [vmem:[#allocation3 + $0xa8] sm:$0xff]
        %v3017 = vld [vmem:[#allocation3 + $0xb0] sm:$0xff]
        %v3018 = vld [vmem:[#allocation3 + $0xb8] sm:$0xff]
        %v3019 = vld [vmem:[#allocation3 + $0xc0] sm:$0xff]
        %v3020 = vld [vmem:[#allocation3 + $0xc8] sm:$0xff]
        %v3021 = vld [vmem:[#allocation3 + $0xd0] sm:$0xff]
        %v3022 = vld [vmem:[#allocation3 + $0xd8] sm:$0xff]
        %v3023 = vld [vmem:[#allocation3 + $0xe0] sm:$0xff]
        %v3024 = vld [vmem:[#allocation3 + $0xe8] sm:$0xff]
        %v3025 = vld [vmem:[#allocation3 + $0xf0] sm:$0xff]
        %v3026 = vld [vmem:[#allocation3 + $0xf8] sm:$0xff]
        %v3027 = vld [vmem:[#allocation3 + $0x100] sm:$0xff]
        %v3028 = vld [vmem:[#allocation3 + $0x108] sm:$0xff]
        %v3029 = vld [vmem:[#allocation3 + $0x110] sm:$0xff]
        %v3030 = vld [vmem:[#allocation3 + $0x118] sm:$0xff]
        %v3031 = vld [vmem:[#allocation3 + $0x120] sm:$0xff]
        %v3032 = vld [vmem:[#allocation3 + $0x128] sm:$0xff]
        %v3033 = vld [vmem:[#allocation3 + $0x130] sm:$0xff]
        %v3034 = vld [vmem:[#allocation3 + $0x138] sm:$0xff]
        %v3035 = vld [vmem:[#allocation3 + $0x140] sm:$0xff]
        %v3036 = vld [vmem:[#allocation3 + $0x148] sm:$0xff]
        %v3037 = vld [vmem:[#allocation3 + $0x150] sm:$0xff]
        %v3038 = vld [vmem:[#allocation3 + $0x158] sm:$0xff]
        %v3039 = vld [vmem:[#allocation3 + $0x160] sm:$0xff]
        %v3040 = vld [vmem:[#allocation3 + $0x168] sm:$0xff]
        %v3041 = vld [vmem:[#allocation3 + $0x170] sm:$0xff]
        %v3042 = vld [vmem:[#allocation3 + $0x178] sm:$0xff]
        %v3043 = vld [vmem:[#allocation3 + $0x180] sm:$0xff]
        %v3044 = vld [vmem:[#allocation3 + $0x188] sm:$0xff]
        %v3045 = vld [vmem:[#allocation3 + $0x190] sm:$0xff]
        %v3046 = vld [vmem:[#allocation3 + $0x198] sm:$0xff]
        %v3047 = vld [vmem:[#allocation3 + $0x1a0] sm:$0xff]
        %v3048 = vld [vmem:[#allocation3 + $0x1a8] sm:$0xff]
        %v3049 = vld [vmem:[#allocation3 + $0x1b0] sm:$0xff]
        %v3050 = vld [vmem:[#allocation3 + $0x1b8] sm:$0xff]
        %v3051 = vld [vmem:[#allocation3 + $0x1c0] sm:$0xff]
        %v3052 = vld [vmem:[#allocation3 + $0x1c8] sm:$0xff]
        %v3053 = vld [vmem:[#allocation3 + $0x1d0] sm:$0xff]
        %v3054 = vld [vmem:[#allocation3 + $0x1d8] sm:$0xff]
        %v3055 = vld [vmem:[#allocation3 + $0x1e0] sm:$0xff]
        %v3056 = vld [vmem:[#allocation3 + $0x1e8] sm:$0xff]
        %v3057 = vld [vmem:[#allocation3 + $0x1f0] sm:$0xff]
        %v3058 = vld [vmem:[#allocation3 + $0x1f8] sm:$0xff]
        %v3059 = vld [vmem:[#allocation3 + $0x200] sm:$0xff]
        %v3060 = vld [vmem:[#allocation3 + $0x208] sm:$0xff]
        %v3061 = vld [vmem:[#allocation3 + $0x210] sm:$0xff]
        %v3062 = vld [vmem:[#allocation3 + $0x218] sm:$0xff]
        %v3063 = vld [vmem:[#allocation3 + $0x220] sm:$0xff]
        %v3064 = vld [vmem:[#allocation3 + $0x228] sm:$0xff]
        %v3065 = vld [vmem:[#allocation3 + $0x230] sm:$0xff]
        %v3066 = vld [vmem:[#allocation3 + $0x238] sm:$0xff]
        %v3067 = vld [vmem:[#allocation3 + $0x240] sm:$0xff]
        %v3068 = vld [vmem:[#allocation3 + $0x248] sm:$0xff]
        %v3069 = vld [vmem:[#allocation3 + $0x250] sm:$0xff]
        %v3070 = vld [vmem:[#allocation3 + $0x258] sm:$0xff]
        %v3071 = vld [vmem:[#allocation3 + $0x260] sm:$0xff]
        %v3072 = vld [vmem:[#allocation3 + $0x268] sm:$0xff]
        %v3073 = vld [vmem:[#allocation3 + $0x270] sm:$0xff]
        %v3074 = vld [vmem:[#allocation3 + $0x278] sm:$0xff]
        %v3075 = vld [vmem:[#allocation3 + $0x280] sm:$0xff]
        %v3076 = vld [vmem:[#allocation3 + $0x288] sm:$0xff]
        %v3077 = vld [vmem:[#allocation3 + $0x290] sm:$0xff]
        %v3078 = vld [vmem:[#allocation3 + $0x298] sm:$0xff]
        %v3079 = vld [vmem:[#allocation3 + $0x2a0] sm:$0xff]
        %v3080 = vld [vmem:[#allocation3 + $0x2a8] sm:$0xff]
        %v3081 = vld [vmem:[#allocation3 + $0x2b0] sm:$0xff]
        %v3082 = vld [vmem:[#allocation3 + $0x2b8] sm:$0xff]
        %v3083 = vld [vmem:[#allocation3 + $0x2c0] sm:$0xff]
        %v3084 = vld [vmem:[#allocation3 + $0x2c8] sm:$0xff]
        %v3085 = vld [vmem:[#allocation3 + $0x2d0] sm:$0xff]
        %v3086 = vld [vmem:[#allocation3 + $0x2d8] sm:$0xff]
        %v3087 = vld [vmem:[#allocation3 + $0x2e0] sm:$0xff]
        %v3088 = vld [vmem:[#allocation3 + $0x2e8] sm:$0xff]
        %v3089 = vld [vmem:[#allocation3 + $0x2f0] sm:$0xff]
        %v3090 = vld [vmem:[#allocation3 + $0x2f8] sm:$0xff]
        %v3091 = vld [vmem:[#allocation3 + $0x300] sm:$0xff]
        %v3092 = vld [vmem:[#allocation3 + $0x308] sm:$0xff]
        %v3093 = vld [vmem:[#allocation3 + $0x310] sm:$0xff]
        %v3094 = vld [vmem:[#allocation3 + $0x318] sm:$0xff]
        %v3095 = vld [vmem:[#allocation3 + $0x320] sm:$0xff]
        %v3096 = vld [vmem:[#allocation3 + $0x328] sm:$0xff]
        %v3097 = vld [vmem:[#allocation3 + $0x330] sm:$0xff]
        %v3098 = vld [vmem:[#allocation3 + $0x338] sm:$0xff]
        %v3099 = vld [vmem:[#allocation3 + $0x340] sm:$0xff]
        %v3100 = vld [vmem:[#allocation3 + $0x348] sm:$0xff]
        %v3101 = vld [vmem:[#allocation3 + $0x350] sm:$0xff]
        %v3102 = vld [vmem:[#allocation3 + $0x358] sm:$0xff]
        %v3103 = vld [vmem:[#allocation3 + $0x360] sm:$0xff]
        %v3104 = vld [vmem:[#allocation3 + $0x368] sm:$0xff]
        %v3105 = vld [vmem:[#allocation3 + $0x370] sm:$0xff]
        %v3106 = vld [vmem:[#allocation3 + $0x378] sm:$0xff]
        %v3107 = vld [vmem:[#allocation3 + $0x380] sm:$0xff]
        %v3108 = vld [vmem:[#allocation3 + $0x388] sm:$0xff]
        %v3109 = vld [vmem:[#allocation3 + $0x390] sm:$0xff]
        %v3110 = vld [vmem:[#allocation3 + $0x398] sm:$0xff]
        %v3111 = vld [vmem:[#allocation3 + $0x3a0] sm:$0xff]
        %v3112 = vld [vmem:[#allocation3 + $0x3a8] sm:$0xff]
        %v3113 = vld [vmem:[#allocation3 + $0x3b0] sm:$0xff]
        %v3114 = vld [vmem:[#allocation3 + $0x3b8] sm:$0xff]
        %v3115 = vld [vmem:[#allocation3 + $0x3c0] sm:$0xff]
        %v3116 = vld [vmem:[#allocation3 + $0x3c8] sm:$0xff]
        %v3117 = vld [vmem:[#allocation3 + $0x3d0] sm:$0xff]
        %v3118 = vld [vmem:[#allocation3 + $0x3d8] sm:$0xff]
        %v3119 = vld [vmem:[#allocation3 + $0x3e0] sm:$0xff]
        %v3120 = vld [vmem:[#allocation3 + $0x3e8] sm:$0xff]
        %v3121 = vld [vmem:[#allocation3 + $0x3f0] sm:$0xff]
        %v3122 = vld [vmem:[#allocation3 + $0x3f8] sm:$0xff]
        %v3123 = vld [vmem:[#allocation3 + $0x400] sm:$0xff]
        %v3124 = vld [vmem:[#allocation3 + $0x408] sm:$0xff]
        %v3125 = vld [vmem:[#allocation3 + $0x410] sm:$0xff]
        %v3126 = vld [vmem:[#allocation3 + $0x418] sm:$0xff]
        %v3127 = vld [vmem:[#allocation3 + $0x420] sm:$0xff]
        %v3128 = vld [vmem:[#allocation3 + $0x428] sm:$0xff]
        %v3129 = vld [vmem:[#allocation3 + $0x430] sm:$0xff]
        %v3130 = vld [vmem:[#allocation3 + $0x438] sm:$0xff]
        %v3131 = vld [vmem:[#allocation3 + $0x440] sm:$0xff]
        %v3132 = vld [vmem:[#allocation3 + $0x448] sm:$0xff]
        %v3133 = vld [vmem:[#allocation3 + $0x450] sm:$0xff]
        %v3134 = vld [vmem:[#allocation3 + $0x458] sm:$0xff]
        %v3135 = vld [vmem:[#allocation3 + $0x460] sm:$0xff]
        %v3136 = vld [vmem:[#allocation3 + $0x468] sm:$0xff]
        %v3137 = vld [vmem:[#allocation3 + $0x470] sm:$0xff]
        %v3138 = vld [vmem:[#allocation3 + $0x478] sm:$0xff]
        %v3139 = vld [vmem:[#allocation3 + $0x480] sm:$0xff]
        %v3140 = vld [vmem:[#allocation3 + $0x488] sm:$0xff]
        %v3141 = vld [vmem:[#allocation3 + $0x490] sm:$0xff]
        %v3142 = vld [vmem:[#allocation3 + $0x498] sm:$0xff]
        %v3143 = vld [vmem:[#allocation3 + $0x4a0] sm:$0xff]
        %v3144 = vld [vmem:[#allocation3 + $0x4a8] sm:$0xff]
        %v3145 = vld [vmem:[%s6] sm:$0xff]
        %v3146 = vld [vmem:[%s6 + $0x8] sm:$0x3]
        %3148 = vset.pattern.permute.xlu0 0
        %3149 = vperm.xlu0 %3148, %v3145
        %v3150 = vpop.permute.xlu0 %3149
        %3153 = vset.pattern.permute.xlu0 0
        %3154 = vperm.xlu0 %3153, %v3146
        %v3155 = vpop.permute.xlu0 %3154
        %vm3157 = vcmask 719872
        %v3159 = vsel %vm3157, %v2989, 0
        %v3162 = vsel %vm3157, %v2994, 0
        %3164 = vmatprep.subr.mxu0 %v2996
        %3165 = vmatpush1.msra.mxu0 %v2995
        %3166 = vmatprep.subr.mxu0 %v2998
        %3167 = vmatpush1.msra.mxu0 %v2997
        %3168 = vmatprep.subr.mxu0 %v3000
        %3169 = vmatpush1.msra.mxu0 %v2999
        %3170 = vmatprep.subr.mxu0 %v3002
        %3171 = vmatpush1.msra.mxu0 %v3001
        %3172 = vmatprep.subr.mxu0 %v3004
        %3173 = vmatpush1.msra.mxu0 %v3003
        %3174 = vmatprep.subr.mxu0 %v3006
        %3175 = vmatpush1.msra.mxu0 %v3005
        %3176 = vmatprep.subr.mxu0 %v3008
        %3177 = vmatpush1.msra.mxu0 %v3007
        %3178 = vmatprep.subr.mxu0 %v3010
        %3179 = vmatpush1.msra.mxu0 %v3009
        %3180 = vmatprep.subr.mxu0 %v3012
        %3181 = vmatpush1.msra.mxu0 %v3011
        %3182 = vmatprep.subr.mxu0 %v3014
        %3183 = vmatpush1.msra.mxu0 %v3013
        %3184 = vmatprep.subr.mxu0 %v3016
        %3185 = vmatpush1.msra.mxu0 %v3015
        %3186 = vmatprep.subr.mxu0 %v3018
        %3187 = vmatpush1.msra.mxu0 %v3017
        %3188 = vmatprep.subr.mxu0 %v3020
        %3189 = vmatpush1.msra.mxu0 %v3019
        %3190 = vmatprep.subr.mxu0 %v3022
        %3191 = vmatpush1.msra.mxu0 %v3021
        %3192 = vmatprep.subr.mxu0 %v3024
        %3193 = vmatpush1.msra.mxu0 %v3023
        %3194 = vmatprep.subr.mxu0 %v3026
        %3195 = vmatpush1.msra.mxu0 %v3025
        %3196 = vmatprep.subr.mxu0 %v3028
        %3197 = vmatpush1.msra.mxu0 %v3027
        %3198 = vmatprep.subr.mxu0 %v3030
        %3199 = vmatpush1.msra.mxu0 %v3029
        %3200 = vmatprep.subr.mxu0 %v3032
        %3201 = vmatpush1.msra.mxu0 %v3031
        %3202 = vmatprep.subr.mxu0 %v3034
        %3203 = vmatpush1.msra.mxu0 %v3033
        %3204 = vmatprep.subr.mxu0 %v3036
        %3205 = vmatpush1.msra.mxu0 %v3035
        %3206 = vmatprep.subr.mxu0 %v3038
        %3207 = vmatpush1.msra.mxu0 %v3037
        %3208 = vmatprep.subr.mxu0 %v3040
        %3209 = vmatpush1.msra.mxu0 %v3039
        %3210 = vmatprep.subr.mxu0 %v3042
        %3211 = vmatpush1.msra.mxu0 %v3041
        %3212 = vmatprep.subr.mxu0 %v3044
        %3213 = vmatpush1.msra.mxu0 %v3043
        %3214 = vmatprep.subr.mxu0 %v3046
        %3215 = vmatpush1.msra.mxu0 %v3045
        %3216 = vmatprep.subr.mxu0 %v3048
        %3217 = vmatpush1.msra.mxu0 %v3047
        %3218 = vmatprep.subr.mxu0 %v3050
        %3219 = vmatpush1.msra.mxu0 %v3049
        %3220 = vmatprep.subr.mxu0 %v3052
        %3221 = vmatpush1.msra.mxu0 %v3051
        %3222 = vmatprep.subr.mxu0 %v3054
        %3223 = vmatpush1.msra.mxu0 %v3053
        %3224 = vmatprep.subr.mxu0 %v3056
        %3225 = vmatpush1.msra.mxu0 %v3055
        %3226 = vmatprep.subr.mxu0 %v3058
        %3227 = vmatpush1.msra.mxu0 %v3057
        %3228 = vmatprep.mubr.f32.mxu0 %v2986
        %3229 = vmatmul.mubr.f32.gmra.mrb[0].mxu0 %v2985
        %v3230 = vpop.f32.mrb[0].mxu0
        %v3231 = vadd.f32 %v3150, %v3230
        %v3232 = vpop.f32.mrb[0].mxu0
        %v3233 = vadd.f32 %v3150, %v3232
        %3234 = vmatprep.mubr.f32.mxu0 %v2991
        %3235 = vmatmul.mubr.f32.gmra.mrb[0].mxu0 %v2990
        %v3236 = vpop.f32.mrb[0].mxu0
        %v3237 = vadd.f32 %v3155, %v3236
        %v3238 = vpop.f32.mrb[0].mxu0
        %v3239 = vadd.f32 %v3155, %v3238
        %3240 = vdwg.mxu0
        %3241 = vmatprep.subr.mxu0 %v3060
        %3242 = vmatpush1.msra.mxu0 %v3059
        %3243 = vmatprep.subr.mxu0 %v3062
        %3244 = vmatpush1.msra.mxu0 %v3061
        %3245 = vmatprep.subr.mxu0 %v3064
        %3246 = vmatpush1.msra.mxu0 %v3063
        %3247 = vmatprep.subr.mxu0 %v3066
        %3248 = vmatpush1.msra.mxu0 %v3065
        %3249 = vmatprep.subr.mxu0 %v3068
        %3250 = vmatpush1.msra.mxu0 %v3067
        %3251 = vmatprep.subr.mxu0 %v3070
        %3252 = vmatpush1.msra.mxu0 %v3069
        %3253 = vmatprep.subr.mxu0 %v3072
        %3254 = vmatpush1.msra.mxu0 %v3071
        %3255 = vmatprep.subr.mxu0 %v3074
        %3256 = vmatpush1.msra.mxu0 %v3073
        %3257 = vmatprep.subr.mxu0 %v3076
        %3258 = vmatpush1.msra.mxu0 %v3075
        %3259 = vmatprep.subr.mxu0 %v3078
        %3260 = vmatpush1.msra.mxu0 %v3077
        %3261 = vmatprep.subr.mxu0 %v3080
        %3262 = vmatpush1.msra.mxu0 %v3079
        %3263 = vmatprep.subr.mxu0 %v3082
        %3264 = vmatpush1.msra.mxu0 %v3081
        %3265 = vmatprep.subr.mxu0 %v3084
        %3266 = vmatpush1.msra.mxu0 %v3083
        %3267 = vmatprep.subr.mxu0 %v3086
        %3268 = vmatpush1.msra.mxu0 %v3085
        %3269 = vmatprep.subr.mxu0 %v3088
        %3270 = vmatpush1.msra.mxu0 %v3087
        %3271 = vmatprep.subr.mxu0 %v3090
        %3272 = vmatpush1.msra.mxu0 %v3089
        %3273 = vmatprep.subr.mxu0 %v3092
        %3274 = vmatpush1.msra.mxu0 %v3091
        %3275 = vmatprep.subr.mxu0 %v3094
        %3276 = vmatpush1.msra.mxu0 %v3093
        %3277 = vmatprep.subr.mxu0 %v3096
        %3278 = vmatpush1.msra.mxu0 %v3095
        %3279 = vmatprep.subr.mxu0 %v3098
        %3280 = vmatpush1.msra.mxu0 %v3097
        %3281 = vmatprep.subr.mxu0 %v3100
        %3282 = vmatpush1.msra.mxu0 %v3099
        %3283 = vmatprep.subr.mxu0 %v3102
        %3284 = vmatpush1.msra.mxu0 %v3101
        %3285 = vmatprep.subr.mxu0 %v3104
        %3286 = vmatpush1.msra.mxu0 %v3103
        %3287 = vmatprep.subr.mxu0 %v3106
        %3288 = vmatpush1.msra.mxu0 %v3105
        %3289 = vmatprep.subr.mxu0 %v3108
        %3290 = vmatpush1.msra.mxu0 %v3107
        %3291 = vmatprep.subr.mxu0 %v3110
        %3292 = vmatpush1.msra.mxu0 %v3109
        %3293 = vmatprep.subr.mxu0 %v3112
        %3294 = vmatpush1.msra.mxu0 %v3111
        %3295 = vmatprep.subr.mxu0 %v3114
        %3296 = vmatpush1.msra.mxu0 %v3113
        %3297 = vmatprep.subr.mxu0 %v3116
        %3298 = vmatpush1.msra.mxu0 %v3115
        %3299 = vmatprep.subr.mxu0 %v3118
        %3300 = vmatpush1.msra.mxu0 %v3117
        %3301 = vmatprep.subr.mxu0 %v3120
        %3302 = vmatpush1.msra.mxu0 %v3119
        %3303 = vmatprep.subr.mxu0 %v3122
        %3304 = vmatpush1.msra.mxu0 %v3121
        %3305 = vmatprep.mubr.f32.mxu0 %v2988
        %3306 = vmatmul.mubr.f32.gmra.mrb[0].mxu0 %v2987
        %v3307 = vpop.f32.mrb[0].mxu0
        %v3308 = vadd.f32 %v3231, %v3307
        %v3309 = vpop.f32.mrb[0].mxu0
        %v3310 = vadd.f32 %v3233, %v3309
        %3311 = vmatprep.mubr.f32.mxu0 %v2993
        %3312 = vmatmul.mubr.f32.gmra.mrb[0].mxu0 %v2992
        %v3313 = vpop.f32.mrb[0].mxu0
        %v3314 = vadd.f32 %v3237, %v3313
        %v3315 = vpop.f32.mrb[0].mxu0
        %v3316 = vadd.f32 %v3239, %v3315
        %3317 = vdwg.mxu0
        %3318 = vmatprep.subr.mxu0 %v3124
        %3319 = vmatpush1.msra.mxu0 %v3123
        %3320 = vmatprep.subr.mxu0 %v3126
        %3321 = vmatpush1.msra.mxu0 %v3125
        %3322 = vmatprep.subr.mxu0 %v3128
        %3323 = vmatpush1.msra.mxu0 %v3127
        %3324 = vmatprep.subr.mxu0 %v3130
        %3325 = vmatpush1.msra.mxu0 %v3129
        %3326 = vmatprep.subr.mxu0 %v3132
        %3327 = vmatpush1.msra.mxu0 %v3131
        %3328 = vmatprep.subr.mxu0 %v3134
        %3329 = vmatpush1.msra.mxu0 %v3133
        %3330 = vmatprep.subr.mxu0 %v3136
        %3331 = vmatpush1.msra.mxu0 %v3135
        %3332 = vmatprep.subr.mxu0 %v3138
        %3333 = vmatpush1.msra.mxu0 %v3137
        %3334 = vmatprep.subr.mxu0 %v3140
        %3335 = vmatpush1.msra.mxu0 %v3139
        %3336 = vmatprep.subr.mxu0 %v3142
        %3337 = vmatpush1.msra.mxu0 %v3141
        %3338 = vmatprep.subr.mxu0 %v3144
        %3339 = vmatpush1.msra.mxu0 %v3143
        %3340 = vmatprep.subr.mxu0 0.0
        %3341 = vmatpush1.msra.mxu0 0.0
        %3342 = vmatprep.subr.mxu0 0.0
        %3343 = vmatpush1.msra.mxu0 0.0
        %3344 = vmatprep.subr.mxu0 0.0
        %3345 = vmatpush1.msra.mxu0 0.0
        %3346 = vmatprep.subr.mxu0 0.0
        %3347 = vmatpush1.msra.mxu0 0.0
        %3348 = vmatprep.subr.mxu0 0.0
        %3349 = vmatpush1.msra.mxu0 0.0
        %3350 = vmatprep.subr.mxu0 0.0
        %3351 = vmatpush1.msra.mxu0 0.0
        %3352 = vmatprep.subr.mxu0 0.0
        %3353 = vmatpush1.msra.mxu0 0.0
        %3354 = vmatprep.subr.mxu0 0.0
        %3355 = vmatpush1.msra.mxu0 0.0
        %3356 = vmatprep.subr.mxu0 0.0
        %3357 = vmatpush1.msra.mxu0 0.0
        %3358 = vmatprep.subr.mxu0 0.0
        %3359 = vmatpush1.msra.mxu0 0.0
        %3360 = vmatprep.subr.mxu0 0.0
        %3361 = vmatpush1.msra.mxu0 0.0
        %3362 = vmatprep.subr.mxu0 0.0
        %3363 = vmatpush1.msra.mxu0 0.0
        %3364 = vmatprep.subr.mxu0 0.0
        %3365 = vmatpush1.msra.mxu0 0.0
        %3366 = vmatprep.subr.mxu0 0.0
        %3367 = vmatpush1.msra.mxu0 0.0
        %3368 = vmatprep.subr.mxu0 0.0
        %3369 = vmatpush1.msra.mxu0 0.0
        %3370 = vmatprep.subr.mxu0 0.0
        %3371 = vmatpush1.msra.mxu0 0.0
        %3372 = vmatprep.subr.mxu0 0.0
        %3373 = vmatpush1.msra.mxu0 0.0
        %3374 = vmatprep.subr.mxu0 0.0
        %3375 = vmatpush1.msra.mxu0 0.0
        %3376 = vmatprep.subr.mxu0 0.0
        %3377 = vmatpush1.msra.mxu0 0.0
        %3378 = vmatprep.subr.mxu0 0.0
        %3379 = vmatpush1.msra.mxu0 0.0
        %3380 = vmatprep.subr.mxu0 0.0
        %3381 = vmatpush1.msra.mxu0 0.0
        %3382 = vmatprep.mubr.f32.mxu0 0.0
        %3383 = vmatmul.mubr.f32.gmra.mrb[0].mxu0 %v3159
        %v3384 = vpop.f32.mrb[0].mxu0
        %v3385 = vadd.f32 %v3308, %v3384
        %v3386 = vpop.f32.mrb[0].mxu0
        %v3387 = vadd.f32 %v3310, %v3386
        %3388 = vmatprep.mubr.f32.mxu0 0.0
        %3389 = vmatmul.mubr.f32.gmra.mrb[0].mxu0 %v3162
        %v3390 = vpop.f32.mrb[0].mxu0
        %v3391 = vadd.f32 %v3314, %v3390
        %v3392 = vpop.f32.mrb[0].mxu0
        %v3393 = vadd.f32 %v3316, %v3392
        %3394 = vdwg.mxu0
        %vm3395 = vcmp.ge.f32.partialorder %v3385, 0.0
        %vm3396 = vcmp.ge.f32.partialorder %v3387, 0.0
        %vm3397 = vcmp.ge.f32.partialorder %v3391, 0.0
        %vm3398 = vcmp.ge.f32.partialorder %v3393, 0.0
        %v3399 = vmul.f32 %v3385, 0.01
        %v3400 = vmul.f32 %v3387, 0.01
        %v3401 = vmul.f32 %v3391, 0.01
        %v3402 = vmul.f32 %v3393, 0.01
        %v3403 = vsel %vm3395, %v3385, %v3399
        %v3404 = vsel %vm3396, %v3387, %v3400
        %v3405 = vsel %vm3397, %v3391, %v3401
        %v3406 = vsel %vm3398, %v3393, %v3402
        %3407 = vst [vmem:[#allocation2 + $0x8] sm:$0xff] %v3403
        %3408 = vst [vmem:[#allocation2 + $0x10] sm:$0xff] %v3404
        %3409 = vst [vmem:[#allocation2 + $0x28] sm:$0x3] %v3405
        %3410 = vst [vmem:[#allocation2 + $0x30] sm:$0x3] %v3406
        %v3411 = vld [vmem:[#allocation2] sm:$0xff]
        %v3412 = vld [vmem:[#allocation2 + $0x8] sm:$0xff]
        %v3413 = vld [vmem:[#allocation2 + $0x10] sm:$0xff]
        %v3414 = vld [vmem:[#allocation2 + $0x18] sm:$0xff]
        %v3415 = vld [vmem:[#allocation2 + $0x20] sm:$0xff]
        %v3416 = vld [vmem:[#allocation2 + $0x28] sm:$0xff]
        %v3417 = vld [vmem:[#allocation2 + $0x30] sm:$0xff]
        %v3418 = vld [vmem:[#allocation2 + $0x38] sm:$0xff]
        %3425 = vrot.lane.b32.xlu0 %v3411, 7
        %v3426 = vpop.permute.xlu0 %3425
        %3427 = vrot.lane.b32.xlu0 %v3412, 7
        %v3428 = vpop.permute.xlu0 %3427
        %3429 = vrot.lane.b32.xlu0 %v3413, 7
        %v3430 = vpop.permute.xlu0 %3429
        %3431 = vrot.lane.b32.xlu0 %v3415, 7
        %v3432 = vpop.permute.xlu0 %3431
        %3433 = vrot.lane.b32.xlu0 %v3416, 7
        %v3434 = vpop.permute.xlu0 %3433
        %3435 = vrot.lane.b32.xlu0 %v3417, 7
        %v3436 = vpop.permute.xlu0 %3435
        %v3437 = vsel %vm841, %v3426, %v3428
        %v3438 = vsel %vm841, %v3428, %v3430
        %v3439 = vsel %vm841, %v3432, %v3434
        %v3440 = vsel %vm841, %v3434, %v3436
        %3445 = vst [vmem:[#allocation3] sm:$0xff] %v3437
        %3446 = vst [vmem:[#allocation3 + $0x8] sm:$0xff] %v3438
        %3447 = vst [vmem:[#allocation3 + $0x10] sm:$0xff] %v3439
        %3448 = vst [vmem:[#allocation3 + $0x18] sm:$0xff] %v3440
        %3449 = vrot.lane.b32.xlu0 %v3411, 6
        %v3450 = vpop.permute.xlu0 %3449
        %3451 = vrot.lane.b32.xlu0 %v3412, 6
        %v3452 = vpop.permute.xlu0 %3451
        %3453 = vrot.lane.b32.xlu0 %v3413, 6
        %v3454 = vpop.permute.xlu0 %3453
        %3455 = vrot.lane.b32.xlu0 %v3415, 6
        %v3456 = vpop.permute.xlu0 %3455
        %3457 = vrot.lane.b32.xlu0 %v3416, 6
        %v3458 = vpop.permute.xlu0 %3457
        %3459 = vrot.lane.b32.xlu0 %v3417, 6
        %v3460 = vpop.permute.xlu0 %3459
        %v3461 = vsel %vm854, %v3450, %v3452
        %v3462 = vsel %vm854, %v3452, %v3454
        %v3463 = vsel %vm854, %v3456, %v3458
        %v3464 = vsel %vm854, %v3458, %v3460
        %3469 = vst [vmem:[#allocation3 + $0x20] sm:$0xff] %v3461
        %3470 = vst [vmem:[#allocation3 + $0x28] sm:$0xff] %v3462
        %3471 = vst [vmem:[#allocation3 + $0x30] sm:$0xff] %v3463
        %3472 = vst [vmem:[#allocation3 + $0x38] sm:$0xff] %v3464
        %3473 = vrot.lane.b32.xlu0 %v3411, 5
        %v3474 = vpop.permute.xlu0 %3473
        %3475 = vrot.lane.b32.xlu0 %v3412, 5
        %v3476 = vpop.permute.xlu0 %3475
        %3477 = vrot.lane.b32.xlu0 %v3413, 5
        %v3478 = vpop.permute.xlu0 %3477
        %3479 = vrot.lane.b32.xlu0 %v3415, 5
        %v3480 = vpop.permute.xlu0 %3479
        %3481 = vrot.lane.b32.xlu0 %v3416, 5
        %v3482 = vpop.permute.xlu0 %3481
        %3483 = vrot.lane.b32.xlu0 %v3417, 5
        %v3484 = vpop.permute.xlu0 %3483
        %v3485 = vsel %vm867, %v3474, %v3476
        %v3486 = vsel %vm867, %v3476, %v3478
        %v3487 = vsel %vm867, %v3480, %v3482
        %v3488 = vsel %vm867, %v3482, %v3484
        %3493 = vst [vmem:[#allocation3 + $0x40] sm:$0xff] %v3485
        %3494 = vst [vmem:[#allocation3 + $0x48] sm:$0xff] %v3486
        %3495 = vst [vmem:[#allocation3 + $0x50] sm:$0xff] %v3487
        %3496 = vst [vmem:[#allocation3 + $0x58] sm:$0xff] %v3488
        %3497 = vrot.lane.b32.xlu0 %v3411, 4
        %v3498 = vpop.permute.xlu0 %3497
        %3499 = vrot.lane.b32.xlu0 %v3412, 4
        %v3500 = vpop.permute.xlu0 %3499
        %3501 = vrot.lane.b32.xlu0 %v3413, 4
        %v3502 = vpop.permute.xlu0 %3501
        %3503 = vrot.lane.b32.xlu0 %v3415, 4
        %v3504 = vpop.permute.xlu0 %3503
        %3505 = vrot.lane.b32.xlu0 %v3416, 4
        %v3506 = vpop.permute.xlu0 %3505
        %3507 = vrot.lane.b32.xlu0 %v3417, 4
        %v3508 = vpop.permute.xlu0 %3507
        %v3509 = vsel %vm880, %v3498, %v3500
        %v3510 = vsel %vm880, %v3500, %v3502
        %v3511 = vsel %vm880, %v3504, %v3506
        %v3512 = vsel %vm880, %v3506, %v3508
        %3517 = vst [vmem:[#allocation3 + $0x60] sm:$0xff] %v3509
        %3518 = vst [vmem:[#allocation3 + $0x68] sm:$0xff] %v3510
        %3519 = vst [vmem:[#allocation3 + $0x70] sm:$0xff] %v3511
        %3520 = vst [vmem:[#allocation3 + $0x78] sm:$0xff] %v3512
        %3521 = vrot.lane.b32.xlu0 %v3411, 3
        %v3522 = vpop.permute.xlu0 %3521
        %3523 = vrot.lane.b32.xlu0 %v3412, 3
        %v3524 = vpop.permute.xlu0 %3523
        %3525 = vrot.lane.b32.xlu0 %v3413, 3
        %v3526 = vpop.permute.xlu0 %3525
        %3527 = vrot.lane.b32.xlu0 %v3415, 3
        %v3528 = vpop.permute.xlu0 %3527
        %3529 = vrot.lane.b32.xlu0 %v3416, 3
        %v3530 = vpop.permute.xlu0 %3529
        %3531 = vrot.lane.b32.xlu0 %v3417, 3
        %v3532 = vpop.permute.xlu0 %3531
        %v3533 = vsel %vm893, %v3522, %v3524
        %v3534 = vsel %vm893, %v3524, %v3526
        %v3535 = vsel %vm893, %v3528, %v3530
        %v3536 = vsel %vm893, %v3530, %v3532
        %3541 = vst [vmem:[#allocation3 + $0x80] sm:$0xff] %v3533
        %3542 = vst [vmem:[#allocation3 + $0x88] sm:$0xff] %v3534
        %3543 = vst [vmem:[#allocation3 + $0x90] sm:$0xff] %v3535
        %3544 = vst [vmem:[#allocation3 + $0x98] sm:$0xff] %v3536
        %3545 = vrot.lane.b32.xlu0 %v3411, 2
        %v3546 = vpop.permute.xlu0 %3545
        %3547 = vrot.lane.b32.xlu0 %v3412, 2
        %v3548 = vpop.permute.xlu0 %3547
        %3549 = vrot.lane.b32.xlu0 %v3413, 2
        %v3550 = vpop.permute.xlu0 %3549
        %3551 = vrot.lane.b32.xlu0 %v3415, 2
        %v3552 = vpop.permute.xlu0 %3551
        %3553 = vrot.lane.b32.xlu0 %v3416, 2
        %v3554 = vpop.permute.xlu0 %3553
        %3555 = vrot.lane.b32.xlu0 %v3417, 2
        %v3556 = vpop.permute.xlu0 %3555
        %v3557 = vsel %vm906, %v3546, %v3548
        %v3558 = vsel %vm906, %v3548, %v3550
        %v3559 = vsel %vm906, %v3552, %v3554
        %v3560 = vsel %vm906, %v3554, %v3556
        %3565 = vst [vmem:[#allocation3 + $0xa0] sm:$0xff] %v3557
        %3566 = vst [vmem:[#allocation3 + $0xa8] sm:$0xff] %v3558
        %3567 = vst [vmem:[#allocation3 + $0xb0] sm:$0xff] %v3559
        %3568 = vst [vmem:[#allocation3 + $0xb8] sm:$0xff] %v3560
        %3569 = vrot.lane.b32.xlu0 %v3411, 1
        %v3570 = vpop.permute.xlu0 %3569
        %3571 = vrot.lane.b32.xlu0 %v3412, 1
        %v3572 = vpop.permute.xlu0 %3571
        %3573 = vrot.lane.b32.xlu0 %v3413, 1
        %v3574 = vpop.permute.xlu0 %3573
        %3575 = vrot.lane.b32.xlu0 %v3415, 1
        %v3576 = vpop.permute.xlu0 %3575
        %3577 = vrot.lane.b32.xlu0 %v3416, 1
        %v3578 = vpop.permute.xlu0 %3577
        %3579 = vrot.lane.b32.xlu0 %v3417, 1
        %v3580 = vpop.permute.xlu0 %3579
        %v3581 = vsel %vm919, %v3570, %v3572
        %v3582 = vsel %vm919, %v3572, %v3574
        %v3583 = vsel %vm919, %v3576, %v3578
        %v3584 = vsel %vm919, %v3578, %v3580
        %3589 = vst [vmem:[#allocation3 + $0xc0] sm:$0xff] %v3581
        %3590 = vst [vmem:[#allocation3 + $0xc8] sm:$0xff] %v3582
        %3591 = vst [vmem:[#allocation3 + $0xd0] sm:$0xff] %v3583
        %3592 = vst [vmem:[#allocation3 + $0xd8] sm:$0xff] %v3584
        %3593 = vst [vmem:[#allocation3 + $0xe0] sm:$0xff] %v3412
        %3594 = vst [vmem:[#allocation3 + $0xe8] sm:$0xff] %v3413
        %3595 = vst [vmem:[#allocation3 + $0xf0] sm:$0xff] %v3416
        %3596 = vst [vmem:[#allocation3 + $0xf8] sm:$0xff] %v3417
        %3599 = vrot.lane.b32.xlu0 %v3412, 127
        %v3600 = vpop.permute.xlu0 %3599
        %3601 = vrot.lane.b32.xlu0 %v3413, 127
        %v3602 = vpop.permute.xlu0 %3601
        %3603 = vrot.lane.b32.xlu0 %v3414, 127
        %v3604 = vpop.permute.xlu0 %3603
        %3605 = vrot.lane.b32.xlu0 %v3416, 127
        %v3606 = vpop.permute.xlu0 %3605
        %3607 = vrot.lane.b32.xlu0 %v3417, 127
        %v3608 = vpop.permute.xlu0 %3607
        %3609 = vrot.lane.b32.xlu0 %v3418, 127
        %v3610 = vpop.permute.xlu0 %3609
        %v3611 = vsel %vm935, %v3600, %v3602
        %v3612 = vsel %vm935, %v3602, %v3604
        %v3613 = vsel %vm935, %v3606, %v3608
        %v3614 = vsel %vm935, %v3608, %v3610
        %3619 = vst [vmem:[#allocation3 + $0x100] sm:$0xff] %v3611
        %3620 = vst [vmem:[#allocation3 + $0x108] sm:$0xff] %v3612
        %3621 = vst [vmem:[#allocation3 + $0x110] sm:$0xff] %v3613
        %3622 = vst [vmem:[#allocation3 + $0x118] sm:$0xff] %v3614
        %3623 = vrot.lane.b32.xlu0 %v3412, 126
        %v3624 = vpop.permute.xlu0 %3623
        %3625 = vrot.lane.b32.xlu0 %v3413, 126
        %v3626 = vpop.permute.xlu0 %3625
        %3627 = vrot.lane.b32.xlu0 %v3414, 126
        %v3628 = vpop.permute.xlu0 %3627
        %3629 = vrot.lane.b32.xlu0 %v3416, 126
        %v3630 = vpop.permute.xlu0 %3629
        %3631 = vrot.lane.b32.xlu0 %v3417, 126
        %v3632 = vpop.permute.xlu0 %3631
        %3633 = vrot.lane.b32.xlu0 %v3418, 126
        %v3634 = vpop.permute.xlu0 %3633
        %v3635 = vsel %vm948, %v3624, %v3626
        %v3636 = vsel %vm948, %v3626, %v3628
        %v3637 = vsel %vm948, %v3630, %v3632
        %v3638 = vsel %vm948, %v3632, %v3634
        %3643 = vst [vmem:[#allocation3 + $0x120] sm:$0xff] %v3635
        %3644 = vst [vmem:[#allocation3 + $0x128] sm:$0xff] %v3636
        %3645 = vst [vmem:[#allocation3 + $0x130] sm:$0xff] %v3637
        %3646 = vst [vmem:[#allocation3 + $0x138] sm:$0xff] %v3638
        %3647 = vrot.lane.b32.xlu0 %v3412, 125
        %v3648 = vpop.permute.xlu0 %3647
        %3649 = vrot.lane.b32.xlu0 %v3413, 125
        %v3650 = vpop.permute.xlu0 %3649
        %3651 = vrot.lane.b32.xlu0 %v3414, 125
        %v3652 = vpop.permute.xlu0 %3651
        %3653 = vrot.lane.b32.xlu0 %v3416, 125
        %v3654 = vpop.permute.xlu0 %3653
        %3655 = vrot.lane.b32.xlu0 %v3417, 125
        %v3656 = vpop.permute.xlu0 %3655
        %3657 = vrot.lane.b32.xlu0 %v3418, 125
        %v3658 = vpop.permute.xlu0 %3657
        %v3659 = vsel %vm961, %v3648, %v3650
        %v3660 = vsel %vm961, %v3650, %v3652
        %v3661 = vsel %vm961, %v3654, %v3656
        %v3662 = vsel %vm961, %v3656, %v3658
        %3667 = vst [vmem:[#allocation3 + $0x140] sm:$0xff] %v3659
        %3668 = vst [vmem:[#allocation3 + $0x148] sm:$0xff] %v3660
        %3669 = vst [vmem:[#allocation3 + $0x150] sm:$0xff] %v3661
        %3670 = vst [vmem:[#allocation3 + $0x158] sm:$0xff] %v3662
        %3671 = vrot.lane.b32.xlu0 %v3412, 124
        %v3672 = vpop.permute.xlu0 %3671
        %3673 = vrot.lane.b32.xlu0 %v3413, 124
        %v3674 = vpop.permute.xlu0 %3673
        %3675 = vrot.lane.b32.xlu0 %v3414, 124
        %v3676 = vpop.permute.xlu0 %3675
        %3677 = vrot.lane.b32.xlu0 %v3416, 124
        %v3678 = vpop.permute.xlu0 %3677
        %3679 = vrot.lane.b32.xlu0 %v3417, 124
        %v3680 = vpop.permute.xlu0 %3679
        %3681 = vrot.lane.b32.xlu0 %v3418, 124
        %v3682 = vpop.permute.xlu0 %3681
        %v3683 = vsel %vm974, %v3672, %v3674
        %v3684 = vsel %vm974, %v3674, %v3676
        %v3685 = vsel %vm974, %v3678, %v3680
        %v3686 = vsel %vm974, %v3680, %v3682
        %3691 = vst [vmem:[#allocation3 + $0x160] sm:$0xff] %v3683
        %3692 = vst [vmem:[#allocation3 + $0x168] sm:$0xff] %v3684
        %3693 = vst [vmem:[#allocation3 + $0x170] sm:$0xff] %v3685
        %3694 = vst [vmem:[#allocation3 + $0x178] sm:$0xff] %v3686
        %3695 = vrot.lane.b32.xlu0 %v3412, 123
        %v3696 = vpop.permute.xlu0 %3695
        %3697 = vrot.lane.b32.xlu0 %v3413, 123
        %v3698 = vpop.permute.xlu0 %3697
        %3699 = vrot.lane.b32.xlu0 %v3414, 123
        %v3700 = vpop.permute.xlu0 %3699
        %3701 = vrot.lane.b32.xlu0 %v3416, 123
        %v3702 = vpop.permute.xlu0 %3701
        %3703 = vrot.lane.b32.xlu0 %v3417, 123
        %v3704 = vpop.permute.xlu0 %3703
        %3705 = vrot.lane.b32.xlu0 %v3418, 123
        %v3706 = vpop.permute.xlu0 %3705
        %v3707 = vsel %vm987, %v3696, %v3698
        %v3708 = vsel %vm987, %v3698, %v3700
        %v3709 = vsel %vm987, %v3702, %v3704
        %v3710 = vsel %vm987, %v3704, %v3706
        %3715 = vst [vmem:[#allocation3 + $0x180] sm:$0xff] %v3707
        %3716 = vst [vmem:[#allocation3 + $0x188] sm:$0xff] %v3708
        %3717 = vst [vmem:[#allocation3 + $0x190] sm:$0xff] %v3709
        %3718 = vst [vmem:[#allocation3 + $0x198] sm:$0xff] %v3710
        %3719 = vrot.lane.b32.xlu0 %v3412, 122
        %v3720 = vpop.permute.xlu0 %3719
        %3721 = vrot.lane.b32.xlu0 %v3413, 122
        %v3722 = vpop.permute.xlu0 %3721
        %3723 = vrot.lane.b32.xlu0 %v3414, 122
        %v3724 = vpop.permute.xlu0 %3723
        %3725 = vrot.lane.b32.xlu0 %v3416, 122
        %v3726 = vpop.permute.xlu0 %3725
        %3727 = vrot.lane.b32.xlu0 %v3417, 122
        %v3728 = vpop.permute.xlu0 %3727
        %3729 = vrot.lane.b32.xlu0 %v3418, 122
        %v3730 = vpop.permute.xlu0 %3729
        %v3731 = vsel %vm1000, %v3720, %v3722
        %v3732 = vsel %vm1000, %v3722, %v3724
        %v3733 = vsel %vm1000, %v3726, %v3728
        %v3734 = vsel %vm1000, %v3728, %v3730
        %3739 = vst [vmem:[#allocation3 + $0x1a0] sm:$0xff] %v3731
        %3740 = vst [vmem:[#allocation3 + $0x1a8] sm:$0xff] %v3732
        %3741 = vst [vmem:[#allocation3 + $0x1b0] sm:$0xff] %v3733
        %3742 = vst [vmem:[#allocation3 + $0x1b8] sm:$0xff] %v3734
        %3743 = vrot.lane.b32.xlu0 %v3412, 121
        %v3744 = vpop.permute.xlu0 %3743
        %3745 = vrot.lane.b32.xlu0 %v3413, 121
        %v3746 = vpop.permute.xlu0 %3745
        %3747 = vrot.lane.b32.xlu0 %v3414, 121
        %v3748 = vpop.permute.xlu0 %3747
        %3749 = vrot.lane.b32.xlu0 %v3416, 121
        %v3750 = vpop.permute.xlu0 %3749
        %3751 = vrot.lane.b32.xlu0 %v3417, 121
        %v3752 = vpop.permute.xlu0 %3751
        %3753 = vrot.lane.b32.xlu0 %v3418, 121
        %v3754 = vpop.permute.xlu0 %3753
        %v3755 = vsel %vm1013, %v3744, %v3746
        %v3756 = vsel %vm1013, %v3746, %v3748
        %v3757 = vsel %vm1013, %v3750, %v3752
        %v3758 = vsel %vm1013, %v3752, %v3754
        %3763 = vst [vmem:[#allocation3 + $0x1c0] sm:$0xff] %v3755
        %3764 = vst [vmem:[#allocation3 + $0x1c8] sm:$0xff] %v3756
        %3765 = vst [vmem:[#allocation3 + $0x1d0] sm:$0xff] %v3757
        %3766 = vst [vmem:[#allocation3 + $0x1d8] sm:$0xff] %v3758
        %v3767 = vld [vmem:[#allocation11] sm:$0xff]
        %v3768 = vld [vmem:[#allocation11 + $0x8] sm:$0xff]
        %v3769 = vld [vmem:[#allocation11 + $0x10] sm:$0x3]
        %v3770 = vld [vmem:[#allocation11 + $0x18] sm:$0x3]
        %v3771 = vld [vmem:[#allocation3] sm:$0xff]
        %v3772 = vld [vmem:[#allocation3 + $0x8] sm:$0xff]
        %v3773 = vld [vmem:[#allocation3 + $0x10] sm:$0xff]
        %v3774 = vld [vmem:[#allocation3 + $0x18] sm:$0xff]
        %v3775 = vld [vmem:[#allocation3 + $0x20] sm:$0xff]
        %v3776 = vld [vmem:[#allocation3 + $0x28] sm:$0xff]
        %v3777 = vld [vmem:[#allocation3 + $0x30] sm:$0xff]
        %v3778 = vld [vmem:[#allocation3 + $0x38] sm:$0xff]
        %v3779 = vld [vmem:[#allocation3 + $0x40] sm:$0xff]
        %v3780 = vld [vmem:[#allocation3 + $0x48] sm:$0xff]
        %v3781 = vld [vmem:[#allocation3 + $0x50] sm:$0xff]
        %v3782 = vld [vmem:[#allocation3 + $0x58] sm:$0xff]
        %v3783 = vld [vmem:[#allocation3 + $0x60] sm:$0xff]
        %v3784 = vld [vmem:[#allocation3 + $0x68] sm:$0xff]
        %v3785 = vld [vmem:[#allocation3 + $0x70] sm:$0xff]
        %v3786 = vld [vmem:[#allocation3 + $0x78] sm:$0xff]
        %v3787 = vld [vmem:[#allocation3 + $0x80] sm:$0xff]
        %v3788 = vld [vmem:[#allocation3 + $0x88] sm:$0xff]
        %v3789 = vld [vmem:[#allocation3 + $0x90] sm:$0xff]
        %v3790 = vld [vmem:[#allocation3 + $0x98] sm:$0xff]
        %v3791 = vld [vmem:[#allocation3 + $0xa0] sm:$0xff]
        %v3792 = vld [vmem:[#allocation3 + $0xa8] sm:$0xff]
        %v3793 = vld [vmem:[#allocation3 + $0xb0] sm:$0xff]
        %v3794 = vld [vmem:[#allocation3 + $0xb8] sm:$0xff]
        %v3795 = vld [vmem:[#allocation3 + $0xc0] sm:$0xff]
        %v3796 = vld [vmem:[#allocation3 + $0xc8] sm:$0xff]
        %v3797 = vld [vmem:[#allocation3 + $0xd0] sm:$0xff]
        %v3798 = vld [vmem:[#allocation3 + $0xd8] sm:$0xff]
        %v3799 = vld [vmem:[#allocation3 + $0xe0] sm:$0xff]
        %v3800 = vld [vmem:[#allocation3 + $0xe8] sm:$0xff]
        %v3801 = vld [vmem:[#allocation3 + $0xf0] sm:$0xff]
        %v3802 = vld [vmem:[#allocation3 + $0xf8] sm:$0xff]
        %v3803 = vld [vmem:[#allocation3 + $0x100] sm:$0xff]
        %v3804 = vld [vmem:[#allocation3 + $0x108] sm:$0xff]
        %v3805 = vld [vmem:[#allocation3 + $0x110] sm:$0xff]
        %v3806 = vld [vmem:[#allocation3 + $0x118] sm:$0xff]
        %v3807 = vld [vmem:[#allocation3 + $0x120] sm:$0xff]
        %v3808 = vld [vmem:[#allocation3 + $0x128] sm:$0xff]
        %v3809 = vld [vmem:[#allocation3 + $0x130] sm:$0xff]
        %v3810 = vld [vmem:[#allocation3 + $0x138] sm:$0xff]
        %v3811 = vld [vmem:[#allocation3 + $0x140] sm:$0xff]
        %v3812 = vld [vmem:[#allocation3 + $0x148] sm:$0xff]
        %v3813 = vld [vmem:[#allocation3 + $0x150] sm:$0xff]
        %v3814 = vld [vmem:[#allocation3 + $0x158] sm:$0xff]
        %v3815 = vld [vmem:[#allocation3 + $0x160] sm:$0xff]
        %v3816 = vld [vmem:[#allocation3 + $0x168] sm:$0xff]
        %v3817 = vld [vmem:[#allocation3 + $0x170] sm:$0xff]
        %v3818 = vld [vmem:[#allocation3 + $0x178] sm:$0xff]
        %v3819 = vld [vmem:[#allocation3 + $0x180] sm:$0xff]
        %v3820 = vld [vmem:[#allocation3 + $0x188] sm:$0xff]
        %v3821 = vld [vmem:[#allocation3 + $0x190] sm:$0xff]
        %v3822 = vld [vmem:[#allocation3 + $0x198] sm:$0xff]
        %v3823 = vld [vmem:[#allocation3 + $0x1a0] sm:$0xff]
        %v3824 = vld [vmem:[#allocation3 + $0x1a8] sm:$0xff]
        %v3825 = vld [vmem:[#allocation3 + $0x1b0] sm:$0xff]
        %v3826 = vld [vmem:[#allocation3 + $0x1b8] sm:$0xff]
        %v3827 = vld [vmem:[#allocation3 + $0x1c0] sm:$0xff]
        %v3828 = vld [vmem:[#allocation3 + $0x1c8] sm:$0xff]
        %v3829 = vld [vmem:[#allocation3 + $0x1d0] sm:$0xff]
        %v3830 = vld [vmem:[#allocation3 + $0x1d8] sm:$0xff]
        %v3831 = vld [vmem:[%s8] sm:$0xff]
        %v3832 = vld [vmem:[%s8 + $0x8] sm:$0x3]
        %3834 = vset.pattern.permute.xlu0 0
        %3835 = vperm.xlu0 %3834, %v3831
        %v3836 = vpop.permute.xlu0 %3835
        %3839 = vset.pattern.permute.xlu0 0
        %3840 = vperm.xlu0 %3839, %v3832
        %v3841 = vpop.permute.xlu0 %3840
        %vm3843 = vcmask 916480
        %v3845 = vsel %vm3843, %v3768, 0
        %v3848 = vsel %vm3843, %v3770, 0
        %3850 = vmatprep.subr.mxu0 %v3772
        %3851 = vmatpush1.msra.mxu0 %v3771
        %3852 = vmatprep.subr.mxu0 %v3774
        %3853 = vmatpush1.msra.mxu0 %v3773
        %3854 = vmatprep.subr.mxu0 %v3776
        %3855 = vmatpush1.msra.mxu0 %v3775
        %3856 = vmatprep.subr.mxu0 %v3778
        %3857 = vmatpush1.msra.mxu0 %v3777
        %3858 = vmatprep.subr.mxu0 %v3780
        %3859 = vmatpush1.msra.mxu0 %v3779
        %3860 = vmatprep.subr.mxu0 %v3782
        %3861 = vmatpush1.msra.mxu0 %v3781
        %3862 = vmatprep.subr.mxu0 %v3784
        %3863 = vmatpush1.msra.mxu0 %v3783
        %3864 = vmatprep.subr.mxu0 %v3786
        %3865 = vmatpush1.msra.mxu0 %v3785
        %3866 = vmatprep.subr.mxu0 %v3788
        %3867 = vmatpush1.msra.mxu0 %v3787
        %3868 = vmatprep.subr.mxu0 %v3790
        %3869 = vmatpush1.msra.mxu0 %v3789
        %3870 = vmatprep.subr.mxu0 %v3792
        %3871 = vmatpush1.msra.mxu0 %v3791
        %3872 = vmatprep.subr.mxu0 %v3794
        %3873 = vmatpush1.msra.mxu0 %v3793
        %3874 = vmatprep.subr.mxu0 %v3796
        %3875 = vmatpush1.msra.mxu0 %v3795
        %3876 = vmatprep.subr.mxu0 %v3798
        %3877 = vmatpush1.msra.mxu0 %v3797
        %3878 = vmatprep.subr.mxu0 %v3800
        %3879 = vmatpush1.msra.mxu0 %v3799
        %3880 = vmatprep.subr.mxu0 %v3802
        %3881 = vmatpush1.msra.mxu0 %v3801
        %3882 = vmatprep.subr.mxu0 %v3804
        %3883 = vmatpush1.msra.mxu0 %v3803
        %3884 = vmatprep.subr.mxu0 %v3806
        %3885 = vmatpush1.msra.mxu0 %v3805
        %3886 = vmatprep.subr.mxu0 %v3808
        %3887 = vmatpush1.msra.mxu0 %v3807
        %3888 = vmatprep.subr.mxu0 %v3810
        %3889 = vmatpush1.msra.mxu0 %v3809
        %3890 = vmatprep.subr.mxu0 %v3812
        %3891 = vmatpush1.msra.mxu0 %v3811
        %3892 = vmatprep.subr.mxu0 %v3814
        %3893 = vmatpush1.msra.mxu0 %v3813
        %3894 = vmatprep.subr.mxu0 %v3816
        %3895 = vmatpush1.msra.mxu0 %v3815
        %3896 = vmatprep.subr.mxu0 %v3818
        %3897 = vmatpush1.msra.mxu0 %v3817
        %3898 = vmatprep.subr.mxu0 %v3820
        %3899 = vmatpush1.msra.mxu0 %v3819
        %3900 = vmatprep.subr.mxu0 %v3822
        %3901 = vmatpush1.msra.mxu0 %v3821
        %3902 = vmatprep.subr.mxu0 %v3824
        %3903 = vmatpush1.msra.mxu0 %v3823
        %3904 = vmatprep.subr.mxu0 %v3826
        %3905 = vmatpush1.msra.mxu0 %v3825
        %3906 = vmatprep.subr.mxu0 %v3828
        %3907 = vmatpush1.msra.mxu0 %v3827
        %3908 = vmatprep.subr.mxu0 %v3830
        %3909 = vmatpush1.msra.mxu0 %v3829
        %3910 = vmatprep.subr.mxu0 0.0
        %3911 = vmatpush1.msra.mxu0 0.0
        %3912 = vmatprep.subr.mxu0 0.0
        %3913 = vmatpush1.msra.mxu0 0.0
        %3914 = vmatprep.mubr.f32.mxu0 %v3845
        %3915 = vmatmul.mubr.f32.gmra.mrb[0].mxu0 %v3767
        %v3916 = vpop.f32.mrb[0].mxu0
        %v3917 = vadd.f32 %v3836, %v3916
        %v3918 = vpop.f32.mrb[0].mxu0
        %v3919 = vadd.f32 %v3836, %v3918
        %3920 = vmatprep.mubr.f32.mxu0 %v3848
        %3921 = vmatmul.mubr.f32.gmra.mrb[0].mxu0 %v3769
        %v3922 = vpop.f32.mrb[0].mxu0
        %v3923 = vadd.f32 %v3841, %v3922
        %v3924 = vpop.f32.mrb[0].mxu0
        %v3925 = vadd.f32 %v3841, %v3924
        %3926 = vdwg.mxu0
        %vm3927 = vcmp.ge.f32.partialorder %v3917, 0.0
        %vm3928 = vcmp.ge.f32.partialorder %v3919, 0.0
        %vm3929 = vcmp.ge.f32.partialorder %v3923, 0.0
        %vm3930 = vcmp.ge.f32.partialorder %v3925, 0.0
        %v3931 = vmul.f32 %v3917, 0.01
        %v3932 = vmul.f32 %v3919, 0.01
        %v3933 = vmul.f32 %v3923, 0.01
        %v3934 = vmul.f32 %v3925, 0.01
        %v3935 = vsel %vm3927, %v3917, %v3931
        %v3936 = vsel %vm3928, %v3919, %v3932
        %v3937 = vsel %vm3929, %v3923, %v3933
        %v3938 = vsel %vm3930, %v3925, %v3934
        %3939 = vst [vmem:[#allocation2 + $0x48] sm:$0xff] %v3935
        %3940 = vst [vmem:[#allocation2 + $0x50] sm:$0xff] %v3936
        %3941 = vst [vmem:[#allocation2 + $0x68] sm:$0x3] %v3937
        %3942 = vst [vmem:[#allocation2 + $0x70] sm:$0x3] %v3938
        %v3943 = vld [vmem:[#allocation2] sm:$0xff]
        %v3944 = vld [vmem:[#allocation2 + $0x8] sm:$0xff]
        %v3945 = vld [vmem:[#allocation2 + $0x10] sm:$0xff]
        %v3946 = vld [vmem:[#allocation2 + $0x18] sm:$0xff]
        %v3947 = vld [vmem:[#allocation2 + $0x20] sm:$0xff]
        %v3948 = vld [vmem:[#allocation2 + $0x28] sm:$0xff]
        %v3949 = vld [vmem:[#allocation2 + $0x30] sm:$0xff]
        %v3950 = vld [vmem:[#allocation2 + $0x38] sm:$0xff]
        %v3951 = vld [vmem:[#allocation2 + $0x40] sm:$0xff]
        %v3952 = vld [vmem:[#allocation2 + $0x48] sm:$0xff]
        %v3953 = vld [vmem:[#allocation2 + $0x50] sm:$0xff]
        %v3954 = vld [vmem:[#allocation2 + $0x58] sm:$0xff]
        %v3955 = vld [vmem:[#allocation2 + $0x60] sm:$0xff]
        %v3956 = vld [vmem:[#allocation2 + $0x68] sm:$0xff]
        %v3957 = vld [vmem:[#allocation2 + $0x70] sm:$0xff]
        %v3958 = vld [vmem:[#allocation2 + $0x78] sm:$0xff]
        %3971 = vrot.lane.b32.xlu0 %v3943, 7
        %v3972 = vpop.permute.xlu0 %3971
        %3973 = vrot.lane.b32.xlu0 %v3944, 7
        %v3974 = vpop.permute.xlu0 %3973
        %3975 = vrot.lane.b32.xlu0 %v3945, 7
        %v3976 = vpop.permute.xlu0 %3975
        %3977 = vrot.lane.b32.xlu0 %v3947, 7
        %v3978 = vpop.permute.xlu0 %3977
        %3979 = vrot.lane.b32.xlu0 %v3948, 7
        %v3980 = vpop.permute.xlu0 %3979
        %3981 = vrot.lane.b32.xlu0 %v3949, 7
        %v3982 = vpop.permute.xlu0 %3981
        %3983 = vrot.lane.b32.xlu0 %v3951, 7
        %v3984 = vpop.permute.xlu0 %3983
        %3985 = vrot.lane.b32.xlu0 %v3952, 7
        %v3986 = vpop.permute.xlu0 %3985
        %3987 = vrot.lane.b32.xlu0 %v3953, 7
        %v3988 = vpop.permute.xlu0 %3987
        %3989 = vrot.lane.b32.xlu0 %v3955, 7
        %v3990 = vpop.permute.xlu0 %3989
        %3991 = vrot.lane.b32.xlu0 %v3956, 7
        %v3992 = vpop.permute.xlu0 %3991
        %3993 = vrot.lane.b32.xlu0 %v3957, 7
        %v3994 = vpop.permute.xlu0 %3993
        %v3995 = vsel %vm841, %v3972, %v3974
        %v3996 = vsel %vm841, %v3974, %v3976
        %v3997 = vsel %vm841, %v3978, %v3980
        %v3998 = vsel %vm841, %v3980, %v3982
        %v3999 = vsel %vm841, %v3984, %v3986
        %v4000 = vsel %vm841, %v3986, %v3988
        %v4001 = vsel %vm841, %v3990, %v3992
        %v4002 = vsel %vm841, %v3992, %v3994
        %4011 = vst [vmem:[#allocation3] sm:$0xff] %v3995
        %4012 = vst [vmem:[#allocation3 + $0x8] sm:$0xff] %v3996
        %4013 = vst [vmem:[#allocation3 + $0x10] sm:$0xff] %v3997
        %4014 = vst [vmem:[#allocation3 + $0x18] sm:$0xff] %v3998
        %4015 = vst [vmem:[#allocation3 + $0x20] sm:$0xff] %v3999
        %4016 = vst [vmem:[#allocation3 + $0x28] sm:$0xff] %v4000
        %4017 = vst [vmem:[#allocation3 + $0x30] sm:$0xff] %v4001
        %4018 = vst [vmem:[#allocation3 + $0x38] sm:$0xff] %v4002
        %4019 = vrot.lane.b32.xlu0 %v3943, 6
        %v4020 = vpop.permute.xlu0 %4019
        %4021 = vrot.lane.b32.xlu0 %v3944, 6
        %v4022 = vpop.permute.xlu0 %4021
        %4023 = vrot.lane.b32.xlu0 %v3945, 6
        %v4024 = vpop.permute.xlu0 %4023
        %4025 = vrot.lane.b32.xlu0 %v3947, 6
        %v4026 = vpop.permute.xlu0 %4025
        %4027 = vrot.lane.b32.xlu0 %v3948, 6
        %v4028 = vpop.permute.xlu0 %4027
        %4029 = vrot.lane.b32.xlu0 %v3949, 6
        %v4030 = vpop.permute.xlu0 %4029
        %4031 = vrot.lane.b32.xlu0 %v3951, 6
        %v4032 = vpop.permute.xlu0 %4031
        %4033 = vrot.lane.b32.xlu0 %v3952, 6
        %v4034 = vpop.permute.xlu0 %4033
        %4035 = vrot.lane.b32.xlu0 %v3953, 6
        %v4036 = vpop.permute.xlu0 %4035
        %4037 = vrot.lane.b32.xlu0 %v3955, 6
        %v4038 = vpop.permute.xlu0 %4037
        %4039 = vrot.lane.b32.xlu0 %v3956, 6
        %v4040 = vpop.permute.xlu0 %4039
        %4041 = vrot.lane.b32.xlu0 %v3957, 6
        %v4042 = vpop.permute.xlu0 %4041
        %v4043 = vsel %vm854, %v4020, %v4022
        %v4044 = vsel %vm854, %v4022, %v4024
        %v4045 = vsel %vm854, %v4026, %v4028
        %v4046 = vsel %vm854, %v4028, %v4030
        %v4047 = vsel %vm854, %v4032, %v4034
        %v4048 = vsel %vm854, %v4034, %v4036
        %v4049 = vsel %vm854, %v4038, %v4040
        %v4050 = vsel %vm854, %v4040, %v4042
        %4059 = vst [vmem:[#allocation3 + $0x40] sm:$0xff] %v4043
        %4060 = vst [vmem:[#allocation3 + $0x48] sm:$0xff] %v4044
        %4061 = vst [vmem:[#allocation3 + $0x50] sm:$0xff] %v4045
        %4062 = vst [vmem:[#allocation3 + $0x58] sm:$0xff] %v4046
        %4063 = vst [vmem:[#allocation3 + $0x60] sm:$0xff] %v4047
        %4064 = vst [vmem:[#allocation3 + $0x68] sm:$0xff] %v4048
        %4065 = vst [vmem:[#allocation3 + $0x70] sm:$0xff] %v4049
        %4066 = vst [vmem:[#allocation3 + $0x78] sm:$0xff] %v4050
        %4067 = vrot.lane.b32.xlu0 %v3943, 5
        %v4068 = vpop.permute.xlu0 %4067
        %4069 = vrot.lane.b32.xlu0 %v3944, 5
        %v4070 = vpop.permute.xlu0 %4069
        %4071 = vrot.lane.b32.xlu0 %v3945, 5
        %v4072 = vpop.permute.xlu0 %4071
        %4073 = vrot.lane.b32.xlu0 %v3947, 5
        %v4074 = vpop.permute.xlu0 %4073
        %4075 = vrot.lane.b32.xlu0 %v3948, 5
        %v4076 = vpop.permute.xlu0 %4075
        %4077 = vrot.lane.b32.xlu0 %v3949, 5
        %v4078 = vpop.permute.xlu0 %4077
        %4079 = vrot.lane.b32.xlu0 %v3951, 5
        %v4080 = vpop.permute.xlu0 %4079
        %4081 = vrot.lane.b32.xlu0 %v3952, 5
        %v4082 = vpop.permute.xlu0 %4081
        %4083 = vrot.lane.b32.xlu0 %v3953, 5
        %v4084 = vpop.permute.xlu0 %4083
        %4085 = vrot.lane.b32.xlu0 %v3955, 5
        %v4086 = vpop.permute.xlu0 %4085
        %4087 = vrot.lane.b32.xlu0 %v3956, 5
        %v4088 = vpop.permute.xlu0 %4087
        %4089 = vrot.lane.b32.xlu0 %v3957, 5
        %v4090 = vpop.permute.xlu0 %4089
        %v4091 = vsel %vm867, %v4068, %v4070
        %v4092 = vsel %vm867, %v4070, %v4072
        %v4093 = vsel %vm867, %v4074, %v4076
        %v4094 = vsel %vm867, %v4076, %v4078
        %v4095 = vsel %vm867, %v4080, %v4082
        %v4096 = vsel %vm867, %v4082, %v4084
        %v4097 = vsel %vm867, %v4086, %v4088
        %v4098 = vsel %vm867, %v4088, %v4090
        %4107 = vst [vmem:[#allocation3 + $0x80] sm:$0xff] %v4091
        %4108 = vst [vmem:[#allocation3 + $0x88] sm:$0xff] %v4092
        %4109 = vst [vmem:[#allocation3 + $0x90] sm:$0xff] %v4093
        %4110 = vst [vmem:[#allocation3 + $0x98] sm:$0xff] %v4094
        %4111 = vst [vmem:[#allocation3 + $0xa0] sm:$0xff] %v4095
        %4112 = vst [vmem:[#allocation3 + $0xa8] sm:$0xff] %v4096
        %4113 = vst [vmem:[#allocation3 + $0xb0] sm:$0xff] %v4097
        %4114 = vst [vmem:[#allocation3 + $0xb8] sm:$0xff] %v4098
        %4115 = vrot.lane.b32.xlu0 %v3943, 4
        %v4116 = vpop.permute.xlu0 %4115
        %4117 = vrot.lane.b32.xlu0 %v3944, 4
        %v4118 = vpop.permute.xlu0 %4117
        %4119 = vrot.lane.b32.xlu0 %v3945, 4
        %v4120 = vpop.permute.xlu0 %4119
        %4121 = vrot.lane.b32.xlu0 %v3947, 4
        %v4122 = vpop.permute.xlu0 %4121
        %4123 = vrot.lane.b32.xlu0 %v3948, 4
        %v4124 = vpop.permute.xlu0 %4123
        %4125 = vrot.lane.b32.xlu0 %v3949, 4
        %v4126 = vpop.permute.xlu0 %4125
        %4127 = vrot.lane.b32.xlu0 %v3951, 4
        %v4128 = vpop.permute.xlu0 %4127
        %4129 = vrot.lane.b32.xlu0 %v3952, 4
        %v4130 = vpop.permute.xlu0 %4129
        %4131 = vrot.lane.b32.xlu0 %v3953, 4
        %v4132 = vpop.permute.xlu0 %4131
        %4133 = vrot.lane.b32.xlu0 %v3955, 4
        %v4134 = vpop.permute.xlu0 %4133
        %4135 = vrot.lane.b32.xlu0 %v3956, 4
        %v4136 = vpop.permute.xlu0 %4135
        %4137 = vrot.lane.b32.xlu0 %v3957, 4
        %v4138 = vpop.permute.xlu0 %4137
        %v4139 = vsel %vm880, %v4116, %v4118
        %v4140 = vsel %vm880, %v4118, %v4120
        %v4141 = vsel %vm880, %v4122, %v4124
        %v4142 = vsel %vm880, %v4124, %v4126
        %v4143 = vsel %vm880, %v4128, %v4130
        %v4144 = vsel %vm880, %v4130, %v4132
        %v4145 = vsel %vm880, %v4134, %v4136
        %v4146 = vsel %vm880, %v4136, %v4138
        %4155 = vst [vmem:[#allocation3 + $0xc0] sm:$0xff] %v4139
        %4156 = vst [vmem:[#allocation3 + $0xc8] sm:$0xff] %v4140
        %4157 = vst [vmem:[#allocation3 + $0xd0] sm:$0xff] %v4141
        %4158 = vst [vmem:[#allocation3 + $0xd8] sm:$0xff] %v4142
        %4159 = vst [vmem:[#allocation3 + $0xe0] sm:$0xff] %v4143
        %4160 = vst [vmem:[#allocation3 + $0xe8] sm:$0xff] %v4144
        %4161 = vst [vmem:[#allocation3 + $0xf0] sm:$0xff] %v4145
        %4162 = vst [vmem:[#allocation3 + $0xf8] sm:$0xff] %v4146
        %4163 = vrot.lane.b32.xlu0 %v3943, 3
        %v4164 = vpop.permute.xlu0 %4163
        %4165 = vrot.lane.b32.xlu0 %v3944, 3
        %v4166 = vpop.permute.xlu0 %4165
        %4167 = vrot.lane.b32.xlu0 %v3945, 3
        %v4168 = vpop.permute.xlu0 %4167
        %4169 = vrot.lane.b32.xlu0 %v3947, 3
        %v4170 = vpop.permute.xlu0 %4169
        %4171 = vrot.lane.b32.xlu0 %v3948, 3
        %v4172 = vpop.permute.xlu0 %4171
        %4173 = vrot.lane.b32.xlu0 %v3949, 3
        %v4174 = vpop.permute.xlu0 %4173
        %4175 = vrot.lane.b32.xlu0 %v3951, 3
        %v4176 = vpop.permute.xlu0 %4175
        %4177 = vrot.lane.b32.xlu0 %v3952, 3
        %v4178 = vpop.permute.xlu0 %4177
        %4179 = vrot.lane.b32.xlu0 %v3953, 3
        %v4180 = vpop.permute.xlu0 %4179
        %4181 = vrot.lane.b32.xlu0 %v3955, 3
        %v4182 = vpop.permute.xlu0 %4181
        %4183 = vrot.lane.b32.xlu0 %v3956, 3
        %v4184 = vpop.permute.xlu0 %4183
        %4185 = vrot.lane.b32.xlu0 %v3957, 3
        %v4186 = vpop.permute.xlu0 %4185
        %v4187 = vsel %vm893, %v4164, %v4166
        %v4188 = vsel %vm893, %v4166, %v4168
        %v4189 = vsel %vm893, %v4170, %v4172
        %v4190 = vsel %vm893, %v4172, %v4174
        %v4191 = vsel %vm893, %v4176, %v4178
        %v4192 = vsel %vm893, %v4178, %v4180
        %v4193 = vsel %vm893, %v4182, %v4184
        %v4194 = vsel %vm893, %v4184, %v4186
        %4203 = vst [vmem:[#allocation3 + $0x100] sm:$0xff] %v4187
        %4204 = vst [vmem:[#allocation3 + $0x108] sm:$0xff] %v4188
        %4205 = vst [vmem:[#allocation3 + $0x110] sm:$0xff] %v4189
        %4206 = vst [vmem:[#allocation3 + $0x118] sm:$0xff] %v4190
        %4207 = vst [vmem:[#allocation3 + $0x120] sm:$0xff] %v4191
        %4208 = vst [vmem:[#allocation3 + $0x128] sm:$0xff] %v4192
        %4209 = vst [vmem:[#allocation3 + $0x130] sm:$0xff] %v4193
        %4210 = vst [vmem:[#allocation3 + $0x138] sm:$0xff] %v4194
        %4211 = vrot.lane.b32.xlu0 %v3943, 2
        %v4212 = vpop.permute.xlu0 %4211
        %4213 = vrot.lane.b32.xlu0 %v3944, 2
        %v4214 = vpop.permute.xlu0 %4213
        %4215 = vrot.lane.b32.xlu0 %v3945, 2
        %v4216 = vpop.permute.xlu0 %4215
        %4217 = vrot.lane.b32.xlu0 %v3947, 2
        %v4218 = vpop.permute.xlu0 %4217
        %4219 = vrot.lane.b32.xlu0 %v3948, 2
        %v4220 = vpop.permute.xlu0 %4219
        %4221 = vrot.lane.b32.xlu0 %v3949, 2
        %v4222 = vpop.permute.xlu0 %4221
        %4223 = vrot.lane.b32.xlu0 %v3951, 2
        %v4224 = vpop.permute.xlu0 %4223
        %4225 = vrot.lane.b32.xlu0 %v3952, 2
        %v4226 = vpop.permute.xlu0 %4225
        %4227 = vrot.lane.b32.xlu0 %v3953, 2
        %v4228 = vpop.permute.xlu0 %4227
        %4229 = vrot.lane.b32.xlu0 %v3955, 2
        %v4230 = vpop.permute.xlu0 %4229
        %4231 = vrot.lane.b32.xlu0 %v3956, 2
        %v4232 = vpop.permute.xlu0 %4231
        %4233 = vrot.lane.b32.xlu0 %v3957, 2
        %v4234 = vpop.permute.xlu0 %4233
        %v4235 = vsel %vm906, %v4212, %v4214
        %v4236 = vsel %vm906, %v4214, %v4216
        %v4237 = vsel %vm906, %v4218, %v4220
        %v4238 = vsel %vm906, %v4220, %v4222
        %v4239 = vsel %vm906, %v4224, %v4226
        %v4240 = vsel %vm906, %v4226, %v4228
        %v4241 = vsel %vm906, %v4230, %v4232
        %v4242 = vsel %vm906, %v4232, %v4234
        %4251 = vst [vmem:[#allocation3 + $0x140] sm:$0xff] %v4235
        %4252 = vst [vmem:[#allocation3 + $0x148] sm:$0xff] %v4236
        %4253 = vst [vmem:[#allocation3 + $0x150] sm:$0xff] %v4237
        %4254 = vst [vmem:[#allocation3 + $0x158] sm:$0xff] %v4238
        %4255 = vst [vmem:[#allocation3 + $0x160] sm:$0xff] %v4239
        %4256 = vst [vmem:[#allocation3 + $0x168] sm:$0xff] %v4240
        %4257 = vst [vmem:[#allocation3 + $0x170] sm:$0xff] %v4241
        %4258 = vst [vmem:[#allocation3 + $0x178] sm:$0xff] %v4242
        %4259 = vrot.lane.b32.xlu0 %v3943, 1
        %v4260 = vpop.permute.xlu0 %4259
        %4261 = vrot.lane.b32.xlu0 %v3944, 1
        %v4262 = vpop.permute.xlu0 %4261
        %4263 = vrot.lane.b32.xlu0 %v3945, 1
        %v4264 = vpop.permute.xlu0 %4263
        %4265 = vrot.lane.b32.xlu0 %v3947, 1
        %v4266 = vpop.permute.xlu0 %4265
        %4267 = vrot.lane.b32.xlu0 %v3948, 1
        %v4268 = vpop.permute.xlu0 %4267
        %4269 = vrot.lane.b32.xlu0 %v3949, 1
        %v4270 = vpop.permute.xlu0 %4269
        %4271 = vrot.lane.b32.xlu0 %v3951, 1
        %v4272 = vpop.permute.xlu0 %4271
        %4273 = vrot.lane.b32.xlu0 %v3952, 1
        %v4274 = vpop.permute.xlu0 %4273
        %4275 = vrot.lane.b32.xlu0 %v3953, 1
        %v4276 = vpop.permute.xlu0 %4275
        %4277 = vrot.lane.b32.xlu0 %v3955, 1
        %v4278 = vpop.permute.xlu0 %4277
        %4279 = vrot.lane.b32.xlu0 %v3956, 1
        %v4280 = vpop.permute.xlu0 %4279
        %4281 = vrot.lane.b32.xlu0 %v3957, 1
        %v4282 = vpop.permute.xlu0 %4281
        %v4283 = vsel %vm919, %v4260, %v4262
        %v4284 = vsel %vm919, %v4262, %v4264
        %v4285 = vsel %vm919, %v4266, %v4268
        %v4286 = vsel %vm919, %v4268, %v4270
        %v4287 = vsel %vm919, %v4272, %v4274
        %v4288 = vsel %vm919, %v4274, %v4276
        %v4289 = vsel %vm919, %v4278, %v4280
        %v4290 = vsel %vm919, %v4280, %v4282
        %4299 = vst [vmem:[#allocation3 + $0x180] sm:$0xff] %v4283
        %4300 = vst [vmem:[#allocation3 + $0x188] sm:$0xff] %v4284
        %4301 = vst [vmem:[#allocation3 + $0x190] sm:$0xff] %v4285
        %4302 = vst [vmem:[#allocation3 + $0x198] sm:$0xff] %v4286
        %4303 = vst [vmem:[#allocation3 + $0x1a0] sm:$0xff] %v4287
        %4304 = vst [vmem:[#allocation3 + $0x1a8] sm:$0xff] %v4288
        %4305 = vst [vmem:[#allocation3 + $0x1b0] sm:$0xff] %v4289
        %4306 = vst [vmem:[#allocation3 + $0x1b8] sm:$0xff] %v4290
        %4307 = vst [vmem:[#allocation3 + $0x1c0] sm:$0xff] %v3944
        %4308 = vst [vmem:[#allocation3 + $0x1c8] sm:$0xff] %v3945
        %4309 = vst [vmem:[#allocation3 + $0x1d0] sm:$0xff] %v3948
        %4310 = vst [vmem:[#allocation3 + $0x1d8] sm:$0xff] %v3949
        %4311 = vst [vmem:[#allocation3 + $0x1e0] sm:$0xff] %v3952
        %4312 = vst [vmem:[#allocation3 + $0x1e8] sm:$0xff] %v3953
        %4313 = vst [vmem:[#allocation3 + $0x1f0] sm:$0xff] %v3956
        %4314 = vst [vmem:[#allocation3 + $0x1f8] sm:$0xff] %v3957
        %4319 = vrot.lane.b32.xlu0 %v3944, 127
        %v4320 = vpop.permute.xlu0 %4319
        %4321 = vrot.lane.b32.xlu0 %v3945, 127
        %v4322 = vpop.permute.xlu0 %4321
        %4323 = vrot.lane.b32.xlu0 %v3946, 127
        %v4324 = vpop.permute.xlu0 %4323
        %4325 = vrot.lane.b32.xlu0 %v3948, 127
        %v4326 = vpop.permute.xlu0 %4325
        %4327 = vrot.lane.b32.xlu0 %v3949, 127
        %v4328 = vpop.permute.xlu0 %4327
        %4329 = vrot.lane.b32.xlu0 %v3950, 127
        %v4330 = vpop.permute.xlu0 %4329
        %4331 = vrot.lane.b32.xlu0 %v3952, 127
        %v4332 = vpop.permute.xlu0 %4331
        %4333 = vrot.lane.b32.xlu0 %v3953, 127
        %v4334 = vpop.permute.xlu0 %4333
        %4335 = vrot.lane.b32.xlu0 %v3954, 127
        %v4336 = vpop.permute.xlu0 %4335
        %4337 = vrot.lane.b32.xlu0 %v3956, 127
        %v4338 = vpop.permute.xlu0 %4337
        %4339 = vrot.lane.b32.xlu0 %v3957, 127
        %v4340 = vpop.permute.xlu0 %4339
        %4341 = vrot.lane.b32.xlu0 %v3958, 127
        %v4342 = vpop.permute.xlu0 %4341
        %v4343 = vsel %vm935, %v4320, %v4322
        %v4344 = vsel %vm935, %v4322, %v4324
        %v4345 = vsel %vm935, %v4326, %v4328
        %v4346 = vsel %vm935, %v4328, %v4330
        %v4347 = vsel %vm935, %v4332, %v4334
        %v4348 = vsel %vm935, %v4334, %v4336
        %v4349 = vsel %vm935, %v4338, %v4340
        %v4350 = vsel %vm935, %v4340, %v4342
        %4359 = vst [vmem:[#allocation3 + $0x200] sm:$0xff] %v4343
        %4360 = vst [vmem:[#allocation3 + $0x208] sm:$0xff] %v4344
        %4361 = vst [vmem:[#allocation3 + $0x210] sm:$0xff] %v4345
        %4362 = vst [vmem:[#allocation3 + $0x218] sm:$0xff] %v4346
        %4363 = vst [vmem:[#allocation3 + $0x220] sm:$0xff] %v4347
        %4364 = vst [vmem:[#allocation3 + $0x228] sm:$0xff] %v4348
        %4365 = vst [vmem:[#allocation3 + $0x230] sm:$0xff] %v4349
        %4366 = vst [vmem:[#allocation3 + $0x238] sm:$0xff] %v4350
        %4367 = vrot.lane.b32.xlu0 %v3944, 126
        %v4368 = vpop.permute.xlu0 %4367
        %4369 = vrot.lane.b32.xlu0 %v3945, 126
        %v4370 = vpop.permute.xlu0 %4369
        %4371 = vrot.lane.b32.xlu0 %v3946, 126
        %v4372 = vpop.permute.xlu0 %4371
        %4373 = vrot.lane.b32.xlu0 %v3948, 126
        %v4374 = vpop.permute.xlu0 %4373
        %4375 = vrot.lane.b32.xlu0 %v3949, 126
        %v4376 = vpop.permute.xlu0 %4375
        %4377 = vrot.lane.b32.xlu0 %v3950, 126
        %v4378 = vpop.permute.xlu0 %4377
        %4379 = vrot.lane.b32.xlu0 %v3952, 126
        %v4380 = vpop.permute.xlu0 %4379
        %4381 = vrot.lane.b32.xlu0 %v3953, 126
        %v4382 = vpop.permute.xlu0 %4381
        %4383 = vrot.lane.b32.xlu0 %v3954, 126
        %v4384 = vpop.permute.xlu0 %4383
        %4385 = vrot.lane.b32.xlu0 %v3956, 126
        %v4386 = vpop.permute.xlu0 %4385
        %4387 = vrot.lane.b32.xlu0 %v3957, 126
        %v4388 = vpop.permute.xlu0 %4387
        %4389 = vrot.lane.b32.xlu0 %v3958, 126
        %v4390 = vpop.permute.xlu0 %4389
        %v4391 = vsel %vm948, %v4368, %v4370
        %v4392 = vsel %vm948, %v4370, %v4372
        %v4393 = vsel %vm948, %v4374, %v4376
        %v4394 = vsel %vm948, %v4376, %v4378
        %v4395 = vsel %vm948, %v4380, %v4382
        %v4396 = vsel %vm948, %v4382, %v4384
        %v4397 = vsel %vm948, %v4386, %v4388
        %v4398 = vsel %vm948, %v4388, %v4390
        %4407 = vst [vmem:[#allocation3 + $0x240] sm:$0xff] %v4391
        %4408 = vst [vmem:[#allocation3 + $0x248] sm:$0xff] %v4392
        %4409 = vst [vmem:[#allocation3 + $0x250] sm:$0xff] %v4393
        %4410 = vst [vmem:[#allocation3 + $0x258] sm:$0xff] %v4394
        %4411 = vst [vmem:[#allocation3 + $0x260] sm:$0xff] %v4395
        %4412 = vst [vmem:[#allocation3 + $0x268] sm:$0xff] %v4396
        %4413 = vst [vmem:[#allocation3 + $0x270] sm:$0xff] %v4397
        %4414 = vst [vmem:[#allocation3 + $0x278] sm:$0xff] %v4398
        %4415 = vrot.lane.b32.xlu0 %v3944, 125
        %v4416 = vpop.permute.xlu0 %4415
        %4417 = vrot.lane.b32.xlu0 %v3945, 125
        %v4418 = vpop.permute.xlu0 %4417
        %4419 = vrot.lane.b32.xlu0 %v3946, 125
        %v4420 = vpop.permute.xlu0 %4419
        %4421 = vrot.lane.b32.xlu0 %v3948, 125
        %v4422 = vpop.permute.xlu0 %4421
        %4423 = vrot.lane.b32.xlu0 %v3949, 125
        %v4424 = vpop.permute.xlu0 %4423
        %4425 = vrot.lane.b32.xlu0 %v3950, 125
        %v4426 = vpop.permute.xlu0 %4425
        %4427 = vrot.lane.b32.xlu0 %v3952, 125
        %v4428 = vpop.permute.xlu0 %4427
        %4429 = vrot.lane.b32.xlu0 %v3953, 125
        %v4430 = vpop.permute.xlu0 %4429
        %4431 = vrot.lane.b32.xlu0 %v3954, 125
        %v4432 = vpop.permute.xlu0 %4431
        %4433 = vrot.lane.b32.xlu0 %v3956, 125
        %v4434 = vpop.permute.xlu0 %4433
        %4435 = vrot.lane.b32.xlu0 %v3957, 125
        %v4436 = vpop.permute.xlu0 %4435
        %4437 = vrot.lane.b32.xlu0 %v3958, 125
        %v4438 = vpop.permute.xlu0 %4437
        %v4439 = vsel %vm961, %v4416, %v4418
        %v4440 = vsel %vm961, %v4418, %v4420
        %v4441 = vsel %vm961, %v4422, %v4424
        %v4442 = vsel %vm961, %v4424, %v4426
        %v4443 = vsel %vm961, %v4428, %v4430
        %v4444 = vsel %vm961, %v4430, %v4432
        %v4445 = vsel %vm961, %v4434, %v4436
        %v4446 = vsel %vm961, %v4436, %v4438
        %4455 = vst [vmem:[#allocation3 + $0x280] sm:$0xff] %v4439
        %4456 = vst [vmem:[#allocation3 + $0x288] sm:$0xff] %v4440
        %4457 = vst [vmem:[#allocation3 + $0x290] sm:$0xff] %v4441
        %4458 = vst [vmem:[#allocation3 + $0x298] sm:$0xff] %v4442
        %4459 = vst [vmem:[#allocation3 + $0x2a0] sm:$0xff] %v4443
        %4460 = vst [vmem:[#allocation3 + $0x2a8] sm:$0xff] %v4444
        %4461 = vst [vmem:[#allocation3 + $0x2b0] sm:$0xff] %v4445
        %4462 = vst [vmem:[#allocation3 + $0x2b8] sm:$0xff] %v4446
        %4463 = vrot.lane.b32.xlu0 %v3944, 124
        %v4464 = vpop.permute.xlu0 %4463
        %4465 = vrot.lane.b32.xlu0 %v3945, 124
        %v4466 = vpop.permute.xlu0 %4465
        %4467 = vrot.lane.b32.xlu0 %v3946, 124
        %v4468 = vpop.permute.xlu0 %4467
        %4469 = vrot.lane.b32.xlu0 %v3948, 124
        %v4470 = vpop.permute.xlu0 %4469
        %4471 = vrot.lane.b32.xlu0 %v3949, 124
        %v4472 = vpop.permute.xlu0 %4471
        %4473 = vrot.lane.b32.xlu0 %v3950, 124
        %v4474 = vpop.permute.xlu0 %4473
        %4475 = vrot.lane.b32.xlu0 %v3952, 124
        %v4476 = vpop.permute.xlu0 %4475
        %4477 = vrot.lane.b32.xlu0 %v3953, 124
        %v4478 = vpop.permute.xlu0 %4477
        %4479 = vrot.lane.b32.xlu0 %v3954, 124
        %v4480 = vpop.permute.xlu0 %4479
        %4481 = vrot.lane.b32.xlu0 %v3956, 124
        %v4482 = vpop.permute.xlu0 %4481
        %4483 = vrot.lane.b32.xlu0 %v3957, 124
        %v4484 = vpop.permute.xlu0 %4483
        %4485 = vrot.lane.b32.xlu0 %v3958, 124
        %v4486 = vpop.permute.xlu0 %4485
        %v4487 = vsel %vm974, %v4464, %v4466
        %v4488 = vsel %vm974, %v4466, %v4468
        %v4489 = vsel %vm974, %v4470, %v4472
        %v4490 = vsel %vm974, %v4472, %v4474
        %v4491 = vsel %vm974, %v4476, %v4478
        %v4492 = vsel %vm974, %v4478, %v4480
        %v4493 = vsel %vm974, %v4482, %v4484
        %v4494 = vsel %vm974, %v4484, %v4486
        %4503 = vst [vmem:[#allocation3 + $0x2c0] sm:$0xff] %v4487
        %4504 = vst [vmem:[#allocation3 + $0x2c8] sm:$0xff] %v4488
        %4505 = vst [vmem:[#allocation3 + $0x2d0] sm:$0xff] %v4489
        %4506 = vst [vmem:[#allocation3 + $0x2d8] sm:$0xff] %v4490
        %4507 = vst [vmem:[#allocation3 + $0x2e0] sm:$0xff] %v4491
        %4508 = vst [vmem:[#allocation3 + $0x2e8] sm:$0xff] %v4492
        %4509 = vst [vmem:[#allocation3 + $0x2f0] sm:$0xff] %v4493
        %4510 = vst [vmem:[#allocation3 + $0x2f8] sm:$0xff] %v4494
        %4511 = vrot.lane.b32.xlu0 %v3944, 123
        %v4512 = vpop.permute.xlu0 %4511
        %4513 = vrot.lane.b32.xlu0 %v3945, 123
        %v4514 = vpop.permute.xlu0 %4513
        %4515 = vrot.lane.b32.xlu0 %v3946, 123
        %v4516 = vpop.permute.xlu0 %4515
        %4517 = vrot.lane.b32.xlu0 %v3948, 123
        %v4518 = vpop.permute.xlu0 %4517
        %4519 = vrot.lane.b32.xlu0 %v3949, 123
        %v4520 = vpop.permute.xlu0 %4519
        %4521 = vrot.lane.b32.xlu0 %v3950, 123
        %v4522 = vpop.permute.xlu0 %4521
        %4523 = vrot.lane.b32.xlu0 %v3952, 123
        %v4524 = vpop.permute.xlu0 %4523
        %4525 = vrot.lane.b32.xlu0 %v3953, 123
        %v4526 = vpop.permute.xlu0 %4525
        %4527 = vrot.lane.b32.xlu0 %v3954, 123
        %v4528 = vpop.permute.xlu0 %4527
        %4529 = vrot.lane.b32.xlu0 %v3956, 123
        %v4530 = vpop.permute.xlu0 %4529
        %4531 = vrot.lane.b32.xlu0 %v3957, 123
        %v4532 = vpop.permute.xlu0 %4531
        %4533 = vrot.lane.b32.xlu0 %v3958, 123
        %v4534 = vpop.permute.xlu0 %4533
        %v4535 = vsel %vm987, %v4512, %v4514
        %v4536 = vsel %vm987, %v4514, %v4516
        %v4537 = vsel %vm987, %v4518, %v4520
        %v4538 = vsel %vm987, %v4520, %v4522
        %v4539 = vsel %vm987, %v4524, %v4526
        %v4540 = vsel %vm987, %v4526, %v4528
        %v4541 = vsel %vm987, %v4530, %v4532
        %v4542 = vsel %vm987, %v4532, %v4534
        %4551 = vst [vmem:[#allocation3 + $0x300] sm:$0xff] %v4535
        %4552 = vst [vmem:[#allocation3 + $0x308] sm:$0xff] %v4536
        %4553 = vst [vmem:[#allocation3 + $0x310] sm:$0xff] %v4537
        %4554 = vst [vmem:[#allocation3 + $0x318] sm:$0xff] %v4538
        %4555 = vst [vmem:[#allocation3 + $0x320] sm:$0xff] %v4539
        %4556 = vst [vmem:[#allocation3 + $0x328] sm:$0xff] %v4540
        %4557 = vst [vmem:[#allocation3 + $0x330] sm:$0xff] %v4541
        %4558 = vst [vmem:[#allocation3 + $0x338] sm:$0xff] %v4542
        %4559 = vrot.lane.b32.xlu0 %v3944, 122
        %v4560 = vpop.permute.xlu0 %4559
        %4561 = vrot.lane.b32.xlu0 %v3945, 122
        %v4562 = vpop.permute.xlu0 %4561
        %4563 = vrot.lane.b32.xlu0 %v3946, 122
        %v4564 = vpop.permute.xlu0 %4563
        %4565 = vrot.lane.b32.xlu0 %v3948, 122
        %v4566 = vpop.permute.xlu0 %4565
        %4567 = vrot.lane.b32.xlu0 %v3949, 122
        %v4568 = vpop.permute.xlu0 %4567
        %4569 = vrot.lane.b32.xlu0 %v3950, 122
        %v4570 = vpop.permute.xlu0 %4569
        %4571 = vrot.lane.b32.xlu0 %v3952, 122
        %v4572 = vpop.permute.xlu0 %4571
        %4573 = vrot.lane.b32.xlu0 %v3953, 122
        %v4574 = vpop.permute.xlu0 %4573
        %4575 = vrot.lane.b32.xlu0 %v3954, 122
        %v4576 = vpop.permute.xlu0 %4575
        %4577 = vrot.lane.b32.xlu0 %v3956, 122
        %v4578 = vpop.permute.xlu0 %4577
        %4579 = vrot.lane.b32.xlu0 %v3957, 122
        %v4580 = vpop.permute.xlu0 %4579
        %4581 = vrot.lane.b32.xlu0 %v3958, 122
        %v4582 = vpop.permute.xlu0 %4581
        %v4583 = vsel %vm1000, %v4560, %v4562
        %v4584 = vsel %vm1000, %v4562, %v4564
        %v4585 = vsel %vm1000, %v4566, %v4568
        %v4586 = vsel %vm1000, %v4568, %v4570
        %v4587 = vsel %vm1000, %v4572, %v4574
        %v4588 = vsel %vm1000, %v4574, %v4576
        %v4589 = vsel %vm1000, %v4578, %v4580
        %v4590 = vsel %vm1000, %v4580, %v4582
        %4599 = vst [vmem:[#allocation3 + $0x340] sm:$0xff] %v4583
        %4600 = vst [vmem:[#allocation3 + $0x348] sm:$0xff] %v4584
        %4601 = vst [vmem:[#allocation3 + $0x350] sm:$0xff] %v4585
        %4602 = vst [vmem:[#allocation3 + $0x358] sm:$0xff] %v4586
        %4603 = vst [vmem:[#allocation3 + $0x360] sm:$0xff] %v4587
        %4604 = vst [vmem:[#allocation3 + $0x368] sm:$0xff] %v4588
        %4605 = vst [vmem:[#allocation3 + $0x370] sm:$0xff] %v4589
        %4606 = vst [vmem:[#allocation3 + $0x378] sm:$0xff] %v4590
        %4607 = vrot.lane.b32.xlu0 %v3944, 121
        %v4608 = vpop.permute.xlu0 %4607
        %4609 = vrot.lane.b32.xlu0 %v3945, 121
        %v4610 = vpop.permute.xlu0 %4609
        %4611 = vrot.lane.b32.xlu0 %v3946, 121
        %v4612 = vpop.permute.xlu0 %4611
        %4613 = vrot.lane.b32.xlu0 %v3948, 121
        %v4614 = vpop.permute.xlu0 %4613
        %4615 = vrot.lane.b32.xlu0 %v3949, 121
        %v4616 = vpop.permute.xlu0 %4615
        %4617 = vrot.lane.b32.xlu0 %v3950, 121
        %v4618 = vpop.permute.xlu0 %4617
        %4619 = vrot.lane.b32.xlu0 %v3952, 121
        %v4620 = vpop.permute.xlu0 %4619
        %4621 = vrot.lane.b32.xlu0 %v3953, 121
        %v4622 = vpop.permute.xlu0 %4621
        %4623 = vrot.lane.b32.xlu0 %v3954, 121
        %v4624 = vpop.permute.xlu0 %4623
        %4625 = vrot.lane.b32.xlu0 %v3956, 121
        %v4626 = vpop.permute.xlu0 %4625
        %4627 = vrot.lane.b32.xlu0 %v3957, 121
        %v4628 = vpop.permute.xlu0 %4627
        %4629 = vrot.lane.b32.xlu0 %v3958, 121
        %v4630 = vpop.permute.xlu0 %4629
        %v4631 = vsel %vm1013, %v4608, %v4610
        %v4632 = vsel %vm1013, %v4610, %v4612
        %v4633 = vsel %vm1013, %v4614, %v4616
        %v4634 = vsel %vm1013, %v4616, %v4618
        %v4635 = vsel %vm1013, %v4620, %v4622
        %v4636 = vsel %vm1013, %v4622, %v4624
        %v4637 = vsel %vm1013, %v4626, %v4628
        %v4638 = vsel %vm1013, %v4628, %v4630
        %4647 = vst [vmem:[#allocation3 + $0x380] sm:$0xff] %v4631
        %4648 = vst [vmem:[#allocation3 + $0x388] sm:$0xff] %v4632
        %4649 = vst [vmem:[#allocation3 + $0x390] sm:$0xff] %v4633
        %4650 = vst [vmem:[#allocation3 + $0x398] sm:$0xff] %v4634
        %4651 = vst [vmem:[#allocation3 + $0x3a0] sm:$0xff] %v4635
        %4652 = vst [vmem:[#allocation3 + $0x3a8] sm:$0xff] %v4636
        %4653 = vst [vmem:[#allocation3 + $0x3b0] sm:$0xff] %v4637
        %4654 = vst [vmem:[#allocation3 + $0x3b8] sm:$0xff] %v4638
        %v4655 = vld [vmem:[%s9] sm:$0xff]
        %v4656 = vld [vmem:[%s9 + $0x8] sm:$0xff]
        %v4657 = vld [vmem:[%s9 + $0x10] sm:$0xff]
        %v4658 = vld [vmem:[%s9 + $0x18] sm:$0xff]
        %v4659 = vld [vmem:[%s9 + $0x20] sm:$0x3]
        %v4660 = vld [vmem:[%s9 + $0x28] sm:$0x3]
        %v4661 = vld [vmem:[%s9 + $0x30] sm:$0x3]
        %v4662 = vld [vmem:[%s9 + $0x38] sm:$0x3]
        %v4663 = vld [vmem:[#allocation3] sm:$0xff]
        %v4664 = vld [vmem:[#allocation3 + $0x8] sm:$0xff]
        %v4665 = vld [vmem:[#allocation3 + $0x10] sm:$0xff]
        %v4666 = vld [vmem:[#allocation3 + $0x18] sm:$0xff]
        %v4667 = vld [vmem:[#allocation3 + $0x20] sm:$0xff]
        %v4668 = vld [vmem:[#allocation3 + $0x28] sm:$0xff]
        %v4669 = vld [vmem:[#allocation3 + $0x30] sm:$0xff]
        %v4670 = vld [vmem:[#allocation3 + $0x38] sm:$0xff]
        %v4671 = vld [vmem:[#allocation3 + $0x40] sm:$0xff]
        %v4672 = vld [vmem:[#allocation3 + $0x48] sm:$0xff]
        %v4673 = vld [vmem:[#allocation3 + $0x50] sm:$0xff]
        %v4674 = vld [vmem:[#allocation3 + $0x58] sm:$0xff]
        %v4675 = vld [vmem:[#allocation3 + $0x60] sm:$0xff]
        %v4676 = vld [vmem:[#allocation3 + $0x68] sm:$0xff]
        %v4677 = vld [vmem:[#allocation3 + $0x70] sm:$0xff]
        %v4678 = vld [vmem:[#allocation3 + $0x78] sm:$0xff]
        %v4679 = vld [vmem:[#allocation3 + $0x80] sm:$0xff]
        %v4680 = vld [vmem:[#allocation3 + $0x88] sm:$0xff]
        %v4681 = vld [vmem:[#allocation3 + $0x90] sm:$0xff]
        %v4682 = vld [vmem:[#allocation3 + $0x98] sm:$0xff]
        %v4683 = vld [vmem:[#allocation3 + $0xa0] sm:$0xff]
        %v4684 = vld [vmem:[#allocation3 + $0xa8] sm:$0xff]
        %v4685 = vld [vmem:[#allocation3 + $0xb0] sm:$0xff]
        %v4686 = vld [vmem:[#allocation3 + $0xb8] sm:$0xff]
        %v4687 = vld [vmem:[#allocation3 + $0xc0] sm:$0xff]
        %v4688 = vld [vmem:[#allocation3 + $0xc8] sm:$0xff]
        %v4689 = vld [vmem:[#allocation3 + $0xd0] sm:$0xff]
        %v4690 = vld [vmem:[#allocation3 + $0xd8] sm:$0xff]
        %v4691 = vld [vmem:[#allocation3 + $0xe0] sm:$0xff]
        %v4692 = vld [vmem:[#allocation3 + $0xe8] sm:$0xff]
        %v4693 = vld [vmem:[#allocation3 + $0xf0] sm:$0xff]
        %v4694 = vld [vmem:[#allocation3 + $0xf8] sm:$0xff]
        %v4695 = vld [vmem:[#allocation3 + $0x100] sm:$0xff]
        %v4696 = vld [vmem:[#allocation3 + $0x108] sm:$0xff]
        %v4697 = vld [vmem:[#allocation3 + $0x110] sm:$0xff]
        %v4698 = vld [vmem:[#allocation3 + $0x118] sm:$0xff]
        %v4699 = vld [vmem:[#allocation3 + $0x120] sm:$0xff]
        %v4700 = vld [vmem:[#allocation3 + $0x128] sm:$0xff]
        %v4701 = vld [vmem:[#allocation3 + $0x130] sm:$0xff]
        %v4702 = vld [vmem:[#allocation3 + $0x138] sm:$0xff]
        %v4703 = vld [vmem:[#allocation3 + $0x140] sm:$0xff]
        %v4704 = vld [vmem:[#allocation3 + $0x148] sm:$0xff]
        %v4705 = vld [vmem:[#allocation3 + $0x150] sm:$0xff]
        %v4706 = vld [vmem:[#allocation3 + $0x158] sm:$0xff]
        %v4707 = vld [vmem:[#allocation3 + $0x160] sm:$0xff]
        %v4708 = vld [vmem:[#allocation3 + $0x168] sm:$0xff]
        %v4709 = vld [vmem:[#allocation3 + $0x170] sm:$0xff]
        %v4710 = vld [vmem:[#allocation3 + $0x178] sm:$0xff]
        %v4711 = vld [vmem:[#allocation3 + $0x180] sm:$0xff]
        %v4712 = vld [vmem:[#allocation3 + $0x188] sm:$0xff]
        %v4713 = vld [vmem:[#allocation3 + $0x190] sm:$0xff]
        %v4714 = vld [vmem:[#allocation3 + $0x198] sm:$0xff]
        %v4715 = vld [vmem:[#allocation3 + $0x1a0] sm:$0xff]
        %v4716 = vld [vmem:[#allocation3 + $0x1a8] sm:$0xff]
        %v4717 = vld [vmem:[#allocation3 + $0x1b0] sm:$0xff]
        %v4718 = vld [vmem:[#allocation3 + $0x1b8] sm:$0xff]
        %v4719 = vld [vmem:[#allocation3 + $0x1c0] sm:$0xff]
        %v4720 = vld [vmem:[#allocation3 + $0x1c8] sm:$0xff]
        %v4721 = vld [vmem:[#allocation3 + $0x1d0] sm:$0xff]
        %v4722 = vld [vmem:[#allocation3 + $0x1d8] sm:$0xff]
        %v4723 = vld [vmem:[#allocation3 + $0x1e0] sm:$0xff]
        %v4724 = vld [vmem:[#allocation3 + $0x1e8] sm:$0xff]
        %v4725 = vld [vmem:[#allocation3 + $0x1f0] sm:$0xff]
        %v4726 = vld [vmem:[#allocation3 + $0x1f8] sm:$0xff]
        %v4727 = vld [vmem:[#allocation3 + $0x200] sm:$0xff]
        %v4728 = vld [vmem:[#allocation3 + $0x208] sm:$0xff]
        %v4729 = vld [vmem:[#allocation3 + $0x210] sm:$0xff]
        %v4730 = vld [vmem:[#allocation3 + $0x218] sm:$0xff]
        %v4731 = vld [vmem:[#allocation3 + $0x220] sm:$0xff]
        %v4732 = vld [vmem:[#allocation3 + $0x228] sm:$0xff]
        %v4733 = vld [vmem:[#allocation3 + $0x230] sm:$0xff]
        %v4734 = vld [vmem:[#allocation3 + $0x238] sm:$0xff]
        %v4735 = vld [vmem:[#allocation3 + $0x240] sm:$0xff]
        %v4736 = vld [vmem:[#allocation3 + $0x248] sm:$0xff]
        %v4737 = vld [vmem:[#allocation3 + $0x250] sm:$0xff]
        %v4738 = vld [vmem:[#allocation3 + $0x258] sm:$0xff]
        %v4739 = vld [vmem:[#allocation3 + $0x260] sm:$0xff]
        %v4740 = vld [vmem:[#allocation3 + $0x268] sm:$0xff]
        %v4741 = vld [vmem:[#allocation3 + $0x270] sm:$0xff]
        %v4742 = vld [vmem:[#allocation3 + $0x278] sm:$0xff]
        %v4743 = vld [vmem:[#allocation3 + $0x280] sm:$0xff]
        %v4744 = vld [vmem:[#allocation3 + $0x288] sm:$0xff]
        %v4745 = vld [vmem:[#allocation3 + $0x290] sm:$0xff]
        %v4746 = vld [vmem:[#allocation3 + $0x298] sm:$0xff]
        %v4747 = vld [vmem:[#allocation3 + $0x2a0] sm:$0xff]
        %v4748 = vld [vmem:[#allocation3 + $0x2a8] sm:$0xff]
        %v4749 = vld [vmem:[#allocation3 + $0x2b0] sm:$0xff]
        %v4750 = vld [vmem:[#allocation3 + $0x2b8] sm:$0xff]
        %v4751 = vld [vmem:[#allocation3 + $0x2c0] sm:$0xff]
        %v4752 = vld [vmem:[#allocation3 + $0x2c8] sm:$0xff]
        %v4753 = vld [vmem:[#allocation3 + $0x2d0] sm:$0xff]
        %v4754 = vld [vmem:[#allocation3 + $0x2d8] sm:$0xff]
        %v4755 = vld [vmem:[#allocation3 + $0x2e0] sm:$0xff]
        %v4756 = vld [vmem:[#allocation3 + $0x2e8] sm:$0xff]
        %v4757 = vld [vmem:[#allocation3 + $0x2f0] sm:$0xff]
        %v4758 = vld [vmem:[#allocation3 + $0x2f8] sm:$0xff]
        %v4759 = vld [vmem:[#allocation3 + $0x300] sm:$0xff]
        %v4760 = vld [vmem:[#allocation3 + $0x308] sm:$0xff]
        %v4761 = vld [vmem:[#allocation3 + $0x310] sm:$0xff]
        %v4762 = vld [vmem:[#allocation3 + $0x318] sm:$0xff]
        %v4763 = vld [vmem:[#allocation3 + $0x320] sm:$0xff]
        %v4764 = vld [vmem:[#allocation3 + $0x328] sm:$0xff]
        %v4765 = vld [vmem:[#allocation3 + $0x330] sm:$0xff]
        %v4766 = vld [vmem:[#allocation3 + $0x338] sm:$0xff]
        %v4767 = vld [vmem:[#allocation3 + $0x340] sm:$0xff]
        %v4768 = vld [vmem:[#allocation3 + $0x348] sm:$0xff]
        %v4769 = vld [vmem:[#allocation3 + $0x350] sm:$0xff]
        %v4770 = vld [vmem:[#allocation3 + $0x358] sm:$0xff]
        %v4771 = vld [vmem:[#allocation3 + $0x360] sm:$0xff]
        %v4772 = vld [vmem:[#allocation3 + $0x368] sm:$0xff]
        %v4773 = vld [vmem:[#allocation3 + $0x370] sm:$0xff]
        %v4774 = vld [vmem:[#allocation3 + $0x378] sm:$0xff]
        %v4775 = vld [vmem:[#allocation3 + $0x380] sm:$0xff]
        %v4776 = vld [vmem:[#allocation3 + $0x388] sm:$0xff]
        %v4777 = vld [vmem:[#allocation3 + $0x390] sm:$0xff]
        %v4778 = vld [vmem:[#allocation3 + $0x398] sm:$0xff]
        %v4779 = vld [vmem:[#allocation3 + $0x3a0] sm:$0xff]
        %v4780 = vld [vmem:[#allocation3 + $0x3a8] sm:$0xff]
        %v4781 = vld [vmem:[#allocation3 + $0x3b0] sm:$0xff]
        %v4782 = vld [vmem:[#allocation3 + $0x3b8] sm:$0xff]
        %v4783 = vld [vmem:[%s10] sm:$0xff]
        %v4784 = vld [vmem:[%s10 + $0x8] sm:$0x3]
        %4786 = vset.pattern.permute.xlu0 0
        %4787 = vperm.xlu0 %4786, %v4783
        %v4788 = vpop.permute.xlu0 %4787
        %4791 = vset.pattern.permute.xlu0 0
        %4792 = vperm.xlu0 %4791, %v4784
        %v4793 = vpop.permute.xlu0 %4792
        %vm4795 = vcmask 785408
        %v4797 = vsel %vm4795, %v4658, 0
        %v4800 = vsel %vm4795, %v4662, 0
        %4802 = vmatprep.subr.mxu0 %v4664
        %4803 = vmatpush1.msra.mxu0 %v4663
        %4804 = vmatprep.subr.mxu0 %v4666
        %4805 = vmatpush1.msra.mxu0 %v4665
        %4806 = vmatprep.subr.mxu0 %v4668
        %4807 = vmatpush1.msra.mxu0 %v4667
        %4808 = vmatprep.subr.mxu0 %v4670
        %4809 = vmatpush1.msra.mxu0 %v4669
        %4810 = vmatprep.subr.mxu0 %v4672
        %4811 = vmatpush1.msra.mxu0 %v4671
        %4812 = vmatprep.subr.mxu0 %v4674
        %4813 = vmatpush1.msra.mxu0 %v4673
        %4814 = vmatprep.subr.mxu0 %v4676
        %4815 = vmatpush1.msra.mxu0 %v4675
        %4816 = vmatprep.subr.mxu0 %v4678
        %4817 = vmatpush1.msra.mxu0 %v4677
        %4818 = vmatprep.subr.mxu0 %v4680
        %4819 = vmatpush1.msra.mxu0 %v4679
        %4820 = vmatprep.subr.mxu0 %v4682
        %4821 = vmatpush1.msra.mxu0 %v4681
        %4822 = vmatprep.subr.mxu0 %v4684
        %4823 = vmatpush1.msra.mxu0 %v4683
        %4824 = vmatprep.subr.mxu0 %v4686
        %4825 = vmatpush1.msra.mxu0 %v4685
        %4826 = vmatprep.subr.mxu0 %v4688
        %4827 = vmatpush1.msra.mxu0 %v4687
        %4828 = vmatprep.subr.mxu0 %v4690
        %4829 = vmatpush1.msra.mxu0 %v4689
        %4830 = vmatprep.subr.mxu0 %v4692
        %4831 = vmatpush1.msra.mxu0 %v4691
        %4832 = vmatprep.subr.mxu0 %v4694
        %4833 = vmatpush1.msra.mxu0 %v4693
        %4834 = vmatprep.subr.mxu0 %v4696
        %4835 = vmatpush1.msra.mxu0 %v4695
        %4836 = vmatprep.subr.mxu0 %v4698
        %4837 = vmatpush1.msra.mxu0 %v4697
        %4838 = vmatprep.subr.mxu0 %v4700
        %4839 = vmatpush1.msra.mxu0 %v4699
        %4840 = vmatprep.subr.mxu0 %v4702
        %4841 = vmatpush1.msra.mxu0 %v4701
        %4842 = vmatprep.subr.mxu0 %v4704
        %4843 = vmatpush1.msra.mxu0 %v4703
        %4844 = vmatprep.subr.mxu0 %v4706
        %4845 = vmatpush1.msra.mxu0 %v4705
        %4846 = vmatprep.subr.mxu0 %v4708
        %4847 = vmatpush1.msra.mxu0 %v4707
        %4848 = vmatprep.subr.mxu0 %v4710
        %4849 = vmatpush1.msra.mxu0 %v4709
        %4850 = vmatprep.subr.mxu0 %v4712
        %4851 = vmatpush1.msra.mxu0 %v4711
        %4852 = vmatprep.subr.mxu0 %v4714
        %4853 = vmatpush1.msra.mxu0 %v4713
        %4854 = vmatprep.subr.mxu0 %v4716
        %4855 = vmatpush1.msra.mxu0 %v4715
        %4856 = vmatprep.subr.mxu0 %v4718
        %4857 = vmatpush1.msra.mxu0 %v4717
        %4858 = vmatprep.subr.mxu0 %v4720
        %4859 = vmatpush1.msra.mxu0 %v4719
        %4860 = vmatprep.subr.mxu0 %v4722
        %4861 = vmatpush1.msra.mxu0 %v4721
        %4862 = vmatprep.subr.mxu0 %v4724
        %4863 = vmatpush1.msra.mxu0 %v4723
        %4864 = vmatprep.subr.mxu0 %v4726
        %4865 = vmatpush1.msra.mxu0 %v4725
        %4866 = vmatprep.mubr.f32.mxu0 %v4656
        %4867 = vmatmul.mubr.f32.gmra.mrb[0].mxu0 %v4655
        %v4868 = vpop.f32.mrb[0].mxu0
        %v4869 = vadd.f32 %v4788, %v4868
        %v4870 = vpop.f32.mrb[0].mxu0
        %v4871 = vadd.f32 %v4788, %v4870
        %4872 = vmatprep.mubr.f32.mxu0 %v4660
        %4873 = vmatmul.mubr.f32.gmra.mrb[0].mxu0 %v4659
        %v4874 = vpop.f32.mrb[0].mxu0
        %v4875 = vadd.f32 %v4793, %v4874
        %v4876 = vpop.f32.mrb[0].mxu0
        %v4877 = vadd.f32 %v4793, %v4876
        %4878 = vdwg.mxu0
        %4879 = vmatprep.subr.mxu0 %v4728
        %4880 = vmatpush1.msra.mxu0 %v4727
        %4881 = vmatprep.subr.mxu0 %v4730
        %4882 = vmatpush1.msra.mxu0 %v4729
        %4883 = vmatprep.subr.mxu0 %v4732
        %4884 = vmatpush1.msra.mxu0 %v4731
        %4885 = vmatprep.subr.mxu0 %v4734
        %4886 = vmatpush1.msra.mxu0 %v4733
        %4887 = vmatprep.subr.mxu0 %v4736
        %4888 = vmatpush1.msra.mxu0 %v4735
        %4889 = vmatprep.subr.mxu0 %v4738
        %4890 = vmatpush1.msra.mxu0 %v4737
        %4891 = vmatprep.subr.mxu0 %v4740
        %4892 = vmatpush1.msra.mxu0 %v4739
        %4893 = vmatprep.subr.mxu0 %v4742
        %4894 = vmatpush1.msra.mxu0 %v4741
        %4895 = vmatprep.subr.mxu0 %v4744
        %4896 = vmatpush1.msra.mxu0 %v4743
        %4897 = vmatprep.subr.mxu0 %v4746
        %4898 = vmatpush1.msra.mxu0 %v4745
        %4899 = vmatprep.subr.mxu0 %v4748
        %4900 = vmatpush1.msra.mxu0 %v4747
        %4901 = vmatprep.subr.mxu0 %v4750
        %4902 = vmatpush1.msra.mxu0 %v4749
        %4903 = vmatprep.subr.mxu0 %v4752
        %4904 = vmatpush1.msra.mxu0 %v4751
        %4905 = vmatprep.subr.mxu0 %v4754
        %4906 = vmatpush1.msra.mxu0 %v4753
        %4907 = vmatprep.subr.mxu0 %v4756
        %4908 = vmatpush1.msra.mxu0 %v4755
        %4909 = vmatprep.subr.mxu0 %v4758
        %4910 = vmatpush1.msra.mxu0 %v4757
        %4911 = vmatprep.subr.mxu0 %v4760
        %4912 = vmatpush1.msra.mxu0 %v4759
        %4913 = vmatprep.subr.mxu0 %v4762
        %4914 = vmatpush1.msra.mxu0 %v4761
        %4915 = vmatprep.subr.mxu0 %v4764
        %4916 = vmatpush1.msra.mxu0 %v4763
        %4917 = vmatprep.subr.mxu0 %v4766
        %4918 = vmatpush1.msra.mxu0 %v4765
        %4919 = vmatprep.subr.mxu0 %v4768
        %4920 = vmatpush1.msra.mxu0 %v4767
        %4921 = vmatprep.subr.mxu0 %v4770
        %4922 = vmatpush1.msra.mxu0 %v4769
        %4923 = vmatprep.subr.mxu0 %v4772
        %4924 = vmatpush1.msra.mxu0 %v4771
        %4925 = vmatprep.subr.mxu0 %v4774
        %4926 = vmatpush1.msra.mxu0 %v4773
        %4927 = vmatprep.subr.mxu0 %v4776
        %4928 = vmatpush1.msra.mxu0 %v4775
        %4929 = vmatprep.subr.mxu0 %v4778
        %4930 = vmatpush1.msra.mxu0 %v4777
        %4931 = vmatprep.subr.mxu0 %v4780
        %4932 = vmatpush1.msra.mxu0 %v4779
        %4933 = vmatprep.subr.mxu0 %v4782
        %4934 = vmatpush1.msra.mxu0 %v4781
        %4935 = vmatprep.subr.mxu0 0.0
        %4936 = vmatpush1.msra.mxu0 0.0
        %4937 = vmatprep.subr.mxu0 0.0
        %4938 = vmatpush1.msra.mxu0 0.0
        %4939 = vmatprep.subr.mxu0 0.0
        %4940 = vmatpush1.msra.mxu0 0.0
        %4941 = vmatprep.subr.mxu0 0.0
        %4942 = vmatpush1.msra.mxu0 0.0
        %4943 = vmatprep.mubr.f32.mxu0 %v4797
        %4944 = vmatmul.mubr.f32.gmra.mrb[0].mxu0 %v4657
        %v4945 = vpop.f32.mrb[0].mxu0
        %v4946 = vadd.f32 %v4869, %v4945
        %v4947 = vpop.f32.mrb[0].mxu0
        %v4948 = vadd.f32 %v4871, %v4947
        %4949 = vmatprep.mubr.f32.mxu0 %v4800
        %4950 = vmatmul.mubr.f32.gmra.mrb[0].mxu0 %v4661
        %v4951 = vpop.f32.mrb[0].mxu0
        %v4952 = vadd.f32 %v4875, %v4951
        %v4953 = vpop.f32.mrb[0].mxu0
        %v4954 = vadd.f32 %v4877, %v4953
        %4955 = vdwg.mxu0
        %vm4956 = vcmp.ge.f32.partialorder %v4946, 0.0
        %vm4957 = vcmp.ge.f32.partialorder %v4948, 0.0
        %vm4958 = vcmp.ge.f32.partialorder %v4952, 0.0
        %vm4959 = vcmp.ge.f32.partialorder %v4954, 0.0
        %v4960 = vmul.f32 %v4946, 0.01
        %v4961 = vmul.f32 %v4948, 0.01
        %v4962 = vmul.f32 %v4952, 0.01
        %v4963 = vmul.f32 %v4954, 0.01
        %v4964 = vsel %vm4956, %v4946, %v4960
        %v4965 = vsel %vm4957, %v4948, %v4961
        %v4966 = vsel %vm4958, %v4952, %v4962
        %v4967 = vsel %vm4959, %v4954, %v4963
        %4968 = vst [vmem:[#allocation2 + $0x8] sm:$0xff] %v4964
        %4969 = vst [vmem:[#allocation2 + $0x10] sm:$0xff] %v4965
        %4970 = vst [vmem:[#allocation2 + $0x28] sm:$0x3] %v4966
        %4971 = vst [vmem:[#allocation2 + $0x30] sm:$0x3] %v4967
        %v4972 = vld [vmem:[#allocation2] sm:$0xff]
        %v4973 = vld [vmem:[#allocation2 + $0x8] sm:$0xff]
        %v4974 = vld [vmem:[#allocation2 + $0x10] sm:$0xff]
        %v4975 = vld [vmem:[#allocation2 + $0x18] sm:$0xff]
        %v4976 = vld [vmem:[#allocation2 + $0x20] sm:$0xff]
        %v4977 = vld [vmem:[#allocation2 + $0x28] sm:$0xff]
        %v4978 = vld [vmem:[#allocation2 + $0x30] sm:$0xff]
        %v4979 = vld [vmem:[#allocation2 + $0x38] sm:$0xff]
        %4986 = vrot.lane.b32.xlu0 %v4972, 7
        %v4987 = vpop.permute.xlu0 %4986
        %4988 = vrot.lane.b32.xlu0 %v4973, 7
        %v4989 = vpop.permute.xlu0 %4988
        %4990 = vrot.lane.b32.xlu0 %v4974, 7
        %v4991 = vpop.permute.xlu0 %4990
        %4992 = vrot.lane.b32.xlu0 %v4976, 7
        %v4993 = vpop.permute.xlu0 %4992
        %4994 = vrot.lane.b32.xlu0 %v4977, 7
        %v4995 = vpop.permute.xlu0 %4994
        %4996 = vrot.lane.b32.xlu0 %v4978, 7
        %v4997 = vpop.permute.xlu0 %4996
        %v4998 = vsel %vm841, %v4987, %v4989
        %v4999 = vsel %vm841, %v4989, %v4991
        %v5000 = vsel %vm841, %v4993, %v4995
        %v5001 = vsel %vm841, %v4995, %v4997
        %5006 = vst [vmem:[#allocation3] sm:$0xff] %v4998
        %5007 = vst [vmem:[#allocation3 + $0x8] sm:$0xff] %v4999
        %5008 = vst [vmem:[#allocation3 + $0x10] sm:$0xff] %v5000
        %5009 = vst [vmem:[#allocation3 + $0x18] sm:$0xff] %v5001
        %5010 = vrot.lane.b32.xlu0 %v4972, 6
        %v5011 = vpop.permute.xlu0 %5010
        %5012 = vrot.lane.b32.xlu0 %v4973, 6
        %v5013 = vpop.permute.xlu0 %5012
        %5014 = vrot.lane.b32.xlu0 %v4974, 6
        %v5015 = vpop.permute.xlu0 %5014
        %5016 = vrot.lane.b32.xlu0 %v4976, 6
        %v5017 = vpop.permute.xlu0 %5016
        %5018 = vrot.lane.b32.xlu0 %v4977, 6
        %v5019 = vpop.permute.xlu0 %5018
        %5020 = vrot.lane.b32.xlu0 %v4978, 6
        %v5021 = vpop.permute.xlu0 %5020
        %v5022 = vsel %vm854, %v5011, %v5013
        %v5023 = vsel %vm854, %v5013, %v5015
        %v5024 = vsel %vm854, %v5017, %v5019
        %v5025 = vsel %vm854, %v5019, %v5021
        %5030 = vst [vmem:[#allocation3 + $0x20] sm:$0xff] %v5022
        %5031 = vst [vmem:[#allocation3 + $0x28] sm:$0xff] %v5023
        %5032 = vst [vmem:[#allocation3 + $0x30] sm:$0xff] %v5024
        %5033 = vst [vmem:[#allocation3 + $0x38] sm:$0xff] %v5025
        %5034 = vrot.lane.b32.xlu0 %v4972, 5
        %v5035 = vpop.permute.xlu0 %5034
        %5036 = vrot.lane.b32.xlu0 %v4973, 5
        %v5037 = vpop.permute.xlu0 %5036
        %5038 = vrot.lane.b32.xlu0 %v4974, 5
        %v5039 = vpop.permute.xlu0 %5038
        %5040 = vrot.lane.b32.xlu0 %v4976, 5
        %v5041 = vpop.permute.xlu0 %5040
        %5042 = vrot.lane.b32.xlu0 %v4977, 5
        %v5043 = vpop.permute.xlu0 %5042
        %5044 = vrot.lane.b32.xlu0 %v4978, 5
        %v5045 = vpop.permute.xlu0 %5044
        %v5046 = vsel %vm867, %v5035, %v5037
        %v5047 = vsel %vm867, %v5037, %v5039
        %v5048 = vsel %vm867, %v5041, %v5043
        %v5049 = vsel %vm867, %v5043, %v5045
        %5054 = vst [vmem:[#allocation3 + $0x40] sm:$0xff] %v5046
        %5055 = vst [vmem:[#allocation3 + $0x48] sm:$0xff] %v5047
        %5056 = vst [vmem:[#allocation3 + $0x50] sm:$0xff] %v5048
        %5057 = vst [vmem:[#allocation3 + $0x58] sm:$0xff] %v5049
        %5058 = vrot.lane.b32.xlu0 %v4972, 4
        %v5059 = vpop.permute.xlu0 %5058
        %5060 = vrot.lane.b32.xlu0 %v4973, 4
        %v5061 = vpop.permute.xlu0 %5060
        %5062 = vrot.lane.b32.xlu0 %v4974, 4
        %v5063 = vpop.permute.xlu0 %5062
        %5064 = vrot.lane.b32.xlu0 %v4976, 4
        %v5065 = vpop.permute.xlu0 %5064
        %5066 = vrot.lane.b32.xlu0 %v4977, 4
        %v5067 = vpop.permute.xlu0 %5066
        %5068 = vrot.lane.b32.xlu0 %v4978, 4
        %v5069 = vpop.permute.xlu0 %5068
        %v5070 = vsel %vm880, %v5059, %v5061
        %v5071 = vsel %vm880, %v5061, %v5063
        %v5072 = vsel %vm880, %v5065, %v5067
        %v5073 = vsel %vm880, %v5067, %v5069
        %5078 = vst [vmem:[#allocation3 + $0x60] sm:$0xff] %v5070
        %5079 = vst [vmem:[#allocation3 + $0x68] sm:$0xff] %v5071
        %5080 = vst [vmem:[#allocation3 + $0x70] sm:$0xff] %v5072
        %5081 = vst [vmem:[#allocation3 + $0x78] sm:$0xff] %v5073
        %5082 = vrot.lane.b32.xlu0 %v4972, 3
        %v5083 = vpop.permute.xlu0 %5082
        %5084 = vrot.lane.b32.xlu0 %v4973, 3
        %v5085 = vpop.permute.xlu0 %5084
        %5086 = vrot.lane.b32.xlu0 %v4974, 3
        %v5087 = vpop.permute.xlu0 %5086
        %5088 = vrot.lane.b32.xlu0 %v4976, 3
        %v5089 = vpop.permute.xlu0 %5088
        %5090 = vrot.lane.b32.xlu0 %v4977, 3
        %v5091 = vpop.permute.xlu0 %5090
        %5092 = vrot.lane.b32.xlu0 %v4978, 3
        %v5093 = vpop.permute.xlu0 %5092
        %v5094 = vsel %vm893, %v5083, %v5085
        %v5095 = vsel %vm893, %v5085, %v5087
        %v5096 = vsel %vm893, %v5089, %v5091
        %v5097 = vsel %vm893, %v5091, %v5093
        %5102 = vst [vmem:[#allocation3 + $0x80] sm:$0xff] %v5094
        %5103 = vst [vmem:[#allocation3 + $0x88] sm:$0xff] %v5095
        %5104 = vst [vmem:[#allocation3 + $0x90] sm:$0xff] %v5096
        %5105 = vst [vmem:[#allocation3 + $0x98] sm:$0xff] %v5097
        %5106 = vrot.lane.b32.xlu0 %v4972, 2
        %v5107 = vpop.permute.xlu0 %5106
        %5108 = vrot.lane.b32.xlu0 %v4973, 2
        %v5109 = vpop.permute.xlu0 %5108
        %5110 = vrot.lane.b32.xlu0 %v4974, 2
        %v5111 = vpop.permute.xlu0 %5110
        %5112 = vrot.lane.b32.xlu0 %v4976, 2
        %v5113 = vpop.permute.xlu0 %5112
        %5114 = vrot.lane.b32.xlu0 %v4977, 2
        %v5115 = vpop.permute.xlu0 %5114
        %5116 = vrot.lane.b32.xlu0 %v4978, 2
        %v5117 = vpop.permute.xlu0 %5116
        %v5118 = vsel %vm906, %v5107, %v5109
        %v5119 = vsel %vm906, %v5109, %v5111
        %v5120 = vsel %vm906, %v5113, %v5115
        %v5121 = vsel %vm906, %v5115, %v5117
        %5126 = vst [vmem:[#allocation3 + $0xa0] sm:$0xff] %v5118
        %5127 = vst [vmem:[#allocation3 + $0xa8] sm:$0xff] %v5119
        %5128 = vst [vmem:[#allocation3 + $0xb0] sm:$0xff] %v5120
        %5129 = vst [vmem:[#allocation3 + $0xb8] sm:$0xff] %v5121
        %5130 = vrot.lane.b32.xlu0 %v4972, 1
        %v5131 = vpop.permute.xlu0 %5130
        %5132 = vrot.lane.b32.xlu0 %v4973, 1
        %v5133 = vpop.permute.xlu0 %5132
        %5134 = vrot.lane.b32.xlu0 %v4974, 1
        %v5135 = vpop.permute.xlu0 %5134
        %5136 = vrot.lane.b32.xlu0 %v4976, 1
        %v5137 = vpop.permute.xlu0 %5136
        %5138 = vrot.lane.b32.xlu0 %v4977, 1
        %v5139 = vpop.permute.xlu0 %5138
        %5140 = vrot.lane.b32.xlu0 %v4978, 1
        %v5141 = vpop.permute.xlu0 %5140
        %v5142 = vsel %vm919, %v5131, %v5133
        %v5143 = vsel %vm919, %v5133, %v5135
        %v5144 = vsel %vm919, %v5137, %v5139
        %v5145 = vsel %vm919, %v5139, %v5141
        %5150 = vst [vmem:[#allocation3 + $0xc0] sm:$0xff] %v5142
        %5151 = vst [vmem:[#allocation3 + $0xc8] sm:$0xff] %v5143
        %5152 = vst [vmem:[#allocation3 + $0xd0] sm:$0xff] %v5144
        %5153 = vst [vmem:[#allocation3 + $0xd8] sm:$0xff] %v5145
        %5154 = vst [vmem:[#allocation3 + $0xe0] sm:$0xff] %v4973
        %5155 = vst [vmem:[#allocation3 + $0xe8] sm:$0xff] %v4974
        %5156 = vst [vmem:[#allocation3 + $0xf0] sm:$0xff] %v4977
        %5157 = vst [vmem:[#allocation3 + $0xf8] sm:$0xff] %v4978
        %5160 = vrot.lane.b32.xlu0 %v4973, 127
        %v5161 = vpop.permute.xlu0 %5160
        %5162 = vrot.lane.b32.xlu0 %v4974, 127
        %v5163 = vpop.permute.xlu0 %5162
        %5164 = vrot.lane.b32.xlu0 %v4975, 127
        %v5165 = vpop.permute.xlu0 %5164
        %5166 = vrot.lane.b32.xlu0 %v4977, 127
        %v5167 = vpop.permute.xlu0 %5166
        %5168 = vrot.lane.b32.xlu0 %v4978, 127
        %v5169 = vpop.permute.xlu0 %5168
        %5170 = vrot.lane.b32.xlu0 %v4979, 127
        %v5171 = vpop.permute.xlu0 %5170
        %v5172 = vsel %vm935, %v5161, %v5163
        %v5173 = vsel %vm935, %v5163, %v5165
        %v5174 = vsel %vm935, %v5167, %v5169
        %v5175 = vsel %vm935, %v5169, %v5171
        %5180 = vst [vmem:[#allocation3 + $0x100] sm:$0xff] %v5172
        %5181 = vst [vmem:[#allocation3 + $0x108] sm:$0xff] %v5173
        %5182 = vst [vmem:[#allocation3 + $0x110] sm:$0xff] %v5174
        %5183 = vst [vmem:[#allocation3 + $0x118] sm:$0xff] %v5175
        %5184 = vrot.lane.b32.xlu0 %v4973, 126
        %v5185 = vpop.permute.xlu0 %5184
        %5186 = vrot.lane.b32.xlu0 %v4974, 126
        %v5187 = vpop.permute.xlu0 %5186
        %5188 = vrot.lane.b32.xlu0 %v4975, 126
        %v5189 = vpop.permute.xlu0 %5188
        %5190 = vrot.lane.b32.xlu0 %v4977, 126
        %v5191 = vpop.permute.xlu0 %5190
        %5192 = vrot.lane.b32.xlu0 %v4978, 126
        %v5193 = vpop.permute.xlu0 %5192
        %5194 = vrot.lane.b32.xlu0 %v4979, 126
        %v5195 = vpop.permute.xlu0 %5194
        %v5196 = vsel %vm948, %v5185, %v5187
        %v5197 = vsel %vm948, %v5187, %v5189
        %v5198 = vsel %vm948, %v5191, %v5193
        %v5199 = vsel %vm948, %v5193, %v5195
        %5204 = vst [vmem:[#allocation3 + $0x120] sm:$0xff] %v5196
        %5205 = vst [vmem:[#allocation3 + $0x128] sm:$0xff] %v5197
        %5206 = vst [vmem:[#allocation3 + $0x130] sm:$0xff] %v5198
        %5207 = vst [vmem:[#allocation3 + $0x138] sm:$0xff] %v5199
        %5208 = vrot.lane.b32.xlu0 %v4973, 125
        %v5209 = vpop.permute.xlu0 %5208
        %5210 = vrot.lane.b32.xlu0 %v4974, 125
        %v5211 = vpop.permute.xlu0 %5210
        %5212 = vrot.lane.b32.xlu0 %v4975, 125
        %v5213 = vpop.permute.xlu0 %5212
        %5214 = vrot.lane.b32.xlu0 %v4977, 125
        %v5215 = vpop.permute.xlu0 %5214
        %5216 = vrot.lane.b32.xlu0 %v4978, 125
        %v5217 = vpop.permute.xlu0 %5216
        %5218 = vrot.lane.b32.xlu0 %v4979, 125
        %v5219 = vpop.permute.xlu0 %5218
        %v5220 = vsel %vm961, %v5209, %v5211
        %v5221 = vsel %vm961, %v5211, %v5213
        %v5222 = vsel %vm961, %v5215, %v5217
        %v5223 = vsel %vm961, %v5217, %v5219
        %5228 = vst [vmem:[#allocation3 + $0x140] sm:$0xff] %v5220
        %5229 = vst [vmem:[#allocation3 + $0x148] sm:$0xff] %v5221
        %5230 = vst [vmem:[#allocation3 + $0x150] sm:$0xff] %v5222
        %5231 = vst [vmem:[#allocation3 + $0x158] sm:$0xff] %v5223
        %5232 = vrot.lane.b32.xlu0 %v4973, 124
        %v5233 = vpop.permute.xlu0 %5232
        %5234 = vrot.lane.b32.xlu0 %v4974, 124
        %v5235 = vpop.permute.xlu0 %5234
        %5236 = vrot.lane.b32.xlu0 %v4975, 124
        %v5237 = vpop.permute.xlu0 %5236
        %5238 = vrot.lane.b32.xlu0 %v4977, 124
        %v5239 = vpop.permute.xlu0 %5238
        %5240 = vrot.lane.b32.xlu0 %v4978, 124
        %v5241 = vpop.permute.xlu0 %5240
        %5242 = vrot.lane.b32.xlu0 %v4979, 124
        %v5243 = vpop.permute.xlu0 %5242
        %v5244 = vsel %vm974, %v5233, %v5235
        %v5245 = vsel %vm974, %v5235, %v5237
        %v5246 = vsel %vm974, %v5239, %v5241
        %v5247 = vsel %vm974, %v5241, %v5243
        %5252 = vst [vmem:[#allocation3 + $0x160] sm:$0xff] %v5244
        %5253 = vst [vmem:[#allocation3 + $0x168] sm:$0xff] %v5245
        %5254 = vst [vmem:[#allocation3 + $0x170] sm:$0xff] %v5246
        %5255 = vst [vmem:[#allocation3 + $0x178] sm:$0xff] %v5247
        %5256 = vrot.lane.b32.xlu0 %v4973, 123
        %v5257 = vpop.permute.xlu0 %5256
        %5258 = vrot.lane.b32.xlu0 %v4974, 123
        %v5259 = vpop.permute.xlu0 %5258
        %5260 = vrot.lane.b32.xlu0 %v4975, 123
        %v5261 = vpop.permute.xlu0 %5260
        %5262 = vrot.lane.b32.xlu0 %v4977, 123
        %v5263 = vpop.permute.xlu0 %5262
        %5264 = vrot.lane.b32.xlu0 %v4978, 123
        %v5265 = vpop.permute.xlu0 %5264
        %5266 = vrot.lane.b32.xlu0 %v4979, 123
        %v5267 = vpop.permute.xlu0 %5266
        %v5268 = vsel %vm987, %v5257, %v5259
        %v5269 = vsel %vm987, %v5259, %v5261
        %v5270 = vsel %vm987, %v5263, %v5265
        %v5271 = vsel %vm987, %v5265, %v5267
        %5276 = vst [vmem:[#allocation3 + $0x180] sm:$0xff] %v5268
        %5277 = vst [vmem:[#allocation3 + $0x188] sm:$0xff] %v5269
        %5278 = vst [vmem:[#allocation3 + $0x190] sm:$0xff] %v5270
        %5279 = vst [vmem:[#allocation3 + $0x198] sm:$0xff] %v5271
        %5280 = vrot.lane.b32.xlu0 %v4973, 122
        %v5281 = vpop.permute.xlu0 %5280
        %5282 = vrot.lane.b32.xlu0 %v4974, 122
        %v5283 = vpop.permute.xlu0 %5282
        %5284 = vrot.lane.b32.xlu0 %v4975, 122
        %v5285 = vpop.permute.xlu0 %5284
        %5286 = vrot.lane.b32.xlu0 %v4977, 122
        %v5287 = vpop.permute.xlu0 %5286
        %5288 = vrot.lane.b32.xlu0 %v4978, 122
        %v5289 = vpop.permute.xlu0 %5288
        %5290 = vrot.lane.b32.xlu0 %v4979, 122
        %v5291 = vpop.permute.xlu0 %5290
        %v5292 = vsel %vm1000, %v5281, %v5283
        %v5293 = vsel %vm1000, %v5283, %v5285
        %v5294 = vsel %vm1000, %v5287, %v5289
        %v5295 = vsel %vm1000, %v5289, %v5291
        %5300 = vst [vmem:[#allocation3 + $0x1a0] sm:$0xff] %v5292
        %5301 = vst [vmem:[#allocation3 + $0x1a8] sm:$0xff] %v5293
        %5302 = vst [vmem:[#allocation3 + $0x1b0] sm:$0xff] %v5294
        %5303 = vst [vmem:[#allocation3 + $0x1b8] sm:$0xff] %v5295
        %5304 = vrot.lane.b32.xlu0 %v4973, 121
        %v5305 = vpop.permute.xlu0 %5304
        %5306 = vrot.lane.b32.xlu0 %v4974, 121
        %v5307 = vpop.permute.xlu0 %5306
        %5308 = vrot.lane.b32.xlu0 %v4975, 121
        %v5309 = vpop.permute.xlu0 %5308
        %5310 = vrot.lane.b32.xlu0 %v4977, 121
        %v5311 = vpop.permute.xlu0 %5310
        %5312 = vrot.lane.b32.xlu0 %v4978, 121
        %v5313 = vpop.permute.xlu0 %5312
        %5314 = vrot.lane.b32.xlu0 %v4979, 121
        %v5315 = vpop.permute.xlu0 %5314
        %v5316 = vsel %vm1013, %v5305, %v5307
        %v5317 = vsel %vm1013, %v5307, %v5309
        %v5318 = vsel %vm1013, %v5311, %v5313
        %v5319 = vsel %vm1013, %v5313, %v5315
        %5324 = vst [vmem:[#allocation3 + $0x1c0] sm:$0xff] %v5316
        %5325 = vst [vmem:[#allocation3 + $0x1c8] sm:$0xff] %v5317
        %5326 = vst [vmem:[#allocation3 + $0x1d0] sm:$0xff] %v5318
        %5327 = vst [vmem:[#allocation3 + $0x1d8] sm:$0xff] %v5319
        %v5328 = vld [vmem:[#allocation13] sm:$0xff]
        %v5329 = vld [vmem:[#allocation13 + $0x8] sm:$0xff]
        %v5330 = vld [vmem:[#allocation13 + $0x10] sm:$0x3]
        %v5331 = vld [vmem:[#allocation13 + $0x18] sm:$0x3]
        %v5332 = vld [vmem:[#allocation3] sm:$0xff]
        %v5333 = vld [vmem:[#allocation3 + $0x8] sm:$0xff]
        %v5334 = vld [vmem:[#allocation3 + $0x10] sm:$0xff]
        %v5335 = vld [vmem:[#allocation3 + $0x18] sm:$0xff]
        %v5336 = vld [vmem:[#allocation3 + $0x20] sm:$0xff]
        %v5337 = vld [vmem:[#allocation3 + $0x28] sm:$0xff]
        %v5338 = vld [vmem:[#allocation3 + $0x30] sm:$0xff]
        %v5339 = vld [vmem:[#allocation3 + $0x38] sm:$0xff]
        %v5340 = vld [vmem:[#allocation3 + $0x40] sm:$0xff]
        %v5341 = vld [vmem:[#allocation3 + $0x48] sm:$0xff]
        %v5342 = vld [vmem:[#allocation3 + $0x50] sm:$0xff]
        %v5343 = vld [vmem:[#allocation3 + $0x58] sm:$0xff]
        %v5344 = vld [vmem:[#allocation3 + $0x60] sm:$0xff]
        %v5345 = vld [vmem:[#allocation3 + $0x68] sm:$0xff]
        %v5346 = vld [vmem:[#allocation3 + $0x70] sm:$0xff]
        %v5347 = vld [vmem:[#allocation3 + $0x78] sm:$0xff]
        %v5348 = vld [vmem:[#allocation3 + $0x80] sm:$0xff]
        %v5349 = vld [vmem:[#allocation3 + $0x88] sm:$0xff]
        %v5350 = vld [vmem:[#allocation3 + $0x90] sm:$0xff]
        %v5351 = vld [vmem:[#allocation3 + $0x98] sm:$0xff]
        %v5352 = vld [vmem:[#allocation3 + $0xa0] sm:$0xff]
        %v5353 = vld [vmem:[#allocation3 + $0xa8] sm:$0xff]
        %v5354 = vld [vmem:[#allocation3 + $0xb0] sm:$0xff]
        %v5355 = vld [vmem:[#allocation3 + $0xb8] sm:$0xff]
        %v5356 = vld [vmem:[#allocation3 + $0xc0] sm:$0xff]
        %v5357 = vld [vmem:[#allocation3 + $0xc8] sm:$0xff]
        %v5358 = vld [vmem:[#allocation3 + $0xd0] sm:$0xff]
        %v5359 = vld [vmem:[#allocation3 + $0xd8] sm:$0xff]
        %v5360 = vld [vmem:[#allocation3 + $0xe0] sm:$0xff]
        %v5361 = vld [vmem:[#allocation3 + $0xe8] sm:$0xff]
        %v5362 = vld [vmem:[#allocation3 + $0xf0] sm:$0xff]
        %v5363 = vld [vmem:[#allocation3 + $0xf8] sm:$0xff]
        %v5364 = vld [vmem:[#allocation3 + $0x100] sm:$0xff]
        %v5365 = vld [vmem:[#allocation3 + $0x108] sm:$0xff]
        %v5366 = vld [vmem:[#allocation3 + $0x110] sm:$0xff]
        %v5367 = vld [vmem:[#allocation3 + $0x118] sm:$0xff]
        %v5368 = vld [vmem:[#allocation3 + $0x120] sm:$0xff]
        %v5369 = vld [vmem:[#allocation3 + $0x128] sm:$0xff]
        %v5370 = vld [vmem:[#allocation3 + $0x130] sm:$0xff]
        %v5371 = vld [vmem:[#allocation3 + $0x138] sm:$0xff]
        %v5372 = vld [vmem:[#allocation3 + $0x140] sm:$0xff]
        %v5373 = vld [vmem:[#allocation3 + $0x148] sm:$0xff]
        %v5374 = vld [vmem:[#allocation3 + $0x150] sm:$0xff]
        %v5375 = vld [vmem:[#allocation3 + $0x158] sm:$0xff]
        %v5376 = vld [vmem:[#allocation3 + $0x160] sm:$0xff]
        %v5377 = vld [vmem:[#allocation3 + $0x168] sm:$0xff]
        %v5378 = vld [vmem:[#allocation3 + $0x170] sm:$0xff]
        %v5379 = vld [vmem:[#allocation3 + $0x178] sm:$0xff]
        %v5380 = vld [vmem:[#allocation3 + $0x180] sm:$0xff]
        %v5381 = vld [vmem:[#allocation3 + $0x188] sm:$0xff]
        %v5382 = vld [vmem:[#allocation3 + $0x190] sm:$0xff]
        %v5383 = vld [vmem:[#allocation3 + $0x198] sm:$0xff]
        %v5384 = vld [vmem:[#allocation3 + $0x1a0] sm:$0xff]
        %v5385 = vld [vmem:[#allocation3 + $0x1a8] sm:$0xff]
        %v5386 = vld [vmem:[#allocation3 + $0x1b0] sm:$0xff]
        %v5387 = vld [vmem:[#allocation3 + $0x1b8] sm:$0xff]
        %v5388 = vld [vmem:[#allocation3 + $0x1c0] sm:$0xff]
        %v5389 = vld [vmem:[#allocation3 + $0x1c8] sm:$0xff]
        %v5390 = vld [vmem:[#allocation3 + $0x1d0] sm:$0xff]
        %v5391 = vld [vmem:[#allocation3 + $0x1d8] sm:$0xff]
        %v5392 = vld [vmem:[%s12] sm:$0xff]
        %v5393 = vld [vmem:[%s12 + $0x8] sm:$0x3]
        %5395 = vset.pattern.permute.xlu0 0
        %5396 = vperm.xlu0 %5395, %v5392
        %v5397 = vpop.permute.xlu0 %5396
        %5400 = vset.pattern.permute.xlu0 0
        %5401 = vperm.xlu0 %5400, %v5393
        %v5402 = vpop.permute.xlu0 %5401
        %v5405 = vsel %vm3843, %v5329, 0
        %v5408 = vsel %vm3843, %v5331, 0
        %5410 = vmatprep.subr.mxu0 %v5333
        %5411 = vmatpush1.msra.mxu0 %v5332
        %5412 = vmatprep.subr.mxu0 %v5335
        %5413 = vmatpush1.msra.mxu0 %v5334
        %5414 = vmatprep.subr.mxu0 %v5337
        %5415 = vmatpush1.msra.mxu0 %v5336
        %5416 = vmatprep.subr.mxu0 %v5339
        %5417 = vmatpush1.msra.mxu0 %v5338
        %5418 = vmatprep.subr.mxu0 %v5341
        %5419 = vmatpush1.msra.mxu0 %v5340
        %5420 = vmatprep.subr.mxu0 %v5343
        %5421 = vmatpush1.msra.mxu0 %v5342
        %5422 = vmatprep.subr.mxu0 %v5345
        %5423 = vmatpush1.msra.mxu0 %v5344
        %5424 = vmatprep.subr.mxu0 %v5347
        %5425 = vmatpush1.msra.mxu0 %v5346
        %5426 = vmatprep.subr.mxu0 %v5349
        %5427 = vmatpush1.msra.mxu0 %v5348
        %5428 = vmatprep.subr.mxu0 %v5351
        %5429 = vmatpush1.msra.mxu0 %v5350
        %5430 = vmatprep.subr.mxu0 %v5353
        %5431 = vmatpush1.msra.mxu0 %v5352
        %5432 = vmatprep.subr.mxu0 %v5355
        %5433 = vmatpush1.msra.mxu0 %v5354
        %5434 = vmatprep.subr.mxu0 %v5357
        %5435 = vmatpush1.msra.mxu0 %v5356
        %5436 = vmatprep.subr.mxu0 %v5359
        %5437 = vmatpush1.msra.mxu0 %v5358
        %5438 = vmatprep.subr.mxu0 %v5361
        %5439 = vmatpush1.msra.mxu0 %v5360
        %5440 = vmatprep.subr.mxu0 %v5363
        %5441 = vmatpush1.msra.mxu0 %v5362
        %5442 = vmatprep.subr.mxu0 %v5365
        %5443 = vmatpush1.msra.mxu0 %v5364
        %5444 = vmatprep.subr.mxu0 %v5367
        %5445 = vmatpush1.msra.mxu0 %v5366
        %5446 = vmatprep.subr.mxu0 %v5369
        %5447 = vmatpush1.msra.mxu0 %v5368
        %5448 = vmatprep.subr.mxu0 %v5371
        %5449 = vmatpush1.msra.mxu0 %v5370
        %5450 = vmatprep.subr.mxu0 %v5373
        %5451 = vmatpush1.msra.mxu0 %v5372
        %5452 = vmatprep.subr.mxu0 %v5375
        %5453 = vmatpush1.msra.mxu0 %v5374
        %5454 = vmatprep.subr.mxu0 %v5377
        %5455 = vmatpush1.msra.mxu0 %v5376
        %5456 = vmatprep.subr.mxu0 %v5379
        %5457 = vmatpush1.msra.mxu0 %v5378
        %5458 = vmatprep.subr.mxu0 %v5381
        %5459 = vmatpush1.msra.mxu0 %v5380
        %5460 = vmatprep.subr.mxu0 %v5383
        %5461 = vmatpush1.msra.mxu0 %v5382
        %5462 = vmatprep.subr.mxu0 %v5385
        %5463 = vmatpush1.msra.mxu0 %v5384
        %5464 = vmatprep.subr.mxu0 %v5387
        %5465 = vmatpush1.msra.mxu0 %v5386
        %5466 = vmatprep.subr.mxu0 %v5389
        %5467 = vmatpush1.msra.mxu0 %v5388
        %5468 = vmatprep.subr.mxu0 %v5391
        %5469 = vmatpush1.msra.mxu0 %v5390
        %5470 = vmatprep.subr.mxu0 0.0
        %5471 = vmatpush1.msra.mxu0 0.0
        %5472 = vmatprep.subr.mxu0 0.0
        %5473 = vmatpush1.msra.mxu0 0.0
        %5474 = vmatprep.mubr.f32.mxu0 %v5405
        %5475 = vmatmul.mubr.f32.gmra.mrb[0].mxu0 %v5328
        %v5476 = vpop.f32.mrb[0].mxu0
        %v5477 = vadd.f32 %v5397, %v5476
        %v5478 = vpop.f32.mrb[0].mxu0
        %v5479 = vadd.f32 %v5397, %v5478
        %5480 = vmatprep.mubr.f32.mxu0 %v5408
        %5481 = vmatmul.mubr.f32.gmra.mrb[0].mxu0 %v5330
        %v5482 = vpop.f32.mrb[0].mxu0
        %v5483 = vadd.f32 %v5402, %v5482
        %v5484 = vpop.f32.mrb[0].mxu0
        %v5485 = vadd.f32 %v5402, %v5484
        %5486 = vdwg.mxu0
        %vm5487 = vcmp.ge.f32.partialorder %v5477, 0.0
        %vm5488 = vcmp.ge.f32.partialorder %v5479, 0.0
        %vm5489 = vcmp.ge.f32.partialorder %v5483, 0.0
        %vm5490 = vcmp.ge.f32.partialorder %v5485, 0.0
        %v5491 = vmul.f32 %v5477, 0.01
        %v5492 = vmul.f32 %v5479, 0.01
        %v5493 = vmul.f32 %v5483, 0.01
        %v5494 = vmul.f32 %v5485, 0.01
        %v5495 = vsel %vm5487, %v5477, %v5491
        %v5496 = vsel %vm5488, %v5479, %v5492
        %v5497 = vsel %vm5489, %v5483, %v5493
        %v5498 = vsel %vm5490, %v5485, %v5494
        %5499 = vst [vmem:[#allocation2 + $0x48] sm:$0xff] %v5495
        %5500 = vst [vmem:[#allocation2 + $0x50] sm:$0xff] %v5496
        %5501 = vst [vmem:[#allocation2 + $0x68] sm:$0x3] %v5497
        %5502 = vst [vmem:[#allocation2 + $0x70] sm:$0x3] %v5498
        %v5503 = vld [vmem:[#allocation2] sm:$0xff]
        %v5504 = vld [vmem:[#allocation2 + $0x8] sm:$0xff]
        %v5505 = vld [vmem:[#allocation2 + $0x10] sm:$0xff]
        %v5506 = vld [vmem:[#allocation2 + $0x18] sm:$0xff]
        %v5507 = vld [vmem:[#allocation2 + $0x20] sm:$0xff]
        %v5508 = vld [vmem:[#allocation2 + $0x28] sm:$0xff]
        %v5509 = vld [vmem:[#allocation2 + $0x30] sm:$0xff]
        %v5510 = vld [vmem:[#allocation2 + $0x38] sm:$0xff]
        %v5511 = vld [vmem:[#allocation2 + $0x40] sm:$0xff]
        %v5512 = vld [vmem:[#allocation2 + $0x48] sm:$0xff]
        %v5513 = vld [vmem:[#allocation2 + $0x50] sm:$0xff]
        %v5514 = vld [vmem:[#allocation2 + $0x58] sm:$0xff]
        %v5515 = vld [vmem:[#allocation2 + $0x60] sm:$0xff]
        %v5516 = vld [vmem:[#allocation2 + $0x68] sm:$0xff]
        %v5517 = vld [vmem:[#allocation2 + $0x70] sm:$0xff]
        %v5518 = vld [vmem:[#allocation2 + $0x78] sm:$0xff]
        %5531 = vrot.lane.b32.xlu0 %v5503, 2
        %v5532 = vpop.permute.xlu0 %5531
        %5533 = vrot.lane.b32.xlu0 %v5504, 2
        %v5534 = vpop.permute.xlu0 %5533
        %5535 = vrot.lane.b32.xlu0 %v5505, 2
        %v5536 = vpop.permute.xlu0 %5535
        %5537 = vrot.lane.b32.xlu0 %v5507, 2
        %v5538 = vpop.permute.xlu0 %5537
        %5539 = vrot.lane.b32.xlu0 %v5508, 2
        %v5540 = vpop.permute.xlu0 %5539
        %5541 = vrot.lane.b32.xlu0 %v5509, 2
        %v5542 = vpop.permute.xlu0 %5541
        %5543 = vrot.lane.b32.xlu0 %v5511, 2
        %v5544 = vpop.permute.xlu0 %5543
        %5545 = vrot.lane.b32.xlu0 %v5512, 2
        %v5546 = vpop.permute.xlu0 %5545
        %5547 = vrot.lane.b32.xlu0 %v5513, 2
        %v5548 = vpop.permute.xlu0 %5547
        %5549 = vrot.lane.b32.xlu0 %v5515, 2
        %v5550 = vpop.permute.xlu0 %5549
        %5551 = vrot.lane.b32.xlu0 %v5516, 2
        %v5552 = vpop.permute.xlu0 %5551
        %5553 = vrot.lane.b32.xlu0 %v5517, 2
        %v5554 = vpop.permute.xlu0 %5553
        %v5555 = vsel %vm906, %v5532, %v5534
        %v5556 = vsel %vm906, %v5534, %v5536
        %v5557 = vsel %vm906, %v5538, %v5540
        %v5558 = vsel %vm906, %v5540, %v5542
        %v5559 = vsel %vm906, %v5544, %v5546
        %v5560 = vsel %vm906, %v5546, %v5548
        %v5561 = vsel %vm906, %v5550, %v5552
        %v5562 = vsel %vm906, %v5552, %v5554
        %5571 = vst [vmem:[#allocation3] sm:$0xff] %v5555
        %5572 = vst [vmem:[#allocation3 + $0x8] sm:$0xff] %v5556
        %5573 = vst [vmem:[#allocation3 + $0x10] sm:$0xff] %v5557
        %5574 = vst [vmem:[#allocation3 + $0x18] sm:$0xff] %v5558
        %5575 = vst [vmem:[#allocation3 + $0x20] sm:$0xff] %v5559
        %5576 = vst [vmem:[#allocation3 + $0x28] sm:$0xff] %v5560
        %5577 = vst [vmem:[#allocation3 + $0x30] sm:$0xff] %v5561
        %5578 = vst [vmem:[#allocation3 + $0x38] sm:$0xff] %v5562
        %5579 = vrot.lane.b32.xlu0 %v5503, 1
        %v5580 = vpop.permute.xlu0 %5579
        %5581 = vrot.lane.b32.xlu0 %v5504, 1
        %v5582 = vpop.permute.xlu0 %5581
        %5583 = vrot.lane.b32.xlu0 %v5505, 1
        %v5584 = vpop.permute.xlu0 %5583
        %5585 = vrot.lane.b32.xlu0 %v5507, 1
        %v5586 = vpop.permute.xlu0 %5585
        %5587 = vrot.lane.b32.xlu0 %v5508, 1
        %v5588 = vpop.permute.xlu0 %5587
        %5589 = vrot.lane.b32.xlu0 %v5509, 1
        %v5590 = vpop.permute.xlu0 %5589
        %5591 = vrot.lane.b32.xlu0 %v5511, 1
        %v5592 = vpop.permute.xlu0 %5591
        %5593 = vrot.lane.b32.xlu0 %v5512, 1
        %v5594 = vpop.permute.xlu0 %5593
        %5595 = vrot.lane.b32.xlu0 %v5513, 1
        %v5596 = vpop.permute.xlu0 %5595
        %5597 = vrot.lane.b32.xlu0 %v5515, 1
        %v5598 = vpop.permute.xlu0 %5597
        %5599 = vrot.lane.b32.xlu0 %v5516, 1
        %v5600 = vpop.permute.xlu0 %5599
        %5601 = vrot.lane.b32.xlu0 %v5517, 1
        %v5602 = vpop.permute.xlu0 %5601
        %v5603 = vsel %vm919, %v5580, %v5582
        %v5604 = vsel %vm919, %v5582, %v5584
        %v5605 = vsel %vm919, %v5586, %v5588
        %v5606 = vsel %vm919, %v5588, %v5590
        %v5607 = vsel %vm919, %v5592, %v5594
        %v5608 = vsel %vm919, %v5594, %v5596
        %v5609 = vsel %vm919, %v5598, %v5600
        %v5610 = vsel %vm919, %v5600, %v5602
        %5619 = vst [vmem:[#allocation3 + $0x40] sm:$0xff] %v5603
        %5620 = vst [vmem:[#allocation3 + $0x48] sm:$0xff] %v5604
        %5621 = vst [vmem:[#allocation3 + $0x50] sm:$0xff] %v5605
        %5622 = vst [vmem:[#allocation3 + $0x58] sm:$0xff] %v5606
        %5623 = vst [vmem:[#allocation3 + $0x60] sm:$0xff] %v5607
        %5624 = vst [vmem:[#allocation3 + $0x68] sm:$0xff] %v5608
        %5625 = vst [vmem:[#allocation3 + $0x70] sm:$0xff] %v5609
        %5626 = vst [vmem:[#allocation3 + $0x78] sm:$0xff] %v5610
        %5627 = vst [vmem:[#allocation3 + $0x80] sm:$0xff] %v5504
        %5628 = vst [vmem:[#allocation3 + $0x88] sm:$0xff] %v5505
        %5629 = vst [vmem:[#allocation3 + $0x90] sm:$0xff] %v5508
        %5630 = vst [vmem:[#allocation3 + $0x98] sm:$0xff] %v5509
        %5631 = vst [vmem:[#allocation3 + $0xa0] sm:$0xff] %v5512
        %5632 = vst [vmem:[#allocation3 + $0xa8] sm:$0xff] %v5513
        %5633 = vst [vmem:[#allocation3 + $0xb0] sm:$0xff] %v5516
        %5634 = vst [vmem:[#allocation3 + $0xb8] sm:$0xff] %v5517
        %5639 = vrot.lane.b32.xlu0 %v5504, 127
        %v5640 = vpop.permute.xlu0 %5639
        %5641 = vrot.lane.b32.xlu0 %v5505, 127
        %v5642 = vpop.permute.xlu0 %5641
        %5643 = vrot.lane.b32.xlu0 %v5506, 127
        %v5644 = vpop.permute.xlu0 %5643
        %5645 = vrot.lane.b32.xlu0 %v5508, 127
        %v5646 = vpop.permute.xlu0 %5645
        %5647 = vrot.lane.b32.xlu0 %v5509, 127
        %v5648 = vpop.permute.xlu0 %5647
        %5649 = vrot.lane.b32.xlu0 %v5510, 127
        %v5650 = vpop.permute.xlu0 %5649
        %5651 = vrot.lane.b32.xlu0 %v5512, 127
        %v5652 = vpop.permute.xlu0 %5651
        %5653 = vrot.lane.b32.xlu0 %v5513, 127
        %v5654 = vpop.permute.xlu0 %5653
        %5655 = vrot.lane.b32.xlu0 %v5514, 127
        %v5656 = vpop.permute.xlu0 %5655
        %5657 = vrot.lane.b32.xlu0 %v5516, 127
        %v5658 = vpop.permute.xlu0 %5657
        %5659 = vrot.lane.b32.xlu0 %v5517, 127
        %v5660 = vpop.permute.xlu0 %5659
        %5661 = vrot.lane.b32.xlu0 %v5518, 127
        %v5662 = vpop.permute.xlu0 %5661
        %v5663 = vsel %vm935, %v5640, %v5642
        %v5664 = vsel %vm935, %v5642, %v5644
        %v5665 = vsel %vm935, %v5646, %v5648
        %v5666 = vsel %vm935, %v5648, %v5650
        %v5667 = vsel %vm935, %v5652, %v5654
        %v5668 = vsel %vm935, %v5654, %v5656
        %v5669 = vsel %vm935, %v5658, %v5660
        %v5670 = vsel %vm935, %v5660, %v5662
        %5679 = vst [vmem:[#allocation3 + $0xc0] sm:$0xff] %v5663
        %5680 = vst [vmem:[#allocation3 + $0xc8] sm:$0xff] %v5664
        %5681 = vst [vmem:[#allocation3 + $0xd0] sm:$0xff] %v5665
        %5682 = vst [vmem:[#allocation3 + $0xd8] sm:$0xff] %v5666
        %5683 = vst [vmem:[#allocation3 + $0xe0] sm:$0xff] %v5667
        %5684 = vst [vmem:[#allocation3 + $0xe8] sm:$0xff] %v5668
        %5685 = vst [vmem:[#allocation3 + $0xf0] sm:$0xff] %v5669
        %5686 = vst [vmem:[#allocation3 + $0xf8] sm:$0xff] %v5670
        %5687 = vrot.lane.b32.xlu0 %v5504, 126
        %v5688 = vpop.permute.xlu0 %5687
        %5689 = vrot.lane.b32.xlu0 %v5505, 126
        %v5690 = vpop.permute.xlu0 %5689
        %5691 = vrot.lane.b32.xlu0 %v5506, 126
        %v5692 = vpop.permute.xlu0 %5691
        %5693 = vrot.lane.b32.xlu0 %v5508, 126
        %v5694 = vpop.permute.xlu0 %5693
        %5695 = vrot.lane.b32.xlu0 %v5509, 126
        %v5696 = vpop.permute.xlu0 %5695
        %5697 = vrot.lane.b32.xlu0 %v5510, 126
        %v5698 = vpop.permute.xlu0 %5697
        %5699 = vrot.lane.b32.xlu0 %v5512, 126
        %v5700 = vpop.permute.xlu0 %5699
        %5701 = vrot.lane.b32.xlu0 %v5513, 126
        %v5702 = vpop.permute.xlu0 %5701
        %5703 = vrot.lane.b32.xlu0 %v5514, 126
        %v5704 = vpop.permute.xlu0 %5703
        %5705 = vrot.lane.b32.xlu0 %v5516, 126
        %v5706 = vpop.permute.xlu0 %5705
        %5707 = vrot.lane.b32.xlu0 %v5517, 126
        %v5708 = vpop.permute.xlu0 %5707
        %5709 = vrot.lane.b32.xlu0 %v5518, 126
        %v5710 = vpop.permute.xlu0 %5709
        %v5711 = vsel %vm948, %v5688, %v5690
        %v5712 = vsel %vm948, %v5690, %v5692
        %v5713 = vsel %vm948, %v5694, %v5696
        %v5714 = vsel %vm948, %v5696, %v5698
        %v5715 = vsel %vm948, %v5700, %v5702
        %v5716 = vsel %vm948, %v5702, %v5704
        %v5717 = vsel %vm948, %v5706, %v5708
        %v5718 = vsel %vm948, %v5708, %v5710
        %5727 = vst [vmem:[#allocation3 + $0x100] sm:$0xff] %v5711
        %5728 = vst [vmem:[#allocation3 + $0x108] sm:$0xff] %v5712
        %5729 = vst [vmem:[#allocation3 + $0x110] sm:$0xff] %v5713
        %5730 = vst [vmem:[#allocation3 + $0x118] sm:$0xff] %v5714
        %5731 = vst [vmem:[#allocation3 + $0x120] sm:$0xff] %v5715
        %5732 = vst [vmem:[#allocation3 + $0x128] sm:$0xff] %v5716
        %5733 = vst [vmem:[#allocation3 + $0x130] sm:$0xff] %v5717
        %5734 = vst [vmem:[#allocation3 + $0x138] sm:$0xff] %v5718
        %v5735 = vld [vmem:[%s13] sm:$0x7f]
        %v5736 = vld [vmem:[%s13 + $0x8] sm:$0x7f]
        %v5737 = vld [vmem:[#allocation3] sm:$0xff]
        %v5738 = vld [vmem:[#allocation3 + $0x8] sm:$0xff]
        %v5739 = vld [vmem:[#allocation3 + $0x10] sm:$0xff]
        %v5740 = vld [vmem:[#allocation3 + $0x18] sm:$0xff]
        %v5741 = vld [vmem:[#allocation3 + $0x20] sm:$0xff]
        %v5742 = vld [vmem:[#allocation3 + $0x28] sm:$0xff]
        %v5743 = vld [vmem:[#allocation3 + $0x30] sm:$0xff]
        %v5744 = vld [vmem:[#allocation3 + $0x38] sm:$0xff]
        %v5745 = vld [vmem:[#allocation3 + $0x40] sm:$0xff]
        %v5746 = vld [vmem:[#allocation3 + $0x48] sm:$0xff]
        %v5747 = vld [vmem:[#allocation3 + $0x50] sm:$0xff]
        %v5748 = vld [vmem:[#allocation3 + $0x58] sm:$0xff]
        %v5749 = vld [vmem:[#allocation3 + $0x60] sm:$0xff]
        %v5750 = vld [vmem:[#allocation3 + $0x68] sm:$0xff]
        %v5751 = vld [vmem:[#allocation3 + $0x70] sm:$0xff]
        %v5752 = vld [vmem:[#allocation3 + $0x78] sm:$0xff]
        %v5753 = vld [vmem:[#allocation3 + $0x80] sm:$0xff]
        %v5754 = vld [vmem:[#allocation3 + $0x88] sm:$0xff]
        %v5755 = vld [vmem:[#allocation3 + $0x90] sm:$0xff]
        %v5756 = vld [vmem:[#allocation3 + $0x98] sm:$0xff]
        %v5757 = vld [vmem:[#allocation3 + $0xa0] sm:$0xff]
        %v5758 = vld [vmem:[#allocation3 + $0xa8] sm:$0xff]
        %v5759 = vld [vmem:[#allocation3 + $0xb0] sm:$0xff]
        %v5760 = vld [vmem:[#allocation3 + $0xb8] sm:$0xff]
        %v5761 = vld [vmem:[#allocation3 + $0xc0] sm:$0xff]
        %v5762 = vld [vmem:[#allocation3 + $0xc8] sm:$0xff]
        %v5763 = vld [vmem:[#allocation3 + $0xd0] sm:$0xff]
        %v5764 = vld [vmem:[#allocation3 + $0xd8] sm:$0xff]
        %v5765 = vld [vmem:[#allocation3 + $0xe0] sm:$0xff]
        %v5766 = vld [vmem:[#allocation3 + $0xe8] sm:$0xff]
        %v5767 = vld [vmem:[#allocation3 + $0xf0] sm:$0xff]
        %v5768 = vld [vmem:[#allocation3 + $0xf8] sm:$0xff]
        %v5769 = vld [vmem:[#allocation3 + $0x100] sm:$0xff]
        %v5770 = vld [vmem:[#allocation3 + $0x108] sm:$0xff]
        %v5771 = vld [vmem:[#allocation3 + $0x110] sm:$0xff]
        %v5772 = vld [vmem:[#allocation3 + $0x118] sm:$0xff]
        %v5773 = vld [vmem:[#allocation3 + $0x120] sm:$0xff]
        %v5774 = vld [vmem:[#allocation3 + $0x128] sm:$0xff]
        %v5775 = vld [vmem:[#allocation3 + $0x130] sm:$0xff]
        %v5776 = vld [vmem:[#allocation3 + $0x138] sm:$0xff]
        %v5777 = vld [vmem:[%s14] sm:$0x7f]
        %5779 = vset.pattern.permute.xlu0 0
        %5780 = vperm.xlu0 %5779, %v5777
        %v5781 = vpop.permute.xlu0 %5780
        %vm5783 = vcmask 261120
        %v5785 = vsel %vm5783, %v5736, 0
        %5787 = vmatprep.subr.mxu0 %v5738
        %5788 = vmatpush1.msra.mxu0 %v5737
        %5789 = vmatprep.subr.mxu0 %v5740
        %5790 = vmatpush1.msra.mxu0 %v5739
        %5791 = vmatprep.subr.mxu0 %v5742
        %5792 = vmatpush1.msra.mxu0 %v5741
        %5793 = vmatprep.subr.mxu0 %v5744
        %5794 = vmatpush1.msra.mxu0 %v5743
        %5795 = vmatprep.subr.mxu0 %v5746
        %5796 = vmatpush1.msra.mxu0 %v5745
        %5797 = vmatprep.subr.mxu0 %v5748
        %5798 = vmatpush1.msra.mxu0 %v5747
        %5799 = vmatprep.subr.mxu0 %v5750
        %5800 = vmatpush1.msra.mxu0 %v5749
        %5801 = vmatprep.subr.mxu0 %v5752
        %5802 = vmatpush1.msra.mxu0 %v5751
        %5803 = vmatprep.subr.mxu0 %v5754
        %5804 = vmatpush1.msra.mxu0 %v5753
        %5805 = vmatprep.subr.mxu0 %v5756
        %5806 = vmatpush1.msra.mxu0 %v5755
        %5807 = vmatprep.subr.mxu0 %v5758
        %5808 = vmatpush1.msra.mxu0 %v5757
        %5809 = vmatprep.subr.mxu0 %v5760
        %5810 = vmatpush1.msra.mxu0 %v5759
        %5811 = vmatprep.subr.mxu0 %v5762
        %5812 = vmatpush1.msra.mxu0 %v5761
        %5813 = vmatprep.subr.mxu0 %v5764
        %5814 = vmatpush1.msra.mxu0 %v5763
        %5815 = vmatprep.subr.mxu0 %v5766
        %5816 = vmatpush1.msra.mxu0 %v5765
        %5817 = vmatprep.subr.mxu0 %v5768
        %5818 = vmatpush1.msra.mxu0 %v5767
        %5819 = vmatprep.subr.mxu0 %v5770
        %5820 = vmatpush1.msra.mxu0 %v5769
        %5821 = vmatprep.subr.mxu0 %v5772
        %5822 = vmatpush1.msra.mxu0 %v5771
        %5823 = vmatprep.subr.mxu0 %v5774
        %5824 = vmatpush1.msra.mxu0 %v5773
        %5825 = vmatprep.subr.mxu0 %v5776
        %5826 = vmatpush1.msra.mxu0 %v5775
        %5827 = vmatprep.subr.mxu0 0.0
        %5828 = vmatpush1.msra.mxu0 0.0
        %5829 = vmatprep.subr.mxu0 0.0
        %5830 = vmatpush1.msra.mxu0 0.0
        %5831 = vmatprep.subr.mxu0 0.0
        %5832 = vmatpush1.msra.mxu0 0.0
        %5833 = vmatprep.subr.mxu0 0.0
        %5834 = vmatpush1.msra.mxu0 0.0
        %5835 = vmatprep.subr.mxu0 0.0
        %5836 = vmatpush1.msra.mxu0 0.0
        %5837 = vmatprep.subr.mxu0 0.0
        %5838 = vmatpush1.msra.mxu0 0.0
        %5839 = vmatprep.subr.mxu0 0.0
        %5840 = vmatpush1.msra.mxu0 0.0
        %5841 = vmatprep.subr.mxu0 0.0
        %5842 = vmatpush1.msra.mxu0 0.0
        %5843 = vmatprep.subr.mxu0 0.0
        %5844 = vmatpush1.msra.mxu0 0.0
        %5845 = vmatprep.subr.mxu0 0.0
        %5846 = vmatpush1.msra.mxu0 0.0
        %5847 = vmatprep.subr.mxu0 0.0
        %5848 = vmatpush1.msra.mxu0 0.0
        %5849 = vmatprep.subr.mxu0 0.0
        %5850 = vmatpush1.msra.mxu0 0.0
        %5851 = vmatprep.mubr.f32.mxu0 %v5785
        %5852 = vmatmul.mubr.f32.gmra.mrb[0].mxu0 %v5735
        %v5853 = vpop.f32.mrb[0].mxu0
        %v5854 = vadd.f32 %v5781, %v5853
        %v5855 = vpop.f32.mrb[0].mxu0
        %v5856 = vadd.f32 %v5781, %v5855
        %5857 = vdwg.mxu0
        %vm5858 = vcmp.ge.f32.partialorder %v5854, 0.0
        %vm5859 = vcmp.ge.f32.partialorder %v5856, 0.0
        %v5860 = vmul.f32 %v5854, 0.01
        %v5861 = vmul.f32 %v5856, 0.01
        %v5862 = vsel %vm5858, %v5854, %v5860
        %v5863 = vsel %vm5859, %v5856, %v5861
        %5864 = vst [vmem:[#allocation2 + $0x8] sm:$0x7f] %v5862
        %5865 = vst [vmem:[#allocation2 + $0x10] sm:$0x7f] %v5863
        %v5866 = vld [vmem:[#allocation2] sm:$0xff]
        %v5867 = vld [vmem:[#allocation2 + $0x8] sm:$0xff]
        %v5868 = vld [vmem:[#allocation2 + $0x10] sm:$0xff]
        %v5869 = vld [vmem:[#allocation2 + $0x18] sm:$0xff]
        %5873 = vrot.lane.b32.xlu0 %v5866, 2
        %v5874 = vpop.permute.xlu0 %5873
        %5875 = vrot.lane.b32.xlu0 %v5867, 2
        %v5876 = vpop.permute.xlu0 %5875
        %5877 = vrot.lane.b32.xlu0 %v5868, 2
        %v5878 = vpop.permute.xlu0 %5877
        %v5879 = vsel %vm906, %v5874, %v5876
        %v5880 = vsel %vm906, %v5876, %v5878
        %5883 = vst [vmem:[#allocation3] sm:$0xff] %v5879
        %5884 = vst [vmem:[#allocation3 + $0x8] sm:$0xff] %v5880
        %5885 = vrot.lane.b32.xlu0 %v5866, 1
        %v5886 = vpop.permute.xlu0 %5885
        %5887 = vrot.lane.b32.xlu0 %v5867, 1
        %v5888 = vpop.permute.xlu0 %5887
        %5889 = vrot.lane.b32.xlu0 %v5868, 1
        %v5890 = vpop.permute.xlu0 %5889
        %v5891 = vsel %vm919, %v5886, %v5888
        %v5892 = vsel %vm919, %v5888, %v5890
        %5895 = vst [vmem:[#allocation3 + $0x10] sm:$0xff] %v5891
        %5896 = vst [vmem:[#allocation3 + $0x18] sm:$0xff] %v5892
        %5897 = vst [vmem:[#allocation3 + $0x20] sm:$0xff] %v5867
        %5898 = vst [vmem:[#allocation3 + $0x28] sm:$0xff] %v5868
        %5900 = vrot.lane.b32.xlu0 %v5867, 127
        %v5901 = vpop.permute.xlu0 %5900
        %5902 = vrot.lane.b32.xlu0 %v5868, 127
        %v5903 = vpop.permute.xlu0 %5902
        %5904 = vrot.lane.b32.xlu0 %v5869, 127
        %v5905 = vpop.permute.xlu0 %5904
        %v5906 = vsel %vm935, %v5901, %v5903
        %v5907 = vsel %vm935, %v5903, %v5905
        %5910 = vst [vmem:[#allocation3 + $0x30] sm:$0xff] %v5906
        %5911 = vst [vmem:[#allocation3 + $0x38] sm:$0xff] %v5907
        %5912 = vrot.lane.b32.xlu0 %v5867, 126
        %v5913 = vpop.permute.xlu0 %5912
        %5914 = vrot.lane.b32.xlu0 %v5868, 126
        %v5915 = vpop.permute.xlu0 %5914
        %5916 = vrot.lane.b32.xlu0 %v5869, 126
        %v5917 = vpop.permute.xlu0 %5916
        %v5918 = vsel %vm948, %v5913, %v5915
        %v5919 = vsel %vm948, %v5915, %v5917
        %5922 = vst [vmem:[#allocation3 + $0x40] sm:$0xff] %v5918
        %5923 = vst [vmem:[#allocation3 + $0x48] sm:$0xff] %v5919
        %v5924 = vld [vmem:[%s15] sm:$0x7]
        %v5925 = vld [vmem:[#allocation3] sm:$0xff]
        %v5926 = vld [vmem:[#allocation3 + $0x8] sm:$0xff]
        %v5927 = vld [vmem:[#allocation3 + $0x10] sm:$0xff]
        %v5928 = vld [vmem:[#allocation3 + $0x18] sm:$0xff]
        %v5929 = vld [vmem:[#allocation3 + $0x20] sm:$0xff]
        %v5930 = vld [vmem:[#allocation3 + $0x28] sm:$0xff]
        %v5931 = vld [vmem:[#allocation3 + $0x30] sm:$0xff]
        %v5932 = vld [vmem:[#allocation3 + $0x38] sm:$0xff]
        %v5933 = vld [vmem:[#allocation3 + $0x40] sm:$0xff]
        %v5934 = vld [vmem:[#allocation3 + $0x48] sm:$0xff]
        %v5935 = vld [vmem:[%s16] sm:$0x7]
        %5937 = vset.pattern.permute.xlu0 0
        %5938 = vperm.xlu0 %5937, %v5935
        %v5939 = vpop.permute.xlu0 %5938
        %vm5941 = vcmask 326656
        %v5943 = vsel %vm5941, %v5924, 0
        %5945 = vmatprep.subr.mxu0 %v5926
        %5946 = vmatpush1.msra.mxu0 %v5925
        %5947 = vmatprep.subr.mxu0 %v5928
        %5948 = vmatpush1.msra.mxu0 %v5927
        %5949 = vmatprep.subr.mxu0 %v5930
        %5950 = vmatpush1.msra.mxu0 %v5929
        %5951 = vmatprep.subr.mxu0 %v5932
        %5952 = vmatpush1.msra.mxu0 %v5931
        %5953 = vmatprep.subr.mxu0 %v5934
        %5954 = vmatpush1.msra.mxu0 %v5933
        %5955 = vmatprep.subr.mxu0 0.0
        %5956 = vmatpush1.msra.mxu0 0.0
        %5957 = vmatprep.subr.mxu0 0.0
        %5958 = vmatpush1.msra.mxu0 0.0
        %5959 = vmatprep.subr.mxu0 0.0
        %5960 = vmatpush1.msra.mxu0 0.0
        %5961 = vmatprep.subr.mxu0 0.0
        %5962 = vmatpush1.msra.mxu0 0.0
        %5963 = vmatprep.subr.mxu0 0.0
        %5964 = vmatpush1.msra.mxu0 0.0
        %5965 = vmatprep.subr.mxu0 0.0
        %5966 = vmatpush1.msra.mxu0 0.0
        %5967 = vmatprep.subr.mxu0 0.0
        %5968 = vmatpush1.msra.mxu0 0.0
        %5969 = vmatprep.subr.mxu0 0.0
        %5970 = vmatpush1.msra.mxu0 0.0
        %5971 = vmatprep.subr.mxu0 0.0
        %5972 = vmatpush1.msra.mxu0 0.0
        %5973 = vmatprep.subr.mxu0 0.0
        %5974 = vmatpush1.msra.mxu0 0.0
        %5975 = vmatprep.subr.mxu0 0.0
        %5976 = vmatpush1.msra.mxu0 0.0
        %5977 = vmatprep.subr.mxu0 0.0
        %5978 = vmatpush1.msra.mxu0 0.0
        %5979 = vmatprep.subr.mxu0 0.0
        %5980 = vmatpush1.msra.mxu0 0.0
        %5981 = vmatprep.subr.mxu0 0.0
        %5982 = vmatpush1.msra.mxu0 0.0
        %5983 = vmatprep.subr.mxu0 0.0
        %5984 = vmatpush1.msra.mxu0 0.0
        %5985 = vmatprep.subr.mxu0 0.0
        %5986 = vmatpush1.msra.mxu0 0.0
        %5987 = vmatprep.subr.mxu0 0.0
        %5988 = vmatpush1.msra.mxu0 0.0
        %5989 = vmatprep.subr.mxu0 0.0
        %5990 = vmatpush1.msra.mxu0 0.0
        %5991 = vmatprep.subr.mxu0 0.0
        %5992 = vmatpush1.msra.mxu0 0.0
        %5993 = vmatprep.subr.mxu0 0.0
        %5994 = vmatpush1.msra.mxu0 0.0
        %5995 = vmatprep.subr.mxu0 0.0
        %5996 = vmatpush1.msra.mxu0 0.0
        %5997 = vmatprep.subr.mxu0 0.0
        %5998 = vmatpush1.msra.mxu0 0.0
        %5999 = vmatprep.subr.mxu0 0.0
        %6000 = vmatpush1.msra.mxu0 0.0
        %6001 = vmatprep.subr.mxu0 0.0
        %6002 = vmatpush1.msra.mxu0 0.0
        %6003 = vmatprep.subr.mxu0 0.0
        %6004 = vmatpush1.msra.mxu0 0.0
        %6005 = vmatprep.subr.mxu0 0.0
        %6006 = vmatpush1.msra.mxu0 0.0
        %6007 = vmatprep.subr.mxu0 0.0
        %6008 = vmatpush1.msra.mxu0 0.0
        %6009 = vmatprep.mubr.f32.mxu0 0.0
        %6010 = vmatmul.mubr.f32.gmra.mrb[0].mxu0 %v5943
        %v6011 = vpop.f32.mrb[0].mxu0
        %v6012 = vadd.f32 %v5939, %v6011
        %v6013 = vpop.f32.mrb[0].mxu0
        %v6014 = vadd.f32 %v5939, %v6013
        %6015 = vdwg.mxu0
        %vm6016 = vcmp.ge.f32.partialorder %v6012, 0.0
        %vm6017 = vcmp.ge.f32.partialorder %v6014, 0.0
        %v6018 = vmul.f32 %v6012, 0.01
        %v6019 = vmul.f32 %v6014, 0.01
        %v6020 = vsel %vm6016, %v6012, %v6018
        %v6021 = vsel %vm6017, %v6014, %v6019
        %6022 = vst [vmem:[#allocation2 + $0x28] sm:$0x7] %v6020
        %6023 = vst [vmem:[#allocation2 + $0x30] sm:$0x7] %v6021
        %v6024 = vld [vmem:[#allocation2] sm:$0xff]
        %v6025 = vld [vmem:[#allocation2 + $0x8] sm:$0xff]
        %v6026 = vld [vmem:[#allocation2 + $0x10] sm:$0xff]
        %v6027 = vld [vmem:[#allocation2 + $0x18] sm:$0xff]
        %v6028 = vld [vmem:[#allocation2 + $0x20] sm:$0xff]
        %v6029 = vld [vmem:[#allocation2 + $0x28] sm:$0xff]
        %v6030 = vld [vmem:[#allocation2 + $0x30] sm:$0xff]
        %v6031 = vld [vmem:[#allocation2 + $0x38] sm:$0xff]
        %6038 = vrot.lane.b32.xlu0 %v6024, 2
        %v6039 = vpop.permute.xlu0 %6038
        %6040 = vrot.lane.b32.xlu0 %v6025, 2
        %v6041 = vpop.permute.xlu0 %6040
        %6042 = vrot.lane.b32.xlu0 %v6026, 2
        %v6043 = vpop.permute.xlu0 %6042
        %6044 = vrot.lane.b32.xlu0 %v6028, 2
        %v6045 = vpop.permute.xlu0 %6044
        %6046 = vrot.lane.b32.xlu0 %v6029, 2
        %v6047 = vpop.permute.xlu0 %6046
        %6048 = vrot.lane.b32.xlu0 %v6030, 2
        %v6049 = vpop.permute.xlu0 %6048
        %v6050 = vsel %vm906, %v6039, %v6041
        %v6051 = vsel %vm906, %v6041, %v6043
        %v6052 = vsel %vm906, %v6045, %v6047
        %v6053 = vsel %vm906, %v6047, %v6049
        %6058 = vst [vmem:[#allocation3] sm:$0xff] %v6050
        %6059 = vst [vmem:[#allocation3 + $0x8] sm:$0xff] %v6051
        %6060 = vst [vmem:[#allocation3 + $0x10] sm:$0xff] %v6052
        %6061 = vst [vmem:[#allocation3 + $0x18] sm:$0xff] %v6053
        %6062 = vrot.lane.b32.xlu0 %v6024, 1
        %v6063 = vpop.permute.xlu0 %6062
        %6064 = vrot.lane.b32.xlu0 %v6025, 1
        %v6065 = vpop.permute.xlu0 %6064
        %6066 = vrot.lane.b32.xlu0 %v6026, 1
        %v6067 = vpop.permute.xlu0 %6066
        %6068 = vrot.lane.b32.xlu0 %v6028, 1
        %v6069 = vpop.permute.xlu0 %6068
        %6070 = vrot.lane.b32.xlu0 %v6029, 1
        %v6071 = vpop.permute.xlu0 %6070
        %6072 = vrot.lane.b32.xlu0 %v6030, 1
        %v6073 = vpop.permute.xlu0 %6072
        %v6074 = vsel %vm919, %v6063, %v6065
        %v6075 = vsel %vm919, %v6065, %v6067
        %v6076 = vsel %vm919, %v6069, %v6071
        %v6077 = vsel %vm919, %v6071, %v6073
        %6082 = vst [vmem:[#allocation3 + $0x20] sm:$0xff] %v6074
        %6083 = vst [vmem:[#allocation3 + $0x28] sm:$0xff] %v6075
        %6084 = vst [vmem:[#allocation3 + $0x30] sm:$0xff] %v6076
        %6085 = vst [vmem:[#allocation3 + $0x38] sm:$0xff] %v6077
        %6086 = vst [vmem:[#allocation3 + $0x40] sm:$0xff] %v6025
        %6087 = vst [vmem:[#allocation3 + $0x48] sm:$0xff] %v6026
        %6088 = vst [vmem:[#allocation3 + $0x50] sm:$0xff] %v6029
        %6089 = vst [vmem:[#allocation3 + $0x58] sm:$0xff] %v6030
        %6092 = vrot.lane.b32.xlu0 %v6025, 127
        %v6093 = vpop.permute.xlu0 %6092
        %6094 = vrot.lane.b32.xlu0 %v6026, 127
        %v6095 = vpop.permute.xlu0 %6094
        %6096 = vrot.lane.b32.xlu0 %v6027, 127
        %v6097 = vpop.permute.xlu0 %6096
        %6098 = vrot.lane.b32.xlu0 %v6029, 127
        %v6099 = vpop.permute.xlu0 %6098
        %6100 = vrot.lane.b32.xlu0 %v6030, 127
        %v6101 = vpop.permute.xlu0 %6100
        %6102 = vrot.lane.b32.xlu0 %v6031, 127
        %v6103 = vpop.permute.xlu0 %6102
        %v6104 = vsel %vm935, %v6093, %v6095
        %v6105 = vsel %vm935, %v6095, %v6097
        %v6106 = vsel %vm935, %v6099, %v6101
        %v6107 = vsel %vm935, %v6101, %v6103
        %6112 = vst [vmem:[#allocation3 + $0x60] sm:$0xff] %v6104
        %6113 = vst [vmem:[#allocation3 + $0x68] sm:$0xff] %v6105
        %6114 = vst [vmem:[#allocation3 + $0x70] sm:$0xff] %v6106
        %6115 = vst [vmem:[#allocation3 + $0x78] sm:$0xff] %v6107
        %6116 = vrot.lane.b32.xlu0 %v6025, 126
        %v6117 = vpop.permute.xlu0 %6116
        %6118 = vrot.lane.b32.xlu0 %v6026, 126
        %v6119 = vpop.permute.xlu0 %6118
        %6120 = vrot.lane.b32.xlu0 %v6027, 126
        %v6121 = vpop.permute.xlu0 %6120
        %6122 = vrot.lane.b32.xlu0 %v6029, 126
        %v6123 = vpop.permute.xlu0 %6122
        %6124 = vrot.lane.b32.xlu0 %v6030, 126
        %v6125 = vpop.permute.xlu0 %6124
        %6126 = vrot.lane.b32.xlu0 %v6031, 126
        %v6127 = vpop.permute.xlu0 %6126
        %v6128 = vsel %vm948, %v6117, %v6119
        %v6129 = vsel %vm948, %v6119, %v6121
        %v6130 = vsel %vm948, %v6123, %v6125
        %v6131 = vsel %vm948, %v6125, %v6127
        %6136 = vst [vmem:[#allocation3 + $0x80] sm:$0xff] %v6128
        %6137 = vst [vmem:[#allocation3 + $0x88] sm:$0xff] %v6129
        %6138 = vst [vmem:[#allocation3 + $0x90] sm:$0xff] %v6130
        %6139 = vst [vmem:[#allocation3 + $0x98] sm:$0xff] %v6131
        %v6140 = vld [vmem:[%s17] sm:$0x1]
        %v6141 = vld [vmem:[#allocation3] sm:$0xff]
        %v6142 = vld [vmem:[#allocation3 + $0x8] sm:$0xff]
        %v6143 = vld [vmem:[#allocation3 + $0x10] sm:$0xff]
        %v6144 = vld [vmem:[#allocation3 + $0x18] sm:$0xff]
        %v6145 = vld [vmem:[#allocation3 + $0x20] sm:$0xff]
        %v6146 = vld [vmem:[#allocation3 + $0x28] sm:$0xff]
        %v6147 = vld [vmem:[#allocation3 + $0x30] sm:$0xff]
        %v6148 = vld [vmem:[#allocation3 + $0x38] sm:$0xff]
        %v6149 = vld [vmem:[#allocation3 + $0x40] sm:$0xff]
        %v6150 = vld [vmem:[#allocation3 + $0x48] sm:$0xff]
        %v6151 = vld [vmem:[#allocation3 + $0x50] sm:$0xff]
        %v6152 = vld [vmem:[#allocation3 + $0x58] sm:$0xff]
        %v6153 = vld [vmem:[#allocation3 + $0x60] sm:$0xff]
        %v6154 = vld [vmem:[#allocation3 + $0x68] sm:$0xff]
        %v6155 = vld [vmem:[#allocation3 + $0x70] sm:$0xff]
        %v6156 = vld [vmem:[#allocation3 + $0x78] sm:$0xff]
        %v6157 = vld [vmem:[#allocation3 + $0x80] sm:$0xff]
        %v6158 = vld [vmem:[#allocation3 + $0x88] sm:$0xff]
        %v6159 = vld [vmem:[#allocation3 + $0x90] sm:$0xff]
        %v6160 = vld [vmem:[#allocation3 + $0x98] sm:$0xff]
        %v6161 = vld [vmem:[#allocation4] sm:$0x1]
        %6163 = vset.pattern.permute.xlu0 0
        %6164 = vperm.xlu0 %6163, %v6161
        %v6165 = vpop.permute.xlu0 %6164
        %v6167 = vlaneseq
        %v6168 = vshrl.u32 %v6167, 7
        %v6169 = vsub.s32 0, %v6168
        %v6170 = vrot.slane %v6165, %v6169
        %vm6171 = vcmask 654336
        %v6173 = vsel %vm6171, %v6140, 0
        %6175 = vmatprep.subr.mxu0 %v6142
        %6176 = vmatpush1.msra.mxu0 %v6141
        %6177 = vmatprep.subr.mxu0 %v6144
        %6178 = vmatpush1.msra.mxu0 %v6143
        %6179 = vmatprep.subr.mxu0 %v6146
        %6180 = vmatpush1.msra.mxu0 %v6145
        %6181 = vmatprep.subr.mxu0 %v6148
        %6182 = vmatpush1.msra.mxu0 %v6147
        %6183 = vmatprep.subr.mxu0 %v6150
        %6184 = vmatpush1.msra.mxu0 %v6149
        %6185 = vmatprep.subr.mxu0 %v6152
        %6186 = vmatpush1.msra.mxu0 %v6151
        %6187 = vmatprep.subr.mxu0 %v6154
        %6188 = vmatpush1.msra.mxu0 %v6153
        %6189 = vmatprep.subr.mxu0 %v6156
        %6190 = vmatpush1.msra.mxu0 %v6155
        %6191 = vmatprep.subr.mxu0 %v6158
        %6192 = vmatpush1.msra.mxu0 %v6157
        %6193 = vmatprep.subr.mxu0 %v6160
        %6194 = vmatpush1.msra.mxu0 %v6159
        %6195 = vmatprep.subr.mxu0 0.0
        %6196 = vmatpush1.msra.mxu0 0.0
        %6197 = vmatprep.subr.mxu0 0.0
        %6198 = vmatpush1.msra.mxu0 0.0
        %6199 = vmatprep.subr.mxu0 0.0
        %6200 = vmatpush1.msra.mxu0 0.0
        %6201 = vmatprep.subr.mxu0 0.0
        %6202 = vmatpush1.msra.mxu0 0.0
        %6203 = vmatprep.subr.mxu0 0.0
        %6204 = vmatpush1.msra.mxu0 0.0
        %6205 = vmatprep.subr.mxu0 0.0
        %6206 = vmatpush1.msra.mxu0 0.0
        %6207 = vmatprep.subr.mxu0 0.0
        %6208 = vmatpush1.msra.mxu0 0.0
        %6209 = vmatprep.subr.mxu0 0.0
        %6210 = vmatpush1.msra.mxu0 0.0
        %6211 = vmatprep.subr.mxu0 0.0
        %6212 = vmatpush1.msra.mxu0 0.0
        %6213 = vmatprep.subr.mxu0 0.0
        %6214 = vmatpush1.msra.mxu0 0.0
        %6215 = vmatprep.subr.mxu0 0.0
        %6216 = vmatpush1.msra.mxu0 0.0
        %6217 = vmatprep.subr.mxu0 0.0
        %6218 = vmatpush1.msra.mxu0 0.0
        %6219 = vmatprep.subr.mxu0 0.0
        %6220 = vmatpush1.msra.mxu0 0.0
        %6221 = vmatprep.subr.mxu0 0.0
        %6222 = vmatpush1.msra.mxu0 0.0
        %6223 = vmatprep.subr.mxu0 0.0
        %6224 = vmatpush1.msra.mxu0 0.0
        %6225 = vmatprep.subr.mxu0 0.0
        %6226 = vmatpush1.msra.mxu0 0.0
        %6227 = vmatprep.subr.mxu0 0.0
        %6228 = vmatpush1.msra.mxu0 0.0
        %6229 = vmatprep.subr.mxu0 0.0
        %6230 = vmatpush1.msra.mxu0 0.0
        %6231 = vmatprep.subr.mxu0 0.0
        %6232 = vmatpush1.msra.mxu0 0.0
        %6233 = vmatprep.subr.mxu0 0.0
        %6234 = vmatpush1.msra.mxu0 0.0
        %6235 = vmatprep.subr.mxu0 0.0
        %6236 = vmatpush1.msra.mxu0 0.0
        %6237 = vmatprep.subr.mxu0 0.0
        %6238 = vmatpush1.msra.mxu0 0.0
        %6239 = vmatprep.mubr.f32.mxu0 0.0
        %6240 = vmatmul.mubr.f32.gmra.mrb[0].mxu0 %v6173
        %v6241 = vpop.f32.mrb[0].mxu0
        %v6242 = vadd.f32 %v6170, %v6241
        %v6243 = vpop.f32.mrb[0].mxu0
        %v6244 = vadd.f32 %v6170, %v6243
        %6245 = vdwg.mxu0
        %vm6246 = vcmp.ge.f32.partialorder %v6242, 0.0
        %vm6247 = vcmp.ge.f32.partialorder %v6244, 0.0
        %v6248 = vmul.f32 %v6242, 0.01
        %v6249 = vmul.f32 %v6244, 0.01
        %v6250 = vsel %vm6246, %v6242, %v6248
        %v6251 = vsel %vm6247, %v6244, %v6249
        %v6254 = vcombine.low %v6250, %v6251
        %v6256 = vunpack.c.l.s4 1966171168
        %v6257 = vunpack.c.0.s8 %v6256
        %v6258 = vlaneseq
        %v6259 = vshrl.u32 %v6258, 7
        %v6260 = vsub.s32 %v6257, %v6259
        %v6261 = vrot.slane %v6254, %v6260
        %v6263 = vunpack.c.l.s4 1966171168
        %v6264 = vunpack.c.0.s8 %v6263
        %v6265 = vlaneseq
        %v6266 = vshrl.u32 %v6265, 7
        %v6267 = vsub.s32 %v6264, %v6266
        %v6268 = vrot.slane %v6261, %v6267
        %6270 = vst.msk [vmem:[%s760] ss:$8 sm:$0x3] %vm759, %v6268
        %6271 = vst.msk [vmem:[%s760] ss:$8 sm:$0x0] %vm759, %v6268
        %v6272 = vld [vmem:[#allocation2] sm:$0xff]
        %v6273 = vld [vmem:[#allocation2 + $0x8] sm:$0xff]
        %v6274 = vld [vmem:[#allocation2 + $0x10] sm:$0xff]
        %v6275 = vld [vmem:[#allocation2 + $0x18] sm:$0xff]
        %6279 = vrot.lane.b32.xlu0 %v6272, 45
        %v6280 = vpop.permute.xlu0 %6279
        %6281 = vrot.lane.b32.xlu0 %v6273, 45
        %v6282 = vpop.permute.xlu0 %6281
        %6283 = vrot.lane.b32.xlu0 %v6274, 45
        %v6284 = vpop.permute.xlu0 %6283
        %vm6285 = vcmask 367616
        %v6286 = vsel %vm6285, %v6280, %v6282
        %v6287 = vsel %vm6285, %v6282, %v6284
        %6290 = vst [vmem:[#allocation3] sm:$0xff] %v6286
        %6291 = vst [vmem:[#allocation3 + $0x8] sm:$0xff] %v6287
        %6292 = vrot.lane.b32.xlu0 %v6272, 44
        %v6293 = vpop.permute.xlu0 %6292
        %6294 = vrot.lane.b32.xlu0 %v6273, 44
        %v6295 = vpop.permute.xlu0 %6294
        %6296 = vrot.lane.b32.xlu0 %v6274, 44
        %v6297 = vpop.permute.xlu0 %6296
        %vm6298 = vcmask 359424
        %v6299 = vsel %vm6298, %v6293, %v6295
        %v6300 = vsel %vm6298, %v6295, %v6297
        %6303 = vst [vmem:[#allocation3 + $0x10] sm:$0xff] %v6299
        %6304 = vst [vmem:[#allocation3 + $0x18] sm:$0xff] %v6300
        %6305 = vrot.lane.b32.xlu0 %v6272, 43
        %v6306 = vpop.permute.xlu0 %6305
        %6307 = vrot.lane.b32.xlu0 %v6273, 43
        %v6308 = vpop.permute.xlu0 %6307
        %6309 = vrot.lane.b32.xlu0 %v6274, 43
        %v6310 = vpop.permute.xlu0 %6309
        %vm6311 = vcmask 351232
        %v6312 = vsel %vm6311, %v6306, %v6308
        %v6313 = vsel %vm6311, %v6308, %v6310
        %6316 = vst [vmem:[#allocation3 + $0x20] sm:$0xff] %v6312
        %6317 = vst [vmem:[#allocation3 + $0x28] sm:$0xff] %v6313
        %6318 = vrot.lane.b32.xlu0 %v6272, 42
        %v6319 = vpop.permute.xlu0 %6318
        %6320 = vrot.lane.b32.xlu0 %v6273, 42
        %v6321 = vpop.permute.xlu0 %6320
        %6322 = vrot.lane.b32.xlu0 %v6274, 42
        %v6323 = vpop.permute.xlu0 %6322
        %vm6324 = vcmask 343040
        %v6325 = vsel %vm6324, %v6319, %v6321
        %v6326 = vsel %vm6324, %v6321, %v6323
        %6329 = vst [vmem:[#allocation3 + $0x30] sm:$0xff] %v6325
        %6330 = vst [vmem:[#allocation3 + $0x38] sm:$0xff] %v6326
        %6331 = vrot.lane.b32.xlu0 %v6272, 41
        %v6332 = vpop.permute.xlu0 %6331
        %6333 = vrot.lane.b32.xlu0 %v6273, 41
        %v6334 = vpop.permute.xlu0 %6333
        %6335 = vrot.lane.b32.xlu0 %v6274, 41
        %v6336 = vpop.permute.xlu0 %6335
        %vm6337 = vcmask 334848
        %v6338 = vsel %vm6337, %v6332, %v6334
        %v6339 = vsel %vm6337, %v6334, %v6336
        %6342 = vst [vmem:[#allocation3 + $0x40] sm:$0xff] %v6338
        %6343 = vst [vmem:[#allocation3 + $0x48] sm:$0xff] %v6339
        %6344 = vrot.lane.b32.xlu0 %v6272, 40
        %v6345 = vpop.permute.xlu0 %6344
        %6346 = vrot.lane.b32.xlu0 %v6273, 40
        %v6347 = vpop.permute.xlu0 %6346
        %6348 = vrot.lane.b32.xlu0 %v6274, 40
        %v6349 = vpop.permute.xlu0 %6348
        %v6350 = vsel %vm5941, %v6345, %v6347
        %v6351 = vsel %vm5941, %v6347, %v6349
        %6354 = vst [vmem:[#allocation3 + $0x50] sm:$0xff] %v6350
        %6355 = vst [vmem:[#allocation3 + $0x58] sm:$0xff] %v6351
        %6356 = vrot.lane.b32.xlu0 %v6272, 39
        %v6357 = vpop.permute.xlu0 %6356
        %6358 = vrot.lane.b32.xlu0 %v6273, 39
        %v6359 = vpop.permute.xlu0 %6358
        %6360 = vrot.lane.b32.xlu0 %v6274, 39
        %v6361 = vpop.permute.xlu0 %6360
        %vm6362 = vcmask 318464
        %v6363 = vsel %vm6362, %v6357, %v6359
        %v6364 = vsel %vm6362, %v6359, %v6361
        %6367 = vst [vmem:[#allocation3 + $0x60] sm:$0xff] %v6363
        %6368 = vst [vmem:[#allocation3 + $0x68] sm:$0xff] %v6364
        %6369 = vrot.lane.b32.xlu0 %v6272, 38
        %v6370 = vpop.permute.xlu0 %6369
        %6371 = vrot.lane.b32.xlu0 %v6273, 38
        %v6372 = vpop.permute.xlu0 %6371
        %6373 = vrot.lane.b32.xlu0 %v6274, 38
        %v6374 = vpop.permute.xlu0 %6373
        %vm6375 = vcmask 310272
        %v6376 = vsel %vm6375, %v6370, %v6372
        %v6377 = vsel %vm6375, %v6372, %v6374
        %6380 = vst [vmem:[#allocation3 + $0x70] sm:$0xff] %v6376
        %6381 = vst [vmem:[#allocation3 + $0x78] sm:$0xff] %v6377
        %6382 = vrot.lane.b32.xlu0 %v6272, 37
        %v6383 = vpop.permute.xlu0 %6382
        %6384 = vrot.lane.b32.xlu0 %v6273, 37
        %v6385 = vpop.permute.xlu0 %6384
        %6386 = vrot.lane.b32.xlu0 %v6274, 37
        %v6387 = vpop.permute.xlu0 %6386
        %vm6388 = vcmask 302080
        %v6389 = vsel %vm6388, %v6383, %v6385
        %v6390 = vsel %vm6388, %v6385, %v6387
        %6393 = vst [vmem:[#allocation3 + $0x80] sm:$0xff] %v6389
        %6394 = vst [vmem:[#allocation3 + $0x88] sm:$0xff] %v6390
        %6395 = vrot.lane.b32.xlu0 %v6272, 36
        %v6396 = vpop.permute.xlu0 %6395
        %6397 = vrot.lane.b32.xlu0 %v6273, 36
        %v6398 = vpop.permute.xlu0 %6397
        %6399 = vrot.lane.b32.xlu0 %v6274, 36
        %v6400 = vpop.permute.xlu0 %6399
        %vm6401 = vcmask 293888
        %v6402 = vsel %vm6401, %v6396, %v6398
        %v6403 = vsel %vm6401, %v6398, %v6400
        %6406 = vst [vmem:[#allocation3 + $0x90] sm:$0xff] %v6402
        %6407 = vst [vmem:[#allocation3 + $0x98] sm:$0xff] %v6403
        %6408 = vrot.lane.b32.xlu0 %v6272, 35
        %v6409 = vpop.permute.xlu0 %6408
        %6410 = vrot.lane.b32.xlu0 %v6273, 35
        %v6411 = vpop.permute.xlu0 %6410
        %6412 = vrot.lane.b32.xlu0 %v6274, 35
        %v6413 = vpop.permute.xlu0 %6412
        %vm6414 = vcmask 285696
        %v6415 = vsel %vm6414, %v6409, %v6411
        %v6416 = vsel %vm6414, %v6411, %v6413
        %6419 = vst [vmem:[#allocation3 + $0xa0] sm:$0xff] %v6415
        %6420 = vst [vmem:[#allocation3 + $0xa8] sm:$0xff] %v6416
        %6421 = vrot.lane.b32.xlu0 %v6272, 34
        %v6422 = vpop.permute.xlu0 %6421
        %6423 = vrot.lane.b32.xlu0 %v6273, 34
        %v6424 = vpop.permute.xlu0 %6423
        %6425 = vrot.lane.b32.xlu0 %v6274, 34
        %v6426 = vpop.permute.xlu0 %6425
        %vm6427 = vcmask 277504
        %v6428 = vsel %vm6427, %v6422, %v6424
        %v6429 = vsel %vm6427, %v6424, %v6426
        %6432 = vst [vmem:[#allocation3 + $0xb0] sm:$0xff] %v6428
        %6433 = vst [vmem:[#allocation3 + $0xb8] sm:$0xff] %v6429
        %6434 = vrot.lane.b32.xlu0 %v6272, 33
        %v6435 = vpop.permute.xlu0 %6434
        %6436 = vrot.lane.b32.xlu0 %v6273, 33
        %v6437 = vpop.permute.xlu0 %6436
        %6438 = vrot.lane.b32.xlu0 %v6274, 33
        %v6439 = vpop.permute.xlu0 %6438
        %vm6440 = vcmask 269312
        %v6441 = vsel %vm6440, %v6435, %v6437
        %v6442 = vsel %vm6440, %v6437, %v6439
        %6445 = vst [vmem:[#allocation3 + $0xc0] sm:$0xff] %v6441
        %6446 = vst [vmem:[#allocation3 + $0xc8] sm:$0xff] %v6442
        %6447 = vrot.lane.b32.xlu0 %v6272, 32
        %v6448 = vpop.permute.xlu0 %6447
        %6449 = vrot.lane.b32.xlu0 %v6273, 32
        %v6450 = vpop.permute.xlu0 %6449
        %6451 = vrot.lane.b32.xlu0 %v6274, 32
        %v6452 = vpop.permute.xlu0 %6451
        %v6453 = vsel %vm5783, %v6448, %v6450
        %v6454 = vsel %vm5783, %v6450, %v6452
        %6457 = vst [vmem:[#allocation3 + $0xd0] sm:$0xff] %v6453
        %6458 = vst [vmem:[#allocation3 + $0xd8] sm:$0xff] %v6454
        %6459 = vrot.lane.b32.xlu0 %v6272, 31
        %v6460 = vpop.permute.xlu0 %6459
        %6461 = vrot.lane.b32.xlu0 %v6273, 31
        %v6462 = vpop.permute.xlu0 %6461
        %6463 = vrot.lane.b32.xlu0 %v6274, 31
        %v6464 = vpop.permute.xlu0 %6463
        %vm6465 = vcmask 252928
        %v6466 = vsel %vm6465, %v6460, %v6462
        %v6467 = vsel %vm6465, %v6462, %v6464
        %6470 = vst [vmem:[#allocation3 + $0xe0] sm:$0xff] %v6466
        %6471 = vst [vmem:[#allocation3 + $0xe8] sm:$0xff] %v6467
        %6472 = vrot.lane.b32.xlu0 %v6272, 30
        %v6473 = vpop.permute.xlu0 %6472
        %6474 = vrot.lane.b32.xlu0 %v6273, 30
        %v6475 = vpop.permute.xlu0 %6474
        %6476 = vrot.lane.b32.xlu0 %v6274, 30
        %v6477 = vpop.permute.xlu0 %6476
        %vm6478 = vcmask 244736
        %v6479 = vsel %vm6478, %v6473, %v6475
        %v6480 = vsel %vm6478, %v6475, %v6477
        %6483 = vst [vmem:[#allocation3 + $0xf0] sm:$0xff] %v6479
        %6484 = vst [vmem:[#allocation3 + $0xf8] sm:$0xff] %v6480
        %6485 = vrot.lane.b32.xlu0 %v6272, 29
        %v6486 = vpop.permute.xlu0 %6485
        %6487 = vrot.lane.b32.xlu0 %v6273, 29
        %v6488 = vpop.permute.xlu0 %6487
        %6489 = vrot.lane.b32.xlu0 %v6274, 29
        %v6490 = vpop.permute.xlu0 %6489
        %vm6491 = vcmask 236544
        %v6492 = vsel %vm6491, %v6486, %v6488
        %v6493 = vsel %vm6491, %v6488, %v6490
        %6496 = vst [vmem:[#allocation3 + $0x100] sm:$0xff] %v6492
        %6497 = vst [vmem:[#allocation3 + $0x108] sm:$0xff] %v6493
        %6498 = vrot.lane.b32.xlu0 %v6272, 28
        %v6499 = vpop.permute.xlu0 %6498
        %6500 = vrot.lane.b32.xlu0 %v6273, 28
        %v6501 = vpop.permute.xlu0 %6500
        %6502 = vrot.lane.b32.xlu0 %v6274, 28
        %v6503 = vpop.permute.xlu0 %6502
        %vm6504 = vcmask 228352
        %v6505 = vsel %vm6504, %v6499, %v6501
        %v6506 = vsel %vm6504, %v6501, %v6503
        %6509 = vst [vmem:[#allocation3 + $0x110] sm:$0xff] %v6505
        %6510 = vst [vmem:[#allocation3 + $0x118] sm:$0xff] %v6506
        %6511 = vrot.lane.b32.xlu0 %v6272, 27
        %v6512 = vpop.permute.xlu0 %6511
        %6513 = vrot.lane.b32.xlu0 %v6273, 27
        %v6514 = vpop.permute.xlu0 %6513
        %6515 = vrot.lane.b32.xlu0 %v6274, 27
        %v6516 = vpop.permute.xlu0 %6515
        %vm6517 = vcmask 220160
        %v6518 = vsel %vm6517, %v6512, %v6514
        %v6519 = vsel %vm6517, %v6514, %v6516
        %6522 = vst [vmem:[#allocation3 + $0x120] sm:$0xff] %v6518
        %6523 = vst [vmem:[#allocation3 + $0x128] sm:$0xff] %v6519
        %6524 = vrot.lane.b32.xlu0 %v6272, 26
        %v6525 = vpop.permute.xlu0 %6524
        %6526 = vrot.lane.b32.xlu0 %v6273, 26
        %v6527 = vpop.permute.xlu0 %6526
        %6528 = vrot.lane.b32.xlu0 %v6274, 26
        %v6529 = vpop.permute.xlu0 %6528
        %vm6530 = vcmask 211968
        %v6531 = vsel %vm6530, %v6525, %v6527
        %v6532 = vsel %vm6530, %v6527, %v6529
        %6535 = vst [vmem:[#allocation3 + $0x130] sm:$0xff] %v6531
        %6536 = vst [vmem:[#allocation3 + $0x138] sm:$0xff] %v6532
        %6537 = vrot.lane.b32.xlu0 %v6272, 25
        %v6538 = vpop.permute.xlu0 %6537
        %6539 = vrot.lane.b32.xlu0 %v6273, 25
        %v6540 = vpop.permute.xlu0 %6539
        %6541 = vrot.lane.b32.xlu0 %v6274, 25
        %v6542 = vpop.permute.xlu0 %6541
        %vm6543 = vcmask 203776
        %v6544 = vsel %vm6543, %v6538, %v6540
        %v6545 = vsel %vm6543, %v6540, %v6542
        %6548 = vst [vmem:[#allocation3 + $0x140] sm:$0xff] %v6544
        %6549 = vst [vmem:[#allocation3 + $0x148] sm:$0xff] %v6545
        %6550 = vrot.lane.b32.xlu0 %v6272, 24
        %v6551 = vpop.permute.xlu0 %6550
        %6552 = vrot.lane.b32.xlu0 %v6273, 24
        %v6553 = vpop.permute.xlu0 %6552
        %6554 = vrot.lane.b32.xlu0 %v6274, 24
        %v6555 = vpop.permute.xlu0 %6554
        %vm6556 = vcmask 195584
        %v6557 = vsel %vm6556, %v6551, %v6553
        %v6558 = vsel %vm6556, %v6553, %v6555
        %6561 = vst [vmem:[#allocation3 + $0x150] sm:$0xff] %v6557
        %6562 = vst [vmem:[#allocation3 + $0x158] sm:$0xff] %v6558
        %6563 = vrot.lane.b32.xlu0 %v6272, 23
        %v6564 = vpop.permute.xlu0 %6563
        %6565 = vrot.lane.b32.xlu0 %v6273, 23
        %v6566 = vpop.permute.xlu0 %6565
        %6567 = vrot.lane.b32.xlu0 %v6274, 23
        %v6568 = vpop.permute.xlu0 %6567
        %vm6569 = vcmask 187392
        %v6570 = vsel %vm6569, %v6564, %v6566
        %v6571 = vsel %vm6569, %v6566, %v6568
        %6574 = vst [vmem:[#allocation3 + $0x160] sm:$0xff] %v6570
        %6575 = vst [vmem:[#allocation3 + $0x168] sm:$0xff] %v6571
        %6576 = vrot.lane.b32.xlu0 %v6272, 22
        %v6577 = vpop.permute.xlu0 %6576
        %6578 = vrot.lane.b32.xlu0 %v6273, 22
        %v6579 = vpop.permute.xlu0 %6578
        %6580 = vrot.lane.b32.xlu0 %v6274, 22
        %v6581 = vpop.permute.xlu0 %6580
        %vm6582 = vcmask 179200
        %v6583 = vsel %vm6582, %v6577, %v6579
        %v6584 = vsel %vm6582, %v6579, %v6581
        %6587 = vst [vmem:[#allocation3 + $0x170] sm:$0xff] %v6583
        %6588 = vst [vmem:[#allocation3 + $0x178] sm:$0xff] %v6584
        %6589 = vrot.lane.b32.xlu0 %v6272, 21
        %v6590 = vpop.permute.xlu0 %6589
        %6591 = vrot.lane.b32.xlu0 %v6273, 21
        %v6592 = vpop.permute.xlu0 %6591
        %6593 = vrot.lane.b32.xlu0 %v6274, 21
        %v6594 = vpop.permute.xlu0 %6593
        %vm6595 = vcmask 171008
        %v6596 = vsel %vm6595, %v6590, %v6592
        %v6597 = vsel %vm6595, %v6592, %v6594
        %6600 = vst [vmem:[#allocation3 + $0x180] sm:$0xff] %v6596
        %6601 = vst [vmem:[#allocation3 + $0x188] sm:$0xff] %v6597
        %6602 = vrot.lane.b32.xlu0 %v6272, 20
        %v6603 = vpop.permute.xlu0 %6602
        %6604 = vrot.lane.b32.xlu0 %v6273, 20
        %v6605 = vpop.permute.xlu0 %6604
        %6606 = vrot.lane.b32.xlu0 %v6274, 20
        %v6607 = vpop.permute.xlu0 %6606
        %vm6608 = vcmask 162816
        %v6609 = vsel %vm6608, %v6603, %v6605
        %v6610 = vsel %vm6608, %v6605, %v6607
        %6613 = vst [vmem:[#allocation3 + $0x190] sm:$0xff] %v6609
        %6614 = vst [vmem:[#allocation3 + $0x198] sm:$0xff] %v6610
        %6615 = vrot.lane.b32.xlu0 %v6272, 19
        %v6616 = vpop.permute.xlu0 %6615
        %6617 = vrot.lane.b32.xlu0 %v6273, 19
        %v6618 = vpop.permute.xlu0 %6617
        %6619 = vrot.lane.b32.xlu0 %v6274, 19
        %v6620 = vpop.permute.xlu0 %6619
        %vm6621 = vcmask 154624
        %v6622 = vsel %vm6621, %v6616, %v6618
        %v6623 = vsel %vm6621, %v6618, %v6620
        %6626 = vst [vmem:[#allocation3 + $0x1a0] sm:$0xff] %v6622
        %6627 = vst [vmem:[#allocation3 + $0x1a8] sm:$0xff] %v6623
        %6628 = vrot.lane.b32.xlu0 %v6272, 18
        %v6629 = vpop.permute.xlu0 %6628
        %6630 = vrot.lane.b32.xlu0 %v6273, 18
        %v6631 = vpop.permute.xlu0 %6630
        %6632 = vrot.lane.b32.xlu0 %v6274, 18
        %v6633 = vpop.permute.xlu0 %6632
        %vm6634 = vcmask 146432
        %v6635 = vsel %vm6634, %v6629, %v6631
        %v6636 = vsel %vm6634, %v6631, %v6633
        %6639 = vst [vmem:[#allocation3 + $0x1b0] sm:$0xff] %v6635
        %6640 = vst [vmem:[#allocation3 + $0x1b8] sm:$0xff] %v6636
        %6641 = vrot.lane.b32.xlu0 %v6272, 17
        %v6642 = vpop.permute.xlu0 %6641
        %6643 = vrot.lane.b32.xlu0 %v6273, 17
        %v6644 = vpop.permute.xlu0 %6643
        %6645 = vrot.lane.b32.xlu0 %v6274, 17
        %v6646 = vpop.permute.xlu0 %6645
        %vm6647 = vcmask 138240
        %v6648 = vsel %vm6647, %v6642, %v6644
        %v6649 = vsel %vm6647, %v6644, %v6646
        %6652 = vst [vmem:[#allocation3 + $0x1c0] sm:$0xff] %v6648
        %6653 = vst [vmem:[#allocation3 + $0x1c8] sm:$0xff] %v6649
        %6654 = vrot.lane.b32.xlu0 %v6272, 16
        %v6655 = vpop.permute.xlu0 %6654
        %6656 = vrot.lane.b32.xlu0 %v6273, 16
        %v6657 = vpop.permute.xlu0 %6656
        %6658 = vrot.lane.b32.xlu0 %v6274, 16
        %v6659 = vpop.permute.xlu0 %6658
        %vm6660 = vcmask 130048
        %v6661 = vsel %vm6660, %v6655, %v6657
        %v6662 = vsel %vm6660, %v6657, %v6659
        %6665 = vst [vmem:[#allocation3 + $0x1d0] sm:$0xff] %v6661
        %6666 = vst [vmem:[#allocation3 + $0x1d8] sm:$0xff] %v6662
        %6667 = vrot.lane.b32.xlu0 %v6272, 15
        %v6668 = vpop.permute.xlu0 %6667
        %6669 = vrot.lane.b32.xlu0 %v6273, 15
        %v6670 = vpop.permute.xlu0 %6669
        %6671 = vrot.lane.b32.xlu0 %v6274, 15
        %v6672 = vpop.permute.xlu0 %6671
        %vm6673 = vcmask 121856
        %v6674 = vsel %vm6673, %v6668, %v6670
        %v6675 = vsel %vm6673, %v6670, %v6672
        %6678 = vst [vmem:[#allocation3 + $0x1e0] sm:$0xff] %v6674
        %6679 = vst [vmem:[#allocation3 + $0x1e8] sm:$0xff] %v6675
        %6680 = vrot.lane.b32.xlu0 %v6272, 14
        %v6681 = vpop.permute.xlu0 %6680
        %6682 = vrot.lane.b32.xlu0 %v6273, 14
        %v6683 = vpop.permute.xlu0 %6682
        %6684 = vrot.lane.b32.xlu0 %v6274, 14
        %v6685 = vpop.permute.xlu0 %6684
        %vm6686 = vcmask 113664
        %v6687 = vsel %vm6686, %v6681, %v6683
        %v6688 = vsel %vm6686, %v6683, %v6685
        %6691 = vst [vmem:[#allocation3 + $0x1f0] sm:$0xff] %v6687
        %6692 = vst [vmem:[#allocation3 + $0x1f8] sm:$0xff] %v6688
        %6693 = vrot.lane.b32.xlu0 %v6272, 13
        %v6694 = vpop.permute.xlu0 %6693
        %6695 = vrot.lane.b32.xlu0 %v6273, 13
        %v6696 = vpop.permute.xlu0 %6695
        %6697 = vrot.lane.b32.xlu0 %v6274, 13
        %v6698 = vpop.permute.xlu0 %6697
        %vm6699 = vcmask 105472
        %v6700 = vsel %vm6699, %v6694, %v6696
        %v6701 = vsel %vm6699, %v6696, %v6698
        %6704 = vst [vmem:[#allocation3 + $0x200] sm:$0xff] %v6700
        %6705 = vst [vmem:[#allocation3 + $0x208] sm:$0xff] %v6701
        %6706 = vrot.lane.b32.xlu0 %v6272, 12
        %v6707 = vpop.permute.xlu0 %6706
        %6708 = vrot.lane.b32.xlu0 %v6273, 12
        %v6709 = vpop.permute.xlu0 %6708
        %6710 = vrot.lane.b32.xlu0 %v6274, 12
        %v6711 = vpop.permute.xlu0 %6710
        %v6712 = vsel %vm776, %v6707, %v6709
        %v6713 = vsel %vm776, %v6709, %v6711
        %6716 = vst [vmem:[#allocation3 + $0x210] sm:$0xff] %v6712
        %6717 = vst [vmem:[#allocation3 + $0x218] sm:$0xff] %v6713
        %6718 = vrot.lane.b32.xlu0 %v6272, 11
        %v6719 = vpop.permute.xlu0 %6718
        %6720 = vrot.lane.b32.xlu0 %v6273, 11
        %v6721 = vpop.permute.xlu0 %6720
        %6722 = vrot.lane.b32.xlu0 %v6274, 11
        %v6723 = vpop.permute.xlu0 %6722
        %v6724 = vsel %vm789, %v6719, %v6721
        %v6725 = vsel %vm789, %v6721, %v6723
        %6728 = vst [vmem:[#allocation3 + $0x220] sm:$0xff] %v6724
        %6729 = vst [vmem:[#allocation3 + $0x228] sm:$0xff] %v6725
        %6730 = vrot.lane.b32.xlu0 %v6272, 10
        %v6731 = vpop.permute.xlu0 %6730
        %6732 = vrot.lane.b32.xlu0 %v6273, 10
        %v6733 = vpop.permute.xlu0 %6732
        %6734 = vrot.lane.b32.xlu0 %v6274, 10
        %v6735 = vpop.permute.xlu0 %6734
        %v6736 = vsel %vm802, %v6731, %v6733
        %v6737 = vsel %vm802, %v6733, %v6735
        %6740 = vst [vmem:[#allocation3 + $0x230] sm:$0xff] %v6736
        %6741 = vst [vmem:[#allocation3 + $0x238] sm:$0xff] %v6737
        %6742 = vrot.lane.b32.xlu0 %v6272, 9
        %v6743 = vpop.permute.xlu0 %6742
        %6744 = vrot.lane.b32.xlu0 %v6273, 9
        %v6745 = vpop.permute.xlu0 %6744
        %6746 = vrot.lane.b32.xlu0 %v6274, 9
        %v6747 = vpop.permute.xlu0 %6746
        %v6748 = vsel %vm815, %v6743, %v6745
        %v6749 = vsel %vm815, %v6745, %v6747
        %6752 = vst [vmem:[#allocation3 + $0x240] sm:$0xff] %v6748
        %6753 = vst [vmem:[#allocation3 + $0x248] sm:$0xff] %v6749
        %6754 = vrot.lane.b32.xlu0 %v6272, 8
        %v6755 = vpop.permute.xlu0 %6754
        %6756 = vrot.lane.b32.xlu0 %v6273, 8
        %v6757 = vpop.permute.xlu0 %6756
        %6758 = vrot.lane.b32.xlu0 %v6274, 8
        %v6759 = vpop.permute.xlu0 %6758
        %v6760 = vsel %vm828, %v6755, %v6757
        %v6761 = vsel %vm828, %v6757, %v6759
        %6764 = vst [vmem:[#allocation3 + $0x250] sm:$0xff] %v6760
        %6765 = vst [vmem:[#allocation3 + $0x258] sm:$0xff] %v6761
        %6766 = vrot.lane.b32.xlu0 %v6272, 7
        %v6767 = vpop.permute.xlu0 %6766
        %6768 = vrot.lane.b32.xlu0 %v6273, 7
        %v6769 = vpop.permute.xlu0 %6768
        %6770 = vrot.lane.b32.xlu0 %v6274, 7
        %v6771 = vpop.permute.xlu0 %6770
        %v6772 = vsel %vm841, %v6767, %v6769
        %v6773 = vsel %vm841, %v6769, %v6771
        %6776 = vst [vmem:[#allocation3 + $0x260] sm:$0xff] %v6772
        %6777 = vst [vmem:[#allocation3 + $0x268] sm:$0xff] %v6773
        %6778 = vrot.lane.b32.xlu0 %v6272, 6
        %v6779 = vpop.permute.xlu0 %6778
        %6780 = vrot.lane.b32.xlu0 %v6273, 6
        %v6781 = vpop.permute.xlu0 %6780
        %6782 = vrot.lane.b32.xlu0 %v6274, 6
        %v6783 = vpop.permute.xlu0 %6782
        %v6784 = vsel %vm854, %v6779, %v6781
        %v6785 = vsel %vm854, %v6781, %v6783
        %6788 = vst [vmem:[#allocation3 + $0x270] sm:$0xff] %v6784
        %6789 = vst [vmem:[#allocation3 + $0x278] sm:$0xff] %v6785
        %6790 = vrot.lane.b32.xlu0 %v6272, 5
        %v6791 = vpop.permute.xlu0 %6790
        %6792 = vrot.lane.b32.xlu0 %v6273, 5
        %v6793 = vpop.permute.xlu0 %6792
        %6794 = vrot.lane.b32.xlu0 %v6274, 5
        %v6795 = vpop.permute.xlu0 %6794
        %v6796 = vsel %vm867, %v6791, %v6793
        %v6797 = vsel %vm867, %v6793, %v6795
        %6800 = vst [vmem:[#allocation3 + $0x280] sm:$0xff] %v6796
        %6801 = vst [vmem:[#allocation3 + $0x288] sm:$0xff] %v6797
        %6802 = vrot.lane.b32.xlu0 %v6272, 4
        %v6803 = vpop.permute.xlu0 %6802
        %6804 = vrot.lane.b32.xlu0 %v6273, 4
        %v6805 = vpop.permute.xlu0 %6804
        %6806 = vrot.lane.b32.xlu0 %v6274, 4
        %v6807 = vpop.permute.xlu0 %6806
        %v6808 = vsel %vm880, %v6803, %v6805
        %v6809 = vsel %vm880, %v6805, %v6807
        %6812 = vst [vmem:[#allocation3 + $0x290] sm:$0xff] %v6808
        %6813 = vst [vmem:[#allocation3 + $0x298] sm:$0xff] %v6809
        %6814 = vrot.lane.b32.xlu0 %v6272, 3
        %v6815 = vpop.permute.xlu0 %6814
        %6816 = vrot.lane.b32.xlu0 %v6273, 3
        %v6817 = vpop.permute.xlu0 %6816
        %6818 = vrot.lane.b32.xlu0 %v6274, 3
        %v6819 = vpop.permute.xlu0 %6818
        %v6820 = vsel %vm893, %v6815, %v6817
        %v6821 = vsel %vm893, %v6817, %v6819
        %6824 = vst [vmem:[#allocation3 + $0x2a0] sm:$0xff] %v6820
        %6825 = vst [vmem:[#allocation3 + $0x2a8] sm:$0xff] %v6821
        %6826 = vrot.lane.b32.xlu0 %v6272, 2
        %v6827 = vpop.permute.xlu0 %6826
        %6828 = vrot.lane.b32.xlu0 %v6273, 2
        %v6829 = vpop.permute.xlu0 %6828
        %6830 = vrot.lane.b32.xlu0 %v6274, 2
        %v6831 = vpop.permute.xlu0 %6830
        %v6832 = vsel %vm906, %v6827, %v6829
        %v6833 = vsel %vm906, %v6829, %v6831
        %6836 = vst [vmem:[#allocation3 + $0x2b0] sm:$0xff] %v6832
        %6837 = vst [vmem:[#allocation3 + $0x2b8] sm:$0xff] %v6833
        %6838 = vrot.lane.b32.xlu0 %v6272, 1
        %v6839 = vpop.permute.xlu0 %6838
        %6840 = vrot.lane.b32.xlu0 %v6273, 1
        %v6841 = vpop.permute.xlu0 %6840
        %6842 = vrot.lane.b32.xlu0 %v6274, 1
        %v6843 = vpop.permute.xlu0 %6842
        %v6844 = vsel %vm919, %v6839, %v6841
        %v6845 = vsel %vm919, %v6841, %v6843
        %6848 = vst [vmem:[#allocation3 + $0x2c0] sm:$0xff] %v6844
        %6849 = vst [vmem:[#allocation3 + $0x2c8] sm:$0xff] %v6845
        %6850 = vst [vmem:[#allocation3 + $0x2d0] sm:$0xff] %v6273
        %6851 = vst [vmem:[#allocation3 + $0x2d8] sm:$0xff] %v6274
        %6853 = vrot.lane.b32.xlu0 %v6273, 127
        %v6854 = vpop.permute.xlu0 %6853
        %6855 = vrot.lane.b32.xlu0 %v6274, 127
        %v6856 = vpop.permute.xlu0 %6855
        %6857 = vrot.lane.b32.xlu0 %v6275, 127
        %v6858 = vpop.permute.xlu0 %6857
        %v6859 = vsel %vm935, %v6854, %v6856
        %v6860 = vsel %vm935, %v6856, %v6858
        %6863 = vst [vmem:[#allocation3 + $0x2e0] sm:$0xff] %v6859
        %6864 = vst [vmem:[#allocation3 + $0x2e8] sm:$0xff] %v6860
        %6865 = vrot.lane.b32.xlu0 %v6273, 126
        %v6866 = vpop.permute.xlu0 %6865
        %6867 = vrot.lane.b32.xlu0 %v6274, 126
        %v6868 = vpop.permute.xlu0 %6867
        %6869 = vrot.lane.b32.xlu0 %v6275, 126
        %v6870 = vpop.permute.xlu0 %6869
        %v6871 = vsel %vm948, %v6866, %v6868
        %v6872 = vsel %vm948, %v6868, %v6870
        %6875 = vst [vmem:[#allocation3 + $0x2f0] sm:$0xff] %v6871
        %6876 = vst [vmem:[#allocation3 + $0x2f8] sm:$0xff] %v6872
        %6877 = vrot.lane.b32.xlu0 %v6273, 125
        %v6878 = vpop.permute.xlu0 %6877
        %6879 = vrot.lane.b32.xlu0 %v6274, 125
        %v6880 = vpop.permute.xlu0 %6879
        %6881 = vrot.lane.b32.xlu0 %v6275, 125
        %v6882 = vpop.permute.xlu0 %6881
        %v6883 = vsel %vm961, %v6878, %v6880
        %v6884 = vsel %vm961, %v6880, %v6882
        %6887 = vst [vmem:[#allocation3 + $0x300] sm:$0xff] %v6883
        %6888 = vst [vmem:[#allocation3 + $0x308] sm:$0xff] %v6884
        %6889 = vrot.lane.b32.xlu0 %v6273, 124
        %v6890 = vpop.permute.xlu0 %6889
        %6891 = vrot.lane.b32.xlu0 %v6274, 124
        %v6892 = vpop.permute.xlu0 %6891
        %6893 = vrot.lane.b32.xlu0 %v6275, 124
        %v6894 = vpop.permute.xlu0 %6893
        %v6895 = vsel %vm974, %v6890, %v6892
        %v6896 = vsel %vm974, %v6892, %v6894
        %6899 = vst [vmem:[#allocation3 + $0x310] sm:$0xff] %v6895
        %6900 = vst [vmem:[#allocation3 + $0x318] sm:$0xff] %v6896
        %6901 = vrot.lane.b32.xlu0 %v6273, 123
        %v6902 = vpop.permute.xlu0 %6901
        %6903 = vrot.lane.b32.xlu0 %v6274, 123
        %v6904 = vpop.permute.xlu0 %6903
        %6905 = vrot.lane.b32.xlu0 %v6275, 123
        %v6906 = vpop.permute.xlu0 %6905
        %v6907 = vsel %vm987, %v6902, %v6904
        %v6908 = vsel %vm987, %v6904, %v6906
        %6911 = vst [vmem:[#allocation3 + $0x320] sm:$0xff] %v6907
        %6912 = vst [vmem:[#allocation3 + $0x328] sm:$0xff] %v6908
        %6913 = vrot.lane.b32.xlu0 %v6273, 122
        %v6914 = vpop.permute.xlu0 %6913
        %6915 = vrot.lane.b32.xlu0 %v6274, 122
        %v6916 = vpop.permute.xlu0 %6915
        %6917 = vrot.lane.b32.xlu0 %v6275, 122
        %v6918 = vpop.permute.xlu0 %6917
        %v6919 = vsel %vm1000, %v6914, %v6916
        %v6920 = vsel %vm1000, %v6916, %v6918
        %6923 = vst [vmem:[#allocation3 + $0x330] sm:$0xff] %v6919
        %6924 = vst [vmem:[#allocation3 + $0x338] sm:$0xff] %v6920
        %6925 = vrot.lane.b32.xlu0 %v6273, 121
        %v6926 = vpop.permute.xlu0 %6925
        %6927 = vrot.lane.b32.xlu0 %v6274, 121
        %v6928 = vpop.permute.xlu0 %6927
        %6929 = vrot.lane.b32.xlu0 %v6275, 121
        %v6930 = vpop.permute.xlu0 %6929
        %v6931 = vsel %vm1013, %v6926, %v6928
        %v6932 = vsel %vm1013, %v6928, %v6930
        %6935 = vst [vmem:[#allocation3 + $0x340] sm:$0xff] %v6931
        %6936 = vst [vmem:[#allocation3 + $0x348] sm:$0xff] %v6932
        %6937 = vrot.lane.b32.xlu0 %v6273, 120
        %v6938 = vpop.permute.xlu0 %6937
        %6939 = vrot.lane.b32.xlu0 %v6274, 120
        %v6940 = vpop.permute.xlu0 %6939
        %6941 = vrot.lane.b32.xlu0 %v6275, 120
        %v6942 = vpop.permute.xlu0 %6941
        %v6943 = vsel %vm1026, %v6938, %v6940
        %v6944 = vsel %vm1026, %v6940, %v6942
        %6947 = vst [vmem:[#allocation3 + $0x350] sm:$0xff] %v6943
        %6948 = vst [vmem:[#allocation3 + $0x358] sm:$0xff] %v6944
        %6949 = vrot.lane.b32.xlu0 %v6273, 119
        %v6950 = vpop.permute.xlu0 %6949
        %6951 = vrot.lane.b32.xlu0 %v6274, 119
        %v6952 = vpop.permute.xlu0 %6951
        %6953 = vrot.lane.b32.xlu0 %v6275, 119
        %v6954 = vpop.permute.xlu0 %6953
        %v6955 = vsel %vm1039, %v6950, %v6952
        %v6956 = vsel %vm1039, %v6952, %v6954
        %6959 = vst [vmem:[#allocation3 + $0x360] sm:$0xff] %v6955
        %6960 = vst [vmem:[#allocation3 + $0x368] sm:$0xff] %v6956
        %6961 = vrot.lane.b32.xlu0 %v6273, 118
        %v6962 = vpop.permute.xlu0 %6961
        %6963 = vrot.lane.b32.xlu0 %v6274, 118
        %v6964 = vpop.permute.xlu0 %6963
        %6965 = vrot.lane.b32.xlu0 %v6275, 118
        %v6966 = vpop.permute.xlu0 %6965
        %v6967 = vsel %vm1052, %v6962, %v6964
        %v6968 = vsel %vm1052, %v6964, %v6966
        %6971 = vst [vmem:[#allocation3 + $0x370] sm:$0xff] %v6967
        %6972 = vst [vmem:[#allocation3 + $0x378] sm:$0xff] %v6968
        %6973 = vrot.lane.b32.xlu0 %v6273, 117
        %v6974 = vpop.permute.xlu0 %6973
        %6975 = vrot.lane.b32.xlu0 %v6274, 117
        %v6976 = vpop.permute.xlu0 %6975
        %6977 = vrot.lane.b32.xlu0 %v6275, 117
        %v6978 = vpop.permute.xlu0 %6977
        %v6979 = vsel %vm1065, %v6974, %v6976
        %v6980 = vsel %vm1065, %v6976, %v6978
        %6983 = vst [vmem:[#allocation3 + $0x380] sm:$0xff] %v6979
        %6984 = vst [vmem:[#allocation3 + $0x388] sm:$0xff] %v6980
        %6985 = vrot.lane.b32.xlu0 %v6273, 116
        %v6986 = vpop.permute.xlu0 %6985
        %6987 = vrot.lane.b32.xlu0 %v6274, 116
        %v6988 = vpop.permute.xlu0 %6987
        %6989 = vrot.lane.b32.xlu0 %v6275, 116
        %v6990 = vpop.permute.xlu0 %6989
        %v6991 = vsel %vm1078, %v6986, %v6988
        %v6992 = vsel %vm1078, %v6988, %v6990
        %6995 = vst [vmem:[#allocation3 + $0x390] sm:$0xff] %v6991
        %6996 = vst [vmem:[#allocation3 + $0x398] sm:$0xff] %v6992
        %6997 = vrot.lane.b32.xlu0 %v6273, 115
        %v6998 = vpop.permute.xlu0 %6997
        %6999 = vrot.lane.b32.xlu0 %v6274, 115
        %v7000 = vpop.permute.xlu0 %6999
        %7001 = vrot.lane.b32.xlu0 %v6275, 115
        %v7002 = vpop.permute.xlu0 %7001
        %vm7003 = vcmask 941056
        %v7004 = vsel %vm7003, %v6998, %v7000
        %v7005 = vsel %vm7003, %v7000, %v7002
        %7008 = vst [vmem:[#allocation3 + $0x3a0] sm:$0xff] %v7004
        %7009 = vst [vmem:[#allocation3 + $0x3a8] sm:$0xff] %v7005
        %7010 = vrot.lane.b32.xlu0 %v6273, 114
        %v7011 = vpop.permute.xlu0 %7010
        %7012 = vrot.lane.b32.xlu0 %v6274, 114
        %v7013 = vpop.permute.xlu0 %7012
        %7014 = vrot.lane.b32.xlu0 %v6275, 114
        %v7015 = vpop.permute.xlu0 %7014
        %vm7016 = vcmask 932864
        %v7017 = vsel %vm7016, %v7011, %v7013
        %v7018 = vsel %vm7016, %v7013, %v7015
        %7021 = vst [vmem:[#allocation3 + $0x3b0] sm:$0xff] %v7017
        %7022 = vst [vmem:[#allocation3 + $0x3b8] sm:$0xff] %v7018
        %7023 = vrot.lane.b32.xlu0 %v6273, 113
        %v7024 = vpop.permute.xlu0 %7023
        %7025 = vrot.lane.b32.xlu0 %v6274, 113
        %v7026 = vpop.permute.xlu0 %7025
        %7027 = vrot.lane.b32.xlu0 %v6275, 113
        %v7028 = vpop.permute.xlu0 %7027
        %vm7029 = vcmask 924672
        %v7030 = vsel %vm7029, %v7024, %v7026
        %v7031 = vsel %vm7029, %v7026, %v7028
        %7034 = vst [vmem:[#allocation3 + $0x3c0] sm:$0xff] %v7030
        %7035 = vst [vmem:[#allocation3 + $0x3c8] sm:$0xff] %v7031
        %7036 = vrot.lane.b32.xlu0 %v6273, 112
        %v7037 = vpop.permute.xlu0 %7036
        %7038 = vrot.lane.b32.xlu0 %v6274, 112
        %v7039 = vpop.permute.xlu0 %7038
        %7040 = vrot.lane.b32.xlu0 %v6275, 112
        %v7041 = vpop.permute.xlu0 %7040
        %v7042 = vsel %vm3843, %v7037, %v7039
        %v7043 = vsel %vm3843, %v7039, %v7041
        %7046 = vst [vmem:[#allocation3 + $0x3d0] sm:$0xff] %v7042
        %7047 = vst [vmem:[#allocation3 + $0x3d8] sm:$0xff] %v7043
        %7048 = vrot.lane.b32.xlu0 %v6273, 111
        %v7049 = vpop.permute.xlu0 %7048
        %7050 = vrot.lane.b32.xlu0 %v6274, 111
        %v7051 = vpop.permute.xlu0 %7050
        %7052 = vrot.lane.b32.xlu0 %v6275, 111
        %v7053 = vpop.permute.xlu0 %7052
        %vm7054 = vcmask 908288
        %v7055 = vsel %vm7054, %v7049, %v7051
        %v7056 = vsel %vm7054, %v7051, %v7053
        %7059 = vst [vmem:[#allocation3 + $0x3e0] sm:$0xff] %v7055
        %7060 = vst [vmem:[#allocation3 + $0x3e8] sm:$0xff] %v7056
        %7061 = vrot.lane.b32.xlu0 %v6273, 110
        %v7062 = vpop.permute.xlu0 %7061
        %7063 = vrot.lane.b32.xlu0 %v6274, 110
        %v7064 = vpop.permute.xlu0 %7063
        %7065 = vrot.lane.b32.xlu0 %v6275, 110
        %v7066 = vpop.permute.xlu0 %7065
        %vm7067 = vcmask 900096
        %v7068 = vsel %vm7067, %v7062, %v7064
        %v7069 = vsel %vm7067, %v7064, %v7066
        %7072 = vst [vmem:[#allocation3 + $0x3f0] sm:$0xff] %v7068
        %7073 = vst [vmem:[#allocation3 + $0x3f8] sm:$0xff] %v7069
        %7074 = vrot.lane.b32.xlu0 %v6273, 109
        %v7075 = vpop.permute.xlu0 %7074
        %7076 = vrot.lane.b32.xlu0 %v6274, 109
        %v7077 = vpop.permute.xlu0 %7076
        %7078 = vrot.lane.b32.xlu0 %v6275, 109
        %v7079 = vpop.permute.xlu0 %7078
        %vm7080 = vcmask 891904
        %v7081 = vsel %vm7080, %v7075, %v7077
        %v7082 = vsel %vm7080, %v7077, %v7079
        %7085 = vst [vmem:[#allocation3 + $0x400] sm:$0xff] %v7081
        %7086 = vst [vmem:[#allocation3 + $0x408] sm:$0xff] %v7082
        %7087 = vrot.lane.b32.xlu0 %v6273, 108
        %v7088 = vpop.permute.xlu0 %7087
        %7089 = vrot.lane.b32.xlu0 %v6274, 108
        %v7090 = vpop.permute.xlu0 %7089
        %7091 = vrot.lane.b32.xlu0 %v6275, 108
        %v7092 = vpop.permute.xlu0 %7091
        %vm7093 = vcmask 883712
        %v7094 = vsel %vm7093, %v7088, %v7090
        %v7095 = vsel %vm7093, %v7090, %v7092
        %7098 = vst [vmem:[#allocation3 + $0x410] sm:$0xff] %v7094
        %7099 = vst [vmem:[#allocation3 + $0x418] sm:$0xff] %v7095
        %7100 = vrot.lane.b32.xlu0 %v6273, 107
        %v7101 = vpop.permute.xlu0 %7100
        %7102 = vrot.lane.b32.xlu0 %v6274, 107
        %v7103 = vpop.permute.xlu0 %7102
        %7104 = vrot.lane.b32.xlu0 %v6275, 107
        %v7105 = vpop.permute.xlu0 %7104
        %vm7106 = vcmask 875520
        %v7107 = vsel %vm7106, %v7101, %v7103
        %v7108 = vsel %vm7106, %v7103, %v7105
        %7111 = vst [vmem:[#allocation3 + $0x420] sm:$0xff] %v7107
        %7112 = vst [vmem:[#allocation3 + $0x428] sm:$0xff] %v7108
        %7113 = vrot.lane.b32.xlu0 %v6273, 106
        %v7114 = vpop.permute.xlu0 %7113
        %7115 = vrot.lane.b32.xlu0 %v6274, 106
        %v7116 = vpop.permute.xlu0 %7115
        %7117 = vrot.lane.b32.xlu0 %v6275, 106
        %v7118 = vpop.permute.xlu0 %7117
        %vm7119 = vcmask 867328
        %v7120 = vsel %vm7119, %v7114, %v7116
        %v7121 = vsel %vm7119, %v7116, %v7118
        %7124 = vst [vmem:[#allocation3 + $0x430] sm:$0xff] %v7120
        %7125 = vst [vmem:[#allocation3 + $0x438] sm:$0xff] %v7121
        %7126 = vrot.lane.b32.xlu0 %v6273, 105
        %v7127 = vpop.permute.xlu0 %7126
        %7128 = vrot.lane.b32.xlu0 %v6274, 105
        %v7129 = vpop.permute.xlu0 %7128
        %7130 = vrot.lane.b32.xlu0 %v6275, 105
        %v7131 = vpop.permute.xlu0 %7130
        %vm7132 = vcmask 859136
        %v7133 = vsel %vm7132, %v7127, %v7129
        %v7134 = vsel %vm7132, %v7129, %v7131
        %7137 = vst [vmem:[#allocation3 + $0x440] sm:$0xff] %v7133
        %7138 = vst [vmem:[#allocation3 + $0x448] sm:$0xff] %v7134
        %7139 = vrot.lane.b32.xlu0 %v6273, 104
        %v7140 = vpop.permute.xlu0 %7139
        %7141 = vrot.lane.b32.xlu0 %v6274, 104
        %v7142 = vpop.permute.xlu0 %7141
        %7143 = vrot.lane.b32.xlu0 %v6275, 104
        %v7144 = vpop.permute.xlu0 %7143
        %v7145 = vsel %vm1918, %v7140, %v7142
        %v7146 = vsel %vm1918, %v7142, %v7144
        %7149 = vst [vmem:[#allocation3 + $0x450] sm:$0xff] %v7145
        %7150 = vst [vmem:[#allocation3 + $0x458] sm:$0xff] %v7146
        %7151 = vrot.lane.b32.xlu0 %v6273, 103
        %v7152 = vpop.permute.xlu0 %7151
        %7153 = vrot.lane.b32.xlu0 %v6274, 103
        %v7154 = vpop.permute.xlu0 %7153
        %7155 = vrot.lane.b32.xlu0 %v6275, 103
        %v7156 = vpop.permute.xlu0 %7155
        %vm7157 = vcmask 842752
        %v7158 = vsel %vm7157, %v7152, %v7154
        %v7159 = vsel %vm7157, %v7154, %v7156
        %7162 = vst [vmem:[#allocation3 + $0x460] sm:$0xff] %v7158
        %7163 = vst [vmem:[#allocation3 + $0x468] sm:$0xff] %v7159
        %7164 = vrot.lane.b32.xlu0 %v6273, 102
        %v7165 = vpop.permute.xlu0 %7164
        %7166 = vrot.lane.b32.xlu0 %v6274, 102
        %v7167 = vpop.permute.xlu0 %7166
        %7168 = vrot.lane.b32.xlu0 %v6275, 102
        %v7169 = vpop.permute.xlu0 %7168
        %vm7170 = vcmask 834560
        %v7171 = vsel %vm7170, %v7165, %v7167
        %v7172 = vsel %vm7170, %v7167, %v7169
        %7175 = vst [vmem:[#allocation3 + $0x470] sm:$0xff] %v7171
        %7176 = vst [vmem:[#allocation3 + $0x478] sm:$0xff] %v7172
        %7177 = vrot.lane.b32.xlu0 %v6273, 101
        %v7178 = vpop.permute.xlu0 %7177
        %7179 = vrot.lane.b32.xlu0 %v6274, 101
        %v7180 = vpop.permute.xlu0 %7179
        %7181 = vrot.lane.b32.xlu0 %v6275, 101
        %v7182 = vpop.permute.xlu0 %7181
        %vm7183 = vcmask 826368
        %v7184 = vsel %vm7183, %v7178, %v7180
        %v7185 = vsel %vm7183, %v7180, %v7182
        %7188 = vst [vmem:[#allocation3 + $0x480] sm:$0xff] %v7184
        %7189 = vst [vmem:[#allocation3 + $0x488] sm:$0xff] %v7185
        %7190 = vrot.lane.b32.xlu0 %v6273, 100
        %v7191 = vpop.permute.xlu0 %7190
        %7192 = vrot.lane.b32.xlu0 %v6274, 100
        %v7193 = vpop.permute.xlu0 %7192
        %7194 = vrot.lane.b32.xlu0 %v6275, 100
        %v7195 = vpop.permute.xlu0 %7194
        %vm7196 = vcmask 818176
        %v7197 = vsel %vm7196, %v7191, %v7193
        %v7198 = vsel %vm7196, %v7193, %v7195
        %7201 = vst [vmem:[#allocation3 + $0x490] sm:$0xff] %v7197
        %7202 = vst [vmem:[#allocation3 + $0x498] sm:$0xff] %v7198
        %7203 = vrot.lane.b32.xlu0 %v6273, 99
        %v7204 = vpop.permute.xlu0 %7203
        %7205 = vrot.lane.b32.xlu0 %v6274, 99
        %v7206 = vpop.permute.xlu0 %7205
        %7207 = vrot.lane.b32.xlu0 %v6275, 99
        %v7208 = vpop.permute.xlu0 %7207
        %vm7209 = vcmask 809984
        %v7210 = vsel %vm7209, %v7204, %v7206
        %v7211 = vsel %vm7209, %v7206, %v7208
        %7214 = vst [vmem:[#allocation3 + $0x4a0] sm:$0xff] %v7210
        %7215 = vst [vmem:[#allocation3 + $0x4a8] sm:$0xff] %v7211
        %7216 = vrot.lane.b32.xlu0 %v6273, 98
        %v7217 = vpop.permute.xlu0 %7216
        %7218 = vrot.lane.b32.xlu0 %v6274, 98
        %v7219 = vpop.permute.xlu0 %7218
        %7220 = vrot.lane.b32.xlu0 %v6275, 98
        %v7221 = vpop.permute.xlu0 %7220
        %vm7222 = vcmask 801792
        %v7223 = vsel %vm7222, %v7217, %v7219
        %v7224 = vsel %vm7222, %v7219, %v7221
        %7227 = vst [vmem:[#allocation3 + $0x4b0] sm:$0xff] %v7223
        %7228 = vst [vmem:[#allocation3 + $0x4b8] sm:$0xff] %v7224
        %7229 = vrot.lane.b32.xlu0 %v6273, 97
        %v7230 = vpop.permute.xlu0 %7229
        %7231 = vrot.lane.b32.xlu0 %v6274, 97
        %v7232 = vpop.permute.xlu0 %7231
        %7233 = vrot.lane.b32.xlu0 %v6275, 97
        %v7234 = vpop.permute.xlu0 %7233
        %vm7235 = vcmask 793600
        %v7236 = vsel %vm7235, %v7230, %v7232
        %v7237 = vsel %vm7235, %v7232, %v7234
        %7240 = vst [vmem:[#allocation3 + $0x4c0] sm:$0xff] %v7236
        %7241 = vst [vmem:[#allocation3 + $0x4c8] sm:$0xff] %v7237
        %7242 = vrot.lane.b32.xlu0 %v6273, 96
        %v7243 = vpop.permute.xlu0 %7242
        %7244 = vrot.lane.b32.xlu0 %v6274, 96
        %v7245 = vpop.permute.xlu0 %7244
        %7246 = vrot.lane.b32.xlu0 %v6275, 96
        %v7247 = vpop.permute.xlu0 %7246
        %v7248 = vsel %vm4795, %v7243, %v7245
        %v7249 = vsel %vm4795, %v7245, %v7247
        %7252 = vst [vmem:[#allocation3 + $0x4d0] sm:$0xff] %v7248
        %7253 = vst [vmem:[#allocation3 + $0x4d8] sm:$0xff] %v7249
        %7254 = vrot.lane.b32.xlu0 %v6273, 95
        %v7255 = vpop.permute.xlu0 %7254
        %7256 = vrot.lane.b32.xlu0 %v6274, 95
        %v7257 = vpop.permute.xlu0 %7256
        %7258 = vrot.lane.b32.xlu0 %v6275, 95
        %v7259 = vpop.permute.xlu0 %7258
        %vm7260 = vcmask 777216
        %v7261 = vsel %vm7260, %v7255, %v7257
        %v7262 = vsel %vm7260, %v7257, %v7259
        %7265 = vst [vmem:[#allocation3 + $0x4e0] sm:$0xff] %v7261
        %7266 = vst [vmem:[#allocation3 + $0x4e8] sm:$0xff] %v7262
        %7267 = vrot.lane.b32.xlu0 %v6273, 94
        %v7268 = vpop.permute.xlu0 %7267
        %7269 = vrot.lane.b32.xlu0 %v6274, 94
        %v7270 = vpop.permute.xlu0 %7269
        %7271 = vrot.lane.b32.xlu0 %v6275, 94
        %v7272 = vpop.permute.xlu0 %7271
        %vm7273 = vcmask 769024
        %v7274 = vsel %vm7273, %v7268, %v7270
        %v7275 = vsel %vm7273, %v7270, %v7272
        %7278 = vst [vmem:[#allocation3 + $0x4f0] sm:$0xff] %v7274
        %7279 = vst [vmem:[#allocation3 + $0x4f8] sm:$0xff] %v7275
        %7280 = vrot.lane.b32.xlu0 %v6273, 93
        %v7281 = vpop.permute.xlu0 %7280
        %7282 = vrot.lane.b32.xlu0 %v6274, 93
        %v7283 = vpop.permute.xlu0 %7282
        %7284 = vrot.lane.b32.xlu0 %v6275, 93
        %v7285 = vpop.permute.xlu0 %7284
        %vm7286 = vcmask 760832
        %v7287 = vsel %vm7286, %v7281, %v7283
        %v7288 = vsel %vm7286, %v7283, %v7285
        %7291 = vst [vmem:[#allocation3 + $0x500] sm:$0xff] %v7287
        %7292 = vst [vmem:[#allocation3 + $0x508] sm:$0xff] %v7288
        %7293 = vrot.lane.b32.xlu0 %v6273, 92
        %v7294 = vpop.permute.xlu0 %7293
        %7295 = vrot.lane.b32.xlu0 %v6274, 92
        %v7296 = vpop.permute.xlu0 %7295
        %7297 = vrot.lane.b32.xlu0 %v6275, 92
        %v7298 = vpop.permute.xlu0 %7297
        %vm7299 = vcmask 752640
        %v7300 = vsel %vm7299, %v7294, %v7296
        %v7301 = vsel %vm7299, %v7296, %v7298
        %7304 = vst [vmem:[#allocation3 + $0x510] sm:$0xff] %v7300
        %7305 = vst [vmem:[#allocation3 + $0x518] sm:$0xff] %v7301
        %7306 = vrot.lane.b32.xlu0 %v6273, 91
        %v7307 = vpop.permute.xlu0 %7306
        %7308 = vrot.lane.b32.xlu0 %v6274, 91
        %v7309 = vpop.permute.xlu0 %7308
        %7310 = vrot.lane.b32.xlu0 %v6275, 91
        %v7311 = vpop.permute.xlu0 %7310
        %vm7312 = vcmask 744448
        %v7313 = vsel %vm7312, %v7307, %v7309
        %v7314 = vsel %vm7312, %v7309, %v7311
        %7317 = vst [vmem:[#allocation3 + $0x520] sm:$0xff] %v7313
        %7318 = vst [vmem:[#allocation3 + $0x528] sm:$0xff] %v7314
        %7319 = vrot.lane.b32.xlu0 %v6273, 90
        %v7320 = vpop.permute.xlu0 %7319
        %7321 = vrot.lane.b32.xlu0 %v6274, 90
        %v7322 = vpop.permute.xlu0 %7321
        %7323 = vrot.lane.b32.xlu0 %v6275, 90
        %v7324 = vpop.permute.xlu0 %7323
        %vm7325 = vcmask 736256
        %v7326 = vsel %vm7325, %v7320, %v7322
        %v7327 = vsel %vm7325, %v7322, %v7324
        %7330 = vst [vmem:[#allocation3 + $0x530] sm:$0xff] %v7326
        %7331 = vst [vmem:[#allocation3 + $0x538] sm:$0xff] %v7327
        %7332 = vrot.lane.b32.xlu0 %v6273, 89
        %v7333 = vpop.permute.xlu0 %7332
        %7334 = vrot.lane.b32.xlu0 %v6274, 89
        %v7335 = vpop.permute.xlu0 %7334
        %7336 = vrot.lane.b32.xlu0 %v6275, 89
        %v7337 = vpop.permute.xlu0 %7336
        %vm7338 = vcmask 728064
        %v7339 = vsel %vm7338, %v7333, %v7335
        %v7340 = vsel %vm7338, %v7335, %v7337
        %7343 = vst [vmem:[#allocation3 + $0x540] sm:$0xff] %v7339
        %7344 = vst [vmem:[#allocation3 + $0x548] sm:$0xff] %v7340
        %7345 = vrot.lane.b32.xlu0 %v6273, 88
        %v7346 = vpop.permute.xlu0 %7345
        %7347 = vrot.lane.b32.xlu0 %v6274, 88
        %v7348 = vpop.permute.xlu0 %7347
        %7349 = vrot.lane.b32.xlu0 %v6275, 88
        %v7350 = vpop.permute.xlu0 %7349
        %v7351 = vsel %vm3157, %v7346, %v7348
        %v7352 = vsel %vm3157, %v7348, %v7350
        %7355 = vst [vmem:[#allocation3 + $0x550] sm:$0xff] %v7351
        %7356 = vst [vmem:[#allocation3 + $0x558] sm:$0xff] %v7352
        %7357 = vrot.lane.b32.xlu0 %v6273, 87
        %v7358 = vpop.permute.xlu0 %7357
        %7359 = vrot.lane.b32.xlu0 %v6274, 87
        %v7360 = vpop.permute.xlu0 %7359
        %7361 = vrot.lane.b32.xlu0 %v6275, 87
        %v7362 = vpop.permute.xlu0 %7361
        %vm7363 = vcmask 711680
        %v7364 = vsel %vm7363, %v7358, %v7360
        %v7365 = vsel %vm7363, %v7360, %v7362
        %7368 = vst [vmem:[#allocation3 + $0x560] sm:$0xff] %v7364
        %7369 = vst [vmem:[#allocation3 + $0x568] sm:$0xff] %v7365
        %7370 = vrot.lane.b32.xlu0 %v6273, 86
        %v7371 = vpop.permute.xlu0 %7370
        %7372 = vrot.lane.b32.xlu0 %v6274, 86
        %v7373 = vpop.permute.xlu0 %7372
        %7374 = vrot.lane.b32.xlu0 %v6275, 86
        %v7375 = vpop.permute.xlu0 %7374
        %vm7376 = vcmask 703488
        %v7377 = vsel %vm7376, %v7371, %v7373
        %v7378 = vsel %vm7376, %v7373, %v7375
        %7381 = vst [vmem:[#allocation3 + $0x570] sm:$0xff] %v7377
        %7382 = vst [vmem:[#allocation3 + $0x578] sm:$0xff] %v7378
        %7383 = vrot.lane.b32.xlu0 %v6273, 85
        %v7384 = vpop.permute.xlu0 %7383
        %7385 = vrot.lane.b32.xlu0 %v6274, 85
        %v7386 = vpop.permute.xlu0 %7385
        %7387 = vrot.lane.b32.xlu0 %v6275, 85
        %v7388 = vpop.permute.xlu0 %7387
        %vm7389 = vcmask 695296
        %v7390 = vsel %vm7389, %v7384, %v7386
        %v7391 = vsel %vm7389, %v7386, %v7388
        %7394 = vst [vmem:[#allocation3 + $0x580] sm:$0xff] %v7390
        %7395 = vst [vmem:[#allocation3 + $0x588] sm:$0xff] %v7391
        %7396 = vrot.lane.b32.xlu0 %v6273, 84
        %v7397 = vpop.permute.xlu0 %7396
        %7398 = vrot.lane.b32.xlu0 %v6274, 84
        %v7399 = vpop.permute.xlu0 %7398
        %7400 = vrot.lane.b32.xlu0 %v6275, 84
        %v7401 = vpop.permute.xlu0 %7400
        %vm7402 = vcmask 687104
        %v7403 = vsel %vm7402, %v7397, %v7399
        %v7404 = vsel %vm7402, %v7399, %v7401
        %7407 = vst [vmem:[#allocation3 + $0x590] sm:$0xff] %v7403
        %7408 = vst [vmem:[#allocation3 + $0x598] sm:$0xff] %v7404
        %7409 = vrot.lane.b32.xlu0 %v6273, 83
        %v7410 = vpop.permute.xlu0 %7409
        %7411 = vrot.lane.b32.xlu0 %v6274, 83
        %v7412 = vpop.permute.xlu0 %7411
        %7413 = vrot.lane.b32.xlu0 %v6275, 83
        %v7414 = vpop.permute.xlu0 %7413
        %vm7415 = vcmask 678912
        %v7416 = vsel %vm7415, %v7410, %v7412
        %v7417 = vsel %vm7415, %v7412, %v7414
        %7420 = vst [vmem:[#allocation3 + $0x5a0] sm:$0xff] %v7416
        %7421 = vst [vmem:[#allocation3 + $0x5a8] sm:$0xff] %v7417
        %v7422 = vld [vmem:[%s19] sm:$0x3f]
        %v7423 = vld [vmem:[#allocation3] sm:$0xff]
        %v7424 = vld [vmem:[#allocation3 + $0x8] sm:$0xff]
        %v7425 = vld [vmem:[#allocation3 + $0x10] sm:$0xff]
        %v7426 = vld [vmem:[#allocation3 + $0x18] sm:$0xff]
        %v7427 = vld [vmem:[#allocation3 + $0x20] sm:$0xff]
        %v7428 = vld [vmem:[#allocation3 + $0x28] sm:$0xff]
        %v7429 = vld [vmem:[#allocation3 + $0x30] sm:$0xff]
        %v7430 = vld [vmem:[#allocation3 + $0x38] sm:$0xff]
        %v7431 = vld [vmem:[#allocation3 + $0x40] sm:$0xff]
        %v7432 = vld [vmem:[#allocation3 + $0x48] sm:$0xff]
        %v7433 = vld [vmem:[#allocation3 + $0x50] sm:$0xff]
        %v7434 = vld [vmem:[#allocation3 + $0x58] sm:$0xff]
        %v7435 = vld [vmem:[#allocation3 + $0x60] sm:$0xff]
        %v7436 = vld [vmem:[#allocation3 + $0x68] sm:$0xff]
        %v7437 = vld [vmem:[#allocation3 + $0x70] sm:$0xff]
        %v7438 = vld [vmem:[#allocation3 + $0x78] sm:$0xff]
        %v7439 = vld [vmem:[#allocation3 + $0x80] sm:$0xff]
        %v7440 = vld [vmem:[#allocation3 + $0x88] sm:$0xff]
        %v7441 = vld [vmem:[#allocation3 + $0x90] sm:$0xff]
        %v7442 = vld [vmem:[#allocation3 + $0x98] sm:$0xff]
        %v7443 = vld [vmem:[#allocation3 + $0xa0] sm:$0xff]
        %v7444 = vld [vmem:[#allocation3 + $0xa8] sm:$0xff]
        %v7445 = vld [vmem:[#allocation3 + $0xb0] sm:$0xff]
        %v7446 = vld [vmem:[#allocation3 + $0xb8] sm:$0xff]
        %v7447 = vld [vmem:[#allocation3 + $0xc0] sm:$0xff]
        %v7448 = vld [vmem:[#allocation3 + $0xc8] sm:$0xff]
        %v7449 = vld [vmem:[#allocation3 + $0xd0] sm:$0xff]
        %v7450 = vld [vmem:[#allocation3 + $0xd8] sm:$0xff]
        %v7451 = vld [vmem:[#allocation3 + $0xe0] sm:$0xff]
        %v7452 = vld [vmem:[#allocation3 + $0xe8] sm:$0xff]
        %v7453 = vld [vmem:[#allocation3 + $0xf0] sm:$0xff]
        %v7454 = vld [vmem:[#allocation3 + $0xf8] sm:$0xff]
        %v7455 = vld [vmem:[#allocation3 + $0x100] sm:$0xff]
        %v7456 = vld [vmem:[#allocation3 + $0x108] sm:$0xff]
        %v7457 = vld [vmem:[#allocation3 + $0x110] sm:$0xff]
        %v7458 = vld [vmem:[#allocation3 + $0x118] sm:$0xff]
        %v7459 = vld [vmem:[#allocation3 + $0x120] sm:$0xff]
        %v7460 = vld [vmem:[#allocation3 + $0x128] sm:$0xff]
        %v7461 = vld [vmem:[#allocation3 + $0x130] sm:$0xff]
        %v7462 = vld [vmem:[#allocation3 + $0x138] sm:$0xff]
        %v7463 = vld [vmem:[#allocation3 + $0x140] sm:$0xff]
        %v7464 = vld [vmem:[#allocation3 + $0x148] sm:$0xff]
        %v7465 = vld [vmem:[#allocation3 + $0x150] sm:$0xff]
        %v7466 = vld [vmem:[#allocation3 + $0x158] sm:$0xff]
        %v7467 = vld [vmem:[#allocation3 + $0x160] sm:$0xff]
        %v7468 = vld [vmem:[#allocation3 + $0x168] sm:$0xff]
        %v7469 = vld [vmem:[#allocation3 + $0x170] sm:$0xff]
        %v7470 = vld [vmem:[#allocation3 + $0x178] sm:$0xff]
        %v7471 = vld [vmem:[#allocation3 + $0x180] sm:$0xff]
        %v7472 = vld [vmem:[#allocation3 + $0x188] sm:$0xff]
        %v7473 = vld [vmem:[#allocation3 + $0x190] sm:$0xff]
        %v7474 = vld [vmem:[#allocation3 + $0x198] sm:$0xff]
        %v7475 = vld [vmem:[#allocation3 + $0x1a0] sm:$0xff]
        %v7476 = vld [vmem:[#allocation3 + $0x1a8] sm:$0xff]
        %v7477 = vld [vmem:[#allocation3 + $0x1b0] sm:$0xff]
        %v7478 = vld [vmem:[#allocation3 + $0x1b8] sm:$0xff]
        %v7479 = vld [vmem:[#allocation3 + $0x1c0] sm:$0xff]
        %v7480 = vld [vmem:[#allocation3 + $0x1c8] sm:$0xff]
        %v7481 = vld [vmem:[#allocation3 + $0x1d0] sm:$0xff]
        %v7482 = vld [vmem:[#allocation3 + $0x1d8] sm:$0xff]
        %v7483 = vld [vmem:[#allocation3 + $0x1e0] sm:$0xff]
        %v7484 = vld [vmem:[#allocation3 + $0x1e8] sm:$0xff]
        %v7485 = vld [vmem:[#allocation3 + $0x1f0] sm:$0xff]
        %v7486 = vld [vmem:[#allocation3 + $0x1f8] sm:$0xff]
        %v7487 = vld [vmem:[#allocation3 + $0x200] sm:$0xff]
        %v7488 = vld [vmem:[#allocation3 + $0x208] sm:$0xff]
        %v7489 = vld [vmem:[#allocation3 + $0x210] sm:$0xff]
        %v7490 = vld [vmem:[#allocation3 + $0x218] sm:$0xff]
        %v7491 = vld [vmem:[#allocation3 + $0x220] sm:$0xff]
        %v7492 = vld [vmem:[#allocation3 + $0x228] sm:$0xff]
        %v7493 = vld [vmem:[#allocation3 + $0x230] sm:$0xff]
        %v7494 = vld [vmem:[#allocation3 + $0x238] sm:$0xff]
        %v7495 = vld [vmem:[#allocation3 + $0x240] sm:$0xff]
        %v7496 = vld [vmem:[#allocation3 + $0x248] sm:$0xff]
        %v7497 = vld [vmem:[#allocation3 + $0x250] sm:$0xff]
        %v7498 = vld [vmem:[#allocation3 + $0x258] sm:$0xff]
        %v7499 = vld [vmem:[#allocation3 + $0x260] sm:$0xff]
        %v7500 = vld [vmem:[#allocation3 + $0x268] sm:$0xff]
        %v7501 = vld [vmem:[#allocation3 + $0x270] sm:$0xff]
        %v7502 = vld [vmem:[#allocation3 + $0x278] sm:$0xff]
        %v7503 = vld [vmem:[#allocation3 + $0x280] sm:$0xff]
        %v7504 = vld [vmem:[#allocation3 + $0x288] sm:$0xff]
        %v7505 = vld [vmem:[#allocation3 + $0x290] sm:$0xff]
        %v7506 = vld [vmem:[#allocation3 + $0x298] sm:$0xff]
        %v7507 = vld [vmem:[#allocation3 + $0x2a0] sm:$0xff]
        %v7508 = vld [vmem:[#allocation3 + $0x2a8] sm:$0xff]
        %v7509 = vld [vmem:[#allocation3 + $0x2b0] sm:$0xff]
        %v7510 = vld [vmem:[#allocation3 + $0x2b8] sm:$0xff]
        %v7511 = vld [vmem:[#allocation3 + $0x2c0] sm:$0xff]
        %v7512 = vld [vmem:[#allocation3 + $0x2c8] sm:$0xff]
        %v7513 = vld [vmem:[#allocation3 + $0x2d0] sm:$0xff]
        %v7514 = vld [vmem:[#allocation3 + $0x2d8] sm:$0xff]
        %v7515 = vld [vmem:[#allocation3 + $0x2e0] sm:$0xff]
        %v7516 = vld [vmem:[#allocation3 + $0x2e8] sm:$0xff]
        %v7517 = vld [vmem:[#allocation3 + $0x2f0] sm:$0xff]
        %v7518 = vld [vmem:[#allocation3 + $0x2f8] sm:$0xff]
        %v7519 = vld [vmem:[#allocation3 + $0x300] sm:$0xff]
        %v7520 = vld [vmem:[#allocation3 + $0x308] sm:$0xff]
        %v7521 = vld [vmem:[#allocation3 + $0x310] sm:$0xff]
        %v7522 = vld [vmem:[#allocation3 + $0x318] sm:$0xff]
        %v7523 = vld [vmem:[#allocation3 + $0x320] sm:$0xff]
        %v7524 = vld [vmem:[#allocation3 + $0x328] sm:$0xff]
        %v7525 = vld [vmem:[#allocation3 + $0x330] sm:$0xff]
        %v7526 = vld [vmem:[#allocation3 + $0x338] sm:$0xff]
        %v7527 = vld [vmem:[#allocation3 + $0x340] sm:$0xff]
        %v7528 = vld [vmem:[#allocation3 + $0x348] sm:$0xff]
        %v7529 = vld [vmem:[#allocation3 + $0x350] sm:$0xff]
        %v7530 = vld [vmem:[#allocation3 + $0x358] sm:$0xff]
        %v7531 = vld [vmem:[#allocation3 + $0x360] sm:$0xff]
        %v7532 = vld [vmem:[#allocation3 + $0x368] sm:$0xff]
        %v7533 = vld [vmem:[#allocation3 + $0x370] sm:$0xff]
        %v7534 = vld [vmem:[#allocation3 + $0x378] sm:$0xff]
        %v7535 = vld [vmem:[#allocation3 + $0x380] sm:$0xff]
        %v7536 = vld [vmem:[#allocation3 + $0x388] sm:$0xff]
        %v7537 = vld [vmem:[#allocation3 + $0x390] sm:$0xff]
        %v7538 = vld [vmem:[#allocation3 + $0x398] sm:$0xff]
        %v7539 = vld [vmem:[#allocation3 + $0x3a0] sm:$0xff]
        %v7540 = vld [vmem:[#allocation3 + $0x3a8] sm:$0xff]
        %v7541 = vld [vmem:[#allocation3 + $0x3b0] sm:$0xff]
        %v7542 = vld [vmem:[#allocation3 + $0x3b8] sm:$0xff]
        %v7543 = vld [vmem:[#allocation3 + $0x3c0] sm:$0xff]
        %v7544 = vld [vmem:[#allocation3 + $0x3c8] sm:$0xff]
        %v7545 = vld [vmem:[#allocation3 + $0x3d0] sm:$0xff]
        %v7546 = vld [vmem:[#allocation3 + $0x3d8] sm:$0xff]
        %v7547 = vld [vmem:[#allocation3 + $0x3e0] sm:$0xff]
        %v7548 = vld [vmem:[#allocation3 + $0x3e8] sm:$0xff]
        %v7549 = vld [vmem:[#allocation3 + $0x3f0] sm:$0xff]
        %v7550 = vld [vmem:[#allocation3 + $0x3f8] sm:$0xff]
        %v7551 = vld [vmem:[#allocation3 + $0x400] sm:$0xff]
        %v7552 = vld [vmem:[#allocation3 + $0x408] sm:$0xff]
        %v7553 = vld [vmem:[#allocation3 + $0x410] sm:$0xff]
        %v7554 = vld [vmem:[#allocation3 + $0x418] sm:$0xff]
        %v7555 = vld [vmem:[#allocation3 + $0x420] sm:$0xff]
        %v7556 = vld [vmem:[#allocation3 + $0x428] sm:$0xff]
        %v7557 = vld [vmem:[#allocation3 + $0x430] sm:$0xff]
        %v7558 = vld [vmem:[#allocation3 + $0x438] sm:$0xff]
        %v7559 = vld [vmem:[#allocation3 + $0x440] sm:$0xff]
        %v7560 = vld [vmem:[#allocation3 + $0x448] sm:$0xff]
        %v7561 = vld [vmem:[#allocation3 + $0x450] sm:$0xff]
        %v7562 = vld [vmem:[#allocation3 + $0x458] sm:$0xff]
        %v7563 = vld [vmem:[#allocation3 + $0x460] sm:$0xff]
        %v7564 = vld [vmem:[#allocation3 + $0x468] sm:$0xff]
        %v7565 = vld [vmem:[#allocation3 + $0x470] sm:$0xff]
        %v7566 = vld [vmem:[#allocation3 + $0x478] sm:$0xff]
        %v7567 = vld [vmem:[#allocation3 + $0x480] sm:$0xff]
        %v7568 = vld [vmem:[#allocation3 + $0x488] sm:$0xff]
        %v7569 = vld [vmem:[#allocation3 + $0x490] sm:$0xff]
        %v7570 = vld [vmem:[#allocation3 + $0x498] sm:$0xff]
        %v7571 = vld [vmem:[#allocation3 + $0x4a0] sm:$0xff]
        %v7572 = vld [vmem:[#allocation3 + $0x4a8] sm:$0xff]
        %v7573 = vld [vmem:[#allocation3 + $0x4b0] sm:$0xff]
        %v7574 = vld [vmem:[#allocation3 + $0x4b8] sm:$0xff]
        %v7575 = vld [vmem:[#allocation3 + $0x4c0] sm:$0xff]
        %v7576 = vld [vmem:[#allocation3 + $0x4c8] sm:$0xff]
        %v7577 = vld [vmem:[#allocation3 + $0x4d0] sm:$0xff]
        %v7578 = vld [vmem:[#allocation3 + $0x4d8] sm:$0xff]
        %v7579 = vld [vmem:[#allocation3 + $0x4e0] sm:$0xff]
        %v7580 = vld [vmem:[#allocation3 + $0x4e8] sm:$0xff]
        %v7581 = vld [vmem:[#allocation3 + $0x4f0] sm:$0xff]
        %v7582 = vld [vmem:[#allocation3 + $0x4f8] sm:$0xff]
        %v7583 = vld [vmem:[#allocation3 + $0x500] sm:$0xff]
        %v7584 = vld [vmem:[#allocation3 + $0x508] sm:$0xff]
        %v7585 = vld [vmem:[#allocation3 + $0x510] sm:$0xff]
        %v7586 = vld [vmem:[#allocation3 + $0x518] sm:$0xff]
        %v7587 = vld [vmem:[#allocation3 + $0x520] sm:$0xff]
        %v7588 = vld [vmem:[#allocation3 + $0x528] sm:$0xff]
        %v7589 = vld [vmem:[#allocation3 + $0x530] sm:$0xff]
        %v7590 = vld [vmem:[#allocation3 + $0x538] sm:$0xff]
        %v7591 = vld [vmem:[#allocation3 + $0x540] sm:$0xff]
        %v7592 = vld [vmem:[#allocation3 + $0x548] sm:$0xff]
        %v7593 = vld [vmem:[#allocation3 + $0x550] sm:$0xff]
        %v7594 = vld [vmem:[#allocation3 + $0x558] sm:$0xff]
        %v7595 = vld [vmem:[#allocation3 + $0x560] sm:$0xff]
        %v7596 = vld [vmem:[#allocation3 + $0x568] sm:$0xff]
        %v7597 = vld [vmem:[#allocation3 + $0x570] sm:$0xff]
        %v7598 = vld [vmem:[#allocation3 + $0x578] sm:$0xff]
        %v7599 = vld [vmem:[#allocation3 + $0x580] sm:$0xff]
        %v7600 = vld [vmem:[#allocation3 + $0x588] sm:$0xff]
        %v7601 = vld [vmem:[#allocation3 + $0x590] sm:$0xff]
        %v7602 = vld [vmem:[#allocation3 + $0x598] sm:$0xff]
        %v7603 = vld [vmem:[#allocation3 + $0x5a0] sm:$0xff]
        %v7604 = vld [vmem:[#allocation3 + $0x5a8] sm:$0xff]
        %v7605 = vld [vmem:[#allocation5] sm:$0x1]
        %7607 = vset.pattern.permute.xlu0 0
        %7608 = vperm.xlu0 %7607, %v7605
        %v7609 = vpop.permute.xlu0 %7608
        %v7611 = vlaneseq
        %v7612 = vshrl.u32 %v7611, 7
        %v7613 = vsub.s32 0, %v7612
        %v7614 = vrot.slane %v7609, %v7613
        %v7616 = vlaneseq
        %v7617 = vshrl.u32 %v7616, 7
        %v7618 = vsub.s32 0, %v7617
        %v7619 = vrot.slane %v7422, %v7618
        %v7620 = vlaneseq
        %v7621 = vshrl.u32 %v7620, 7
        %v7622 = vsub.s32 1, %v7621
        %v7623 = vrot.slane %v7422, %v7622
        %v7624 = vlaneseq
        %v7625 = vshrl.u32 %v7624, 7
        %v7626 = vsub.s32 2, %v7625
        %v7627 = vrot.slane %v7422, %v7626
        %v7628 = vlaneseq
        %v7629 = vshrl.u32 %v7628, 7
        %v7630 = vsub.s32 3, %v7629
        %v7631 = vrot.slane %v7422, %v7630
        %v7632 = vlaneseq
        %v7633 = vshrl.u32 %v7632, 7
        %v7634 = vsub.s32 4, %v7633
        %v7635 = vrot.slane %v7422, %v7634
        %v7636 = vlaneseq
        %v7637 = vshrl.u32 %v7636, 7
        %v7638 = vsub.s32 5, %v7637
        %v7639 = vrot.slane %v7422, %v7638
        %v7645 = vsel %vm3157, %v7639, 0
        %7647 = vmatprep.subr.mxu0 %v7424
        %7648 = vmatpush1.msra.mxu0 %v7423
        %7649 = vmatprep.subr.mxu0 %v7426
        %7650 = vmatpush1.msra.mxu0 %v7425
        %7651 = vmatprep.subr.mxu0 %v7428
        %7652 = vmatpush1.msra.mxu0 %v7427
        %7653 = vmatprep.subr.mxu0 %v7430
        %7654 = vmatpush1.msra.mxu0 %v7429
        %7655 = vmatprep.subr.mxu0 %v7432
        %7656 = vmatpush1.msra.mxu0 %v7431
        %7657 = vmatprep.subr.mxu0 %v7434
        %7658 = vmatpush1.msra.mxu0 %v7433
        %7659 = vmatprep.subr.mxu0 %v7436
        %7660 = vmatpush1.msra.mxu0 %v7435
        %7661 = vmatprep.subr.mxu0 %v7438
        %7662 = vmatpush1.msra.mxu0 %v7437
        %7663 = vmatprep.subr.mxu0 %v7440
        %7664 = vmatpush1.msra.mxu0 %v7439
        %7665 = vmatprep.subr.mxu0 %v7442
        %7666 = vmatpush1.msra.mxu0 %v7441
        %7667 = vmatprep.subr.mxu0 %v7444
        %7668 = vmatpush1.msra.mxu0 %v7443
        %7669 = vmatprep.subr.mxu0 %v7446
        %7670 = vmatpush1.msra.mxu0 %v7445
        %7671 = vmatprep.subr.mxu0 %v7448
        %7672 = vmatpush1.msra.mxu0 %v7447
        %7673 = vmatprep.subr.mxu0 %v7450
        %7674 = vmatpush1.msra.mxu0 %v7449
        %7675 = vmatprep.subr.mxu0 %v7452
        %7676 = vmatpush1.msra.mxu0 %v7451
        %7677 = vmatprep.subr.mxu0 %v7454
        %7678 = vmatpush1.msra.mxu0 %v7453
        %7679 = vmatprep.subr.mxu0 %v7456
        %7680 = vmatpush1.msra.mxu0 %v7455
        %7681 = vmatprep.subr.mxu0 %v7458
        %7682 = vmatpush1.msra.mxu0 %v7457
        %7683 = vmatprep.subr.mxu0 %v7460
        %7684 = vmatpush1.msra.mxu0 %v7459
        %7685 = vmatprep.subr.mxu0 %v7462
        %7686 = vmatpush1.msra.mxu0 %v7461
        %7687 = vmatprep.subr.mxu0 %v7464
        %7688 = vmatpush1.msra.mxu0 %v7463
        %7689 = vmatprep.subr.mxu0 %v7466
        %7690 = vmatpush1.msra.mxu0 %v7465
        %7691 = vmatprep.subr.mxu0 %v7468
        %7692 = vmatpush1.msra.mxu0 %v7467
        %7693 = vmatprep.subr.mxu0 %v7470
        %7694 = vmatpush1.msra.mxu0 %v7469
        %7695 = vmatprep.subr.mxu0 %v7472
        %7696 = vmatpush1.msra.mxu0 %v7471
        %7697 = vmatprep.subr.mxu0 %v7474
        %7698 = vmatpush1.msra.mxu0 %v7473
        %7699 = vmatprep.subr.mxu0 %v7476
        %7700 = vmatpush1.msra.mxu0 %v7475
        %7701 = vmatprep.subr.mxu0 %v7478
        %7702 = vmatpush1.msra.mxu0 %v7477
        %7703 = vmatprep.subr.mxu0 %v7480
        %7704 = vmatpush1.msra.mxu0 %v7479
        %7705 = vmatprep.subr.mxu0 %v7482
        %7706 = vmatpush1.msra.mxu0 %v7481
        %7707 = vmatprep.subr.mxu0 %v7484
        %7708 = vmatpush1.msra.mxu0 %v7483
        %7709 = vmatprep.subr.mxu0 %v7486
        %7710 = vmatpush1.msra.mxu0 %v7485
        %7711 = vmatprep.mubr.f32.mxu0 %v7623
        %7712 = vmatmul.mubr.f32.gmra.mrb[0].mxu0 %v7619
        %v7713 = vpop.f32.mrb[0].mxu0
        %v7714 = vadd.f32 %v7614, %v7713
        %v7715 = vpop.f32.mrb[0].mxu0
        %v7716 = vadd.f32 %v7614, %v7715
        %7717 = vdwg.mxu0
        %7718 = vmatprep.subr.mxu0 %v7488
        %7719 = vmatpush1.msra.mxu0 %v7487
        %7720 = vmatprep.subr.mxu0 %v7490
        %7721 = vmatpush1.msra.mxu0 %v7489
        %7722 = vmatprep.subr.mxu0 %v7492
        %7723 = vmatpush1.msra.mxu0 %v7491
        %7724 = vmatprep.subr.mxu0 %v7494
        %7725 = vmatpush1.msra.mxu0 %v7493
        %7726 = vmatprep.subr.mxu0 %v7496
        %7727 = vmatpush1.msra.mxu0 %v7495
        %7728 = vmatprep.subr.mxu0 %v7498
        %7729 = vmatpush1.msra.mxu0 %v7497
        %7730 = vmatprep.subr.mxu0 %v7500
        %7731 = vmatpush1.msra.mxu0 %v7499
        %7732 = vmatprep.subr.mxu0 %v7502
        %7733 = vmatpush1.msra.mxu0 %v7501
        %7734 = vmatprep.subr.mxu0 %v7504
        %7735 = vmatpush1.msra.mxu0 %v7503
        %7736 = vmatprep.subr.mxu0 %v7506
        %7737 = vmatpush1.msra.mxu0 %v7505
        %7738 = vmatprep.subr.mxu0 %v7508
        %7739 = vmatpush1.msra.mxu0 %v7507
        %7740 = vmatprep.subr.mxu0 %v7510
        %7741 = vmatpush1.msra.mxu0 %v7509
        %7742 = vmatprep.subr.mxu0 %v7512
        %7743 = vmatpush1.msra.mxu0 %v7511
        %7744 = vmatprep.subr.mxu0 %v7514
        %7745 = vmatpush1.msra.mxu0 %v7513
        %7746 = vmatprep.subr.mxu0 %v7516
        %7747 = vmatpush1.msra.mxu0 %v7515
        %7748 = vmatprep.subr.mxu0 %v7518
        %7749 = vmatpush1.msra.mxu0 %v7517
        %7750 = vmatprep.subr.mxu0 %v7520
        %7751 = vmatpush1.msra.mxu0 %v7519
        %7752 = vmatprep.subr.mxu0 %v7522
        %7753 = vmatpush1.msra.mxu0 %v7521
        %7754 = vmatprep.subr.mxu0 %v7524
        %7755 = vmatpush1.msra.mxu0 %v7523
        %7756 = vmatprep.subr.mxu0 %v7526
        %7757 = vmatpush1.msra.mxu0 %v7525
        %7758 = vmatprep.subr.mxu0 %v7528
        %7759 = vmatpush1.msra.mxu0 %v7527
        %7760 = vmatprep.subr.mxu0 %v7530
        %7761 = vmatpush1.msra.mxu0 %v7529
        %7762 = vmatprep.subr.mxu0 %v7532
        %7763 = vmatpush1.msra.mxu0 %v7531
        %7764 = vmatprep.subr.mxu0 %v7534
        %7765 = vmatpush1.msra.mxu0 %v7533
        %7766 = vmatprep.subr.mxu0 %v7536
        %7767 = vmatpush1.msra.mxu0 %v7535
        %7768 = vmatprep.subr.mxu0 %v7538
        %7769 = vmatpush1.msra.mxu0 %v7537
        %7770 = vmatprep.subr.mxu0 %v7540
        %7771 = vmatpush1.msra.mxu0 %v7539
        %7772 = vmatprep.subr.mxu0 %v7542
        %7773 = vmatpush1.msra.mxu0 %v7541
        %7774 = vmatprep.subr.mxu0 %v7544
        %7775 = vmatpush1.msra.mxu0 %v7543
        %7776 = vmatprep.subr.mxu0 %v7546
        %7777 = vmatpush1.msra.mxu0 %v7545
        %7778 = vmatprep.subr.mxu0 %v7548
        %7779 = vmatpush1.msra.mxu0 %v7547
        %7780 = vmatprep.subr.mxu0 %v7550
        %7781 = vmatpush1.msra.mxu0 %v7549
        %7782 = vmatprep.mubr.f32.mxu0 %v7631
        %7783 = vmatmul.mubr.f32.gmra.mrb[0].mxu0 %v7627
        %v7784 = vpop.f32.mrb[0].mxu0
        %v7785 = vadd.f32 %v7714, %v7784
        %v7786 = vpop.f32.mrb[0].mxu0
        %v7787 = vadd.f32 %v7716, %v7786
        %7788 = vdwg.mxu0
        %7789 = vmatprep.subr.mxu0 %v7552
        %7790 = vmatpush1.msra.mxu0 %v7551
        %7791 = vmatprep.subr.mxu0 %v7554
        %7792 = vmatpush1.msra.mxu0 %v7553
        %7793 = vmatprep.subr.mxu0 %v7556
        %7794 = vmatpush1.msra.mxu0 %v7555
        %7795 = vmatprep.subr.mxu0 %v7558
        %7796 = vmatpush1.msra.mxu0 %v7557
        %7797 = vmatprep.subr.mxu0 %v7560
        %7798 = vmatpush1.msra.mxu0 %v7559
        %7799 = vmatprep.subr.mxu0 %v7562
        %7800 = vmatpush1.msra.mxu0 %v7561
        %7801 = vmatprep.subr.mxu0 %v7564
        %7802 = vmatpush1.msra.mxu0 %v7563
        %7803 = vmatprep.subr.mxu0 %v7566
        %7804 = vmatpush1.msra.mxu0 %v7565
        %7805 = vmatprep.subr.mxu0 %v7568
        %7806 = vmatpush1.msra.mxu0 %v7567
        %7807 = vmatprep.subr.mxu0 %v7570
        %7808 = vmatpush1.msra.mxu0 %v7569
        %7809 = vmatprep.subr.mxu0 %v7572
        %7810 = vmatpush1.msra.mxu0 %v7571
        %7811 = vmatprep.subr.mxu0 %v7574
        %7812 = vmatpush1.msra.mxu0 %v7573
        %7813 = vmatprep.subr.mxu0 %v7576
        %7814 = vmatpush1.msra.mxu0 %v7575
        %7815 = vmatprep.subr.mxu0 %v7578
        %7816 = vmatpush1.msra.mxu0 %v7577
        %7817 = vmatprep.subr.mxu0 %v7580
        %7818 = vmatpush1.msra.mxu0 %v7579
        %7819 = vmatprep.subr.mxu0 %v7582
        %7820 = vmatpush1.msra.mxu0 %v7581
        %7821 = vmatprep.subr.mxu0 %v7584
        %7822 = vmatpush1.msra.mxu0 %v7583
        %7823 = vmatprep.subr.mxu0 %v7586
        %7824 = vmatpush1.msra.mxu0 %v7585
        %7825 = vmatprep.subr.mxu0 %v7588
        %7826 = vmatpush1.msra.mxu0 %v7587
        %7827 = vmatprep.subr.mxu0 %v7590
        %7828 = vmatpush1.msra.mxu0 %v7589
        %7829 = vmatprep.subr.mxu0 %v7592
        %7830 = vmatpush1.msra.mxu0 %v7591
        %7831 = vmatprep.subr.mxu0 %v7594
        %7832 = vmatpush1.msra.mxu0 %v7593
        %7833 = vmatprep.subr.mxu0 %v7596
        %7834 = vmatpush1.msra.mxu0 %v7595
        %7835 = vmatprep.subr.mxu0 %v7598
        %7836 = vmatpush1.msra.mxu0 %v7597
        %7837 = vmatprep.subr.mxu0 %v7600
        %7838 = vmatpush1.msra.mxu0 %v7599
        %7839 = vmatprep.subr.mxu0 %v7602
        %7840 = vmatpush1.msra.mxu0 %v7601
        %7841 = vmatprep.subr.mxu0 %v7604
        %7842 = vmatpush1.msra.mxu0 %v7603
        %7843 = vmatprep.subr.mxu0 0.0
        %7844 = vmatpush1.msra.mxu0 0.0
        %7845 = vmatprep.subr.mxu0 0.0
        %7846 = vmatpush1.msra.mxu0 0.0
        %7847 = vmatprep.subr.mxu0 0.0
        %7848 = vmatpush1.msra.mxu0 0.0
        %7849 = vmatprep.subr.mxu0 0.0
        %7850 = vmatpush1.msra.mxu0 0.0
        %7851 = vmatprep.subr.mxu0 0.0
        %7852 = vmatpush1.msra.mxu0 0.0
        %7853 = vmatprep.mubr.f32.mxu0 %v7645
        %7854 = vmatmul.mubr.f32.gmra.mrb[0].mxu0 %v7635
        %v7855 = vpop.f32.mrb[0].mxu0
        %v7856 = vadd.f32 %v7785, %v7855
        %v7857 = vpop.f32.mrb[0].mxu0
        %v7858 = vadd.f32 %v7787, %v7857
        %7859 = vdwg.mxu0
        %vm7860 = vcmp.gt.f32.partialorder %v7856, 20.0
        %vm7861 = vcmp.gt.f32.partialorder %v7858, 20.0
        %v7862 = vmin.f32 %v7856, 20.0
        %v7863 = vmin.f32 %v7858, 20.0
        %v7864 = vmul.f32 %v7862, 1.442695
        %v7865 = vpow.pop %v7864
        %v7866 = vmul.f32 %v7863, 1.442695
        %v7867 = vpow.pop %v7866
        %v7868 = vadd.f32 %v7865, 1.0
        %v7869 = vlog2.pop %v7868
        %v7870 = vmul.f32 %v7869, 0.6931472
        %v7871 = vmul.f32 -0.5, %v7865
        %v7872 = vadd.f32 %v7871, 1.0
        %v7873 = vmul.f32 %v7872, %v7865
        %v7874 = vand.u32 2147483647, %v7865
        %vm7875 = vcmp.lt.f32.partialorder %v7874, 0.0004427343
        %v7876 = vsel %vm7875, %v7873, %v7870
        %v7877 = vadd.f32 %v7867, 1.0
        %v7878 = vlog2.pop %v7877
        %v7879 = vmul.f32 %v7878, 0.6931472
        %v7880 = vmul.f32 -0.5, %v7867
        %v7881 = vadd.f32 %v7880, 1.0
        %v7882 = vmul.f32 %v7881, %v7867
        %v7883 = vand.u32 2147483647, %v7867
        %vm7884 = vcmp.lt.f32.partialorder %v7883, 0.0004427343
        %v7885 = vsel %vm7884, %v7882, %v7879
        %v7886 = vsel %vm7860, %v7856, %v7876
        %v7887 = vsel %vm7861, %v7858, %v7885
        %v7890 = vcombine.low %v7886, %v7887
        %v7892 = vunpack.c.l.s4 1966171168
        %v7893 = vunpack.c.0.s8 %v7892
        %v7894 = vlaneseq
        %v7895 = vshrl.u32 %v7894, 7
        %v7896 = vsub.s32 %v7893, %v7895
        %v7897 = vrot.slane %v7890, %v7896
        %v7899 = vunpack.c.l.s4 1966171168
        %v7900 = vunpack.c.0.s8 %v7899
        %v7901 = vlaneseq
        %v7902 = vshrl.u32 %v7901, 7
        %v7903 = vsub.s32 %v7900, %v7902
        %v7904 = vrot.slane %v7897, %v7903
        %7906 = vst.msk [vmem:[%s734] sm:$0x3] %vm759, %v7904
        %p7907 = scmp.lt.s32.totalorder %s41, 1
        %s7908 = scalar_select %p7907, %s41, 1
        %s7909 = smul.addr %s7908, 2
        %s7910 = scalar_lea.vmem %s21, %s7909
        // Predicated region
        $region125: #{forward.1} parent=103 // pred_check
          %p7911 = pneg %p505
        $region126: #{forward.1} parent=103 // pred_check_branch
          %7913 = sbr.rel (%p7911) target = $region128
        $region127: #{forward.1} parent=103 // pred_region
          _
        $region128: #{forward.1} parent=103 // pred_fallthru
          _
      $region104: #{forward.1} parent=5 // pred_fallthru
        _
      %p7914 = scmp.le.s32.totalorder 2, %s36
      // Predicated region
      $region129: #{forward.1} parent=5 // pred_check
        %p7915 = pneg %p7914
      $region130: #{forward.1} parent=5 // pred_check_branch
        %7917 = sbr.rel (%p7915) target = $region132
      $region131: #{forward.1} parent=5 // pred_region
        %s7918 = ssub.s32 %s36, 2
        // Predicated region
        $region133: #{forward.1} parent=131 // pred_check
          %p7919 = pneg %p511
        $region134: #{forward.1} parent=131 // pred_check_branch
          %7921 = sbr.rel (%p7919) target = $region136
        $region135: #{forward.1} parent=131 // pred_region
          %p7922 = scmp.lt.s32.totalorder %s42, 1
          %s7923 = scalar_select %p7922, %s42, 1
          %s7924 = smul.addr %s7923, 2
          %s7925 = scalar_lea.vmem %s21, %s7924
        $region136: #{forward.1} parent=131 // pred_fallthru
          _
      $region132: #{forward.1} parent=5 // pred_fallthru
        _
    $region6: #{forward.1} parent=1 // loop_footer
      %s40 = sadd.s32 1, %s36
    $region7: #{forward.1} parent=1 // loop_footer_branch
      %35 = sbr.rel target = $region3
    $region8: #{forward.1} parent=1 // loop_exit
      _
    %7926 = vsyncpa [#allocation7], 1
    %s7927 = scalar_lea.sflag [#allocation7], 1
    %7928 = vsyncpa %s7927, 1
    %7929 = vsyncpa [#allocation9], 1
    %7930 = vsyncpa [#allocation12], 1

</llo_original>
